<compile_context>
chip_gen: v6e
topology: v6e:2x2x1
jax: 0.10.0
libtpu: 0.0.40
codegen_flags: <defaults>
</compile_context>

<pallas_src>
import functools
import numpy as np
import jax
import jax.numpy as jnp
from jax.experimental import pallas as pl
from jax.experimental.pallas import tpu as pltpu

_EPS = 1e-5
_VMEM_LIMIT = 48 * 1024 * 1024  # <= v7x 64 MiB physical VMEM


# ------------------------------ tiling helpers -------------------------------

def _pick_tco(cout):
    # lane-dense output tiles; 128 wide works on v5e (4x128 MXU) and v6e/v7x.
    if cout % 128 == 0:
        return 128
    return cout


def _pick_th(hout, wout):
    # largest divisor of Hout keeping the accumulator rows <= 128
    # (acc <= 128 x 128 f32 = 64 KiB = 16 vregs).
    best = 1
    for d in range(1, hout + 1):
        if hout % d == 0 and d * wout <= 128:
            best = d
    return best


# -------------------------------- kernels ------------------------------------

def _conv3x3_kernel(*args, K, tH, Wout, n_src, act):
    """Fused (multi-source-concat) 3x3 same-conv + folded-BN + activation.

    args = (x_ref_0..x_ref_{n-1}, w_ref_0..w_ref_{n-1}, b_ref, o_ref)
      x_ref_s : (1, Hp, Wp, Cin_s)  bf16, full padded image (resident block)
      w_ref_s : (9*Cin_s, tCo)      bf16, im2col-ordered (ky, kx, cin)
      b_ref   : (1, tCo)            f32, folded BN bias
      o_ref   : (1, tH, Wout, tCo)
    """
    x_refs = args[:n_src]
    w_refs = args[n_src:2 * n_src]
    b_ref = args[2 * n_src]
    o_ref = args[2 * n_src + 1]
    tco = o_ref.shape[-1]

    hstart = pl.multiple_of(pl.program_id(1) * tH, tH)
    acc = jnp.zeros((tH * Wout, tco), jnp.float32)
    for s in range(n_src):
        cin = x_refs[s].shape[-1]
        # row strip with the 3x3 halo, loaded once from the resident block
        strip = x_refs[s][0, pl.ds(hstart, tH + K - 1), :, :]   # (tH+2, Wp, cin)
        taps = []
        for ky in range(K):
            for kx in range(K):
                taps.append(strip[ky:ky + tH, kx:kx + Wout, :]
                            .reshape(tH * Wout, cin))
        cols = jnp.concatenate(taps, axis=-1)                   # (tH*Wout, 9*cin)
        acc = acc + jnp.dot(cols, w_refs[s][...],
                            preferred_element_type=jnp.float32)
    acc = acc + b_ref[...]                                      # f32 epilogue
    if act == 'relu':
        acc = jnp.maximum(acc, 0.0)
    o_ref[0] = acc.reshape(tH, Wout, tco).astype(o_ref.dtype)


def _deconv_phase_kernel(x_ref, w_ref, b_ref, o_ref, *, H, W):
    """Polyphase ConvTranspose2d(k=4, s=2, p=1): 4 x (2x2 valid conv).

      x_ref : (1, H+2, W+2, Cin)   bf16 (input padded by 1)
      w_ref : (2, 2, 4*Cin, tCo)   bf16, phase sub-kernels, (dy,dx,cin) order
      b_ref : (1, tCo)             f32
      o_ref : (1, 4, H, W, tCo)    phase-major output, phase = 2*py + px
    """
    xp = x_ref[0]
    cin = x_ref.shape[-1]
    tco = o_ref.shape[-1]
    for py in range(2):
        for px in range(2):
            taps = []
            for dy in range(2):
                for dx in range(2):
                    taps.append(
                        xp[py + dy:py + dy + H, px + dx:px + dx + W, :]
                        .reshape(H * W, cin))
            cols = jnp.concatenate(taps, axis=-1)               # (H*W, 4*Cin)
            acc = jnp.dot(cols, w_ref[py, px],
                          preferred_element_type=jnp.float32)
            acc = acc + b_ref[...]
            o_ref[0, py * 2 + px] = acc.reshape(H, W, tco).astype(o_ref.dtype)


# ------------------------------- wrappers -------------------------------------

def conv3x3_bn_act(xs, ws, bias, *, act='relu', out_dtype=jnp.bfloat16):
    """'same' 3x3 conv over the channel-concat of xs (never materialized),
    with folded BN bias and activation. xs: list of NHWC arrays."""
    K = 3
    n_src = len(xs)
    B, Hout, Wout, _ = xs[0].shape
    Cout = ws[0].shape[-1]
    cins = [int(x.shape[-1]) for x in xs]

    xps = [jnp.pad(x.astype(jnp.bfloat16), ((0, 0), (1, 1), (1, 1), (0, 0)))
           for x in xs]
    Hp, Wp = Hout + 2, Wout + 2

    tCo = _pick_tco(Cout)
    tH = _pick_th(Hout, Wout)
    nH, nC = Hout // tH, Cout // tCo

    in_specs = []
    for c in cins:  # full padded image, resident across (h, co) steps
        in_specs.append(pl.BlockSpec((1, Hp, Wp, c),
                                     lambda b, h, co: (b, 0, 0, 0)))
    for c in cins:  # per-source im2col weight, tiled over Cout
        in_specs.append(pl.BlockSpec((K * K * c, tCo),
                                     lambda b, h, co: (0, co)))
    in_specs.append(pl.BlockSpec((1, tCo), lambda b, h, co: (0, co)))

    kern = functools.partial(_conv3x3_kernel, K=K, tH=tH, Wout=Wout,
                             n_src=n_src, act=act)
    return pl.pallas_call(
        kern,
        out_shape=jax.ShapeDtypeStruct((B, Hout, Wout, Cout), out_dtype),
        grid=(B, nH, nC),
        in_specs=in_specs,
        out_specs=pl.BlockSpec((1, tH, Wout, tCo),
                               lambda b, h, co: (b, h, 0, co)),
        compiler_params=pltpu.CompilerParams(
            dimension_semantics=("parallel", "parallel", "parallel"),
            vmem_limit_bytes=_VMEM_LIMIT),
    )(*xps, *[w.astype(jnp.bfloat16) for w in ws],
      bias.reshape(1, Cout).astype(jnp.float32))


def conv_transpose_4x4_s2(x, w_phase, bias, *, out_dtype=jnp.bfloat16):
    """nn.ConvTranspose2d(k=4, s=2, p=1) via polyphase decomposition."""
    B, H, W, Cin = x.shape
    Cout = w_phase.shape[-1]
    xp = jnp.pad(x.astype(jnp.bfloat16), ((0, 0), (1, 1), (1, 1), (0, 0)))

    tCo = _pick_tco(Cout)
    nC = Cout // tCo

    kern = functools.partial(_deconv_phase_kernel, H=H, W=W)
    ph = pl.pallas_call(
        kern,
        out_shape=jax.ShapeDtypeStruct((B, 4, H, W, Cout), out_dtype),
        grid=(B, nC),
        in_specs=[
            pl.BlockSpec((1, H + 2, W + 2, Cin), lambda b, co: (b, 0, 0, 0)),
            pl.BlockSpec((2, 2, 4 * Cin, tCo), lambda b, co: (0, 0, 0, co)),
            pl.BlockSpec((1, tCo), lambda b, co: (0, co)),
        ],
        out_specs=pl.BlockSpec((1, 4, H, W, tCo),
                               lambda b, co: (b, 0, 0, 0, co)),
        compiler_params=pltpu.CompilerParams(
            dimension_semantics=("parallel", "parallel"),
            vmem_limit_bytes=_VMEM_LIMIT),
    )(xp, w_phase.astype(jnp.bfloat16),
      bias.reshape(1, Cout).astype(jnp.float32))

    # phase interleave: out[b, 2m+py, 2n+px, c] = ph[b, 2*py+px, m, n, c]
    return (ph.reshape(B, 2, 2, H, W, Cout)
              .transpose(0, 3, 1, 4, 2, 5)
              .reshape(B, 2 * H, 2 * W, Cout))


# --------------------------- parameter generation -----------------------------

def _fold_bn(w, b, key, cout):
    """Fold eval-mode BatchNorm (running stats) into the preceding conv."""
    kg, kb = jax.random.split(key)
    gamma = 1.0 + 0.1 * jax.random.normal(kg, (cout,), jnp.float32)
    beta = 0.01 * jax.random.normal(kb, (cout,), jnp.float32)
    mean = jnp.zeros((cout,), jnp.float32)
    var = jnp.ones((cout,), jnp.float32)
    scale = gamma / jnp.sqrt(var + _EPS)
    return w * scale, (b - mean) * scale + beta


def init_unetup3_params(key, in_size, out_size):
    ks = jax.random.split(key, 8)

    # up: ConvTranspose2d(in_size, out_size, 4, 2, 1)
    # stored directly as the spatially-flipped equivalent HWIO conv weight
    wf = (jax.random.normal(ks[0], (4, 4, in_size, out_size), jnp.float32)
          / np.sqrt(16 * in_size))
    up_b = 0.01 * jax.random.normal(ks[1], (out_size,), jnp.float32)
    # phase (py,px) sub-kernel: Wf[py::2, px::2] flattened in (dy, dx, cin) order
    w_phase = jnp.stack(
        [jnp.stack([wf[py::2, px::2].reshape(4 * in_size, out_size)
                    for px in range(2)], axis=0) for py in range(2)],
        axis=0)                                           # (2, 2, 4*Cin, Cout)

    # conv1: Conv3x3(out*3, out) + BN (folded)
    w1 = (jax.random.normal(ks[2], (3, 3, 3 * out_size, out_size), jnp.float32)
          / np.sqrt(9 * 3 * out_size))
    b1 = 0.01 * jax.random.normal(ks[3], (out_size,), jnp.float32)
    w1, b1 = _fold_bn(w1, b1, ks[4], out_size)
    # split along Cin into the three concat sources (order: up(i1), i2, i3)
    w1_src = [w1[:, :, s * out_size:(s + 1) * out_size, :]
              .reshape(9 * out_size, out_size) for s in range(3)]

    # conv2: Conv3x3(out, out) + BN (folded)
    w2 = (jax.random.normal(ks[5], (3, 3, out_size, out_size), jnp.float32)
          / np.sqrt(9 * out_size))
    b2 = 0.01 * jax.random.normal(ks[6], (out_size,), jnp.float32)
    w2, b2 = _fold_bn(w2, b2, ks[7], out_size)
    w2 = w2.reshape(9 * out_size, out_size)

    return dict(
        up_w=w_phase.astype(jnp.bfloat16), up_b=up_b,
        w1=[w.astype(jnp.bfloat16) for w in w1_src], b1=b1,
        w2=w2.astype(jnp.bfloat16), b2=b2,
    )


# --------------------------------- forward ------------------------------------

def unetup3_forward(params, inputs1, inputs2, inputs3):
    """unetUp3.forward: NCHW in, NCHW out."""
    i1 = jnp.transpose(inputs1, (0, 2, 3, 1))
    i2 = jnp.transpose(inputs2, (0, 2, 3, 1))
    i3 = jnp.transpose(inputs3, (0, 2, 3, 1))

    o1 = conv_transpose_4x4_s2(i1, params['up_w'], params['up_b'])
    h = conv3x3_bn_act([o1, i2, i3], params['w1'], params['b1'],
                       act='relu', out_dtype=jnp.bfloat16)
    y = conv3x3_bn_act([h], [params['w2']], params['b2'],
                       act='relu', out_dtype=jnp.float32)
    return jnp.transpose(y, (0, 3, 1, 2))


# ----------------------------------- main --------------------------------------

if __name__ == "__main__":
    key = jax.random.PRNGKey(0)
    kp, k1, k2, k3 = jax.random.split(key, 4)

    in_size, out_size = 128, 64
    B, H, W = 2, 8, 8   # i1 at HxW; i2/i3 and output at 2Hx2W (unet skip level)

    params = init_unetup3_params(kp, in_size, out_size)
    inputs1 = jax.random.normal(k1, (B, in_size, H, W), jnp.float32)
    inputs2 = jax.random.normal(k2, (B, out_size, 2 * H, 2 * W), jnp.float32)
    inputs3 = jax.random.normal(k3, (B, out_size, 2 * H, 2 * W), jnp.float32)

    fwd = jax.jit(unetup3_forward)
    out = fwd(params, inputs1, inputs2, inputs3)
    jax.block_until_ready(out)

    assert out.shape == (B, out_size, 2 * H, 2 * W), out.shape
    assert bool(jnp.all(jnp.isfinite(out)))
    print("KERNEL_OK")
</pallas_src>

<mosaic_0001>
module attributes {stable_mosaic.version = 11 : i64} {
  func.func @_deconv_phase_kernel(%arg0: i32, %arg1: i32, %arg2: memref<1x10x10x128xbf16, #tpu.memory_space<vmem>>, %arg3: memref<2x2x512x64xbf16, #tpu.memory_space<vmem>>, %arg4: memref<1x64xf32, #tpu.memory_space<vmem>>, %arg5: memref<1x4x8x8x64xbf16, #tpu.memory_space<vmem>>) attributes {dimension_semantics = [#tpu.dimension_semantics<parallel>, #tpu.dimension_semantics<parallel>], iteration_bounds = array<i64: 2, 1>, scalar_prefetch = 0 : i64, scratch_operands = 0 : i64, tpu.core_type = #tpu.core_type<tc>, window_params = [{transform_indices = @transform_0, window_bounds = array<i64: 1, 10, 10, 128>}, {transform_indices = @transform_1, window_bounds = array<i64: 2, 2, 512, 64>}, {transform_indices = @transform_2, window_bounds = array<i64: 1, 64>}, {transform_indices = @transform_3, window_bounds = array<i64: 1, 4, 8, 8, 64>}]} {
    %c0 = arith.constant 0 : index
    %c0_0 = arith.constant 0 : index
    %c0_1 = arith.constant 0 : index
    %c0_2 = arith.constant 0 : index
    %0 = vector.load %arg2[%c0, %c0_0, %c0_1, %c0_2] : memref<1x10x10x128xbf16, #tpu.memory_space<vmem>>, vector<1x10x10x128xbf16>
    %1 = vector.shape_cast %0 : vector<1x10x10x128xbf16> to vector<10x10x128xbf16>
    %2 = vector.extract_strided_slice %1 {offsets = [0, 0, 0], sizes = [8, 8, 128], strides = [1, 1, 1]} : vector<10x10x128xbf16> to vector<8x8x128xbf16>
    %3 = vector.shape_cast %2 : vector<8x8x128xbf16> to vector<64x128xbf16>
    %4 = vector.extract_strided_slice %1 {offsets = [0, 1, 0], sizes = [8, 8, 128], strides = [1, 1, 1]} : vector<10x10x128xbf16> to vector<8x8x128xbf16>
    %5 = vector.shape_cast %4 : vector<8x8x128xbf16> to vector<64x128xbf16>
    %6 = vector.extract_strided_slice %1 {offsets = [1, 0, 0], sizes = [8, 8, 128], strides = [1, 1, 1]} : vector<10x10x128xbf16> to vector<8x8x128xbf16>
    %7 = vector.shape_cast %6 : vector<8x8x128xbf16> to vector<64x128xbf16>
    %8 = vector.extract_strided_slice %1 {offsets = [1, 1, 0], sizes = [8, 8, 128], strides = [1, 1, 1]} : vector<10x10x128xbf16> to vector<8x8x128xbf16>
    %9 = vector.shape_cast %8 : vector<8x8x128xbf16> to vector<64x128xbf16>
    %10 = tpu.concatenate %3, %5, %7, %9 in 1 : vector<64x128xbf16>, vector<64x128xbf16>, vector<64x128xbf16>, vector<64x128xbf16> -> vector<64x512xbf16>
    %c0_3 = arith.constant 0 : index
    %c0_4 = arith.constant 0 : index
    %c0_5 = arith.constant 0 : index
    %c0_6 = arith.constant 0 : index
    %11 = vector.load %arg3[%c0_3, %c0_4, %c0_5, %c0_6] : memref<2x2x512x64xbf16, #tpu.memory_space<vmem>>, vector<1x1x512x64xbf16>
    %12 = vector.shape_cast %11 : vector<1x1x512x64xbf16> to vector<512x64xbf16>
    %cst = arith.constant dense<0.000000e+00> : vector<64x64xf32>
    %13 = tpu.matmul %10, %12, %cst {dimension_numbers = #tpu.dot_dimension_numbers<[1], [0], [0], [1], [0, 0, 1, 1], [], []>} : vector<64x512xbf16>, vector<512x64xbf16>, vector<64x64xf32> -> vector<64x64xf32>
    %c0_7 = arith.constant 0 : index
    %c0_8 = arith.constant 0 : index
    %14 = vector.load %arg4[%c0_7, %c0_8] : memref<1x64xf32, #tpu.memory_space<vmem>>, vector<1x64xf32>
    %15 = vector.broadcast %14 : vector<1x64xf32> to vector<64x64xf32>
    %16 = arith.addf %13, %15 : vector<64x64xf32>
    %17 = vector.shape_cast %16 : vector<64x64xf32> to vector<8x8x64xf32>
    %18 = arith.truncf %17 : vector<8x8x64xf32> to vector<8x8x64xbf16>
    %c0_9 = arith.constant 0 : index
    %c0_10 = arith.constant 0 : index
    %c0_11 = arith.constant 0 : index
    %c0_12 = arith.constant 0 : index
    %c0_13 = arith.constant 0 : index
    %19 = vector.load %arg5[%c0_9, %c0_10, %c0_11, %c0_12, %c0_13] : memref<1x4x8x8x64xbf16, #tpu.memory_space<vmem>>, vector<1x1x8x8x64xbf16>
    %20 = vector.shape_cast %19 : vector<1x1x8x8x64xbf16> to vector<8x8x64xbf16>
    %21 = vector.shape_cast %18 : vector<8x8x64xbf16> to vector<1x1x8x8x64xbf16>
    tpu.vector_store %arg5[%c0_9, %c0_10, %c0_11, %c0_12, %c0_13], %21 {strides = array<i32>} : memref<1x4x8x8x64xbf16, #tpu.memory_space<vmem>>, vector<1x1x8x8x64xbf16>,
    %22 = vector.extract_strided_slice %1 {offsets = [0, 1, 0], sizes = [8, 8, 128], strides = [1, 1, 1]} : vector<10x10x128xbf16> to vector<8x8x128xbf16>
    %23 = vector.shape_cast %22 : vector<8x8x128xbf16> to vector<64x128xbf16>
    %24 = vector.extract_strided_slice %1 {offsets = [0, 2, 0], sizes = [8, 8, 128], strides = [1, 1, 1]} : vector<10x10x128xbf16> to vector<8x8x128xbf16>
    %25 = vector.shape_cast %24 : vector<8x8x128xbf16> to vector<64x128xbf16>
    %26 = vector.extract_strided_slice %1 {offsets = [1, 1, 0], sizes = [8, 8, 128], strides = [1, 1, 1]} : vector<10x10x128xbf16> to vector<8x8x128xbf16>
    %27 = vector.shape_cast %26 : vector<8x8x128xbf16> to vector<64x128xbf16>
    %28 = vector.extract_strided_slice %1 {offsets = [1, 2, 0], sizes = [8, 8, 128], strides = [1, 1, 1]} : vector<10x10x128xbf16> to vector<8x8x128xbf16>
    %29 = vector.shape_cast %28 : vector<8x8x128xbf16> to vector<64x128xbf16>
    %30 = tpu.concatenate %23, %25, %27, %29 in 1 : vector<64x128xbf16>, vector<64x128xbf16>, vector<64x128xbf16>, vector<64x128xbf16> -> vector<64x512xbf16>
    %c0_14 = arith.constant 0 : index
    %c1 = arith.constant 1 : index
    %c0_15 = arith.constant 0 : index
    %c0_16 = arith.constant 0 : index
    %31 = vector.load %arg3[%c0_14, %c1, %c0_15, %c0_16] : memref<2x2x512x64xbf16, #tpu.memory_space<vmem>>, vector<1x1x512x64xbf16>
    %32 = vector.shape_cast %31 : vector<1x1x512x64xbf16> to vector<512x64xbf16>
    %cst_17 = arith.constant dense<0.000000e+00> : vector<64x64xf32>
    %33 = tpu.matmul %30, %32, %cst_17 {dimension_numbers = #tpu.dot_dimension_numbers<[1], [0], [0], [1], [0, 0, 1, 1], [], []>} : vector<64x512xbf16>, vector<512x64xbf16>, vector<64x64xf32> -> vector<64x64xf32>
    %c0_18 = arith.constant 0 : index
    %c0_19 = arith.constant 0 : index
    %34 = vector.load %arg4[%c0_18, %c0_19] : memref<1x64xf32, #tpu.memory_space<vmem>>, vector<1x64xf32>
    %35 = vector.broadcast %34 : vector<1x64xf32> to vector<64x64xf32>
    %36 = arith.addf %33, %35 : vector<64x64xf32>
    %37 = vector.shape_cast %36 : vector<64x64xf32> to vector<8x8x64xf32>
    %38 = arith.truncf %37 : vector<8x8x64xf32> to vector<8x8x64xbf16>
    %c0_20 = arith.constant 0 : index
    %c1_21 = arith.constant 1 : index
    %c0_22 = arith.constant 0 : index
    %c0_23 = arith.constant 0 : index
    %c0_24 = arith.constant 0 : index
    %39 = vector.load %arg5[%c0_20, %c1_21, %c0_22, %c0_23, %c0_24] : memref<1x4x8x8x64xbf16, #tpu.memory_space<vmem>>, vector<1x1x8x8x64xbf16>
    %40 = vector.shape_cast %39 : vector<1x1x8x8x64xbf16> to vector<8x8x64xbf16>
    %41 = vector.shape_cast %38 : vector<8x8x64xbf16> to vector<1x1x8x8x64xbf16>
    tpu.vector_store %arg5[%c0_20, %c1_21, %c0_22, %c0_23, %c0_24], %41 {strides = array<i32>} : memref<1x4x8x8x64xbf16, #tpu.memory_space<vmem>>, vector<1x1x8x8x64xbf16>,
    %42 = vector.extract_strided_slice %1 {offsets = [1, 0, 0], sizes = [8, 8, 128], strides = [1, 1, 1]} : vector<10x10x128xbf16> to vector<8x8x128xbf16>
    %43 = vector.shape_cast %42 : vector<8x8x128xbf16> to vector<64x128xbf16>
    %44 = vector.extract_strided_slice %1 {offsets = [1, 1, 0], sizes = [8, 8, 128], strides = [1, 1, 1]} : vector<10x10x128xbf16> to vector<8x8x128xbf16>
    %45 = vector.shape_cast %44 : vector<8x8x128xbf16> to vector<64x128xbf16>
    %46 = vector.extract_strided_slice %1 {offsets = [2, 0, 0], sizes = [8, 8, 128], strides = [1, 1, 1]} : vector<10x10x128xbf16> to vector<8x8x128xbf16>
    %47 = vector.shape_cast %46 : vector<8x8x128xbf16> to vector<64x128xbf16>
    %48 = vector.extract_strided_slice %1 {offsets = [2, 1, 0], sizes = [8, 8, 128], strides = [1, 1, 1]} : vector<10x10x128xbf16> to vector<8x8x128xbf16>
    %49 = vector.shape_cast %48 : vector<8x8x128xbf16> to vector<64x128xbf16>
    %50 = tpu.concatenate %43, %45, %47, %49 in 1 : vector<64x128xbf16>, vector<64x128xbf16>, vector<64x128xbf16>, vector<64x128xbf16> -> vector<64x512xbf16>
    %c1_25 = arith.constant 1 : index
    %c0_26 = arith.constant 0 : index
    %c0_27 = arith.constant 0 : index
    %c0_28 = arith.constant 0 : index
    %51 = vector.load %arg3[%c1_25, %c0_26, %c0_27, %c0_28] : memref<2x2x512x64xbf16, #tpu.memory_space<vmem>>, vector<1x1x512x64xbf16>
    %52 = vector.shape_cast %51 : vector<1x1x512x64xbf16> to vector<512x64xbf16>
    %cst_29 = arith.constant dense<0.000000e+00> : vector<64x64xf32>
    %53 = tpu.matmul %50, %52, %cst_29 {dimension_numbers = #tpu.dot_dimension_numbers<[1], [0], [0], [1], [0, 0, 1, 1], [], []>} : vector<64x512xbf16>, vector<512x64xbf16>, vector<64x64xf32> -> vector<64x64xf32>
    %c0_30 = arith.constant 0 : index
    %c0_31 = arith.constant 0 : index
    %54 = vector.load %arg4[%c0_30, %c0_31] : memref<1x64xf32, #tpu.memory_space<vmem>>, vector<1x64xf32>
    %55 = vector.broadcast %54 : vector<1x64xf32> to vector<64x64xf32>
    %56 = arith.addf %53, %55 : vector<64x64xf32>
    %57 = vector.shape_cast %56 : vector<64x64xf32> to vector<8x8x64xf32>
    %58 = arith.truncf %57 : vector<8x8x64xf32> to vector<8x8x64xbf16>
    %c0_32 = arith.constant 0 : index
    %c2 = arith.constant 2 : index
    %c0_33 = arith.constant 0 : index
    %c0_34 = arith.constant 0 : index
    %c0_35 = arith.constant 0 : index
    %59 = vector.load %arg5[%c0_32, %c2, %c0_33, %c0_34, %c0_35] : memref<1x4x8x8x64xbf16, #tpu.memory_space<vmem>>, vector<1x1x8x8x64xbf16>
    %60 = vector.shape_cast %59 : vector<1x1x8x8x64xbf16> to vector<8x8x64xbf16>
    %61 = vector.shape_cast %58 : vector<8x8x64xbf16> to vector<1x1x8x8x64xbf16>
    tpu.vector_store %arg5[%c0_32, %c2, %c0_33, %c0_34, %c0_35], %61 {strides = array<i32>} : memref<1x4x8x8x64xbf16, #tpu.memory_space<vmem>>, vector<1x1x8x8x64xbf16>,
    %62 = vector.extract_strided_slice %1 {offsets = [1, 1, 0], sizes = [8, 8, 128], strides = [1, 1, 1]} : vector<10x10x128xbf16> to vector<8x8x128xbf16>
    %63 = vector.shape_cast %62 : vector<8x8x128xbf16> to vector<64x128xbf16>
    %64 = vector.extract_strided_slice %1 {offsets = [1, 2, 0], sizes = [8, 8, 128], strides = [1, 1, 1]} : vector<10x10x128xbf16> to vector<8x8x128xbf16>
    %65 = vector.shape_cast %64 : vector<8x8x128xbf16> to vector<64x128xbf16>
    %66 = vector.extract_strided_slice %1 {offsets = [2, 1, 0], sizes = [8, 8, 128], strides = [1, 1, 1]} : vector<10x10x128xbf16> to vector<8x8x128xbf16>
    %67 = vector.shape_cast %66 : vector<8x8x128xbf16> to vector<64x128xbf16>
    %68 = vector.extract_strided_slice %1 {offsets = [2, 2, 0], sizes = [8, 8, 128], strides = [1, 1, 1]} : vector<10x10x128xbf16> to vector<8x8x128xbf16>
    %69 = vector.shape_cast %68 : vector<8x8x128xbf16> to vector<64x128xbf16>
    %70 = tpu.concatenate %63, %65, %67, %69 in 1 : vector<64x128xbf16>, vector<64x128xbf16>, vector<64x128xbf16>, vector<64x128xbf16> -> vector<64x512xbf16>
    %c1_36 = arith.constant 1 : index
    %c1_37 = arith.constant 1 : index
    %c0_38 = arith.constant 0 : index
    %c0_39 = arith.constant 0 : index
    %71 = vector.load %arg3[%c1_36, %c1_37, %c0_38, %c0_39] : memref<2x2x512x64xbf16, #tpu.memory_space<vmem>>, vector<1x1x512x64xbf16>
    %72 = vector.shape_cast %71 : vector<1x1x512x64xbf16> to vector<512x64xbf16>
    %cst_40 = arith.constant dense<0.000000e+00> : vector<64x64xf32>
    %73 = tpu.matmul %70, %72, %cst_40 {dimension_numbers = #tpu.dot_dimension_numbers<[1], [0], [0], [1], [0, 0, 1, 1], [], []>} : vector<64x512xbf16>, vector<512x64xbf16>, vector<64x64xf32> -> vector<64x64xf32>
    %c0_41 = arith.constant 0 : index
    %c0_42 = arith.constant 0 : index
    %74 = vector.load %arg4[%c0_41, %c0_42] : memref<1x64xf32, #tpu.memory_space<vmem>>, vector<1x64xf32>
    %75 = vector.broadcast %74 : vector<1x64xf32> to vector<64x64xf32>
    %76 = arith.addf %73, %75 : vector<64x64xf32>
    %77 = vector.shape_cast %76 : vector<64x64xf32> to vector<8x8x64xf32>
    %78 = arith.truncf %77 : vector<8x8x64xf32> to vector<8x8x64xbf16>
    %c0_43 = arith.constant 0 : index
    %c3 = arith.constant 3 : index
    %c0_44 = arith.constant 0 : index
    %c0_45 = arith.constant 0 : index
    %c0_46 = arith.constant 0 : index
    %79 = vector.load %arg5[%c0_43, %c3, %c0_44, %c0_45, %c0_46] : memref<1x4x8x8x64xbf16, #tpu.memory_space<vmem>>, vector<1x1x8x8x64xbf16>
    %80 = vector.shape_cast %79 : vector<1x1x8x8x64xbf16> to vector<8x8x64xbf16>
    %81 = vector.shape_cast %78 : vector<8x8x64xbf16> to vector<1x1x8x8x64xbf16>
    tpu.vector_store %arg5[%c0_43, %c3, %c0_44, %c0_45, %c0_46], %81 {strides = array<i32>} : memref<1x4x8x8x64xbf16, #tpu.memory_space<vmem>>, vector<1x1x8x8x64xbf16>,
    return
  }
  func.func @transform_0(%arg0: i32, %arg1: i32) -> (i32, i32, i32, i32) {
    %c0_i32 = arith.constant 0 : i32
    %c0_i32_0 = arith.constant 0 : i32
    %c0_i32_1 = arith.constant 0 : i32
    %c0_i32_2 = arith.constant 0 : i32
    return %arg0, %c0_i32, %c0_i32_0, %c0_i32_1 : i32, i32, i32, i32
  }
  func.func @transform_1(%arg0: i32, %arg1: i32) -> (i32, i32, i32, i32) {
    %c0_i32 = arith.constant 0 : i32
    %c0_i32_0 = arith.constant 0 : i32
    %c0_i32_1 = arith.constant 0 : i32
    %c0_i32_2 = arith.constant 0 : i32
    return %c0_i32, %c0_i32_0, %c0_i32_1, %arg1 : i32, i32, i32, i32
  }
  func.func @transform_2(%arg0: i32, %arg1: i32) -> (i32, i32) {
    %c0_i32 = arith.constant 0 : i32
    %c0_i32_0 = arith.constant 0 : i32
    return %c0_i32, %arg1 : i32, i32
  }
  func.func @transform_3(%arg0: i32, %arg1: i32) -> (i32, i32, i32, i32, i32) {
    %c0_i32 = arith.constant 0 : i32
    %c0_i32_0 = arith.constant 0 : i32
    %c0_i32_1 = arith.constant 0 : i32
    %c0_i32_2 = arith.constant 0 : i32
    return %arg0, %c0_i32, %c0_i32_0, %c0_i32_1, %arg1 : i32, i32, i32, i32, i32
  }
}

module attributes {stable_mosaic.version = 11 : i64} {
  func.func @_conv3x3_kernel(%arg0: i32, %arg1: i32, %arg2: i32, %arg3: memref<1x18x18x64xbf16, #tpu.memory_space<vmem>>, %arg4: memref<1x18x18x64xbf16, #tpu.memory_space<vmem>>, %arg5: memref<1x18x18x64xbf16, #tpu.memory_space<vmem>>, %arg6: memref<576x64xbf16, #tpu.memory_space<vmem>>, %arg7: memref<576x64xbf16, #tpu.memory_space<vmem>>, %arg8: memref<576x64xbf16, #tpu.memory_space<vmem>>, %arg9: memref<1x64xf32, #tpu.memory_space<vmem>>, %arg10: memref<1x8x16x64xbf16, #tpu.memory_space<vmem>>) attributes {dimension_semantics = [#tpu.dimension_semantics<parallel>, #tpu.dimension_semantics<parallel>, #tpu.dimension_semantics<parallel>], iteration_bounds = array<i64: 2, 2, 1>, scalar_prefetch = 0 : i64, scratch_operands = 0 : i64, tpu.core_type = #tpu.core_type<tc>, window_params = [{transform_indices = @transform_0, window_bounds = array<i64: 1, 18, 18, 64>}, {transform_indices = @transform_1, window_bounds = array<i64: 1, 18, 18, 64>}, {transform_indices = @transform_2, window_bounds = array<i64: 1, 18, 18, 64>}, {transform_indices = @transform_3, window_bounds = array<i64: 576, 64>}, {transform_indices = @transform_4, window_bounds = array<i64: 576, 64>}, {transform_indices = @transform_5, window_bounds = array<i64: 576, 64>}, {transform_indices = @transform_6, window_bounds = array<i64: 1, 64>}, {transform_indices = @transform_7, window_bounds = array<i64: 1, 8, 16, 64>}]} {
    %c8_i32 = arith.constant 8 : i32
    %0 = arith.muli %arg1, %c8_i32 : i32
    %1 = tpu.assume_multiple %0, 8 : i32
    %cst = arith.constant 0.000000e+00 : f32
    %2 = vector.broadcast %cst : f32 to vector<128x64xf32>
    %c0 = arith.constant 0 : index
    %3 = arith.index_cast %1 : i32 to index
    %c0_0 = arith.constant 0 : index
    %c0_1 = arith.constant 0 : index
    %4 = vector.load %arg3[%c0, %3, %c0_0, %c0_1] : memref<1x18x18x64xbf16, #tpu.memory_space<vmem>>, vector<1x10x18x64xbf16>
    %5 = vector.shape_cast %4 : vector<1x10x18x64xbf16> to vector<10x18x64xbf16>
    %6 = vector.extract_strided_slice %5 {offsets = [0, 0, 0], sizes = [8, 16, 64], strides = [1, 1, 1]} : vector<10x18x64xbf16> to vector<8x16x64xbf16>
    %7 = vector.shape_cast %6 : vector<8x16x64xbf16> to vector<128x64xbf16>
    %8 = vector.extract_strided_slice %5 {offsets = [0, 1, 0], sizes = [8, 16, 64], strides = [1, 1, 1]} : vector<10x18x64xbf16> to vector<8x16x64xbf16>
    %9 = vector.shape_cast %8 : vector<8x16x64xbf16> to vector<128x64xbf16>
    %10 = vector.extract_strided_slice %5 {offsets = [0, 2, 0], sizes = [8, 16, 64], strides = [1, 1, 1]} : vector<10x18x64xbf16> to vector<8x16x64xbf16>
    %11 = vector.shape_cast %10 : vector<8x16x64xbf16> to vector<128x64xbf16>
    %12 = vector.extract_strided_slice %5 {offsets = [1, 0, 0], sizes = [8, 16, 64], strides = [1, 1, 1]} : vector<10x18x64xbf16> to vector<8x16x64xbf16>
    %13 = vector.shape_cast %12 : vector<8x16x64xbf16> to vector<128x64xbf16>
    %14 = vector.extract_strided_slice %5 {offsets = [1, 1, 0], sizes = [8, 16, 64], strides = [1, 1, 1]} : vector<10x18x64xbf16> to vector<8x16x64xbf16>
    %15 = vector.shape_cast %14 : vector<8x16x64xbf16> to vector<128x64xbf16>
    %16 = vector.extract_strided_slice %5 {offsets = [1, 2, 0], sizes = [8, 16, 64], strides = [1, 1, 1]} : vector<10x18x64xbf16> to vector<8x16x64xbf16>
    %17 = vector.shape_cast %16 : vector<8x16x64xbf16> to vector<128x64xbf16>
    %18 = vector.extract_strided_slice %5 {offsets = [2, 0, 0], sizes = [8, 16, 64], strides = [1, 1, 1]} : vector<10x18x64xbf16> to vector<8x16x64xbf16>
    %19 = vector.shape_cast %18 : vector<8x16x64xbf16> to vector<128x64xbf16>
    %20 = vector.extract_strided_slice %5 {offsets = [2, 1, 0], sizes = [8, 16, 64], strides = [1, 1, 1]} : vector<10x18x64xbf16> to vector<8x16x64xbf16>
    %21 = vector.shape_cast %20 : vector<8x16x64xbf16> to vector<128x64xbf16>
    %22 = vector.extract_strided_slice %5 {offsets = [2, 2, 0], sizes = [8, 16, 64], strides = [1, 1, 1]} : vector<10x18x64xbf16> to vector<8x16x64xbf16>
    %23 = vector.shape_cast %22 : vector<8x16x64xbf16> to vector<128x64xbf16>
    %24 = tpu.concatenate %7, %9, %11, %13, %15, %17, %19, %21, %23 in 1 : vector<128x64xbf16>, vector<128x64xbf16>, vector<128x64xbf16>, vector<128x64xbf16>, vector<128x64xbf16>, vector<128x64xbf16>, vector<128x64xbf16>, vector<128x64xbf16>, vector<128x64xbf16> -> vector<128x576xbf16>
    %c0_2 = arith.constant 0 : index
    %c0_3 = arith.constant 0 : index
    %25 = vector.load %arg6[%c0_2, %c0_3] : memref<576x64xbf16, #tpu.memory_space<vmem>>, vector<576x64xbf16>
    %cst_4 = arith.constant dense<0.000000e+00> : vector<128x64xf32>
    %26 = tpu.matmul %24, %25, %cst_4 {dimension_numbers = #tpu.dot_dimension_numbers<[1], [0], [0], [1], [0, 0, 1, 1], [], []>} : vector<128x576xbf16>, vector<576x64xbf16>, vector<128x64xf32> -> vector<128x64xf32>
    %27 = arith.addf %2, %26 : vector<128x64xf32>
    %c0_5 = arith.constant 0 : index
    %28 = arith.index_cast %1 : i32 to index
    %c0_6 = arith.constant 0 : index
    %c0_7 = arith.constant 0 : index
    %29 = vector.load %arg4[%c0_5, %28, %c0_6, %c0_7] : memref<1x18x18x64xbf16, #tpu.memory_space<vmem>>, vector<1x10x18x64xbf16>
    %30 = vector.shape_cast %29 : vector<1x10x18x64xbf16> to vector<10x18x64xbf16>
    %31 = vector.extract_strided_slice %30 {offsets = [0, 0, 0], sizes = [8, 16, 64], strides = [1, 1, 1]} : vector<10x18x64xbf16> to vector<8x16x64xbf16>
    %32 = vector.shape_cast %31 : vector<8x16x64xbf16> to vector<128x64xbf16>
    %33 = vector.extract_strided_slice %30 {offsets = [0, 1, 0], sizes = [8, 16, 64], strides = [1, 1, 1]} : vector<10x18x64xbf16> to vector<8x16x64xbf16>
    %34 = vector.shape_cast %33 : vector<8x16x64xbf16> to vector<128x64xbf16>
    %35 = vector.extract_strided_slice %30 {offsets = [0, 2, 0], sizes = [8, 16, 64], strides = [1, 1, 1]} : vector<10x18x64xbf16> to vector<8x16x64xbf16>
    %36 = vector.shape_cast %35 : vector<8x16x64xbf16> to vector<128x64xbf16>
    %37 = vector.extract_strided_slice %30 {offsets = [1, 0, 0], sizes = [8, 16, 64], strides = [1, 1, 1]} : vector<10x18x64xbf16> to vector<8x16x64xbf16>
    %38 = vector.shape_cast %37 : vector<8x16x64xbf16> to vector<128x64xbf16>
    %39 = vector.extract_strided_slice %30 {offsets = [1, 1, 0], sizes = [8, 16, 64], strides = [1, 1, 1]} : vector<10x18x64xbf16> to vector<8x16x64xbf16>
    %40 = vector.shape_cast %39 : vector<8x16x64xbf16> to vector<128x64xbf16>
    %41 = vector.extract_strided_slice %30 {offsets = [1, 2, 0], sizes = [8, 16, 64], strides = [1, 1, 1]} : vector<10x18x64xbf16> to vector<8x16x64xbf16>
    %42 = vector.shape_cast %41 : vector<8x16x64xbf16> to vector<128x64xbf16>
    %43 = vector.extract_strided_slice %30 {offsets = [2, 0, 0], sizes = [8, 16, 64], strides = [1, 1, 1]} : vector<10x18x64xbf16> to vector<8x16x64xbf16>
    %44 = vector.shape_cast %43 : vector<8x16x64xbf16> to vector<128x64xbf16>
    %45 = vector.extract_strided_slice %30 {offsets = [2, 1, 0], sizes = [8, 16, 64], strides = [1, 1, 1]} : vector<10x18x64xbf16> to vector<8x16x64xbf16>
    %46 = vector.shape_cast %45 : vector<8x16x64xbf16> to vector<128x64xbf16>
    %47 = vector.extract_strided_slice %30 {offsets = [2, 2, 0], sizes = [8, 16, 64], strides = [1, 1, 1]} : vector<10x18x64xbf16> to vector<8x16x64xbf16>
    %48 = vector.shape_cast %47 : vector<8x16x64xbf16> to vector<128x64xbf16>
    %49 = tpu.concatenate %32, %34, %36, %38, %40, %42, %44, %46, %48 in 1 : vector<128x64xbf16>, vector<128x64xbf16>, vector<128x64xbf16>, vector<128x64xbf16>, vector<128x64xbf16>, vector<128x64xbf16>, vector<128x64xbf16>, vector<128x64xbf16>, vector<128x64xbf16> -> vector<128x576xbf16>
    %c0_8 = arith.constant 0 : index
    %c0_9 = arith.constant 0 : index
    %50 = vector.load %arg7[%c0_8, %c0_9] : memref<576x64xbf16, #tpu.memory_space<vmem>>, vector<576x64xbf16>
    %cst_10 = arith.constant dense<0.000000e+00> : vector<128x64xf32>
    %51 = tpu.matmul %49, %50, %cst_10 {dimension_numbers = #tpu.dot_dimension_numbers<[1], [0], [0], [1], [0, 0, 1, 1], [], []>} : vector<128x576xbf16>, vector<576x64xbf16>, vector<128x64xf32> -> vector<128x64xf32>
    %52 = arith.addf %27, %51 : vector<128x64xf32>
    %c0_11 = arith.constant 0 : index
    %53 = arith.index_cast %1 : i32 to index
    %c0_12 = arith.constant 0 : index
    %c0_13 = arith.constant 0 : index
    %54 = vector.load %arg5[%c0_11, %53, %c0_12, %c0_13] : memref<1x18x18x64xbf16, #tpu.memory_space<vmem>>, vector<1x10x18x64xbf16>
    %55 = vector.shape_cast %54 : vector<1x10x18x64xbf16> to vector<10x18x64xbf16>
    %56 = vector.extract_strided_slice %55 {offsets = [0, 0, 0], sizes = [8, 16, 64], strides = [1, 1, 1]} : vector<10x18x64xbf16> to vector<8x16x64xbf16>
    %57 = vector.shape_cast %56 : vector<8x16x64xbf16> to vector<128x64xbf16>
    %58 = vector.extract_strided_slice %55 {offsets = [0, 1, 0], sizes = [8, 16, 64], strides = [1, 1, 1]} : vector<10x18x64xbf16> to vector<8x16x64xbf16>
    %59 = vector.shape_cast %58 : vector<8x16x64xbf16> to vector<128x64xbf16>
    %60 = vector.extract_strided_slice %55 {offsets = [0, 2, 0], sizes = [8, 16, 64], strides = [1, 1, 1]} : vector<10x18x64xbf16> to vector<8x16x64xbf16>
    %61 = vector.shape_cast %60 : vector<8x16x64xbf16> to vector<128x64xbf16>
    %62 = vector.extract_strided_slice %55 {offsets = [1, 0, 0], sizes = [8, 16, 64], strides = [1, 1, 1]} : vector<10x18x64xbf16> to vector<8x16x64xbf16>
    %63 = vector.shape_cast %62 : vector<8x16x64xbf16> to vector<128x64xbf16>
    %64 = vector.extract_strided_slice %55 {offsets = [1, 1, 0], sizes = [8, 16, 64], strides = [1, 1, 1]} : vector<10x18x64xbf16> to vector<8x16x64xbf16>
    %65 = vector.shape_cast %64 : vector<8x16x64xbf16> to vector<128x64xbf16>
    %66 = vector.extract_strided_slice %55 {offsets = [1, 2, 0], sizes = [8, 16, 64], strides = [1, 1, 1]} : vector<10x18x64xbf16> to vector<8x16x64xbf16>
    %67 = vector.shape_cast %66 : vector<8x16x64xbf16> to vector<128x64xbf16>
    %68 = vector.extract_strided_slice %55 {offsets = [2, 0, 0], sizes = [8, 16, 64], strides = [1, 1, 1]} : vector<10x18x64xbf16> to vector<8x16x64xbf16>
    %69 = vector.shape_cast %68 : vector<8x16x64xbf16> to vector<128x64xbf16>
    %70 = vector.extract_strided_slice %55 {offsets = [2, 1, 0], sizes = [8, 16, 64], strides = [1, 1, 1]} : vector<10x18x64xbf16> to vector<8x16x64xbf16>
    %71 = vector.shape_cast %70 : vector<8x16x64xbf16> to vector<128x64xbf16>
    %72 = vector.extract_strided_slice %55 {offsets = [2, 2, 0], sizes = [8, 16, 64], strides = [1, 1, 1]} : vector<10x18x64xbf16> to vector<8x16x64xbf16>
    %73 = vector.shape_cast %72 : vector<8x16x64xbf16> to vector<128x64xbf16>
    %74 = tpu.concatenate %57, %59, %61, %63, %65, %67, %69, %71, %73 in 1 : vector<128x64xbf16>, vector<128x64xbf16>, vector<128x64xbf16>, vector<128x64xbf16>, vector<128x64xbf16>, vector<128x64xbf16>, vector<128x64xbf16>, vector<128x64xbf16>, vector<128x64xbf16> -> vector<128x576xbf16>
    %c0_14 = arith.constant 0 : index
    %c0_15 = arith.constant 0 : index
    %75 = vector.load %arg8[%c0_14, %c0_15] : memref<576x64xbf16, #tpu.memory_space<vmem>>, vector<576x64xbf16>
    %cst_16 = arith.constant dense<0.000000e+00> : vector<128x64xf32>
    %76 = tpu.matmul %74, %75, %cst_16 {dimension_numbers = #tpu.dot_dimension_numbers<[1], [0], [0], [1], [0, 0, 1, 1], [], []>} : vector<128x576xbf16>, vector<576x64xbf16>, vector<128x64xf32> -> vector<128x64xf32>
    %77 = arith.addf %52, %76 : vector<128x64xf32>
    %c0_17 = arith.constant 0 : index
    %c0_18 = arith.constant 0 : index
    %78 = vector.load %arg9[%c0_17, %c0_18] : memref<1x64xf32, #tpu.memory_space<vmem>>, vector<1x64xf32>
    %79 = vector.broadcast %78 : vector<1x64xf32> to vector<128x64xf32>
    %80 = arith.addf %77, %79 : vector<128x64xf32>
    %cst_19 = arith.constant 0.000000e+00 : f32
    %81 = vector.broadcast %cst_19 : f32 to vector<128x64xf32>
    %82 = arith.maximumf %80, %81 : vector<128x64xf32>
    %83 = vector.shape_cast %82 : vector<128x64xf32> to vector<8x16x64xf32>
    %84 = arith.truncf %83 : vector<8x16x64xf32> to vector<8x16x64xbf16>
    %c0_20 = arith.constant 0 : index
    %c0_21 = arith.constant 0 : index
    %c0_22 = arith.constant 0 : index
    %c0_23 = arith.constant 0 : index
    %85 = vector.load %arg10[%c0_20, %c0_21, %c0_22, %c0_23] : memref<1x8x16x64xbf16, #tpu.memory_space<vmem>>, vector<1x8x16x64xbf16>
    %86 = vector.shape_cast %85 : vector<1x8x16x64xbf16> to vector<8x16x64xbf16>
    %87 = vector.shape_cast %84 : vector<8x16x64xbf16> to vector<1x8x16x64xbf16>
    tpu.vector_store %arg10[%c0_20, %c0_21, %c0_22, %c0_23], %87 {strides = array<i32>} : memref<1x8x16x64xbf16, #tpu.memory_space<vmem>>, vector<1x8x16x64xbf16>,
    return
  }
  func.func @transform_0(%arg0: i32, %arg1: i32, %arg2: i32) -> (i32, i32, i32, i32) {
    %c0_i32 = arith.constant 0 : i32
    %c0_i32_0 = arith.constant 0 : i32
    %c0_i32_1 = arith.constant 0 : i32
    %c0_i32_2 = arith.constant 0 : i32
    return %arg0, %c0_i32, %c0_i32_0, %c0_i32_1 : i32, i32, i32, i32
  }
  func.func @transform_1(%arg0: i32, %arg1: i32, %arg2: i32) -> (i32, i32, i32, i32) {
    %c0_i32 = arith.constant 0 : i32
    %c0_i32_0 = arith.constant 0 : i32
    %c0_i32_1 = arith.constant 0 : i32
    %c0_i32_2 = arith.constant 0 : i32
    return %arg0, %c0_i32, %c0_i32_0, %c0_i32_1 : i32, i32, i32, i32
  }
  func.func @transform_2(%arg0: i32, %arg1: i32, %arg2: i32) -> (i32, i32, i32, i32) {
    %c0_i32 = arith.constant 0 : i32
    %c0_i32_0 = arith.constant 0 : i32
    %c0_i32_1 = arith.constant 0 : i32
    %c0_i32_2 = arith.constant 0 : i32
    return %arg0, %c0_i32, %c0_i32_0, %c0_i32_1 : i32, i32, i32, i32
  }
  func.func @transform_3(%arg0: i32, %arg1: i32, %arg2: i32) -> (i32, i32) {
    %c0_i32 = arith.constant 0 : i32
    %c0_i32_0 = arith.constant 0 : i32
    return %c0_i32, %arg2 : i32, i32
  }
  func.func @transform_4(%arg0: i32, %arg1: i32, %arg2: i32) -> (i32, i32) {
    %c0_i32 = arith.constant 0 : i32
    %c0_i32_0 = arith.constant 0 : i32
    return %c0_i32, %arg2 : i32, i32
  }
  func.func @transform_5(%arg0: i32, %arg1: i32, %arg2: i32) -> (i32, i32) {
    %c0_i32 = arith.constant 0 : i32
    %c0_i32_0 = arith.constant 0 : i32
    return %c0_i32, %arg2 : i32, i32
  }
  func.func @transform_6(%arg0: i32, %arg1: i32, %arg2: i32) -> (i32, i32) {
    %c0_i32 = arith.constant 0 : i32
    %c0_i32_0 = arith.constant 0 : i32
    return %c0_i32, %arg2 : i32, i32
  }
  func.func @transform_7(%arg0: i32, %arg1: i32, %arg2: i32) -> (i32, i32, i32, i32) {
    %c0_i32 = arith.constant 0 : i32
    %c0_i32_0 = arith.constant 0 : i32
    return %arg0, %arg1, %c0_i32, %arg2 : i32, i32, i32, i32
  }
}

module attributes {stable_mosaic.version = 11 : i64} {
  func.func @_conv3x3_kernel(%arg0: i32, %arg1: i32, %arg2: i32, %arg3: memref<1x18x18x64xbf16, #tpu.memory_space<vmem>>, %arg4: memref<576x64xbf16, #tpu.memory_space<vmem>>, %arg5: memref<1x64xf32, #tpu.memory_space<vmem>>, %arg6: memref<1x8x16x64xf32, #tpu.memory_space<vmem>>) attributes {dimension_semantics = [#tpu.dimension_semantics<parallel>, #tpu.dimension_semantics<parallel>, #tpu.dimension_semantics<parallel>], iteration_bounds = array<i64: 2, 2, 1>, scalar_prefetch = 0 : i64, scratch_operands = 0 : i64, tpu.core_type = #tpu.core_type<tc>, window_params = [{transform_indices = @transform_0, window_bounds = array<i64: 1, 18, 18, 64>}, {transform_indices = @transform_1, window_bounds = array<i64: 576, 64>}, {transform_indices = @transform_2, window_bounds = array<i64: 1, 64>}, {transform_indices = @transform_3, window_bounds = array<i64: 1, 8, 16, 64>}]} {
    %c8_i32 = arith.constant 8 : i32
    %0 = arith.muli %arg1, %c8_i32 : i32
    %1 = tpu.assume_multiple %0, 8 : i32
    %cst = arith.constant 0.000000e+00 : f32
    %2 = vector.broadcast %cst : f32 to vector<128x64xf32>
    %c0 = arith.constant 0 : index
    %3 = arith.index_cast %1 : i32 to index
    %c0_0 = arith.constant 0 : index
    %c0_1 = arith.constant 0 : index
    %4 = vector.load %arg3[%c0, %3, %c0_0, %c0_1] : memref<1x18x18x64xbf16, #tpu.memory_space<vmem>>, vector<1x10x18x64xbf16>
    %5 = vector.shape_cast %4 : vector<1x10x18x64xbf16> to vector<10x18x64xbf16>
    %6 = vector.extract_strided_slice %5 {offsets = [0, 0, 0], sizes = [8, 16, 64], strides = [1, 1, 1]} : vector<10x18x64xbf16> to vector<8x16x64xbf16>
    %7 = vector.shape_cast %6 : vector<8x16x64xbf16> to vector<128x64xbf16>
    %8 = vector.extract_strided_slice %5 {offsets = [0, 1, 0], sizes = [8, 16, 64], strides = [1, 1, 1]} : vector<10x18x64xbf16> to vector<8x16x64xbf16>
    %9 = vector.shape_cast %8 : vector<8x16x64xbf16> to vector<128x64xbf16>
    %10 = vector.extract_strided_slice %5 {offsets = [0, 2, 0], sizes = [8, 16, 64], strides = [1, 1, 1]} : vector<10x18x64xbf16> to vector<8x16x64xbf16>
    %11 = vector.shape_cast %10 : vector<8x16x64xbf16> to vector<128x64xbf16>
    %12 = vector.extract_strided_slice %5 {offsets = [1, 0, 0], sizes = [8, 16, 64], strides = [1, 1, 1]} : vector<10x18x64xbf16> to vector<8x16x64xbf16>
    %13 = vector.shape_cast %12 : vector<8x16x64xbf16> to vector<128x64xbf16>
    %14 = vector.extract_strided_slice %5 {offsets = [1, 1, 0], sizes = [8, 16, 64], strides = [1, 1, 1]} : vector<10x18x64xbf16> to vector<8x16x64xbf16>
    %15 = vector.shape_cast %14 : vector<8x16x64xbf16> to vector<128x64xbf16>
    %16 = vector.extract_strided_slice %5 {offsets = [1, 2, 0], sizes = [8, 16, 64], strides = [1, 1, 1]} : vector<10x18x64xbf16> to vector<8x16x64xbf16>
    %17 = vector.shape_cast %16 : vector<8x16x64xbf16> to vector<128x64xbf16>
    %18 = vector.extract_strided_slice %5 {offsets = [2, 0, 0], sizes = [8, 16, 64], strides = [1, 1, 1]} : vector<10x18x64xbf16> to vector<8x16x64xbf16>
    %19 = vector.shape_cast %18 : vector<8x16x64xbf16> to vector<128x64xbf16>
    %20 = vector.extract_strided_slice %5 {offsets = [2, 1, 0], sizes = [8, 16, 64], strides = [1, 1, 1]} : vector<10x18x64xbf16> to vector<8x16x64xbf16>
    %21 = vector.shape_cast %20 : vector<8x16x64xbf16> to vector<128x64xbf16>
    %22 = vector.extract_strided_slice %5 {offsets = [2, 2, 0], sizes = [8, 16, 64], strides = [1, 1, 1]} : vector<10x18x64xbf16> to vector<8x16x64xbf16>
    %23 = vector.shape_cast %22 : vector<8x16x64xbf16> to vector<128x64xbf16>
    %24 = tpu.concatenate %7, %9, %11, %13, %15, %17, %19, %21, %23 in 1 : vector<128x64xbf16>, vector<128x64xbf16>, vector<128x64xbf16>, vector<128x64xbf16>, vector<128x64xbf16>, vector<128x64xbf16>, vector<128x64xbf16>, vector<128x64xbf16>, vector<128x64xbf16> -> vector<128x576xbf16>
    %c0_2 = arith.constant 0 : index
    %c0_3 = arith.constant 0 : index
    %25 = vector.load %arg4[%c0_2, %c0_3] : memref<576x64xbf16, #tpu.memory_space<vmem>>, vector<576x64xbf16>
    %cst_4 = arith.constant dense<0.000000e+00> : vector<128x64xf32>
    %26 = tpu.matmul %24, %25, %cst_4 {dimension_numbers = #tpu.dot_dimension_numbers<[1], [0], [0], [1], [0, 0, 1, 1], [], []>} : vector<128x576xbf16>, vector<576x64xbf16>, vector<128x64xf32> -> vector<128x64xf32>
    %27 = arith.addf %2, %26 : vector<128x64xf32>
    %c0_5 = arith.constant 0 : index
    %c0_6 = arith.constant 0 : index
    %28 = vector.load %arg5[%c0_5, %c0_6] : memref<1x64xf32, #tpu.memory_space<vmem>>, vector<1x64xf32>
    %29 = vector.broadcast %28 : vector<1x64xf32> to vector<128x64xf32>
    %30 = arith.addf %27, %29 : vector<128x64xf32>
    %cst_7 = arith.constant 0.000000e+00 : f32
    %31 = vector.broadcast %cst_7 : f32 to vector<128x64xf32>
    %32 = arith.maximumf %30, %31 : vector<128x64xf32>
    %33 = vector.shape_cast %32 : vector<128x64xf32> to vector<8x16x64xf32>
    %c0_8 = arith.constant 0 : index
    %c0_9 = arith.constant 0 : index
    %c0_10 = arith.constant 0 : index
    %c0_11 = arith.constant 0 : index
    %34 = vector.load %arg6[%c0_8, %c0_9, %c0_10, %c0_11] : memref<1x8x16x64xf32, #tpu.memory_space<vmem>>, vector<1x8x16x64xf32>
    %35 = vector.shape_cast %34 : vector<1x8x16x64xf32> to vector<8x16x64xf32>
    %36 = vector.shape_cast %33 : vector<8x16x64xf32> to vector<1x8x16x64xf32>
    tpu.vector_store %arg6[%c0_8, %c0_9, %c0_10, %c0_11], %36 {strides = array<i32>} : memref<1x8x16x64xf32, #tpu.memory_space<vmem>>, vector<1x8x16x64xf32>,
    return
  }
  func.func @transform_0(%arg0: i32, %arg1: i32, %arg2: i32) -> (i32, i32, i32, i32) {
    %c0_i32 = arith.constant 0 : i32
    %c0_i32_0 = arith.constant 0 : i32
    %c0_i32_1 = arith.constant 0 : i32
    %c0_i32_2 = arith.constant 0 : i32
    return %arg0, %c0_i32, %c0_i32_0, %c0_i32_1 : i32, i32, i32, i32
  }
  func.func @transform_1(%arg0: i32, %arg1: i32, %arg2: i32) -> (i32, i32) {
    %c0_i32 = arith.constant 0 : i32
    %c0_i32_0 = arith.constant 0 : i32
    return %c0_i32, %arg2 : i32, i32
  }
  func.func @transform_2(%arg0: i32, %arg1: i32, %arg2: i32) -> (i32, i32) {
    %c0_i32 = arith.constant 0 : i32
    %c0_i32_0 = arith.constant 0 : i32
    return %c0_i32, %arg2 : i32, i32
  }
  func.func @transform_3(%arg0: i32, %arg1: i32, %arg2: i32) -> (i32, i32, i32, i32) {
    %c0_i32 = arith.constant 0 : i32
    %c0_i32_0 = arith.constant 0 : i32
    return %arg0, %arg1, %c0_i32, %arg2 : i32, i32, i32, i32
  }
}

</mosaic_0001>

<llo_original>
// kernel: unetup3_forward.3
$region0: #{unetup3_forward.3}
  #allocation0 [shape = 'u32[]', space=smem, size = 0x4, offset = 0x4, fixed_abs, tag = 'smem constant byte address 0x4 - core index']
  #allocation1 [shape = 'u32[144,128]{1,0:T(1,128)}', space=vmem, size = 0x12000, scoped, tag = 'internal scratch']
  %s0 = inlined_call_operand.vmem [shape: bf16[2,10,10,128], index: 0, kind: input, shape index: {}]
  %s1 = inlined_call_operand.vmem [shape: bf16[2,2,512,64], index: 1, kind: input, shape index: {}]
  %s2 = inlined_call_operand.vmem [shape: f32[1,64], index: 2, kind: input, shape index: {}]
  %s3 = inlined_call_operand.vmem [shape: bf16[2,4,8,8,64], index: 3, kind: output, shape index: {}]
  %s4 = sld [smem:[#allocation0]]
  $region45: #{unetup3_forward.3} parent=0
    _
  %s6 = ssub.s32 1, %s4
  %s7 = scalar_select 0, %s6, %s4
  loop: start=0, step=1, limit=4
  $region2: #{unetup3_forward.3} parent=0 // loop_pre_header
    _
  $region3: #{unetup3_forward.3} parent=0 // loop_header
    %s9 = sphi 0, %s13
    %p10 = scmp.ge.s32.totalorder %s9, 4
    %s16 = sphi 0, %s28
    %s17 = sphi 0, %s24
    %s18 = sphi 0, %s16
    %s19 = sphi 0, %s17
    %s20 = sphi 0, %s18
    %s21 = sphi 0, %s19
    %s31 = sphi 0, %s33
    %s34 = sphi 0, %s31
    %s35 = sphi 0, %s34
    %s51 = sphi 0, %s35
    %s57 = sphi 0, %s59
    %s60 = sphi 0, %s57
    %s61 = sphi 0, %s60
    %s77 = sphi 0, %s61
    %s83 = sphi 0, %s85
    %s86 = sphi 0, %s83
    %s87 = sphi 0, %s86
    %s103 = sphi 0, %s87
    %s111 = sphi 0, %s113
    %s114 = sphi 0, %s111
    %s115 = sphi 0, %s114
    %s131 = sphi 0, %s115
  $region4: #{unetup3_forward.3} parent=0 // loop_header_branch
    %12 = sbr.rel (%p10) target = $region8
  $region5: #{unetup3_forward.3} parent=0 // loop_body
    %s14 = ssub.s32 %s9, 1
    %s15 = ssub.s32 %s9, 2
    %s22 = sadd.s32 1, %s17
    %p23 = scmp.ge.s32.totalorder %s22, 1
    %s24 = scalar_select %p23, 0, %s22
    %s25 = sadd.s32 1, %s16
    %s26 = scalar_select %p23, %s25, %s16
    %p27 = scmp.ge.s32.totalorder %s26, 2
    %s28 = scalar_select %p27, 0, %s26
    %s29 = ssub.s32 %s16, %s28
    %p30 = scmp.eq.s32.totalorder %s29, 0
    %s32 = sadd.s32 %s31, 1
    %s33 = scalar_select %p30, %s31, %s32
    %p36 = pneg %p30
    %p37 = scmp.eq.s32.totalorder %s9, 1
    %p38 = por %p36, %p37
    %p39 = scmp.ne.s32.totalorder %s31, %s34
    %p40 = scmp.eq.s32.totalorder %s9, 0
    %p41 = por %p39, %p40
    %p42 = scmp.ne.s32.totalorder %s31, %s34
    %p43 = scmp.eq.s32.totalorder %s14, 1
    %p44 = por %p42, %p43
    %p45 = scmp.ne.s32.totalorder %s34, %s35
    %p46 = scmp.eq.s32.totalorder %s14, 0
    %p47 = por %p45, %p46
    %p48 = scmp.ne.s32.totalorder %s34, %s35
    %p49 = scmp.eq.s32.totalorder %s15, 1
    %p50 = por %p48, %p49
    %p52 = scmp.ne.s32.totalorder %s35, %s51
    %p53 = scmp.eq.s32.totalorder %s15, 0
    %p54 = por %p52, %p53
    %s55 = ssub.s32 %s17, %s24
    %p56 = scmp.eq.s32.totalorder %s55, 0
    %s58 = sadd.s32 %s57, 1
    %s59 = scalar_select %p56, %s57, %s58
    %p62 = pneg %p56
    %p63 = scmp.eq.s32.totalorder %s9, 1
    %p64 = por %p62, %p63
    %p65 = scmp.ne.s32.totalorder %s57, %s60
    %p66 = scmp.eq.s32.totalorder %s9, 0
    %p67 = por %p65, %p66
    %p68 = scmp.ne.s32.totalorder %s57, %s60
    %p69 = scmp.eq.s32.totalorder %s14, 1
    %p70 = por %p68, %p69
    %p71 = scmp.ne.s32.totalorder %s60, %s61
    %p72 = scmp.eq.s32.totalorder %s14, 0
    %p73 = por %p71, %p72
    %p74 = scmp.ne.s32.totalorder %s60, %s61
    %p75 = scmp.eq.s32.totalorder %s15, 1
    %p76 = por %p74, %p75
    %p78 = scmp.ne.s32.totalorder %s61, %s77
    %p79 = scmp.eq.s32.totalorder %s15, 0
    %p80 = por %p78, %p79
    %s81 = ssub.s32 %s17, %s24
    %p82 = scmp.eq.s32.totalorder %s81, 0
    %s84 = sadd.s32 %s83, 1
    %s85 = scalar_select %p82, %s83, %s84
    %p88 = pneg %p82
    %p89 = scmp.eq.s32.totalorder %s9, 1
    %p90 = por %p88, %p89
    %p91 = scmp.ne.s32.totalorder %s83, %s86
    %p92 = scmp.eq.s32.totalorder %s9, 0
    %p93 = por %p91, %p92
    %p94 = scmp.ne.s32.totalorder %s83, %s86
    %p95 = scmp.eq.s32.totalorder %s14, 1
    %p96 = por %p94, %p95
    %p97 = scmp.ne.s32.totalorder %s86, %s87
    %p98 = scmp.eq.s32.totalorder %s14, 0
    %p99 = por %p97, %p98
    %p100 = scmp.ne.s32.totalorder %s86, %s87
    %p101 = scmp.eq.s32.totalorder %s15, 1
    %p102 = por %p100, %p101
    %p104 = scmp.ne.s32.totalorder %s87, %s103
    %p105 = scmp.eq.s32.totalorder %s15, 0
    %p106 = por %p104, %p105
    %s107 = ssub.s32 %s16, %s28
    %s108 = ssub.s32 %s17, %s24
    %s109 = sor.u32 %s107, %s108
    %p110 = scmp.eq.s32.totalorder %s109, 0
    %s112 = sadd.s32 %s111, 1
    %s113 = scalar_select %p110, %s111, %s112
    %p116 = pneg %p110
    %p117 = scmp.eq.s32.totalorder %s9, 1
    %p118 = por %p116, %p117
    %p119 = scmp.ne.s32.totalorder %s111, %s114
    %p120 = scmp.eq.s32.totalorder %s9, 0
    %p121 = por %p119, %p120
    %p122 = scmp.ne.s32.totalorder %s111, %s114
    %p123 = scmp.eq.s32.totalorder %s14, 1
    %p124 = por %p122, %p123
    %p125 = scmp.ne.s32.totalorder %s114, %s115
    %p126 = scmp.eq.s32.totalorder %s14, 0
    %p127 = por %p125, %p126
    %p128 = scmp.ne.s32.totalorder %s114, %s115
    %p129 = scmp.eq.s32.totalorder %s15, 1
    %p130 = por %p128, %p129
    %p132 = scmp.ne.s32.totalorder %s115, %s131
    %p133 = scmp.eq.s32.totalorder %s15, 0
    %p134 = por %p132, %p133
    %p135 = scmp.le.s32.totalorder 1, %s9
    %p136 = scmp.lt.s32.totalorder %s9, 3
    %p137 = pnand %p135, %p136
    %p138 = pneg %p137
    // Predicated region
    $region9: #{unetup3_forward.3} parent=5 // pred_check
      _
    $region10: #{unetup3_forward.3} parent=5 // pred_check_branch
      %140 = sbr.rel (%p137) target = $region12
    $region11: #{unetup3_forward.3} parent=5 // pred_region
      %s141 = ssub.s32 %s9, 1
      // Predicated region
      $region13: #{unetup3_forward.3} parent=11 // pred_check
        %p142 = pneg %p73
      $region14: #{unetup3_forward.3} parent=11 // pred_check_branch
        %144 = sbr.rel (%p142) target = $region16
      $region15: #{unetup3_forward.3} parent=11 // pred_region
        %p145 = scmp.lt.s32.totalorder %s19, 0
        %s146 = scalar_select %p145, %s19, 0
        %s147 = smul.addr %s146, 4
        %s148 = scalar_lea.vmem %s1, %s147
      $region16: #{unetup3_forward.3} parent=11 // pred_fallthru
        _
      // Predicated region
      $region17: #{unetup3_forward.3} parent=11 // pred_check
        %p149 = pneg %p99
      $region18: #{unetup3_forward.3} parent=11 // pred_check_branch
        %151 = sbr.rel (%p149) target = $region20
      $region19: #{unetup3_forward.3} parent=11 // pred_region
        %p152 = scmp.lt.s32.totalorder %s19, 0
        %s153 = scalar_select %p152, %s19, 0
        %s154 = scalar_lea.vmem %s2, %s153
      $region20: #{unetup3_forward.3} parent=11 // pred_fallthru
        _
    $region12: #{unetup3_forward.3} parent=5 // pred_fallthru
      _
    %p155 = scmp.lt.s32.totalorder %s9, 2
    // Predicated region
    $region21: #{unetup3_forward.3} parent=5 // pred_check
      %p156 = pneg %p155
    $region22: #{unetup3_forward.3} parent=5 // pred_check_branch
      %158 = sbr.rel (%p156) target = $region24
    $region23: #{unetup3_forward.3} parent=5 // pred_region
      // Predicated region
      $region25: #{unetup3_forward.3} parent=23 // pred_check
        %p159 = pneg %p41
      $region26: #{unetup3_forward.3} parent=23 // pred_check_branch
        %161 = sbr.rel (%p159) target = $region28
      $region27: #{unetup3_forward.3} parent=23 // pred_region
        %p162 = scmp.lt.s32.totalorder %s16, 1
        %s163 = scalar_select %p162, %s16, 1
        %s164 = smul.addr %s163, 20
        %s165 = smul.addr %s164, 4
        %s166 = scalar_lea.vmem %s0, %s165
      $region28: #{unetup3_forward.3} parent=23 // pred_fallthru
        _
    $region24: #{unetup3_forward.3} parent=5 // pred_fallthru
      _
    %p167 = scmp.le.s32.totalorder 1, %s9
    %p168 = scmp.lt.s32.totalorder %s9, 3
    %p169 = pnand %p167, %p168
    %p170 = pneg %p169
    // Predicated region
    $region29: #{unetup3_forward.3} parent=5 // pred_check
      _
    $region30: #{unetup3_forward.3} parent=5 // pred_check_branch
      %172 = sbr.rel (%p169) target = $region32
    $region31: #{unetup3_forward.3} parent=5 // pred_region
      %s173 = ssub.s32 %s9, 1
      %p174 = scmp.lt.s32.totalorder %s18, 1
      %s175 = scalar_select %p174, %s18, 1
      %s176 = smul.addr %s175, 20
      %s177 = smul.addr %s176, 4
      %s178 = scalar_lea.vmem %s0, %s177
      %p179 = pneg %p47
      %p180 = pneg %p44
      %p181 = scmp.lt.s32.totalorder %s19, 0
      %s182 = scalar_select %p181, %s19, 0
      %s183 = smul.addr %s182, 4
      %s184 = scalar_lea.vmem %s1, %s183
      %p185 = pneg %p73
      %p186 = pneg %p70
      %p187 = scmp.lt.s32.totalorder %s19, 0
      %s188 = scalar_select %p187, %s19, 0
      %s189 = scalar_lea.vmem %s2, %s188
      %p190 = pneg %p99
      %p191 = pneg %p96
      %p192 = pneg %p127
      %p193 = pneg %p124
      %p194 = scmp.lt.s32.totalorder %s18, 1
      %s195 = scalar_select %p194, %s18, 1
      %p196 = scmp.lt.s32.totalorder %s19, 0
      %s197 = scalar_select %p196, %s19, 0
      %s198 = smul.addr %s195, 32
      %s199 = sadd.s32 %s197, %s198
      %s200 = smul.addr %s199, 4
      %s201 = scalar_lea.vmem %s3, %s200
      %p202 = scmp.lt.s32.totalorder %s18, 1
      %s203 = scalar_select %p202, %s18, 1
      %s204 = smul.addr %s203, 20
      %s205 = smul.addr %s204, 4
      %s206 = scalar_lea.vmem %s0, %s205
      %p207 = scmp.lt.s32.totalorder %s19, 0
      %s208 = scalar_select %p207, %s19, 0
      %s209 = smul.addr %s208, 4
      %s210 = scalar_lea.vmem %s1, %s209
      %p211 = scmp.lt.s32.totalorder %s19, 0
      %s212 = scalar_select %p211, %s19, 0
      %s213 = scalar_lea.vmem %s2, %s212
      %p214 = scmp.lt.s32.totalorder %s18, 1
      %s215 = scalar_select %p214, %s18, 1
      %p216 = scmp.lt.s32.totalorder %s19, 0
      %s217 = scalar_select %p216, %s19, 0
      %s218 = smul.addr %s215, 32
      %s219 = sadd.s32 %s217, %s218
      %s220 = smul.addr %s219, 4
      %s221 = scalar_lea.vmem %s3, %s220
      %v223 = vld [vmem:[%s206] sm:$0xf]
      %v224 = vld [vmem:[%s206 + $0x4] sm:$0x1]
      %v225 = vld [vmem:[%s206 + $0x8] sm:$0xf]
      %v226 = vld [vmem:[%s206 + $0xc] sm:$0x1]
      %v227 = vld [vmem:[%s206 + $0x10] sm:$0xf]
      %v228 = vld [vmem:[%s206 + $0x14] sm:$0x1]
      %v229 = vld [vmem:[%s206 + $0x18] sm:$0xf]
      %v230 = vld [vmem:[%s206 + $0x1c] sm:$0x1]
      %v231 = vld [vmem:[%s206 + $0x20] sm:$0xf]
      %v232 = vld [vmem:[%s206 + $0x24] sm:$0x1]
      %v233 = vld [vmem:[%s206 + $0x28] sm:$0xf]
      %v234 = vld [vmem:[%s206 + $0x2c] sm:$0x1]
      %v235 = vld [vmem:[%s206 + $0x30] sm:$0xf]
      %v236 = vld [vmem:[%s206 + $0x34] sm:$0x1]
      %v237 = vld [vmem:[%s206 + $0x38] sm:$0xf]
      %v238 = vld [vmem:[%s206 + $0x3c] sm:$0x1]
      %v239 = vld [vmem:[%s206 + $0x40] sm:$0xf]
      %v240 = vld [vmem:[%s206 + $0x44] sm:$0x1]
      %v241 = vld [vmem:[%s206 + $0x48] sm:$0xf]
      %v242 = vld [vmem:[%s206 + $0x4c] sm:$0x1]
      %vm243 = vsmask.f32 3328
      %vm244 = vsmask.f32 7440
      %vm245 = vmor %vm243, %vm244
      %v247 = vshrl.u32 %v223, 16
      %v249 = vrot.slane %v247, 4
      %v250 = vshll.u32 %v223, 16
      %v252 = vrot.slane %v250, 5
      %v253 = vor.u32 %v249, %v252
      %v254 = vrot.slane %v253, 4
      %v256 = vshll.u32 %v224, 16
      %v258 = vrot.slane %v256, 5
      %v259 = vsel %vm245, %v254, %v258
      %v261 = vshrl.u32 %v225, 16
      %v263 = vrot.slane %v261, 4
      %v264 = vshll.u32 %v225, 16
      %v266 = vrot.slane %v264, 5
      %v267 = vor.u32 %v263, %v266
      %v268 = vrot.slane %v267, 4
      %v270 = vshll.u32 %v226, 16
      %v272 = vrot.slane %v270, 5
      %v273 = vsel %vm245, %v268, %v272
      %v275 = vshrl.u32 %v227, 16
      %v277 = vrot.slane %v275, 4
      %v278 = vshll.u32 %v227, 16
      %v280 = vrot.slane %v278, 5
      %v281 = vor.u32 %v277, %v280
      %v282 = vrot.slane %v281, 4
      %v284 = vshll.u32 %v228, 16
      %v286 = vrot.slane %v284, 5
      %v287 = vsel %vm245, %v282, %v286
      %v289 = vshrl.u32 %v229, 16
      %v291 = vrot.slane %v289, 4
      %v292 = vshll.u32 %v229, 16
      %v294 = vrot.slane %v292, 5
      %v295 = vor.u32 %v291, %v294
      %v296 = vrot.slane %v295, 4
      %v298 = vshll.u32 %v230, 16
      %v300 = vrot.slane %v298, 5
      %v301 = vsel %vm245, %v296, %v300
      %v303 = vshrl.u32 %v231, 16
      %v305 = vrot.slane %v303, 4
      %v306 = vshll.u32 %v231, 16
      %v308 = vrot.slane %v306, 5
      %v309 = vor.u32 %v305, %v308
      %v310 = vrot.slane %v309, 4
      %v312 = vshll.u32 %v232, 16
      %v314 = vrot.slane %v312, 5
      %v315 = vsel %vm245, %v310, %v314
      %v317 = vshrl.u32 %v233, 16
      %v319 = vrot.slane %v317, 4
      %v320 = vshll.u32 %v233, 16
      %v322 = vrot.slane %v320, 5
      %v323 = vor.u32 %v319, %v322
      %v324 = vrot.slane %v323, 4
      %v326 = vshll.u32 %v234, 16
      %v328 = vrot.slane %v326, 5
      %v329 = vsel %vm245, %v324, %v328
      %v331 = vshrl.u32 %v235, 16
      %v333 = vrot.slane %v331, 4
      %v334 = vshll.u32 %v235, 16
      %v336 = vrot.slane %v334, 5
      %v337 = vor.u32 %v333, %v336
      %v338 = vrot.slane %v337, 4
      %v340 = vshll.u32 %v236, 16
      %v342 = vrot.slane %v340, 5
      %v343 = vsel %vm245, %v338, %v342
      %v345 = vshrl.u32 %v237, 16
      %v347 = vrot.slane %v345, 4
      %v348 = vshll.u32 %v237, 16
      %v350 = vrot.slane %v348, 5
      %v351 = vor.u32 %v347, %v350
      %v352 = vrot.slane %v351, 4
      %v354 = vshll.u32 %v238, 16
      %v356 = vrot.slane %v354, 5
      %v357 = vsel %vm245, %v352, %v356
      %v359 = vshrl.u32 %v239, 16
      %v361 = vrot.slane %v359, 4
      %v362 = vshll.u32 %v239, 16
      %v364 = vrot.slane %v362, 5
      %v365 = vor.u32 %v361, %v364
      %v366 = vrot.slane %v365, 4
      %v368 = vshll.u32 %v240, 16
      %v370 = vrot.slane %v368, 5
      %v371 = vsel %vm245, %v366, %v370
      %v380 = vunpack.c.l.b16 %v223
      %v381 = vunpack.c.l.b16 %v225
      %v382 = vunpack.c.l.b16 %v227
      %v383 = vunpack.c.l.b16 %v229
      %v384 = vunpack.c.l.b16 %v231
      %v385 = vunpack.c.l.b16 %v233
      %v386 = vunpack.c.l.b16 %v235
      %v387 = vunpack.c.l.b16 %v237
      %v388 = vpack.c.b16 %v381, %v380
      %v389 = vpack.c.b16 %v383, %v382
      %v390 = vpack.c.b16 %v385, %v384
      %v391 = vpack.c.b16 %v387, %v386
      %v396 = vunpack.c.l.b16 %v259
      %v397 = vunpack.c.l.b16 %v273
      %v398 = vunpack.c.l.b16 %v287
      %v399 = vunpack.c.l.b16 %v301
      %v400 = vunpack.c.l.b16 %v315
      %v401 = vunpack.c.l.b16 %v329
      %v402 = vunpack.c.l.b16 %v343
      %v403 = vunpack.c.l.b16 %v357
      %v404 = vpack.c.b16 %v397, %v396
      %v405 = vpack.c.b16 %v399, %v398
      %v406 = vpack.c.b16 %v401, %v400
      %v407 = vpack.c.b16 %v403, %v402
      %v413 = vunpack.c.l.b16 %v239
      %v414 = vpack.c.b16 %v382, %v381
      %v415 = vpack.c.b16 %v384, %v383
      %v416 = vpack.c.b16 %v386, %v385
      %v417 = vpack.c.b16 %v413, %v387
      %v422 = vunpack.c.l.b16 %v371
      %v423 = vpack.c.b16 %v398, %v397
      %v424 = vpack.c.b16 %v400, %v399
      %v425 = vpack.c.b16 %v402, %v401
      %v426 = vpack.c.b16 %v422, %v403
      %v431 = vld [vmem:[%s210] sm:$0xf]
      %v432 = vld [vmem:[%s210 + $0x4] sm:$0xf]
      %v433 = vld [vmem:[%s210 + $0x8] sm:$0xf]
      %v434 = vld [vmem:[%s210 + $0xc] sm:$0xf]
      %v435 = vld [vmem:[%s210 + $0x10] sm:$0xf]
      %v436 = vld [vmem:[%s210 + $0x14] sm:$0xf]
      %v437 = vld [vmem:[%s210 + $0x18] sm:$0xf]
      %v438 = vld [vmem:[%s210 + $0x1c] sm:$0xf]
      %v439 = vld [vmem:[%s210 + $0x20] sm:$0xf]
      %v440 = vld [vmem:[%s210 + $0x24] sm:$0xf]
      %v441 = vld [vmem:[%s210 + $0x28] sm:$0xf]
      %v442 = vld [vmem:[%s210 + $0x2c] sm:$0xf]
      %v443 = vld [vmem:[%s210 + $0x30] sm:$0xf]
      %v444 = vld [vmem:[%s210 + $0x34] sm:$0xf]
      %v445 = vld [vmem:[%s210 + $0x38] sm:$0xf]
      %v446 = vld [vmem:[%s210 + $0x3c] sm:$0xf]
      %v447 = vld [vmem:[%s210 + $0x40] sm:$0xf]
      %v448 = vld [vmem:[%s210 + $0x44] sm:$0xf]
      %v449 = vld [vmem:[%s210 + $0x48] sm:$0xf]
      %v450 = vld [vmem:[%s210 + $0x4c] sm:$0xf]
      %v451 = vld [vmem:[%s210 + $0x50] sm:$0xf]
      %v452 = vld [vmem:[%s210 + $0x54] sm:$0xf]
      %v453 = vld [vmem:[%s210 + $0x58] sm:$0xf]
      %v454 = vld [vmem:[%s210 + $0x5c] sm:$0xf]
      %v455 = vld [vmem:[%s210 + $0x60] sm:$0xf]
      %v456 = vld [vmem:[%s210 + $0x64] sm:$0xf]
      %v457 = vld [vmem:[%s210 + $0x68] sm:$0xf]
      %v458 = vld [vmem:[%s210 + $0x6c] sm:$0xf]
      %v459 = vld [vmem:[%s210 + $0x70] sm:$0xf]
      %v460 = vld [vmem:[%s210 + $0x74] sm:$0xf]
      %v461 = vld [vmem:[%s210 + $0x78] sm:$0xf]
      %v462 = vld [vmem:[%s210 + $0x7c] sm:$0xf]
      %v463 = vld [vmem:[%s210 + $0x80] sm:$0xf]
      %v464 = vld [vmem:[%s210 + $0x84] sm:$0xf]
      %v465 = vld [vmem:[%s210 + $0x88] sm:$0xf]
      %v466 = vld [vmem:[%s210 + $0x8c] sm:$0xf]
      %v467 = vld [vmem:[%s210 + $0x90] sm:$0xf]
      %v468 = vld [vmem:[%s210 + $0x94] sm:$0xf]
      %v469 = vld [vmem:[%s210 + $0x98] sm:$0xf]
      %v470 = vld [vmem:[%s210 + $0x9c] sm:$0xf]
      %v471 = vld [vmem:[%s210 + $0xa0] sm:$0xf]
      %v472 = vld [vmem:[%s210 + $0xa4] sm:$0xf]
      %v473 = vld [vmem:[%s210 + $0xa8] sm:$0xf]
      %v474 = vld [vmem:[%s210 + $0xac] sm:$0xf]
      %v475 = vld [vmem:[%s210 + $0xb0] sm:$0xf]
      %v476 = vld [vmem:[%s210 + $0xb4] sm:$0xf]
      %v477 = vld [vmem:[%s210 + $0xb8] sm:$0xf]
      %v478 = vld [vmem:[%s210 + $0xbc] sm:$0xf]
      %v479 = vld [vmem:[%s210 + $0xc0] sm:$0xf]
      %v480 = vld [vmem:[%s210 + $0xc4] sm:$0xf]
      %v481 = vld [vmem:[%s210 + $0xc8] sm:$0xf]
      %v482 = vld [vmem:[%s210 + $0xcc] sm:$0xf]
      %v483 = vld [vmem:[%s210 + $0xd0] sm:$0xf]
      %v484 = vld [vmem:[%s210 + $0xd4] sm:$0xf]
      %v485 = vld [vmem:[%s210 + $0xd8] sm:$0xf]
      %v486 = vld [vmem:[%s210 + $0xdc] sm:$0xf]
      %v487 = vld [vmem:[%s210 + $0xe0] sm:$0xf]
      %v488 = vld [vmem:[%s210 + $0xe4] sm:$0xf]
      %v489 = vld [vmem:[%s210 + $0xe8] sm:$0xf]
      %v490 = vld [vmem:[%s210 + $0xec] sm:$0xf]
      %v491 = vld [vmem:[%s210 + $0xf0] sm:$0xf]
      %v492 = vld [vmem:[%s210 + $0xf4] sm:$0xf]
      %v493 = vld [vmem:[%s210 + $0xf8] sm:$0xf]
      %v494 = vld [vmem:[%s210 + $0xfc] sm:$0xf]
      %v495 = vld [vmem:[%s213] sm:$0x1]
      %v497 = vlaneseq
      %v498 = vshrl.u32 %v497, 7
      %v499 = vsub.s32 0, %v498
      %v500 = vrot.slane %v495, %v499
      %v566 = vunpack.c.l.b16 %v431
      %v567 = vunpack.c.l.b16 %v432
      %v568 = vunpack.c.l.b16 %v433
      %v569 = vunpack.c.l.b16 %v434
      %v570 = vunpack.c.l.b16 %v435
      %v571 = vunpack.c.l.b16 %v436
      %v572 = vunpack.c.l.b16 %v437
      %v573 = vunpack.c.l.b16 %v438
      %v574 = vunpack.c.l.b16 %v439
      %v575 = vunpack.c.l.b16 %v440
      %v576 = vunpack.c.l.b16 %v441
      %v577 = vunpack.c.l.b16 %v442
      %v578 = vunpack.c.l.b16 %v443
      %v579 = vunpack.c.l.b16 %v444
      %v580 = vunpack.c.l.b16 %v445
      %v581 = vunpack.c.l.b16 %v446
      %v582 = vunpack.c.l.b16 %v447
      %v583 = vunpack.c.l.b16 %v448
      %v584 = vunpack.c.l.b16 %v449
      %v585 = vunpack.c.l.b16 %v450
      %v586 = vunpack.c.l.b16 %v451
      %v587 = vunpack.c.l.b16 %v452
      %v588 = vunpack.c.l.b16 %v453
      %v589 = vunpack.c.l.b16 %v454
      %v590 = vunpack.c.l.b16 %v455
      %v591 = vunpack.c.l.b16 %v456
      %v592 = vunpack.c.l.b16 %v457
      %v593 = vunpack.c.l.b16 %v458
      %v594 = vunpack.c.l.b16 %v459
      %v595 = vunpack.c.l.b16 %v460
      %v596 = vunpack.c.l.b16 %v461
      %v597 = vunpack.c.l.b16 %v462
      %v598 = vunpack.c.l.b16 %v463
      %v599 = vunpack.c.l.b16 %v464
      %v600 = vunpack.c.l.b16 %v465
      %v601 = vunpack.c.l.b16 %v466
      %v602 = vunpack.c.l.b16 %v467
      %v603 = vunpack.c.l.b16 %v468
      %v604 = vunpack.c.l.b16 %v469
      %v605 = vunpack.c.l.b16 %v470
      %v606 = vunpack.c.l.b16 %v471
      %v607 = vunpack.c.l.b16 %v472
      %v608 = vunpack.c.l.b16 %v473
      %v609 = vunpack.c.l.b16 %v474
      %v610 = vunpack.c.l.b16 %v475
      %v611 = vunpack.c.l.b16 %v476
      %v612 = vunpack.c.l.b16 %v477
      %v613 = vunpack.c.l.b16 %v478
      %v614 = vunpack.c.l.b16 %v479
      %v615 = vunpack.c.l.b16 %v480
      %v616 = vunpack.c.l.b16 %v481
      %v617 = vunpack.c.l.b16 %v482
      %v618 = vunpack.c.l.b16 %v483
      %v619 = vunpack.c.l.b16 %v484
      %v620 = vunpack.c.l.b16 %v485
      %v621 = vunpack.c.l.b16 %v486
      %v622 = vunpack.c.l.b16 %v487
      %v623 = vunpack.c.l.b16 %v488
      %v624 = vunpack.c.l.b16 %v489
      %v625 = vunpack.c.l.b16 %v490
      %v626 = vunpack.c.l.b16 %v491
      %v627 = vunpack.c.l.b16 %v492
      %v628 = vunpack.c.l.b16 %v493
      %v629 = vunpack.c.l.b16 %v494
      %v630 = vpack.c.b16 %v567, %v566
      %v631 = vpack.c.b16 %v569, %v568
      %v632 = vpack.c.b16 %v571, %v570
      %v633 = vpack.c.b16 %v573, %v572
      %v634 = vpack.c.b16 %v575, %v574
      %v635 = vpack.c.b16 %v577, %v576
      %v636 = vpack.c.b16 %v579, %v578
      %v637 = vpack.c.b16 %v581, %v580
      %v638 = vpack.c.b16 %v583, %v582
      %v639 = vpack.c.b16 %v585, %v584
      %v640 = vpack.c.b16 %v587, %v586
      %v641 = vpack.c.b16 %v589, %v588
      %v642 = vpack.c.b16 %v591, %v590
      %v643 = vpack.c.b16 %v593, %v592
      %v644 = vpack.c.b16 %v595, %v594
      %v645 = vpack.c.b16 %v597, %v596
      %v646 = vpack.c.b16 %v599, %v598
      %v647 = vpack.c.b16 %v601, %v600
      %v648 = vpack.c.b16 %v603, %v602
      %v649 = vpack.c.b16 %v605, %v604
      %v650 = vpack.c.b16 %v607, %v606
      %v651 = vpack.c.b16 %v609, %v608
      %v652 = vpack.c.b16 %v611, %v610
      %v653 = vpack.c.b16 %v613, %v612
      %v654 = vpack.c.b16 %v615, %v614
      %v655 = vpack.c.b16 %v617, %v616
      %v656 = vpack.c.b16 %v619, %v618
      %v657 = vpack.c.b16 %v621, %v620
      %v658 = vpack.c.b16 %v623, %v622
      %v659 = vpack.c.b16 %v625, %v624
      %v660 = vpack.c.b16 %v627, %v626
      %v661 = vpack.c.b16 %v629, %v628
      %694 = vmatprep.subr.bf16.mxu0 0
      %695 = vmatpush1.bf16.msra.mxu0 %v637
      %696 = vmatprep.subr.bf16.mxu0 0
      %697 = vmatpush1.bf16.msra.mxu0 %v636
      %698 = vmatprep.subr.bf16.mxu0 0
      %699 = vmatpush1.bf16.msra.mxu0 %v635
      %700 = vmatprep.subr.bf16.mxu0 0
      %701 = vmatpush1.bf16.msra.mxu0 %v634
      %702 = vmatprep.subr.bf16.mxu0 0
      %703 = vmatpush1.bf16.msra.mxu0 %v633
      %704 = vmatprep.subr.bf16.mxu0 0
      %705 = vmatpush1.bf16.msra.mxu0 %v632
      %706 = vmatprep.subr.bf16.mxu0 0
      %707 = vmatpush1.bf16.msra.mxu0 %v631
      %708 = vmatprep.subr.bf16.mxu0 0
      %709 = vmatpush1.bf16.msra.mxu0 %v630
      %710 = vmatprep.subr.bf16.mxu0 0
      %711 = vmatpush2.bf16.msra.mxu0 %v645
      %712 = vmatprep.subr.bf16.mxu0 0
      %713 = vmatpush2.bf16.msra.mxu0 %v644
      %714 = vmatprep.subr.bf16.mxu0 0
      %715 = vmatpush2.bf16.msra.mxu0 %v643
      %716 = vmatprep.subr.bf16.mxu0 0
      %717 = vmatpush2.bf16.msra.mxu0 %v642
      %718 = vmatprep.subr.bf16.mxu0 0
      %719 = vmatpush2.bf16.msra.mxu0 %v641
      %720 = vmatprep.subr.bf16.mxu0 0
      %721 = vmatpush2.bf16.msra.mxu0 %v640
      %722 = vmatprep.subr.bf16.mxu0 0
      %723 = vmatpush2.bf16.msra.mxu0 %v639
      %724 = vmatprep.subr.bf16.mxu0 0
      %725 = vmatpush2.bf16.msra.mxu0 %v638
      %726 = vmatprep.mubr.bf16.mxu0 %v404
      %727 = vmatmul.mubr.bf16.gmra.mxu0 %v388
      %v728 = vpop.f32.mrf.mxu0
      %v729 = vadd.f32 %v500, %v728
      %v730 = vpop.f32.mrf.mxu0
      %v731 = vpop.f32.mrf.mxu0
      %v732 = vadd.f32 %v500, %v731
      %v733 = vpop.f32.mrf.mxu0
      %734 = vmatprep.mubr.bf16.mxu0 %v405
      %735 = vmatmul.mubr.bf16.gmra.mxu0 %v389
      %v736 = vpop.f32.mrf.mxu0
      %v737 = vadd.f32 %v500, %v736
      %v738 = vpop.f32.mrf.mxu0
      %v739 = vpop.f32.mrf.mxu0
      %v740 = vadd.f32 %v500, %v739
      %v741 = vpop.f32.mrf.mxu0
      %742 = vmatprep.mubr.bf16.mxu0 %v406
      %743 = vmatmul.mubr.bf16.gmra.mxu0 %v390
      %v744 = vpop.f32.mrf.mxu0
      %v745 = vadd.f32 %v500, %v744
      %v746 = vpop.f32.mrf.mxu0
      %v747 = vpop.f32.mrf.mxu0
      %v748 = vadd.f32 %v500, %v747
      %v749 = vpop.f32.mrf.mxu0
      %750 = vmatprep.mubr.bf16.mxu0 %v407
      %751 = vmatmul.mubr.bf16.gmra.mxu0 %v391
      %v752 = vpop.f32.mrf.mxu0
      %v753 = vadd.f32 %v500, %v752
      %v754 = vpop.f32.mrf.mxu0
      %v755 = vpop.f32.mrf.mxu0
      %v756 = vadd.f32 %v500, %v755
      %v757 = vpop.f32.mrf.mxu0
      %758 = vdwg.mxu0
      %759 = vmatprep.subr.bf16.mxu0 0
      %760 = vmatpush1.bf16.msra.mxu0 %v653
      %761 = vmatprep.subr.bf16.mxu0 0
      %762 = vmatpush1.bf16.msra.mxu0 %v652
      %763 = vmatprep.subr.bf16.mxu0 0
      %764 = vmatpush1.bf16.msra.mxu0 %v651
      %765 = vmatprep.subr.bf16.mxu0 0
      %766 = vmatpush1.bf16.msra.mxu0 %v650
      %767 = vmatprep.subr.bf16.mxu0 0
      %768 = vmatpush1.bf16.msra.mxu0 %v649
      %769 = vmatprep.subr.bf16.mxu0 0
      %770 = vmatpush1.bf16.msra.mxu0 %v648
      %771 = vmatprep.subr.bf16.mxu0 0
      %772 = vmatpush1.bf16.msra.mxu0 %v647
      %773 = vmatprep.subr.bf16.mxu0 0
      %774 = vmatpush1.bf16.msra.mxu0 %v646
      %775 = vmatprep.subr.bf16.mxu0 0
      %776 = vmatpush2.bf16.msra.mxu0 %v661
      %777 = vmatprep.subr.bf16.mxu0 0
      %778 = vmatpush2.bf16.msra.mxu0 %v660
      %779 = vmatprep.subr.bf16.mxu0 0
      %780 = vmatpush2.bf16.msra.mxu0 %v659
      %781 = vmatprep.subr.bf16.mxu0 0
      %782 = vmatpush2.bf16.msra.mxu0 %v658
      %783 = vmatprep.subr.bf16.mxu0 0
      %784 = vmatpush2.bf16.msra.mxu0 %v657
      %785 = vmatprep.subr.bf16.mxu0 0
      %786 = vmatpush2.bf16.msra.mxu0 %v656
      %787 = vmatprep.subr.bf16.mxu0 0
      %788 = vmatpush2.bf16.msra.mxu0 %v655
      %789 = vmatprep.subr.bf16.mxu0 0
      %790 = vmatpush2.bf16.msra.mxu0 %v654
      %791 = vmatprep.mubr.bf16.mxu0 %v423
      %792 = vmatmul.mubr.bf16.gmra.mxu0 %v414
      %v793 = vpop.f32.mrf.mxu0
      %v794 = vadd.f32 %v729, %v793
      %v795 = vpop.f32.mrf.mxu0
      %v796 = vpop.f32.mrf.mxu0
      %v797 = vadd.f32 %v732, %v796
      %v798 = vpop.f32.mrf.mxu0
      %799 = vmatprep.mubr.bf16.mxu0 %v424
      %800 = vmatmul.mubr.bf16.gmra.mxu0 %v415
      %v801 = vpop.f32.mrf.mxu0
      %v802 = vadd.f32 %v737, %v801
      %v803 = vpop.f32.mrf.mxu0
      %v804 = vpop.f32.mrf.mxu0
      %v805 = vadd.f32 %v740, %v804
      %v806 = vpop.f32.mrf.mxu0
      %807 = vmatprep.mubr.bf16.mxu0 %v425
      %808 = vmatmul.mubr.bf16.gmra.mxu0 %v416
      %v809 = vpop.f32.mrf.mxu0
      %v810 = vadd.f32 %v745, %v809
      %v811 = vpop.f32.mrf.mxu0
      %v812 = vpop.f32.mrf.mxu0
      %v813 = vadd.f32 %v748, %v812
      %v814 = vpop.f32.mrf.mxu0
      %815 = vmatprep.mubr.bf16.mxu0 %v426
      %816 = vmatmul.mubr.bf16.gmra.mxu0 %v417
      %v817 = vpop.f32.mrf.mxu0
      %v818 = vadd.f32 %v753, %v817
      %v819 = vpop.f32.mrf.mxu0
      %v820 = vpop.f32.mrf.mxu0
      %v821 = vadd.f32 %v756, %v820
      %v822 = vpop.f32.mrf.mxu0
      %823 = vdwg.mxu0
      %v824 = vpack.c.bf16 %v794, %v794
      %v825 = vpack.c.bf16 %v797, %v797
      %v826 = vpack.c.bf16 %v802, %v802
      %v827 = vpack.c.bf16 %v805, %v805
      %v828 = vpack.c.bf16 %v810, %v810
      %v829 = vpack.c.bf16 %v813, %v813
      %v830 = vpack.c.bf16 %v818, %v818
      %v831 = vpack.c.bf16 %v821, %v821
      %vm832 = vcmask 519168
      %833 = vst.msk [vmem:[%s221] sm:$0xf] %vm832, %v824
      %834 = vst.msk [vmem:[%s221 + $0x4] sm:$0xf] %vm832, %v825
      %835 = vst.msk [vmem:[%s221 + $0x8] sm:$0xf] %vm832, %v826
      %836 = vst.msk [vmem:[%s221 + $0xc] sm:$0xf] %vm832, %v827
      %837 = vst.msk [vmem:[%s221 + $0x10] sm:$0xf] %vm832, %v828
      %838 = vst.msk [vmem:[%s221 + $0x14] sm:$0xf] %vm832, %v829
      %839 = vst.msk [vmem:[%s221 + $0x18] sm:$0xf] %vm832, %v830
      %840 = vst.msk [vmem:[%s221 + $0x1c] sm:$0xf] %vm832, %v831
      %vm849 = vcmask 1042432
      %vm850 = vcmask 1046532
      %vm851 = vmor %vm849, %vm850
      %v852 = vrot.slane %v223, 5
      %v853 = vrot.slane %v852, 4
      %v854 = vrot.slane %v224, 5
      %v855 = vsel %vm851, %v853, %v854
      %v856 = vrot.slane %v225, 5
      %v857 = vrot.slane %v856, 4
      %v858 = vrot.slane %v226, 5
      %v859 = vsel %vm851, %v857, %v858
      %v860 = vrot.slane %v227, 5
      %v861 = vrot.slane %v860, 4
      %v862 = vrot.slane %v228, 5
      %v863 = vsel %vm851, %v861, %v862
      %v864 = vrot.slane %v229, 5
      %v865 = vrot.slane %v864, 4
      %v866 = vrot.slane %v230, 5
      %v867 = vsel %vm851, %v865, %v866
      %v868 = vrot.slane %v231, 5
      %v869 = vrot.slane %v868, 4
      %v870 = vrot.slane %v232, 5
      %v871 = vsel %vm851, %v869, %v870
      %v872 = vrot.slane %v233, 5
      %v873 = vrot.slane %v872, 4
      %v874 = vrot.slane %v234, 5
      %v875 = vsel %vm851, %v873, %v874
      %v876 = vrot.slane %v235, 5
      %v877 = vrot.slane %v876, 4
      %v878 = vrot.slane %v236, 5
      %v879 = vsel %vm851, %v877, %v878
      %v880 = vrot.slane %v237, 5
      %v881 = vrot.slane %v880, 4
      %v882 = vrot.slane %v238, 5
      %v883 = vsel %vm851, %v881, %v882
      %v885 = vrot.slane %v239, 5
      %v886 = vrot.slane %v885, 4
      %v887 = vrot.slane %v240, 5
      %v888 = vsel %vm851, %v886, %v887
      %v889 = vunpack.c.l.b16 %v855
      %v890 = vunpack.c.l.b16 %v859
      %v891 = vunpack.c.l.b16 %v863
      %v892 = vunpack.c.l.b16 %v867
      %v893 = vunpack.c.l.b16 %v871
      %v894 = vunpack.c.l.b16 %v875
      %v895 = vunpack.c.l.b16 %v879
      %v896 = vunpack.c.l.b16 %v883
      %v897 = vpack.c.b16 %v890, %v889
      %v898 = vpack.c.b16 %v892, %v891
      %v899 = vpack.c.b16 %v894, %v893
      %v900 = vpack.c.b16 %v896, %v895
      %v905 = vunpack.c.l.b16 %v888
      %v906 = vpack.c.b16 %v891, %v890
      %v907 = vpack.c.b16 %v893, %v892
      %v908 = vpack.c.b16 %v895, %v894
      %v909 = vpack.c.b16 %v905, %v896
      %s914 = scalar_lea.vmem %s210, 256
      %v915 = vld [vmem:[%s914] sm:$0xf]
      %v916 = vld [vmem:[%s914 + $0x4] sm:$0xf]
      %v917 = vld [vmem:[%s914 + $0x8] sm:$0xf]
      %v918 = vld [vmem:[%s914 + $0xc] sm:$0xf]
      %v919 = vld [vmem:[%s914 + $0x10] sm:$0xf]
      %v920 = vld [vmem:[%s914 + $0x14] sm:$0xf]
      %v921 = vld [vmem:[%s914 + $0x18] sm:$0xf]
      %v922 = vld [vmem:[%s914 + $0x1c] sm:$0xf]
      %v923 = vld [vmem:[%s914 + $0x20] sm:$0xf]
      %v924 = vld [vmem:[%s914 + $0x24] sm:$0xf]
      %v925 = vld [vmem:[%s914 + $0x28] sm:$0xf]
      %v926 = vld [vmem:[%s914 + $0x2c] sm:$0xf]
      %v927 = vld [vmem:[%s914 + $0x30] sm:$0xf]
      %v928 = vld [vmem:[%s914 + $0x34] sm:$0xf]
      %v929 = vld [vmem:[%s914 + $0x38] sm:$0xf]
      %v930 = vld [vmem:[%s914 + $0x3c] sm:$0xf]
      %v931 = vld [vmem:[%s914 + $0x40] sm:$0xf]
      %v932 = vld [vmem:[%s914 + $0x44] sm:$0xf]
      %v933 = vld [vmem:[%s914 + $0x48] sm:$0xf]
      %v934 = vld [vmem:[%s914 + $0x4c] sm:$0xf]
      %v935 = vld [vmem:[%s914 + $0x50] sm:$0xf]
      %v936 = vld [vmem:[%s914 + $0x54] sm:$0xf]
      %v937 = vld [vmem:[%s914 + $0x58] sm:$0xf]
      %v938 = vld [vmem:[%s914 + $0x5c] sm:$0xf]
      %v939 = vld [vmem:[%s914 + $0x60] sm:$0xf]
      %v940 = vld [vmem:[%s914 + $0x64] sm:$0xf]
      %v941 = vld [vmem:[%s914 + $0x68] sm:$0xf]
      %v942 = vld [vmem:[%s914 + $0x6c] sm:$0xf]
      %v943 = vld [vmem:[%s914 + $0x70] sm:$0xf]
      %v944 = vld [vmem:[%s914 + $0x74] sm:$0xf]
      %v945 = vld [vmem:[%s914 + $0x78] sm:$0xf]
      %v946 = vld [vmem:[%s914 + $0x7c] sm:$0xf]
      %v947 = vld [vmem:[%s914 + $0x80] sm:$0xf]
      %v948 = vld [vmem:[%s914 + $0x84] sm:$0xf]
      %v949 = vld [vmem:[%s914 + $0x88] sm:$0xf]
      %v950 = vld [vmem:[%s914 + $0x8c] sm:$0xf]
      %v951 = vld [vmem:[%s914 + $0x90] sm:$0xf]
      %v952 = vld [vmem:[%s914 + $0x94] sm:$0xf]
      %v953 = vld [vmem:[%s914 + $0x98] sm:$0xf]
      %v954 = vld [vmem:[%s914 + $0x9c] sm:$0xf]
      %v955 = vld [vmem:[%s914 + $0xa0] sm:$0xf]
      %v956 = vld [vmem:[%s914 + $0xa4] sm:$0xf]
      %v957 = vld [vmem:[%s914 + $0xa8] sm:$0xf]
      %v958 = vld [vmem:[%s914 + $0xac] sm:$0xf]
      %v959 = vld [vmem:[%s914 + $0xb0] sm:$0xf]
      %v960 = vld [vmem:[%s914 + $0xb4] sm:$0xf]
      %v961 = vld [vmem:[%s914 + $0xb8] sm:$0xf]
      %v962 = vld [vmem:[%s914 + $0xbc] sm:$0xf]
      %v963 = vld [vmem:[%s914 + $0xc0] sm:$0xf]
      %v964 = vld [vmem:[%s914 + $0xc4] sm:$0xf]
      %v965 = vld [vmem:[%s914 + $0xc8] sm:$0xf]
      %v966 = vld [vmem:[%s914 + $0xcc] sm:$0xf]
      %v967 = vld [vmem:[%s914 + $0xd0] sm:$0xf]
      %v968 = vld [vmem:[%s914 + $0xd4] sm:$0xf]
      %v969 = vld [vmem:[%s914 + $0xd8] sm:$0xf]
      %v970 = vld [vmem:[%s914 + $0xdc] sm:$0xf]
      %v971 = vld [vmem:[%s914 + $0xe0] sm:$0xf]
      %v972 = vld [vmem:[%s914 + $0xe4] sm:$0xf]
      %v973 = vld [vmem:[%s914 + $0xe8] sm:$0xf]
      %v974 = vld [vmem:[%s914 + $0xec] sm:$0xf]
      %v975 = vld [vmem:[%s914 + $0xf0] sm:$0xf]
      %v976 = vld [vmem:[%s914 + $0xf4] sm:$0xf]
      %v977 = vld [vmem:[%s914 + $0xf8] sm:$0xf]
      %v978 = vld [vmem:[%s914 + $0xfc] sm:$0xf]
      %v979 = vld [vmem:[%s213] sm:$0x1]
      %v981 = vlaneseq
      %v982 = vshrl.u32 %v981, 7
      %v983 = vsub.s32 0, %v982
      %v984 = vrot.slane %v979, %v983
      %v1050 = vunpack.c.l.b16 %v915
      %v1051 = vunpack.c.l.b16 %v916
      %v1052 = vunpack.c.l.b16 %v917
      %v1053 = vunpack.c.l.b16 %v918
      %v1054 = vunpack.c.l.b16 %v919
      %v1055 = vunpack.c.l.b16 %v920
      %v1056 = vunpack.c.l.b16 %v921
      %v1057 = vunpack.c.l.b16 %v922
      %v1058 = vunpack.c.l.b16 %v923
      %v1059 = vunpack.c.l.b16 %v924
      %v1060 = vunpack.c.l.b16 %v925
      %v1061 = vunpack.c.l.b16 %v926
      %v1062 = vunpack.c.l.b16 %v927
      %v1063 = vunpack.c.l.b16 %v928
      %v1064 = vunpack.c.l.b16 %v929
      %v1065 = vunpack.c.l.b16 %v930
      %v1066 = vunpack.c.l.b16 %v931
      %v1067 = vunpack.c.l.b16 %v932
      %v1068 = vunpack.c.l.b16 %v933
      %v1069 = vunpack.c.l.b16 %v934
      %v1070 = vunpack.c.l.b16 %v935
      %v1071 = vunpack.c.l.b16 %v936
      %v1072 = vunpack.c.l.b16 %v937
      %v1073 = vunpack.c.l.b16 %v938
      %v1074 = vunpack.c.l.b16 %v939
      %v1075 = vunpack.c.l.b16 %v940
      %v1076 = vunpack.c.l.b16 %v941
      %v1077 = vunpack.c.l.b16 %v942
      %v1078 = vunpack.c.l.b16 %v943
      %v1079 = vunpack.c.l.b16 %v944
      %v1080 = vunpack.c.l.b16 %v945
      %v1081 = vunpack.c.l.b16 %v946
      %v1082 = vunpack.c.l.b16 %v947
      %v1083 = vunpack.c.l.b16 %v948
      %v1084 = vunpack.c.l.b16 %v949
      %v1085 = vunpack.c.l.b16 %v950
      %v1086 = vunpack.c.l.b16 %v951
      %v1087 = vunpack.c.l.b16 %v952
      %v1088 = vunpack.c.l.b16 %v953
      %v1089 = vunpack.c.l.b16 %v954
      %v1090 = vunpack.c.l.b16 %v955
      %v1091 = vunpack.c.l.b16 %v956
      %v1092 = vunpack.c.l.b16 %v957
      %v1093 = vunpack.c.l.b16 %v958
      %v1094 = vunpack.c.l.b16 %v959
      %v1095 = vunpack.c.l.b16 %v960
      %v1096 = vunpack.c.l.b16 %v961
      %v1097 = vunpack.c.l.b16 %v962
      %v1098 = vunpack.c.l.b16 %v963
      %v1099 = vunpack.c.l.b16 %v964
      %v1100 = vunpack.c.l.b16 %v965
      %v1101 = vunpack.c.l.b16 %v966
      %v1102 = vunpack.c.l.b16 %v967
      %v1103 = vunpack.c.l.b16 %v968
      %v1104 = vunpack.c.l.b16 %v969
      %v1105 = vunpack.c.l.b16 %v970
      %v1106 = vunpack.c.l.b16 %v971
      %v1107 = vunpack.c.l.b16 %v972
      %v1108 = vunpack.c.l.b16 %v973
      %v1109 = vunpack.c.l.b16 %v974
      %v1110 = vunpack.c.l.b16 %v975
      %v1111 = vunpack.c.l.b16 %v976
      %v1112 = vunpack.c.l.b16 %v977
      %v1113 = vunpack.c.l.b16 %v978
      %v1114 = vpack.c.b16 %v1051, %v1050
      %v1115 = vpack.c.b16 %v1053, %v1052
      %v1116 = vpack.c.b16 %v1055, %v1054
      %v1117 = vpack.c.b16 %v1057, %v1056
      %v1118 = vpack.c.b16 %v1059, %v1058
      %v1119 = vpack.c.b16 %v1061, %v1060
      %v1120 = vpack.c.b16 %v1063, %v1062
      %v1121 = vpack.c.b16 %v1065, %v1064
      %v1122 = vpack.c.b16 %v1067, %v1066
      %v1123 = vpack.c.b16 %v1069, %v1068
      %v1124 = vpack.c.b16 %v1071, %v1070
      %v1125 = vpack.c.b16 %v1073, %v1072
      %v1126 = vpack.c.b16 %v1075, %v1074
      %v1127 = vpack.c.b16 %v1077, %v1076
      %v1128 = vpack.c.b16 %v1079, %v1078
      %v1129 = vpack.c.b16 %v1081, %v1080
      %v1130 = vpack.c.b16 %v1083, %v1082
      %v1131 = vpack.c.b16 %v1085, %v1084
      %v1132 = vpack.c.b16 %v1087, %v1086
      %v1133 = vpack.c.b16 %v1089, %v1088
      %v1134 = vpack.c.b16 %v1091, %v1090
      %v1135 = vpack.c.b16 %v1093, %v1092
      %v1136 = vpack.c.b16 %v1095, %v1094
      %v1137 = vpack.c.b16 %v1097, %v1096
      %v1138 = vpack.c.b16 %v1099, %v1098
      %v1139 = vpack.c.b16 %v1101, %v1100
      %v1140 = vpack.c.b16 %v1103, %v1102
      %v1141 = vpack.c.b16 %v1105, %v1104
      %v1142 = vpack.c.b16 %v1107, %v1106
      %v1143 = vpack.c.b16 %v1109, %v1108
      %v1144 = vpack.c.b16 %v1111, %v1110
      %v1145 = vpack.c.b16 %v1113, %v1112
      %1178 = vmatprep.subr.bf16.mxu0 0
      %1179 = vmatpush1.bf16.msra.mxu0 %v1121
      %1180 = vmatprep.subr.bf16.mxu0 0
      %1181 = vmatpush1.bf16.msra.mxu0 %v1120
      %1182 = vmatprep.subr.bf16.mxu0 0
      %1183 = vmatpush1.bf16.msra.mxu0 %v1119
      %1184 = vmatprep.subr.bf16.mxu0 0
      %1185 = vmatpush1.bf16.msra.mxu0 %v1118
      %1186 = vmatprep.subr.bf16.mxu0 0
      %1187 = vmatpush1.bf16.msra.mxu0 %v1117
      %1188 = vmatprep.subr.bf16.mxu0 0
      %1189 = vmatpush1.bf16.msra.mxu0 %v1116
      %1190 = vmatprep.subr.bf16.mxu0 0
      %1191 = vmatpush1.bf16.msra.mxu0 %v1115
      %1192 = vmatprep.subr.bf16.mxu0 0
      %1193 = vmatpush1.bf16.msra.mxu0 %v1114
      %1194 = vmatprep.subr.bf16.mxu0 0
      %1195 = vmatpush2.bf16.msra.mxu0 %v1129
      %1196 = vmatprep.subr.bf16.mxu0 0
      %1197 = vmatpush2.bf16.msra.mxu0 %v1128
      %1198 = vmatprep.subr.bf16.mxu0 0
      %1199 = vmatpush2.bf16.msra.mxu0 %v1127
      %1200 = vmatprep.subr.bf16.mxu0 0
      %1201 = vmatpush2.bf16.msra.mxu0 %v1126
      %1202 = vmatprep.subr.bf16.mxu0 0
      %1203 = vmatpush2.bf16.msra.mxu0 %v1125
      %1204 = vmatprep.subr.bf16.mxu0 0
      %1205 = vmatpush2.bf16.msra.mxu0 %v1124
      %1206 = vmatprep.subr.bf16.mxu0 0
      %1207 = vmatpush2.bf16.msra.mxu0 %v1123
      %1208 = vmatprep.subr.bf16.mxu0 0
      %1209 = vmatpush2.bf16.msra.mxu0 %v1122
      %1210 = vmatprep.mubr.bf16.mxu0 %v897
      %1211 = vmatmul.mubr.bf16.gmra.mxu0 %v404
      %v1212 = vpop.f32.mrf.mxu0
      %v1213 = vadd.f32 %v984, %v1212
      %v1214 = vpop.f32.mrf.mxu0
      %v1215 = vpop.f32.mrf.mxu0
      %v1216 = vadd.f32 %v984, %v1215
      %v1217 = vpop.f32.mrf.mxu0
      %1218 = vmatprep.mubr.bf16.mxu0 %v898
      %1219 = vmatmul.mubr.bf16.gmra.mxu0 %v405
      %v1220 = vpop.f32.mrf.mxu0
      %v1221 = vadd.f32 %v984, %v1220
      %v1222 = vpop.f32.mrf.mxu0
      %v1223 = vpop.f32.mrf.mxu0
      %v1224 = vadd.f32 %v984, %v1223
      %v1225 = vpop.f32.mrf.mxu0
      %1226 = vmatprep.mubr.bf16.mxu0 %v899
      %1227 = vmatmul.mubr.bf16.gmra.mxu0 %v406
      %v1228 = vpop.f32.mrf.mxu0
      %v1229 = vadd.f32 %v984, %v1228
      %v1230 = vpop.f32.mrf.mxu0
      %v1231 = vpop.f32.mrf.mxu0
      %v1232 = vadd.f32 %v984, %v1231
      %v1233 = vpop.f32.mrf.mxu0
      %1234 = vmatprep.mubr.bf16.mxu0 %v900
      %1235 = vmatmul.mubr.bf16.gmra.mxu0 %v407
      %v1236 = vpop.f32.mrf.mxu0
      %v1237 = vadd.f32 %v984, %v1236
      %v1238 = vpop.f32.mrf.mxu0
      %v1239 = vpop.f32.mrf.mxu0
      %v1240 = vadd.f32 %v984, %v1239
      %v1241 = vpop.f32.mrf.mxu0
      %1242 = vdwg.mxu0
      %1243 = vmatprep.subr.bf16.mxu0 0
      %1244 = vmatpush1.bf16.msra.mxu0 %v1137
      %1245 = vmatprep.subr.bf16.mxu0 0
      %1246 = vmatpush1.bf16.msra.mxu0 %v1136
      %1247 = vmatprep.subr.bf16.mxu0 0
      %1248 = vmatpush1.bf16.msra.mxu0 %v1135
      %1249 = vmatprep.subr.bf16.mxu0 0
      %1250 = vmatpush1.bf16.msra.mxu0 %v1134
      %1251 = vmatprep.subr.bf16.mxu0 0
      %1252 = vmatpush1.bf16.msra.mxu0 %v1133
      %1253 = vmatprep.subr.bf16.mxu0 0
      %1254 = vmatpush1.bf16.msra.mxu0 %v1132
      %1255 = vmatprep.subr.bf16.mxu0 0
      %1256 = vmatpush1.bf16.msra.mxu0 %v1131
      %1257 = vmatprep.subr.bf16.mxu0 0
      %1258 = vmatpush1.bf16.msra.mxu0 %v1130
      %1259 = vmatprep.subr.bf16.mxu0 0
      %1260 = vmatpush2.bf16.msra.mxu0 %v1145
      %1261 = vmatprep.subr.bf16.mxu0 0
      %1262 = vmatpush2.bf16.msra.mxu0 %v1144
      %1263 = vmatprep.subr.bf16.mxu0 0
      %1264 = vmatpush2.bf16.msra.mxu0 %v1143
      %1265 = vmatprep.subr.bf16.mxu0 0
      %1266 = vmatpush2.bf16.msra.mxu0 %v1142
      %1267 = vmatprep.subr.bf16.mxu0 0
      %1268 = vmatpush2.bf16.msra.mxu0 %v1141
      %1269 = vmatprep.subr.bf16.mxu0 0
      %1270 = vmatpush2.bf16.msra.mxu0 %v1140
      %1271 = vmatprep.subr.bf16.mxu0 0
      %1272 = vmatpush2.bf16.msra.mxu0 %v1139
      %1273 = vmatprep.subr.bf16.mxu0 0
      %1274 = vmatpush2.bf16.msra.mxu0 %v1138
      %1275 = vmatprep.mubr.bf16.mxu0 %v906
      %1276 = vmatmul.mubr.bf16.gmra.mxu0 %v423
      %v1277 = vpop.f32.mrf.mxu0
      %v1278 = vadd.f32 %v1213, %v1277
      %v1279 = vpop.f32.mrf.mxu0
      %v1280 = vpop.f32.mrf.mxu0
      %v1281 = vadd.f32 %v1216, %v1280
      %v1282 = vpop.f32.mrf.mxu0
      %1283 = vmatprep.mubr.bf16.mxu0 %v907
      %1284 = vmatmul.mubr.bf16.gmra.mxu0 %v424
      %v1285 = vpop.f32.mrf.mxu0
      %v1286 = vadd.f32 %v1221, %v1285
      %v1287 = vpop.f32.mrf.mxu0
      %v1288 = vpop.f32.mrf.mxu0
      %v1289 = vadd.f32 %v1224, %v1288
      %v1290 = vpop.f32.mrf.mxu0
      %1291 = vmatprep.mubr.bf16.mxu0 %v908
      %1292 = vmatmul.mubr.bf16.gmra.mxu0 %v425
      %v1293 = vpop.f32.mrf.mxu0
      %v1294 = vadd.f32 %v1229, %v1293
      %v1295 = vpop.f32.mrf.mxu0
      %v1296 = vpop.f32.mrf.mxu0
      %v1297 = vadd.f32 %v1232, %v1296
      %v1298 = vpop.f32.mrf.mxu0
      %1299 = vmatprep.mubr.bf16.mxu0 %v909
      %1300 = vmatmul.mubr.bf16.gmra.mxu0 %v426
      %v1301 = vpop.f32.mrf.mxu0
      %v1302 = vadd.f32 %v1237, %v1301
      %v1303 = vpop.f32.mrf.mxu0
      %v1304 = vpop.f32.mrf.mxu0
      %v1305 = vadd.f32 %v1240, %v1304
      %v1306 = vpop.f32.mrf.mxu0
      %1307 = vdwg.mxu0
      %v1308 = vpack.c.bf16 %v1278, %v1278
      %v1309 = vpack.c.bf16 %v1281, %v1281
      %v1310 = vpack.c.bf16 %v1286, %v1286
      %v1311 = vpack.c.bf16 %v1289, %v1289
      %v1312 = vpack.c.bf16 %v1294, %v1294
      %v1313 = vpack.c.bf16 %v1297, %v1297
      %v1314 = vpack.c.bf16 %v1302, %v1302
      %v1315 = vpack.c.bf16 %v1305, %v1305
      %s1316 = scalar_lea.vmem %s221, 32
      %1317 = vst.msk [vmem:[%s1316] sm:$0xf] %vm832, %v1308
      %1318 = vst.msk [vmem:[%s1316 + $0x4] sm:$0xf] %vm832, %v1309
      %1319 = vst.msk [vmem:[%s1316 + $0x8] sm:$0xf] %vm832, %v1310
      %1320 = vst.msk [vmem:[%s1316 + $0xc] sm:$0xf] %vm832, %v1311
      %1321 = vst.msk [vmem:[%s1316 + $0x10] sm:$0xf] %vm832, %v1312
      %1322 = vst.msk [vmem:[%s1316 + $0x14] sm:$0xf] %vm832, %v1313
      %1323 = vst.msk [vmem:[%s1316 + $0x18] sm:$0xf] %vm832, %v1314
      %1324 = vst.msk [vmem:[%s1316 + $0x1c] sm:$0xf] %vm832, %v1315
      %v1326 = vshrl.u32 %v241, 16
      %v1328 = vrot.slane %v1326, 4
      %v1329 = vshll.u32 %v241, 16
      %v1331 = vrot.slane %v1329, 5
      %v1332 = vor.u32 %v1328, %v1331
      %v1333 = vrot.slane %v1332, 4
      %v1335 = vshll.u32 %v242, 16
      %v1337 = vrot.slane %v1335, 5
      %v1338 = vsel %vm245, %v1333, %v1337
      %v1340 = vunpack.c.l.b16 %v241
      %v1341 = vpack.c.b16 %v1340, %v413
      %v1343 = vunpack.c.l.b16 %v1338
      %v1344 = vpack.c.b16 %v1343, %v422
      %s1346 = scalar_lea.vmem %s210, 512
      %v1347 = vld [vmem:[%s1346] sm:$0xf]
      %v1348 = vld [vmem:[%s1346 + $0x4] sm:$0xf]
      %v1349 = vld [vmem:[%s1346 + $0x8] sm:$0xf]
      %v1350 = vld [vmem:[%s1346 + $0xc] sm:$0xf]
      %v1351 = vld [vmem:[%s1346 + $0x10] sm:$0xf]
      %v1352 = vld [vmem:[%s1346 + $0x14] sm:$0xf]
      %v1353 = vld [vmem:[%s1346 + $0x18] sm:$0xf]
      %v1354 = vld [vmem:[%s1346 + $0x1c] sm:$0xf]
      %v1355 = vld [vmem:[%s1346 + $0x20] sm:$0xf]
      %v1356 = vld [vmem:[%s1346 + $0x24] sm:$0xf]
      %v1357 = vld [vmem:[%s1346 + $0x28] sm:$0xf]
      %v1358 = vld [vmem:[%s1346 + $0x2c] sm:$0xf]
      %v1359 = vld [vmem:[%s1346 + $0x30] sm:$0xf]
      %v1360 = vld [vmem:[%s1346 + $0x34] sm:$0xf]
      %v1361 = vld [vmem:[%s1346 + $0x38] sm:$0xf]
      %v1362 = vld [vmem:[%s1346 + $0x3c] sm:$0xf]
      %v1363 = vld [vmem:[%s1346 + $0x40] sm:$0xf]
      %v1364 = vld [vmem:[%s1346 + $0x44] sm:$0xf]
      %v1365 = vld [vmem:[%s1346 + $0x48] sm:$0xf]
      %v1366 = vld [vmem:[%s1346 + $0x4c] sm:$0xf]
      %v1367 = vld [vmem:[%s1346 + $0x50] sm:$0xf]
      %v1368 = vld [vmem:[%s1346 + $0x54] sm:$0xf]
      %v1369 = vld [vmem:[%s1346 + $0x58] sm:$0xf]
      %v1370 = vld [vmem:[%s1346 + $0x5c] sm:$0xf]
      %v1371 = vld [vmem:[%s1346 + $0x60] sm:$0xf]
      %v1372 = vld [vmem:[%s1346 + $0x64] sm:$0xf]
      %v1373 = vld [vmem:[%s1346 + $0x68] sm:$0xf]
      %v1374 = vld [vmem:[%s1346 + $0x6c] sm:$0xf]
      %v1375 = vld [vmem:[%s1346 + $0x70] sm:$0xf]
      %v1376 = vld [vmem:[%s1346 + $0x74] sm:$0xf]
      %v1377 = vld [vmem:[%s1346 + $0x78] sm:$0xf]
      %v1378 = vld [vmem:[%s1346 + $0x7c] sm:$0xf]
      %v1379 = vld [vmem:[%s1346 + $0x80] sm:$0xf]
      %v1380 = vld [vmem:[%s1346 + $0x84] sm:$0xf]
      %v1381 = vld [vmem:[%s1346 + $0x88] sm:$0xf]
      %v1382 = vld [vmem:[%s1346 + $0x8c] sm:$0xf]
      %v1383 = vld [vmem:[%s1346 + $0x90] sm:$0xf]
      %v1384 = vld [vmem:[%s1346 + $0x94] sm:$0xf]
      %v1385 = vld [vmem:[%s1346 + $0x98] sm:$0xf]
      %v1386 = vld [vmem:[%s1346 + $0x9c] sm:$0xf]
      %v1387 = vld [vmem:[%s1346 + $0xa0] sm:$0xf]
      %v1388 = vld [vmem:[%s1346 + $0xa4] sm:$0xf]
      %v1389 = vld [vmem:[%s1346 + $0xa8] sm:$0xf]
      %v1390 = vld [vmem:[%s1346 + $0xac] sm:$0xf]
      %v1391 = vld [vmem:[%s1346 + $0xb0] sm:$0xf]
      %v1392 = vld [vmem:[%s1346 + $0xb4] sm:$0xf]
      %v1393 = vld [vmem:[%s1346 + $0xb8] sm:$0xf]
      %v1394 = vld [vmem:[%s1346 + $0xbc] sm:$0xf]
      %v1395 = vld [vmem:[%s1346 + $0xc0] sm:$0xf]
      %v1396 = vld [vmem:[%s1346 + $0xc4] sm:$0xf]
      %v1397 = vld [vmem:[%s1346 + $0xc8] sm:$0xf]
      %v1398 = vld [vmem:[%s1346 + $0xcc] sm:$0xf]
      %v1399 = vld [vmem:[%s1346 + $0xd0] sm:$0xf]
      %v1400 = vld [vmem:[%s1346 + $0xd4] sm:$0xf]
      %v1401 = vld [vmem:[%s1346 + $0xd8] sm:$0xf]
      %v1402 = vld [vmem:[%s1346 + $0xdc] sm:$0xf]
      %v1403 = vld [vmem:[%s1346 + $0xe0] sm:$0xf]
      %v1404 = vld [vmem:[%s1346 + $0xe4] sm:$0xf]
      %v1405 = vld [vmem:[%s1346 + $0xe8] sm:$0xf]
      %v1406 = vld [vmem:[%s1346 + $0xec] sm:$0xf]
      %v1407 = vld [vmem:[%s1346 + $0xf0] sm:$0xf]
      %v1408 = vld [vmem:[%s1346 + $0xf4] sm:$0xf]
      %v1409 = vld [vmem:[%s1346 + $0xf8] sm:$0xf]
      %v1410 = vld [vmem:[%s1346 + $0xfc] sm:$0xf]
      %v1411 = vld [vmem:[%s213] sm:$0x1]
      %v1413 = vlaneseq
      %v1414 = vshrl.u32 %v1413, 7
      %v1415 = vsub.s32 0, %v1414
      %v1416 = vrot.slane %v1411, %v1415
      %v1482 = vunpack.c.l.b16 %v1347
      %v1483 = vunpack.c.l.b16 %v1348
      %v1484 = vunpack.c.l.b16 %v1349
      %v1485 = vunpack.c.l.b16 %v1350
      %v1486 = vunpack.c.l.b16 %v1351
      %v1487 = vunpack.c.l.b16 %v1352
      %v1488 = vunpack.c.l.b16 %v1353
      %v1489 = vunpack.c.l.b16 %v1354
      %v1490 = vunpack.c.l.b16 %v1355
      %v1491 = vunpack.c.l.b16 %v1356
      %v1492 = vunpack.c.l.b16 %v1357
      %v1493 = vunpack.c.l.b16 %v1358
      %v1494 = vunpack.c.l.b16 %v1359
      %v1495 = vunpack.c.l.b16 %v1360
      %v1496 = vunpack.c.l.b16 %v1361
      %v1497 = vunpack.c.l.b16 %v1362
      %v1498 = vunpack.c.l.b16 %v1363
      %v1499 = vunpack.c.l.b16 %v1364
      %v1500 = vunpack.c.l.b16 %v1365
      %v1501 = vunpack.c.l.b16 %v1366
      %v1502 = vunpack.c.l.b16 %v1367
      %v1503 = vunpack.c.l.b16 %v1368
      %v1504 = vunpack.c.l.b16 %v1369
      %v1505 = vunpack.c.l.b16 %v1370
      %v1506 = vunpack.c.l.b16 %v1371
      %v1507 = vunpack.c.l.b16 %v1372
      %v1508 = vunpack.c.l.b16 %v1373
      %v1509 = vunpack.c.l.b16 %v1374
      %v1510 = vunpack.c.l.b16 %v1375
      %v1511 = vunpack.c.l.b16 %v1376
      %v1512 = vunpack.c.l.b16 %v1377
      %v1513 = vunpack.c.l.b16 %v1378
      %v1514 = vunpack.c.l.b16 %v1379
      %v1515 = vunpack.c.l.b16 %v1380
      %v1516 = vunpack.c.l.b16 %v1381
      %v1517 = vunpack.c.l.b16 %v1382
      %v1518 = vunpack.c.l.b16 %v1383
      %v1519 = vunpack.c.l.b16 %v1384
      %v1520 = vunpack.c.l.b16 %v1385
      %v1521 = vunpack.c.l.b16 %v1386
      %v1522 = vunpack.c.l.b16 %v1387
      %v1523 = vunpack.c.l.b16 %v1388
      %v1524 = vunpack.c.l.b16 %v1389
      %v1525 = vunpack.c.l.b16 %v1390
      %v1526 = vunpack.c.l.b16 %v1391
      %v1527 = vunpack.c.l.b16 %v1392
      %v1528 = vunpack.c.l.b16 %v1393
      %v1529 = vunpack.c.l.b16 %v1394
      %v1530 = vunpack.c.l.b16 %v1395
      %v1531 = vunpack.c.l.b16 %v1396
      %v1532 = vunpack.c.l.b16 %v1397
      %v1533 = vunpack.c.l.b16 %v1398
      %v1534 = vunpack.c.l.b16 %v1399
      %v1535 = vunpack.c.l.b16 %v1400
      %v1536 = vunpack.c.l.b16 %v1401
      %v1537 = vunpack.c.l.b16 %v1402
      %v1538 = vunpack.c.l.b16 %v1403
      %v1539 = vunpack.c.l.b16 %v1404
      %v1540 = vunpack.c.l.b16 %v1405
      %v1541 = vunpack.c.l.b16 %v1406
      %v1542 = vunpack.c.l.b16 %v1407
      %v1543 = vunpack.c.l.b16 %v1408
      %v1544 = vunpack.c.l.b16 %v1409
      %v1545 = vunpack.c.l.b16 %v1410
      %v1546 = vpack.c.b16 %v1483, %v1482
      %v1547 = vpack.c.b16 %v1485, %v1484
      %v1548 = vpack.c.b16 %v1487, %v1486
      %v1549 = vpack.c.b16 %v1489, %v1488
      %v1550 = vpack.c.b16 %v1491, %v1490
      %v1551 = vpack.c.b16 %v1493, %v1492
      %v1552 = vpack.c.b16 %v1495, %v1494
      %v1553 = vpack.c.b16 %v1497, %v1496
      %v1554 = vpack.c.b16 %v1499, %v1498
      %v1555 = vpack.c.b16 %v1501, %v1500
      %v1556 = vpack.c.b16 %v1503, %v1502
      %v1557 = vpack.c.b16 %v1505, %v1504
      %v1558 = vpack.c.b16 %v1507, %v1506
      %v1559 = vpack.c.b16 %v1509, %v1508
      %v1560 = vpack.c.b16 %v1511, %v1510
      %v1561 = vpack.c.b16 %v1513, %v1512
      %v1562 = vpack.c.b16 %v1515, %v1514
      %v1563 = vpack.c.b16 %v1517, %v1516
      %v1564 = vpack.c.b16 %v1519, %v1518
      %v1565 = vpack.c.b16 %v1521, %v1520
      %v1566 = vpack.c.b16 %v1523, %v1522
      %v1567 = vpack.c.b16 %v1525, %v1524
      %v1568 = vpack.c.b16 %v1527, %v1526
      %v1569 = vpack.c.b16 %v1529, %v1528
      %v1570 = vpack.c.b16 %v1531, %v1530
      %v1571 = vpack.c.b16 %v1533, %v1532
      %v1572 = vpack.c.b16 %v1535, %v1534
      %v1573 = vpack.c.b16 %v1537, %v1536
      %v1574 = vpack.c.b16 %v1539, %v1538
      %v1575 = vpack.c.b16 %v1541, %v1540
      %v1576 = vpack.c.b16 %v1543, %v1542
      %v1577 = vpack.c.b16 %v1545, %v1544
      %1610 = vmatprep.subr.bf16.mxu0 0
      %1611 = vmatpush1.bf16.msra.mxu0 %v1553
      %1612 = vmatprep.subr.bf16.mxu0 0
      %1613 = vmatpush1.bf16.msra.mxu0 %v1552
      %1614 = vmatprep.subr.bf16.mxu0 0
      %1615 = vmatpush1.bf16.msra.mxu0 %v1551
      %1616 = vmatprep.subr.bf16.mxu0 0
      %1617 = vmatpush1.bf16.msra.mxu0 %v1550
      %1618 = vmatprep.subr.bf16.mxu0 0
      %1619 = vmatpush1.bf16.msra.mxu0 %v1549
      %1620 = vmatprep.subr.bf16.mxu0 0
      %1621 = vmatpush1.bf16.msra.mxu0 %v1548
      %1622 = vmatprep.subr.bf16.mxu0 0
      %1623 = vmatpush1.bf16.msra.mxu0 %v1547
      %1624 = vmatprep.subr.bf16.mxu0 0
      %1625 = vmatpush1.bf16.msra.mxu0 %v1546
      %1626 = vmatprep.subr.bf16.mxu0 0
      %1627 = vmatpush2.bf16.msra.mxu0 %v1561
      %1628 = vmatprep.subr.bf16.mxu0 0
      %1629 = vmatpush2.bf16.msra.mxu0 %v1560
      %1630 = vmatprep.subr.bf16.mxu0 0
      %1631 = vmatpush2.bf16.msra.mxu0 %v1559
      %1632 = vmatprep.subr.bf16.mxu0 0
      %1633 = vmatpush2.bf16.msra.mxu0 %v1558
      %1634 = vmatprep.subr.bf16.mxu0 0
      %1635 = vmatpush2.bf16.msra.mxu0 %v1557
      %1636 = vmatprep.subr.bf16.mxu0 0
      %1637 = vmatpush2.bf16.msra.mxu0 %v1556
      %1638 = vmatprep.subr.bf16.mxu0 0
      %1639 = vmatpush2.bf16.msra.mxu0 %v1555
      %1640 = vmatprep.subr.bf16.mxu0 0
      %1641 = vmatpush2.bf16.msra.mxu0 %v1554
      %1642 = vmatprep.mubr.bf16.mxu0 %v423
      %1643 = vmatmul.mubr.bf16.gmra.mxu0 %v414
      %v1644 = vpop.f32.mrf.mxu0
      %v1645 = vadd.f32 %v1416, %v1644
      %v1646 = vpop.f32.mrf.mxu0
      %v1647 = vpop.f32.mrf.mxu0
      %v1648 = vadd.f32 %v1416, %v1647
      %v1649 = vpop.f32.mrf.mxu0
      %1650 = vmatprep.mubr.bf16.mxu0 %v424
      %1651 = vmatmul.mubr.bf16.gmra.mxu0 %v415
      %v1652 = vpop.f32.mrf.mxu0
      %v1653 = vadd.f32 %v1416, %v1652
      %v1654 = vpop.f32.mrf.mxu0
      %v1655 = vpop.f32.mrf.mxu0
      %v1656 = vadd.f32 %v1416, %v1655
      %v1657 = vpop.f32.mrf.mxu0
      %1658 = vmatprep.mubr.bf16.mxu0 %v425
      %1659 = vmatmul.mubr.bf16.gmra.mxu0 %v416
      %v1660 = vpop.f32.mrf.mxu0
      %v1661 = vadd.f32 %v1416, %v1660
      %v1662 = vpop.f32.mrf.mxu0
      %v1663 = vpop.f32.mrf.mxu0
      %v1664 = vadd.f32 %v1416, %v1663
      %v1665 = vpop.f32.mrf.mxu0
      %1666 = vmatprep.mubr.bf16.mxu0 %v426
      %1667 = vmatmul.mubr.bf16.gmra.mxu0 %v417
      %v1668 = vpop.f32.mrf.mxu0
      %v1669 = vadd.f32 %v1416, %v1668
      %v1670 = vpop.f32.mrf.mxu0
      %v1671 = vpop.f32.mrf.mxu0
      %v1672 = vadd.f32 %v1416, %v1671
      %v1673 = vpop.f32.mrf.mxu0
      %1674 = vdwg.mxu0
      %1675 = vmatprep.subr.bf16.mxu0 0
      %1676 = vmatpush1.bf16.msra.mxu0 %v1569
      %1677 = vmatprep.subr.bf16.mxu0 0
      %1678 = vmatpush1.bf16.msra.mxu0 %v1568
      %1679 = vmatprep.subr.bf16.mxu0 0
      %1680 = vmatpush1.bf16.msra.mxu0 %v1567
      %1681 = vmatprep.subr.bf16.mxu0 0
      %1682 = vmatpush1.bf16.msra.mxu0 %v1566
      %1683 = vmatprep.subr.bf16.mxu0 0
      %1684 = vmatpush1.bf16.msra.mxu0 %v1565
      %1685 = vmatprep.subr.bf16.mxu0 0
      %1686 = vmatpush1.bf16.msra.mxu0 %v1564
      %1687 = vmatprep.subr.bf16.mxu0 0
      %1688 = vmatpush1.bf16.msra.mxu0 %v1563
      %1689 = vmatprep.subr.bf16.mxu0 0
      %1690 = vmatpush1.bf16.msra.mxu0 %v1562
      %1691 = vmatprep.subr.bf16.mxu0 0
      %1692 = vmatpush2.bf16.msra.mxu0 %v1577
      %1693 = vmatprep.subr.bf16.mxu0 0
      %1694 = vmatpush2.bf16.msra.mxu0 %v1576
      %1695 = vmatprep.subr.bf16.mxu0 0
      %1696 = vmatpush2.bf16.msra.mxu0 %v1575
      %1697 = vmatprep.subr.bf16.mxu0 0
      %1698 = vmatpush2.bf16.msra.mxu0 %v1574
      %1699 = vmatprep.subr.bf16.mxu0 0
      %1700 = vmatpush2.bf16.msra.mxu0 %v1573
      %1701 = vmatprep.subr.bf16.mxu0 0
      %1702 = vmatpush2.bf16.msra.mxu0 %v1572
      %1703 = vmatprep.subr.bf16.mxu0 0
      %1704 = vmatpush2.bf16.msra.mxu0 %v1571
      %1705 = vmatprep.subr.bf16.mxu0 0
      %1706 = vmatpush2.bf16.msra.mxu0 %v1570
      %1707 = vmatprep.mubr.bf16.mxu0 %v405
      %1708 = vmatmul.mubr.bf16.gmra.mxu0 %v389
      %v1709 = vpop.f32.mrf.mxu0
      %v1710 = vadd.f32 %v1645, %v1709
      %v1711 = vpop.f32.mrf.mxu0
      %v1712 = vpop.f32.mrf.mxu0
      %v1713 = vadd.f32 %v1648, %v1712
      %v1714 = vpop.f32.mrf.mxu0
      %1715 = vmatprep.mubr.bf16.mxu0 %v406
      %1716 = vmatmul.mubr.bf16.gmra.mxu0 %v390
      %v1717 = vpop.f32.mrf.mxu0
      %v1718 = vadd.f32 %v1653, %v1717
      %v1719 = vpop.f32.mrf.mxu0
      %v1720 = vpop.f32.mrf.mxu0
      %v1721 = vadd.f32 %v1656, %v1720
      %v1722 = vpop.f32.mrf.mxu0
      %1723 = vmatprep.mubr.bf16.mxu0 %v407
      %1724 = vmatmul.mubr.bf16.gmra.mxu0 %v391
      %v1725 = vpop.f32.mrf.mxu0
      %v1726 = vadd.f32 %v1661, %v1725
      %v1727 = vpop.f32.mrf.mxu0
      %v1728 = vpop.f32.mrf.mxu0
      %v1729 = vadd.f32 %v1664, %v1728
      %v1730 = vpop.f32.mrf.mxu0
      %1731 = vmatprep.mubr.bf16.mxu0 %v1344
      %1732 = vmatmul.mubr.bf16.gmra.mxu0 %v1341
      %v1733 = vpop.f32.mrf.mxu0
      %v1734 = vadd.f32 %v1669, %v1733
      %v1735 = vpop.f32.mrf.mxu0
      %v1736 = vpop.f32.mrf.mxu0
      %v1737 = vadd.f32 %v1672, %v1736
      %v1738 = vpop.f32.mrf.mxu0
      %1739 = vdwg.mxu0
      %v1740 = vpack.c.bf16 %v1710, %v1710
      %v1741 = vpack.c.bf16 %v1713, %v1713
      %v1742 = vpack.c.bf16 %v1718, %v1718
      %v1743 = vpack.c.bf16 %v1721, %v1721
      %v1744 = vpack.c.bf16 %v1726, %v1726
      %v1745 = vpack.c.bf16 %v1729, %v1729
      %v1746 = vpack.c.bf16 %v1734, %v1734
      %v1747 = vpack.c.bf16 %v1737, %v1737
      %s1748 = scalar_lea.vmem %s221, 64
      %1749 = vst.msk [vmem:[%s1748] sm:$0xf] %vm832, %v1740
      %1750 = vst.msk [vmem:[%s1748 + $0x4] sm:$0xf] %vm832, %v1741
      %1751 = vst.msk [vmem:[%s1748 + $0x8] sm:$0xf] %vm832, %v1742
      %1752 = vst.msk [vmem:[%s1748 + $0xc] sm:$0xf] %vm832, %v1743
      %1753 = vst.msk [vmem:[%s1748 + $0x10] sm:$0xf] %vm832, %v1744
      %1754 = vst.msk [vmem:[%s1748 + $0x14] sm:$0xf] %vm832, %v1745
      %1755 = vst.msk [vmem:[%s1748 + $0x18] sm:$0xf] %vm832, %v1746
      %1756 = vst.msk [vmem:[%s1748 + $0x1c] sm:$0xf] %vm832, %v1747
      %v1758 = vrot.slane %v241, 5
      %v1759 = vrot.slane %v1758, 4
      %v1760 = vrot.slane %v242, 5
      %v1761 = vsel %vm851, %v1759, %v1760
      %v1762 = vunpack.c.l.b16 %v1761
      %v1763 = vpack.c.b16 %v1762, %v905
      %s1765 = scalar_lea.vmem %s210, 768
      %v1766 = vld [vmem:[%s1765] sm:$0xf]
      %v1767 = vld [vmem:[%s1765 + $0x4] sm:$0xf]
      %v1768 = vld [vmem:[%s1765 + $0x8] sm:$0xf]
      %v1769 = vld [vmem:[%s1765 + $0xc] sm:$0xf]
      %v1770 = vld [vmem:[%s1765 + $0x10] sm:$0xf]
      %v1771 = vld [vmem:[%s1765 + $0x14] sm:$0xf]
      %v1772 = vld [vmem:[%s1765 + $0x18] sm:$0xf]
      %v1773 = vld [vmem:[%s1765 + $0x1c] sm:$0xf]
      %v1774 = vld [vmem:[%s1765 + $0x20] sm:$0xf]
      %v1775 = vld [vmem:[%s1765 + $0x24] sm:$0xf]
      %v1776 = vld [vmem:[%s1765 + $0x28] sm:$0xf]
      %v1777 = vld [vmem:[%s1765 + $0x2c] sm:$0xf]
      %v1778 = vld [vmem:[%s1765 + $0x30] sm:$0xf]
      %v1779 = vld [vmem:[%s1765 + $0x34] sm:$0xf]
      %v1780 = vld [vmem:[%s1765 + $0x38] sm:$0xf]
      %v1781 = vld [vmem:[%s1765 + $0x3c] sm:$0xf]
      %v1782 = vld [vmem:[%s1765 + $0x40] sm:$0xf]
      %v1783 = vld [vmem:[%s1765 + $0x44] sm:$0xf]
      %v1784 = vld [vmem:[%s1765 + $0x48] sm:$0xf]
      %v1785 = vld [vmem:[%s1765 + $0x4c] sm:$0xf]
      %v1786 = vld [vmem:[%s1765 + $0x50] sm:$0xf]
      %v1787 = vld [vmem:[%s1765 + $0x54] sm:$0xf]
      %v1788 = vld [vmem:[%s1765 + $0x58] sm:$0xf]
      %v1789 = vld [vmem:[%s1765 + $0x5c] sm:$0xf]
      %v1790 = vld [vmem:[%s1765 + $0x60] sm:$0xf]
      %v1791 = vld [vmem:[%s1765 + $0x64] sm:$0xf]
      %v1792 = vld [vmem:[%s1765 + $0x68] sm:$0xf]
      %v1793 = vld [vmem:[%s1765 + $0x6c] sm:$0xf]
      %v1794 = vld [vmem:[%s1765 + $0x70] sm:$0xf]
      %v1795 = vld [vmem:[%s1765 + $0x74] sm:$0xf]
      %v1796 = vld [vmem:[%s1765 + $0x78] sm:$0xf]
      %v1797 = vld [vmem:[%s1765 + $0x7c] sm:$0xf]
      %v1798 = vld [vmem:[%s1765 + $0x80] sm:$0xf]
      %v1799 = vld [vmem:[%s1765 + $0x84] sm:$0xf]
      %v1800 = vld [vmem:[%s1765 + $0x88] sm:$0xf]
      %v1801 = vld [vmem:[%s1765 + $0x8c] sm:$0xf]
      %v1802 = vld [vmem:[%s1765 + $0x90] sm:$0xf]
      %v1803 = vld [vmem:[%s1765 + $0x94] sm:$0xf]
      %v1804 = vld [vmem:[%s1765 + $0x98] sm:$0xf]
      %v1805 = vld [vmem:[%s1765 + $0x9c] sm:$0xf]
      %v1806 = vld [vmem:[%s1765 + $0xa0] sm:$0xf]
      %v1807 = vld [vmem:[%s1765 + $0xa4] sm:$0xf]
      %v1808 = vld [vmem:[%s1765 + $0xa8] sm:$0xf]
      %v1809 = vld [vmem:[%s1765 + $0xac] sm:$0xf]
      %v1810 = vld [vmem:[%s1765 + $0xb0] sm:$0xf]
      %v1811 = vld [vmem:[%s1765 + $0xb4] sm:$0xf]
      %v1812 = vld [vmem:[%s1765 + $0xb8] sm:$0xf]
      %v1813 = vld [vmem:[%s1765 + $0xbc] sm:$0xf]
      %v1814 = vld [vmem:[%s1765 + $0xc0] sm:$0xf]
      %v1815 = vld [vmem:[%s1765 + $0xc4] sm:$0xf]
      %v1816 = vld [vmem:[%s1765 + $0xc8] sm:$0xf]
      %v1817 = vld [vmem:[%s1765 + $0xcc] sm:$0xf]
      %v1818 = vld [vmem:[%s1765 + $0xd0] sm:$0xf]
      %v1819 = vld [vmem:[%s1765 + $0xd4] sm:$0xf]
      %v1820 = vld [vmem:[%s1765 + $0xd8] sm:$0xf]
      %v1821 = vld [vmem:[%s1765 + $0xdc] sm:$0xf]
      %v1822 = vld [vmem:[%s1765 + $0xe0] sm:$0xf]
      %v1823 = vld [vmem:[%s1765 + $0xe4] sm:$0xf]
      %v1824 = vld [vmem:[%s1765 + $0xe8] sm:$0xf]
      %v1825 = vld [vmem:[%s1765 + $0xec] sm:$0xf]
      %v1826 = vld [vmem:[%s1765 + $0xf0] sm:$0xf]
      %v1827 = vld [vmem:[%s1765 + $0xf4] sm:$0xf]
      %v1828 = vld [vmem:[%s1765 + $0xf8] sm:$0xf]
      %v1829 = vld [vmem:[%s1765 + $0xfc] sm:$0xf]
      %v1830 = vld [vmem:[%s213] sm:$0x1]
      %v1832 = vlaneseq
      %v1833 = vshrl.u32 %v1832, 7
      %v1834 = vsub.s32 0, %v1833
      %v1835 = vrot.slane %v1830, %v1834
      %v1901 = vunpack.c.l.b16 %v1766
      %v1902 = vunpack.c.l.b16 %v1767
      %v1903 = vunpack.c.l.b16 %v1768
      %v1904 = vunpack.c.l.b16 %v1769
      %v1905 = vunpack.c.l.b16 %v1770
      %v1906 = vunpack.c.l.b16 %v1771
      %v1907 = vunpack.c.l.b16 %v1772
      %v1908 = vunpack.c.l.b16 %v1773
      %v1909 = vunpack.c.l.b16 %v1774
      %v1910 = vunpack.c.l.b16 %v1775
      %v1911 = vunpack.c.l.b16 %v1776
      %v1912 = vunpack.c.l.b16 %v1777
      %v1913 = vunpack.c.l.b16 %v1778
      %v1914 = vunpack.c.l.b16 %v1779
      %v1915 = vunpack.c.l.b16 %v1780
      %v1916 = vunpack.c.l.b16 %v1781
      %v1917 = vunpack.c.l.b16 %v1782
      %v1918 = vunpack.c.l.b16 %v1783
      %v1919 = vunpack.c.l.b16 %v1784
      %v1920 = vunpack.c.l.b16 %v1785
      %v1921 = vunpack.c.l.b16 %v1786
      %v1922 = vunpack.c.l.b16 %v1787
      %v1923 = vunpack.c.l.b16 %v1788
      %v1924 = vunpack.c.l.b16 %v1789
      %v1925 = vunpack.c.l.b16 %v1790
      %v1926 = vunpack.c.l.b16 %v1791
      %v1927 = vunpack.c.l.b16 %v1792
      %v1928 = vunpack.c.l.b16 %v1793
      %v1929 = vunpack.c.l.b16 %v1794
      %v1930 = vunpack.c.l.b16 %v1795
      %v1931 = vunpack.c.l.b16 %v1796
      %v1932 = vunpack.c.l.b16 %v1797
      %v1933 = vunpack.c.l.b16 %v1798
      %v1934 = vunpack.c.l.b16 %v1799
      %v1935 = vunpack.c.l.b16 %v1800
      %v1936 = vunpack.c.l.b16 %v1801
      %v1937 = vunpack.c.l.b16 %v1802
      %v1938 = vunpack.c.l.b16 %v1803
      %v1939 = vunpack.c.l.b16 %v1804
      %v1940 = vunpack.c.l.b16 %v1805
      %v1941 = vunpack.c.l.b16 %v1806
      %v1942 = vunpack.c.l.b16 %v1807
      %v1943 = vunpack.c.l.b16 %v1808
      %v1944 = vunpack.c.l.b16 %v1809
      %v1945 = vunpack.c.l.b16 %v1810
      %v1946 = vunpack.c.l.b16 %v1811
      %v1947 = vunpack.c.l.b16 %v1812
      %v1948 = vunpack.c.l.b16 %v1813
      %v1949 = vunpack.c.l.b16 %v1814
      %v1950 = vunpack.c.l.b16 %v1815
      %v1951 = vunpack.c.l.b16 %v1816
      %v1952 = vunpack.c.l.b16 %v1817
      %v1953 = vunpack.c.l.b16 %v1818
      %v1954 = vunpack.c.l.b16 %v1819
      %v1955 = vunpack.c.l.b16 %v1820
      %v1956 = vunpack.c.l.b16 %v1821
      %v1957 = vunpack.c.l.b16 %v1822
      %v1958 = vunpack.c.l.b16 %v1823
      %v1959 = vunpack.c.l.b16 %v1824
      %v1960 = vunpack.c.l.b16 %v1825
      %v1961 = vunpack.c.l.b16 %v1826
      %v1962 = vunpack.c.l.b16 %v1827
      %v1963 = vunpack.c.l.b16 %v1828
      %v1964 = vunpack.c.l.b16 %v1829
      %v1965 = vpack.c.b16 %v1902, %v1901
      %v1966 = vpack.c.b16 %v1904, %v1903
      %v1967 = vpack.c.b16 %v1906, %v1905
      %v1968 = vpack.c.b16 %v1908, %v1907
      %v1969 = vpack.c.b16 %v1910, %v1909
      %v1970 = vpack.c.b16 %v1912, %v1911
      %v1971 = vpack.c.b16 %v1914, %v1913
      %v1972 = vpack.c.b16 %v1916, %v1915
      %v1973 = vpack.c.b16 %v1918, %v1917
      %v1974 = vpack.c.b16 %v1920, %v1919
      %v1975 = vpack.c.b16 %v1922, %v1921
      %v1976 = vpack.c.b16 %v1924, %v1923
      %v1977 = vpack.c.b16 %v1926, %v1925
      %v1978 = vpack.c.b16 %v1928, %v1927
      %v1979 = vpack.c.b16 %v1930, %v1929
      %v1980 = vpack.c.b16 %v1932, %v1931
      %v1981 = vpack.c.b16 %v1934, %v1933
      %v1982 = vpack.c.b16 %v1936, %v1935
      %v1983 = vpack.c.b16 %v1938, %v1937
      %v1984 = vpack.c.b16 %v1940, %v1939
      %v1985 = vpack.c.b16 %v1942, %v1941
      %v1986 = vpack.c.b16 %v1944, %v1943
      %v1987 = vpack.c.b16 %v1946, %v1945
      %v1988 = vpack.c.b16 %v1948, %v1947
      %v1989 = vpack.c.b16 %v1950, %v1949
      %v1990 = vpack.c.b16 %v1952, %v1951
      %v1991 = vpack.c.b16 %v1954, %v1953
      %v1992 = vpack.c.b16 %v1956, %v1955
      %v1993 = vpack.c.b16 %v1958, %v1957
      %v1994 = vpack.c.b16 %v1960, %v1959
      %v1995 = vpack.c.b16 %v1962, %v1961
      %v1996 = vpack.c.b16 %v1964, %v1963
      %2029 = vmatprep.subr.bf16.mxu0 0
      %2030 = vmatpush1.bf16.msra.mxu0 %v1972
      %2031 = vmatprep.subr.bf16.mxu0 0
      %2032 = vmatpush1.bf16.msra.mxu0 %v1971
      %2033 = vmatprep.subr.bf16.mxu0 0
      %2034 = vmatpush1.bf16.msra.mxu0 %v1970
      %2035 = vmatprep.subr.bf16.mxu0 0
      %2036 = vmatpush1.bf16.msra.mxu0 %v1969
      %2037 = vmatprep.subr.bf16.mxu0 0
      %2038 = vmatpush1.bf16.msra.mxu0 %v1968
      %2039 = vmatprep.subr.bf16.mxu0 0
      %2040 = vmatpush1.bf16.msra.mxu0 %v1967
      %2041 = vmatprep.subr.bf16.mxu0 0
      %2042 = vmatpush1.bf16.msra.mxu0 %v1966
      %2043 = vmatprep.subr.bf16.mxu0 0
      %2044 = vmatpush1.bf16.msra.mxu0 %v1965
      %2045 = vmatprep.subr.bf16.mxu0 0
      %2046 = vmatpush2.bf16.msra.mxu0 %v1980
      %2047 = vmatprep.subr.bf16.mxu0 0
      %2048 = vmatpush2.bf16.msra.mxu0 %v1979
      %2049 = vmatprep.subr.bf16.mxu0 0
      %2050 = vmatpush2.bf16.msra.mxu0 %v1978
      %2051 = vmatprep.subr.bf16.mxu0 0
      %2052 = vmatpush2.bf16.msra.mxu0 %v1977
      %2053 = vmatprep.subr.bf16.mxu0 0
      %2054 = vmatpush2.bf16.msra.mxu0 %v1976
      %2055 = vmatprep.subr.bf16.mxu0 0
      %2056 = vmatpush2.bf16.msra.mxu0 %v1975
      %2057 = vmatprep.subr.bf16.mxu0 0
      %2058 = vmatpush2.bf16.msra.mxu0 %v1974
      %2059 = vmatprep.subr.bf16.mxu0 0
      %2060 = vmatpush2.bf16.msra.mxu0 %v1973
      %2061 = vmatprep.mubr.bf16.mxu0 %v906
      %2062 = vmatmul.mubr.bf16.gmra.mxu0 %v423
      %v2063 = vpop.f32.mrf.mxu0
      %v2064 = vadd.f32 %v1835, %v2063
      %v2065 = vpop.f32.mrf.mxu0
      %v2066 = vpop.f32.mrf.mxu0
      %v2067 = vadd.f32 %v1835, %v2066
      %v2068 = vpop.f32.mrf.mxu0
      %2069 = vmatprep.mubr.bf16.mxu0 %v907
      %2070 = vmatmul.mubr.bf16.gmra.mxu0 %v424
      %v2071 = vpop.f32.mrf.mxu0
      %v2072 = vadd.f32 %v1835, %v2071
      %v2073 = vpop.f32.mrf.mxu0
      %v2074 = vpop.f32.mrf.mxu0
      %v2075 = vadd.f32 %v1835, %v2074
      %v2076 = vpop.f32.mrf.mxu0
      %2077 = vmatprep.mubr.bf16.mxu0 %v908
      %2078 = vmatmul.mubr.bf16.gmra.mxu0 %v425
      %v2079 = vpop.f32.mrf.mxu0
      %v2080 = vadd.f32 %v1835, %v2079
      %v2081 = vpop.f32.mrf.mxu0
      %v2082 = vpop.f32.mrf.mxu0
      %v2083 = vadd.f32 %v1835, %v2082
      %v2084 = vpop.f32.mrf.mxu0
      %2085 = vmatprep.mubr.bf16.mxu0 %v909
      %2086 = vmatmul.mubr.bf16.gmra.mxu0 %v426
      %v2087 = vpop.f32.mrf.mxu0
      %v2088 = vadd.f32 %v1835, %v2087
      %v2089 = vpop.f32.mrf.mxu0
      %v2090 = vpop.f32.mrf.mxu0
      %v2091 = vadd.f32 %v1835, %v2090
      %v2092 = vpop.f32.mrf.mxu0
      %2093 = vdwg.mxu0
      %2094 = vmatprep.subr.bf16.mxu0 0
      %2095 = vmatpush1.bf16.msra.mxu0 %v1988
      %2096 = vmatprep.subr.bf16.mxu0 0
      %2097 = vmatpush1.bf16.msra.mxu0 %v1987
      %2098 = vmatprep.subr.bf16.mxu0 0
      %2099 = vmatpush1.bf16.msra.mxu0 %v1986
      %2100 = vmatprep.subr.bf16.mxu0 0
      %2101 = vmatpush1.bf16.msra.mxu0 %v1985
      %2102 = vmatprep.subr.bf16.mxu0 0
      %2103 = vmatpush1.bf16.msra.mxu0 %v1984
      %2104 = vmatprep.subr.bf16.mxu0 0
      %2105 = vmatpush1.bf16.msra.mxu0 %v1983
      %2106 = vmatprep.subr.bf16.mxu0 0
      %2107 = vmatpush1.bf16.msra.mxu0 %v1982
      %2108 = vmatprep.subr.bf16.mxu0 0
      %2109 = vmatpush1.bf16.msra.mxu0 %v1981
      %2110 = vmatprep.subr.bf16.mxu0 0
      %2111 = vmatpush2.bf16.msra.mxu0 %v1996
      %2112 = vmatprep.subr.bf16.mxu0 0
      %2113 = vmatpush2.bf16.msra.mxu0 %v1995
      %2114 = vmatprep.subr.bf16.mxu0 0
      %2115 = vmatpush2.bf16.msra.mxu0 %v1994
      %2116 = vmatprep.subr.bf16.mxu0 0
      %2117 = vmatpush2.bf16.msra.mxu0 %v1993
      %2118 = vmatprep.subr.bf16.mxu0 0
      %2119 = vmatpush2.bf16.msra.mxu0 %v1992
      %2120 = vmatprep.subr.bf16.mxu0 0
      %2121 = vmatpush2.bf16.msra.mxu0 %v1991
      %2122 = vmatprep.subr.bf16.mxu0 0
      %2123 = vmatpush2.bf16.msra.mxu0 %v1990
      %2124 = vmatprep.subr.bf16.mxu0 0
      %2125 = vmatpush2.bf16.msra.mxu0 %v1989
      %2126 = vmatprep.mubr.bf16.mxu0 %v898
      %2127 = vmatmul.mubr.bf16.gmra.mxu0 %v405
      %v2128 = vpop.f32.mrf.mxu0
      %v2129 = vadd.f32 %v2064, %v2128
      %v2130 = vpop.f32.mrf.mxu0
      %v2131 = vpop.f32.mrf.mxu0
      %v2132 = vadd.f32 %v2067, %v2131
      %v2133 = vpop.f32.mrf.mxu0
      %2134 = vmatprep.mubr.bf16.mxu0 %v899
      %2135 = vmatmul.mubr.bf16.gmra.mxu0 %v406
      %v2136 = vpop.f32.mrf.mxu0
      %v2137 = vadd.f32 %v2072, %v2136
      %v2138 = vpop.f32.mrf.mxu0
      %v2139 = vpop.f32.mrf.mxu0
      %v2140 = vadd.f32 %v2075, %v2139
      %v2141 = vpop.f32.mrf.mxu0
      %2142 = vmatprep.mubr.bf16.mxu0 %v900
      %2143 = vmatmul.mubr.bf16.gmra.mxu0 %v407
      %v2144 = vpop.f32.mrf.mxu0
      %v2145 = vadd.f32 %v2080, %v2144
      %v2146 = vpop.f32.mrf.mxu0
      %v2147 = vpop.f32.mrf.mxu0
      %v2148 = vadd.f32 %v2083, %v2147
      %v2149 = vpop.f32.mrf.mxu0
      %2150 = vmatprep.mubr.bf16.mxu0 %v1763
      %2151 = vmatmul.mubr.bf16.gmra.mxu0 %v1344
      %v2152 = vpop.f32.mrf.mxu0
      %v2153 = vadd.f32 %v2088, %v2152
      %v2154 = vpop.f32.mrf.mxu0
      %v2155 = vpop.f32.mrf.mxu0
      %v2156 = vadd.f32 %v2091, %v2155
      %v2157 = vpop.f32.mrf.mxu0
      %2158 = vdwg.mxu0
      %v2159 = vpack.c.bf16 %v2129, %v2129
      %v2160 = vpack.c.bf16 %v2132, %v2132
      %v2161 = vpack.c.bf16 %v2137, %v2137
      %v2162 = vpack.c.bf16 %v2140, %v2140
      %v2163 = vpack.c.bf16 %v2145, %v2145
      %v2164 = vpack.c.bf16 %v2148, %v2148
      %v2165 = vpack.c.bf16 %v2153, %v2153
      %v2166 = vpack.c.bf16 %v2156, %v2156
      %s2167 = scalar_lea.vmem %s221, 96
      %2168 = vst.msk [vmem:[%s2167] sm:$0xf] %vm832, %v2159
      %2169 = vst.msk [vmem:[%s2167 + $0x4] sm:$0xf] %vm832, %v2160
      %2170 = vst.msk [vmem:[%s2167 + $0x8] sm:$0xf] %vm832, %v2161
      %2171 = vst.msk [vmem:[%s2167 + $0xc] sm:$0xf] %vm832, %v2162
      %2172 = vst.msk [vmem:[%s2167 + $0x10] sm:$0xf] %vm832, %v2163
      %2173 = vst.msk [vmem:[%s2167 + $0x14] sm:$0xf] %vm832, %v2164
      %2174 = vst.msk [vmem:[%s2167 + $0x18] sm:$0xf] %vm832, %v2165
      %2175 = vst.msk [vmem:[%s2167 + $0x1c] sm:$0xf] %vm832, %v2166
      %p2176 = scmp.lt.s32.totalorder %s18, 1
      %s2177 = scalar_select %p2176, %s18, 1
      %p2178 = scmp.lt.s32.totalorder %s19, 0
      %s2179 = scalar_select %p2178, %s19, 0
      %s2180 = smul.addr %s2177, 32
      %s2181 = sadd.s32 %s2179, %s2180
      %s2182 = smul.addr %s2181, 4
      %s2183 = scalar_lea.vmem %s3, %s2182
      // Predicated region
      $region33: #{unetup3_forward.3} parent=31 // pred_check
        %p2184 = pneg %p124
      $region34: #{unetup3_forward.3} parent=31 // pred_check_branch
        %2186 = sbr.rel (%p2184) target = $region36
      $region35: #{unetup3_forward.3} parent=31 // pred_region
        _
      $region36: #{unetup3_forward.3} parent=31 // pred_fallthru
        _
    $region32: #{unetup3_forward.3} parent=5 // pred_fallthru
      _
    %p2187 = scmp.le.s32.totalorder 2, %s9
    // Predicated region
    $region37: #{unetup3_forward.3} parent=5 // pred_check
      %p2188 = pneg %p2187
    $region38: #{unetup3_forward.3} parent=5 // pred_check_branch
      %2190 = sbr.rel (%p2188) target = $region40
    $region39: #{unetup3_forward.3} parent=5 // pred_region
      %s2191 = ssub.s32 %s9, 2
      // Predicated region
      $region41: #{unetup3_forward.3} parent=39 // pred_check
        %p2192 = pneg %p130
      $region42: #{unetup3_forward.3} parent=39 // pred_check_branch
        %2194 = sbr.rel (%p2192) target = $region44
      $region43: #{unetup3_forward.3} parent=39 // pred_region
        %p2195 = scmp.lt.s32.totalorder %s20, 1
        %s2196 = scalar_select %p2195, %s20, 1
        %p2197 = scmp.lt.s32.totalorder %s21, 0
        %s2198 = scalar_select %p2197, %s21, 0
        %s2199 = smul.addr %s2196, 32
        %s2200 = sadd.s32 %s2198, %s2199
        %s2201 = smul.addr %s2200, 4
        %s2202 = scalar_lea.vmem %s3, %s2201
      $region44: #{unetup3_forward.3} parent=39 // pred_fallthru
        _
    $region40: #{unetup3_forward.3} parent=5 // pred_fallthru
      _
  $region6: #{unetup3_forward.3} parent=0 // loop_footer
    %s13 = sadd.s32 1, %s9
  $region7: #{unetup3_forward.3} parent=0 // loop_footer_branch
    %8 = sbr.rel target = $region3
  $region8: #{unetup3_forward.3} parent=0 // loop_exit
    _

// kernel: unetup3_forward.5
$region0: #{unetup3_forward.5}
  #allocation0 [shape = 'u32[]', space=smem, size = 0x4, offset = 0x4, fixed_abs, tag = 'smem constant byte address 0x4 - core index']
  #allocation1 [shape = 'u32[144,128]{1,0:T(1,128)}', space=vmem, size = 0x12000, scoped, tag = 'internal scratch']
  %s0 = inlined_call_operand.vmem [shape: bf16[2,18,18,64], index: 0, kind: input, shape index: {}]
  %s1 = inlined_call_operand.vmem [shape: bf16[576,64], index: 1, kind: input, shape index: {}]
  %s2 = inlined_call_operand.vmem [shape: f32[1,64], index: 2, kind: input, shape index: {}]
  %s3 = inlined_call_operand.hbm [shape: f32[2,16,16,64], index: 3, kind: output, shape index: {}]
  %s4 = sld [smem:[#allocation0]]
  $region45: #{unetup3_forward.5} parent=0
    _
  %s6 = ssub.s32 1, %s4
  %s7 = scalar_select 0, %s6, %s4
  $region1: #{unetup3_forward.5} parent=0
    #allocation2 [shape = 'u8[131072]{0}', space=vmem, size = 0x20000, scoped, tag = 'output window, operand 0']
    #allocation3 [shape = 's32[2]{0}', space=sflag, size = 0x8, scoped, tag = 'scoped memory for unetup3_forward.5']
    %8 = vsyncpa [#allocation3], 0
    %s9 = scalar_lea.sflag [#allocation3], 1
    %10 = vsyncpa %s9, 0
    loop: start=0, step=1, limit=6
    $region2: #{unetup3_forward.5} parent=1 // loop_pre_header
      _
    $region3: #{unetup3_forward.5} parent=1 // loop_header
      %s12 = sphi 0, %s16
      %p13 = scmp.ge.s32.totalorder %s12, 6
      %s19 = sphi 0, %s38
      %s20 = sphi 0, %s34
      %s21 = sphi 0, %s30
      %s22 = sphi 0, %s19
      %s23 = sphi 0, %s20
      %s24 = sphi 0, %s21
      %s25 = sphi 0, %s22
      %s26 = sphi 0, %s23
      %s27 = sphi 0, %s24
      %s41 = sphi 0, %s43
      %s44 = sphi 0, %s41
      %s45 = sphi 0, %s44
      %s61 = sphi 0, %s45
      %s67 = sphi 0, %s69
      %s70 = sphi 0, %s67
      %s71 = sphi 0, %s70
      %s87 = sphi 0, %s71
      %s93 = sphi 0, %s95
      %s96 = sphi 0, %s93
      %s97 = sphi 0, %s96
      %s113 = sphi 0, %s97
      %s123 = sphi 0, %s125
      %s126 = sphi 0, %s123
      %s127 = sphi 0, %s126
      %s143 = sphi 0, %s127
    $region4: #{unetup3_forward.5} parent=1 // loop_header_branch
      %15 = sbr.rel (%p13) target = $region8
    $region5: #{unetup3_forward.5} parent=1 // loop_body
      %s17 = ssub.s32 %s12, 1
      %s18 = ssub.s32 %s12, 2
      %s28 = sadd.s32 1, %s21
      %p29 = scmp.ge.s32.totalorder %s28, 1
      %s30 = scalar_select %p29, 0, %s28
      %s31 = sadd.s32 1, %s20
      %s32 = scalar_select %p29, %s31, %s20
      %p33 = scmp.ge.s32.totalorder %s32, 2
      %s34 = scalar_select %p33, 0, %s32
      %s35 = sadd.s32 1, %s19
      %s36 = scalar_select %p33, %s35, %s19
      %p37 = scmp.ge.s32.totalorder %s36, 2
      %s38 = scalar_select %p37, 0, %s36
      %s39 = ssub.s32 %s19, %s38
      %p40 = scmp.eq.s32.totalorder %s39, 0
      %s42 = sadd.s32 %s41, 1
      %s43 = scalar_select %p40, %s41, %s42
      %p46 = pneg %p40
      %p47 = scmp.eq.s32.totalorder %s12, 3
      %p48 = por %p46, %p47
      %p49 = scmp.ne.s32.totalorder %s41, %s44
      %p50 = scmp.eq.s32.totalorder %s12, 0
      %p51 = por %p49, %p50
      %p52 = scmp.ne.s32.totalorder %s41, %s44
      %p53 = scmp.eq.s32.totalorder %s17, 3
      %p54 = por %p52, %p53
      %p55 = scmp.ne.s32.totalorder %s44, %s45
      %p56 = scmp.eq.s32.totalorder %s17, 0
      %p57 = por %p55, %p56
      %p58 = scmp.ne.s32.totalorder %s44, %s45
      %p59 = scmp.eq.s32.totalorder %s18, 3
      %p60 = por %p58, %p59
      %p62 = scmp.ne.s32.totalorder %s45, %s61
      %p63 = scmp.eq.s32.totalorder %s18, 0
      %p64 = por %p62, %p63
      %s65 = ssub.s32 %s21, %s30
      %p66 = scmp.eq.s32.totalorder %s65, 0
      %s68 = sadd.s32 %s67, 1
      %s69 = scalar_select %p66, %s67, %s68
      %p72 = pneg %p66
      %p73 = scmp.eq.s32.totalorder %s12, 3
      %p74 = por %p72, %p73
      %p75 = scmp.ne.s32.totalorder %s67, %s70
      %p76 = scmp.eq.s32.totalorder %s12, 0
      %p77 = por %p75, %p76
      %p78 = scmp.ne.s32.totalorder %s67, %s70
      %p79 = scmp.eq.s32.totalorder %s17, 3
      %p80 = por %p78, %p79
      %p81 = scmp.ne.s32.totalorder %s70, %s71
      %p82 = scmp.eq.s32.totalorder %s17, 0
      %p83 = por %p81, %p82
      %p84 = scmp.ne.s32.totalorder %s70, %s71
      %p85 = scmp.eq.s32.totalorder %s18, 3
      %p86 = por %p84, %p85
      %p88 = scmp.ne.s32.totalorder %s71, %s87
      %p89 = scmp.eq.s32.totalorder %s18, 0
      %p90 = por %p88, %p89
      %s91 = ssub.s32 %s21, %s30
      %p92 = scmp.eq.s32.totalorder %s91, 0
      %s94 = sadd.s32 %s93, 1
      %s95 = scalar_select %p92, %s93, %s94
      %p98 = pneg %p92
      %p99 = scmp.eq.s32.totalorder %s12, 3
      %p100 = por %p98, %p99
      %p101 = scmp.ne.s32.totalorder %s93, %s96
      %p102 = scmp.eq.s32.totalorder %s12, 0
      %p103 = por %p101, %p102
      %p104 = scmp.ne.s32.totalorder %s93, %s96
      %p105 = scmp.eq.s32.totalorder %s17, 3
      %p106 = por %p104, %p105
      %p107 = scmp.ne.s32.totalorder %s96, %s97
      %p108 = scmp.eq.s32.totalorder %s17, 0
      %p109 = por %p107, %p108
      %p110 = scmp.ne.s32.totalorder %s96, %s97
      %p111 = scmp.eq.s32.totalorder %s18, 3
      %p112 = por %p110, %p111
      %p114 = scmp.ne.s32.totalorder %s97, %s113
      %p115 = scmp.eq.s32.totalorder %s18, 0
      %p116 = por %p114, %p115
      %s117 = ssub.s32 %s19, %s38
      %s118 = ssub.s32 %s20, %s34
      %s119 = sor.u32 %s117, %s118
      %s120 = ssub.s32 %s21, %s30
      %s121 = sor.u32 %s119, %s120
      %p122 = scmp.eq.s32.totalorder %s121, 0
      %s124 = sadd.s32 %s123, 1
      %s125 = scalar_select %p122, %s123, %s124
      %p128 = pneg %p122
      %p129 = scmp.eq.s32.totalorder %s12, 3
      %p130 = por %p128, %p129
      %p131 = scmp.ne.s32.totalorder %s123, %s126
      %p132 = scmp.eq.s32.totalorder %s12, 0
      %p133 = por %p131, %p132
      %p134 = scmp.ne.s32.totalorder %s123, %s126
      %p135 = scmp.eq.s32.totalorder %s17, 3
      %p136 = por %p134, %p135
      %p137 = scmp.ne.s32.totalorder %s126, %s127
      %p138 = scmp.eq.s32.totalorder %s17, 0
      %p139 = por %p137, %p138
      %p140 = scmp.ne.s32.totalorder %s126, %s127
      %p141 = scmp.eq.s32.totalorder %s18, 3
      %p142 = por %p140, %p141
      %p144 = scmp.ne.s32.totalorder %s127, %s143
      %p145 = scmp.eq.s32.totalorder %s18, 0
      %p146 = por %p144, %p145
      %p147 = scmp.le.s32.totalorder 1, %s12
      %p148 = scmp.lt.s32.totalorder %s12, 5
      %p149 = pnand %p147, %p148
      %p150 = pneg %p149
      // Predicated region
      $region9: #{unetup3_forward.5} parent=5 // pred_check
        _
      $region10: #{unetup3_forward.5} parent=5 // pred_check_branch
        %152 = sbr.rel (%p149) target = $region12
      $region11: #{unetup3_forward.5} parent=5 // pred_region
        %s153 = ssub.s32 %s12, 1
        // Predicated region
        $region13: #{unetup3_forward.5} parent=11 // pred_check
          %p154 = pneg %p83
        $region14: #{unetup3_forward.5} parent=11 // pred_check_branch
          %156 = sbr.rel (%p154) target = $region16
        $region15: #{unetup3_forward.5} parent=11 // pred_region
          %p157 = scmp.lt.s32.totalorder %s24, 0
          %s158 = scalar_select %p157, %s24, 0
          %s159 = smul.addr %s158, 4
          %s160 = scalar_lea.vmem %s1, %s159
        $region16: #{unetup3_forward.5} parent=11 // pred_fallthru
          _
        // Predicated region
        $region17: #{unetup3_forward.5} parent=11 // pred_check
          %p161 = pneg %p109
        $region18: #{unetup3_forward.5} parent=11 // pred_check_branch
          %163 = sbr.rel (%p161) target = $region20
        $region19: #{unetup3_forward.5} parent=11 // pred_region
          %p164 = scmp.lt.s32.totalorder %s24, 0
          %s165 = scalar_select %p164, %s24, 0
          %s166 = scalar_lea.vmem %s2, %s165
        $region20: #{unetup3_forward.5} parent=11 // pred_fallthru
          _
      $region12: #{unetup3_forward.5} parent=5 // pred_fallthru
        _
      %p167 = scmp.lt.s32.totalorder %s12, 4
      // Predicated region
      $region21: #{unetup3_forward.5} parent=5 // pred_check
        %p168 = pneg %p167
      $region22: #{unetup3_forward.5} parent=5 // pred_check_branch
        %170 = sbr.rel (%p168) target = $region24
      $region23: #{unetup3_forward.5} parent=5 // pred_region
        // Predicated region
        $region25: #{unetup3_forward.5} parent=23 // pred_check
          %p171 = pneg %p51
        $region26: #{unetup3_forward.5} parent=23 // pred_check_branch
          %173 = sbr.rel (%p171) target = $region28
        $region27: #{unetup3_forward.5} parent=23 // pred_region
          %p174 = scmp.lt.s32.totalorder %s19, 1
          %s175 = scalar_select %p174, %s19, 1
          %s176 = smul.addr %s175, 54
          %s177 = smul.addr %s176, 4
          %s178 = scalar_lea.vmem %s0, %s177
        $region28: #{unetup3_forward.5} parent=23 // pred_fallthru
          _
      $region24: #{unetup3_forward.5} parent=5 // pred_fallthru
        _
      %p179 = scmp.le.s32.totalorder 1, %s12
      %p180 = scmp.lt.s32.totalorder %s12, 5
      %p181 = pnand %p179, %p180
      %p182 = pneg %p181
      // Predicated region
      $region29: #{unetup3_forward.5} parent=5 // pred_check
        _
      $region30: #{unetup3_forward.5} parent=5 // pred_check_branch
        %184 = sbr.rel (%p181) target = $region32
      $region31: #{unetup3_forward.5} parent=5 // pred_region
        %s185 = ssub.s32 %s12, 1
        %p186 = scmp.lt.s32.totalorder %s22, 1
        %s187 = scalar_select %p186, %s22, 1
        %s188 = smul.addr %s187, 54
        %s189 = smul.addr %s188, 4
        %s190 = scalar_lea.vmem %s0, %s189
        %p191 = pneg %p57
        %p192 = pneg %p54
        %p193 = scmp.lt.s32.totalorder %s24, 0
        %s194 = scalar_select %p193, %s24, 0
        %s195 = smul.addr %s194, 4
        %s196 = scalar_lea.vmem %s1, %s195
        %p197 = pneg %p83
        %p198 = pneg %p80
        %p199 = scmp.lt.s32.totalorder %s24, 0
        %s200 = scalar_select %p199, %s24, 0
        %s201 = scalar_lea.vmem %s2, %s200
        %p202 = pneg %p109
        %p203 = pneg %p106
        %p204 = pneg %p139
        %p205 = pneg %p136
        %s206 = sand.u32 %s126, 1
        %s207 = scalar_lea.sflag [#allocation3], %s206
        %s208 = sand.u32 %s126, 1
        %s209 = smul.addr %s208, 128
        %s210 = scalar_lea.vmem [#allocation2], %s209
        %p211 = scmp.lt.s32.totalorder %s22, 1
        %s212 = scalar_select %p211, %s22, 1
        %s213 = smul.addr %s212, 54
        %s214 = smul.addr %s213, 4
        %s215 = scalar_lea.vmem %s0, %s214
        %p216 = scmp.lt.s32.totalorder %s24, 0
        %s217 = scalar_select %p216, %s24, 0
        %s218 = smul.addr %s217, 4
        %s219 = scalar_lea.vmem %s1, %s218
        %p220 = scmp.lt.s32.totalorder %s24, 0
        %s221 = scalar_select %p220, %s24, 0
        %s222 = scalar_lea.vmem %s2, %s221
        %s223 = smul.u32 8, %s23
        %s225 = smul.u32 %s23, 8
        %s226 = smul.u32 %s225, 3
        %s227 = smul.addr %s226, 4
        %s228 = scalar_lea.vmem %s215, %s227
        %v229 = vld [vmem:[%s228] sm:$0xf]
        %v230 = vld [vmem:[%s228 + $0x4] sm:$0xf]
        %v231 = vld [vmem:[%s228 + $0x8] sm:$0x1]
        %v232 = vld [vmem:[%s228 + $0xc] sm:$0xf]
        %v233 = vld [vmem:[%s228 + $0x10] sm:$0xf]
        %v234 = vld [vmem:[%s228 + $0x14] sm:$0x1]
        %v235 = vld [vmem:[%s228 + $0x18] sm:$0xf]
        %v236 = vld [vmem:[%s228 + $0x1c] sm:$0xf]
        %v237 = vld [vmem:[%s228 + $0x20] sm:$0x1]
        %v238 = vld [vmem:[%s228 + $0x24] sm:$0xf]
        %v239 = vld [vmem:[%s228 + $0x28] sm:$0xf]
        %v240 = vld [vmem:[%s228 + $0x2c] sm:$0x1]
        %v241 = vld [vmem:[%s228 + $0x30] sm:$0xf]
        %v242 = vld [vmem:[%s228 + $0x34] sm:$0xf]
        %v243 = vld [vmem:[%s228 + $0x38] sm:$0x1]
        %v244 = vld [vmem:[%s228 + $0x3c] sm:$0xf]
        %v245 = vld [vmem:[%s228 + $0x40] sm:$0xf]
        %v246 = vld [vmem:[%s228 + $0x44] sm:$0x1]
        %v247 = vld [vmem:[%s228 + $0x48] sm:$0xf]
        %v248 = vld [vmem:[%s228 + $0x4c] sm:$0xf]
        %v249 = vld [vmem:[%s228 + $0x50] sm:$0x1]
        %v250 = vld [vmem:[%s228 + $0x54] sm:$0xf]
        %v251 = vld [vmem:[%s228 + $0x58] sm:$0xf]
        %v252 = vld [vmem:[%s228 + $0x5c] sm:$0x1]
        %v253 = vld [vmem:[%s228 + $0x60] sm:$0xf]
        %v254 = vld [vmem:[%s228 + $0x64] sm:$0xf]
        %v255 = vld [vmem:[%s228 + $0x68] sm:$0x1]
        %v256 = vld [vmem:[%s228 + $0x6c] sm:$0xf]
        %v257 = vld [vmem:[%s228 + $0x70] sm:$0xf]
        %v258 = vld [vmem:[%s228 + $0x74] sm:$0x1]
        %vm259 = vsmask.f32 3328
        %vm260 = vsmask.f32 7440
        %vm261 = vmor %vm259, %vm260
        %v263 = vshrl.u32 %v229, 16
        %v265 = vrot.slane %v263, 4
        %v266 = vshll.u32 %v229, 16
        %v268 = vrot.slane %v266, 5
        %v269 = vor.u32 %v265, %v268
        %v270 = vrot.slane %v269, 4
        %v272 = vshll.u32 %v230, 16
        %v274 = vrot.slane %v272, 5
        %v275 = vsel %vm261, %v270, %v274
        %v276 = vshrl.u32 %v230, 16
        %v278 = vrot.slane %v276, 4
        %v279 = vor.u32 %v278, %v274
        %v280 = vrot.slane %v279, 4
        %v282 = vshll.u32 %v231, 16
        %v284 = vrot.slane %v282, 5
        %v285 = vsel %vm261, %v280, %v284
        %v287 = vshrl.u32 %v232, 16
        %v289 = vrot.slane %v287, 4
        %v290 = vshll.u32 %v232, 16
        %v292 = vrot.slane %v290, 5
        %v293 = vor.u32 %v289, %v292
        %v294 = vrot.slane %v293, 4
        %v296 = vshll.u32 %v233, 16
        %v298 = vrot.slane %v296, 5
        %v299 = vsel %vm261, %v294, %v298
        %v300 = vshrl.u32 %v233, 16
        %v302 = vrot.slane %v300, 4
        %v303 = vor.u32 %v302, %v298
        %v304 = vrot.slane %v303, 4
        %v306 = vshll.u32 %v234, 16
        %v308 = vrot.slane %v306, 5
        %v309 = vsel %vm261, %v304, %v308
        %v311 = vshrl.u32 %v235, 16
        %v313 = vrot.slane %v311, 4
        %v314 = vshll.u32 %v235, 16
        %v316 = vrot.slane %v314, 5
        %v317 = vor.u32 %v313, %v316
        %v318 = vrot.slane %v317, 4
        %v320 = vshll.u32 %v236, 16
        %v322 = vrot.slane %v320, 5
        %v323 = vsel %vm261, %v318, %v322
        %v324 = vshrl.u32 %v236, 16
        %v326 = vrot.slane %v324, 4
        %v327 = vor.u32 %v326, %v322
        %v328 = vrot.slane %v327, 4
        %v330 = vshll.u32 %v237, 16
        %v332 = vrot.slane %v330, 5
        %v333 = vsel %vm261, %v328, %v332
        %v335 = vshrl.u32 %v238, 16
        %v337 = vrot.slane %v335, 4
        %v338 = vshll.u32 %v238, 16
        %v340 = vrot.slane %v338, 5
        %v341 = vor.u32 %v337, %v340
        %v342 = vrot.slane %v341, 4
        %v344 = vshll.u32 %v239, 16
        %v346 = vrot.slane %v344, 5
        %v347 = vsel %vm261, %v342, %v346
        %v348 = vshrl.u32 %v239, 16
        %v350 = vrot.slane %v348, 4
        %v351 = vor.u32 %v350, %v346
        %v352 = vrot.slane %v351, 4
        %v354 = vshll.u32 %v240, 16
        %v356 = vrot.slane %v354, 5
        %v357 = vsel %vm261, %v352, %v356
        %v359 = vshrl.u32 %v241, 16
        %v361 = vrot.slane %v359, 4
        %v362 = vshll.u32 %v241, 16
        %v364 = vrot.slane %v362, 5
        %v365 = vor.u32 %v361, %v364
        %v366 = vrot.slane %v365, 4
        %v368 = vshll.u32 %v242, 16
        %v370 = vrot.slane %v368, 5
        %v371 = vsel %vm261, %v366, %v370
        %v372 = vshrl.u32 %v242, 16
        %v374 = vrot.slane %v372, 4
        %v375 = vor.u32 %v374, %v370
        %v376 = vrot.slane %v375, 4
        %v378 = vshll.u32 %v243, 16
        %v380 = vrot.slane %v378, 5
        %v381 = vsel %vm261, %v376, %v380
        %v383 = vshrl.u32 %v244, 16
        %v385 = vrot.slane %v383, 4
        %v386 = vshll.u32 %v244, 16
        %v388 = vrot.slane %v386, 5
        %v389 = vor.u32 %v385, %v388
        %v390 = vrot.slane %v389, 4
        %v392 = vshll.u32 %v245, 16
        %v394 = vrot.slane %v392, 5
        %v395 = vsel %vm261, %v390, %v394
        %v396 = vshrl.u32 %v245, 16
        %v398 = vrot.slane %v396, 4
        %v399 = vor.u32 %v398, %v394
        %v400 = vrot.slane %v399, 4
        %v402 = vshll.u32 %v246, 16
        %v404 = vrot.slane %v402, 5
        %v405 = vsel %vm261, %v400, %v404
        %v407 = vshrl.u32 %v247, 16
        %v409 = vrot.slane %v407, 4
        %v410 = vshll.u32 %v247, 16
        %v412 = vrot.slane %v410, 5
        %v413 = vor.u32 %v409, %v412
        %v414 = vrot.slane %v413, 4
        %v416 = vshll.u32 %v248, 16
        %v418 = vrot.slane %v416, 5
        %v419 = vsel %vm261, %v414, %v418
        %v420 = vshrl.u32 %v248, 16
        %v422 = vrot.slane %v420, 4
        %v423 = vor.u32 %v422, %v418
        %v424 = vrot.slane %v423, 4
        %v426 = vshll.u32 %v249, 16
        %v428 = vrot.slane %v426, 5
        %v429 = vsel %vm261, %v424, %v428
        %v431 = vshrl.u32 %v250, 16
        %v433 = vrot.slane %v431, 4
        %v434 = vshll.u32 %v250, 16
        %v436 = vrot.slane %v434, 5
        %v437 = vor.u32 %v433, %v436
        %v438 = vrot.slane %v437, 4
        %v440 = vshll.u32 %v251, 16
        %v442 = vrot.slane %v440, 5
        %v443 = vsel %vm261, %v438, %v442
        %v444 = vshrl.u32 %v251, 16
        %v446 = vrot.slane %v444, 4
        %v447 = vor.u32 %v446, %v442
        %v448 = vrot.slane %v447, 4
        %v450 = vshll.u32 %v252, 16
        %v452 = vrot.slane %v450, 5
        %v453 = vsel %vm261, %v448, %v452
        %vm478 = vcmask 1042432
        %vm479 = vcmask 1046532
        %vm480 = vmor %vm478, %vm479
        %v481 = vrot.slane %v229, 5
        %v482 = vrot.slane %v481, 4
        %v483 = vrot.slane %v230, 5
        %v484 = vsel %vm480, %v482, %v483
        %v485 = vrot.slane %v483, 4
        %v486 = vrot.slane %v231, 5
        %v487 = vsel %vm480, %v485, %v486
        %v488 = vrot.slane %v232, 5
        %v489 = vrot.slane %v488, 4
        %v490 = vrot.slane %v233, 5
        %v491 = vsel %vm480, %v489, %v490
        %v492 = vrot.slane %v490, 4
        %v493 = vrot.slane %v234, 5
        %v494 = vsel %vm480, %v492, %v493
        %v495 = vrot.slane %v235, 5
        %v496 = vrot.slane %v495, 4
        %v497 = vrot.slane %v236, 5
        %v498 = vsel %vm480, %v496, %v497
        %v499 = vrot.slane %v497, 4
        %v500 = vrot.slane %v237, 5
        %v501 = vsel %vm480, %v499, %v500
        %v502 = vrot.slane %v238, 5
        %v503 = vrot.slane %v502, 4
        %v504 = vrot.slane %v239, 5
        %v505 = vsel %vm480, %v503, %v504
        %v506 = vrot.slane %v504, 4
        %v507 = vrot.slane %v240, 5
        %v508 = vsel %vm480, %v506, %v507
        %v509 = vrot.slane %v241, 5
        %v510 = vrot.slane %v509, 4
        %v511 = vrot.slane %v242, 5
        %v512 = vsel %vm480, %v510, %v511
        %v513 = vrot.slane %v511, 4
        %v514 = vrot.slane %v243, 5
        %v515 = vsel %vm480, %v513, %v514
        %v516 = vrot.slane %v244, 5
        %v517 = vrot.slane %v516, 4
        %v518 = vrot.slane %v245, 5
        %v519 = vsel %vm480, %v517, %v518
        %v520 = vrot.slane %v518, 4
        %v521 = vrot.slane %v246, 5
        %v522 = vsel %vm480, %v520, %v521
        %v523 = vrot.slane %v247, 5
        %v524 = vrot.slane %v523, 4
        %v525 = vrot.slane %v248, 5
        %v526 = vsel %vm480, %v524, %v525
        %v527 = vrot.slane %v525, 4
        %v528 = vrot.slane %v249, 5
        %v529 = vsel %vm480, %v527, %v528
        %v530 = vrot.slane %v250, 5
        %v531 = vrot.slane %v530, 4
        %v532 = vrot.slane %v251, 5
        %v533 = vsel %vm480, %v531, %v532
        %v534 = vrot.slane %v532, 4
        %v535 = vrot.slane %v252, 5
        %v536 = vsel %vm480, %v534, %v535
        %v538 = vshrl.u32 %v253, 16
        %v540 = vrot.slane %v538, 4
        %v541 = vshll.u32 %v253, 16
        %v543 = vrot.slane %v541, 5
        %v544 = vor.u32 %v540, %v543
        %v545 = vrot.slane %v544, 4
        %v547 = vshll.u32 %v254, 16
        %v549 = vrot.slane %v547, 5
        %v550 = vsel %vm261, %v545, %v549
        %v551 = vshrl.u32 %v254, 16
        %v553 = vrot.slane %v551, 4
        %v554 = vor.u32 %v553, %v549
        %v555 = vrot.slane %v554, 4
        %v557 = vshll.u32 %v255, 16
        %v559 = vrot.slane %v557, 5
        %v560 = vsel %vm261, %v555, %v559
        %v564 = vrot.slane %v253, 5
        %v565 = vrot.slane %v564, 4
        %v566 = vrot.slane %v254, 5
        %v567 = vsel %vm480, %v565, %v566
        %v568 = vrot.slane %v566, 4
        %v569 = vrot.slane %v255, 5
        %v570 = vsel %vm480, %v568, %v569
        %v572 = vshrl.u32 %v256, 16
        %v574 = vrot.slane %v572, 4
        %v575 = vshll.u32 %v256, 16
        %v577 = vrot.slane %v575, 5
        %v578 = vor.u32 %v574, %v577
        %v579 = vrot.slane %v578, 4
        %v581 = vshll.u32 %v257, 16
        %v583 = vrot.slane %v581, 5
        %v584 = vsel %vm261, %v579, %v583
        %v585 = vshrl.u32 %v257, 16
        %v587 = vrot.slane %v585, 4
        %v588 = vor.u32 %v587, %v583
        %v589 = vrot.slane %v588, 4
        %v591 = vshll.u32 %v258, 16
        %v593 = vrot.slane %v591, 5
        %v594 = vsel %vm261, %v589, %v593
        %v598 = vrot.slane %v256, 5
        %v599 = vrot.slane %v598, 4
        %v600 = vrot.slane %v257, 5
        %v601 = vsel %vm480, %v599, %v600
        %v602 = vrot.slane %v600, 4
        %v603 = vrot.slane %v258, 5
        %v604 = vsel %vm480, %v602, %v603
        %v605 = vunpack.c.l.b16 %v229
        %v606 = vunpack.c.l.b16 %v230
        %v607 = vunpack.c.l.b16 %v232
        %v608 = vunpack.c.l.b16 %v233
        %v609 = vunpack.c.l.b16 %v235
        %v610 = vunpack.c.l.b16 %v236
        %v611 = vunpack.c.l.b16 %v238
        %v612 = vunpack.c.l.b16 %v239
        %v613 = vunpack.c.l.b16 %v241
        %v614 = vunpack.c.l.b16 %v242
        %v615 = vunpack.c.l.b16 %v244
        %v616 = vunpack.c.l.b16 %v245
        %v617 = vunpack.c.l.b16 %v247
        %v618 = vunpack.c.l.b16 %v248
        %v619 = vunpack.c.l.b16 %v250
        %v620 = vunpack.c.l.b16 %v251
        %v621 = vpack.c.b16 %v606, %v605
        %v622 = vpack.c.b16 %v608, %v607
        %v623 = vpack.c.b16 %v610, %v609
        %v624 = vpack.c.b16 %v612, %v611
        %v625 = vpack.c.b16 %v614, %v613
        %v626 = vpack.c.b16 %v616, %v615
        %v627 = vpack.c.b16 %v618, %v617
        %v628 = vpack.c.b16 %v620, %v619
        %v629 = vunpack.c.l.b16 %v275
        %v630 = vunpack.c.l.b16 %v285
        %v631 = vunpack.c.l.b16 %v299
        %v632 = vunpack.c.l.b16 %v309
        %v633 = vunpack.c.l.b16 %v323
        %v634 = vunpack.c.l.b16 %v333
        %v635 = vunpack.c.l.b16 %v347
        %v636 = vunpack.c.l.b16 %v357
        %v637 = vunpack.c.l.b16 %v371
        %v638 = vunpack.c.l.b16 %v381
        %v639 = vunpack.c.l.b16 %v395
        %v640 = vunpack.c.l.b16 %v405
        %v641 = vunpack.c.l.b16 %v419
        %v642 = vunpack.c.l.b16 %v429
        %v643 = vunpack.c.l.b16 %v443
        %v644 = vunpack.c.l.b16 %v453
        %v645 = vpack.c.b16 %v630, %v629
        %v646 = vpack.c.b16 %v632, %v631
        %v647 = vpack.c.b16 %v634, %v633
        %v648 = vpack.c.b16 %v636, %v635
        %v649 = vpack.c.b16 %v638, %v637
        %v650 = vpack.c.b16 %v640, %v639
        %v651 = vpack.c.b16 %v642, %v641
        %v652 = vpack.c.b16 %v644, %v643
        %653 = vrot.lane.b32.xlu0 %v645, 64
        %v654 = vpop.permute.xlu0 %653
        %655 = vrot.lane.b32.xlu0 %v646, 64
        %v656 = vpop.permute.xlu0 %655
        %657 = vrot.lane.b32.xlu0 %v647, 64
        %v658 = vpop.permute.xlu0 %657
        %659 = vrot.lane.b32.xlu0 %v648, 64
        %v660 = vpop.permute.xlu0 %659
        %661 = vrot.lane.b32.xlu0 %v649, 64
        %v662 = vpop.permute.xlu0 %661
        %663 = vrot.lane.b32.xlu0 %v650, 64
        %v664 = vpop.permute.xlu0 %663
        %665 = vrot.lane.b32.xlu0 %v651, 64
        %v666 = vpop.permute.xlu0 %665
        %667 = vrot.lane.b32.xlu0 %v652, 64
        %v668 = vpop.permute.xlu0 %667
        %v669 = vunpack.c.l.b16 %v484
        %v670 = vunpack.c.l.b16 %v487
        %v671 = vunpack.c.l.b16 %v491
        %v672 = vunpack.c.l.b16 %v494
        %v673 = vunpack.c.l.b16 %v498
        %v674 = vunpack.c.l.b16 %v501
        %v675 = vunpack.c.l.b16 %v505
        %v676 = vunpack.c.l.b16 %v508
        %v677 = vunpack.c.l.b16 %v512
        %v678 = vunpack.c.l.b16 %v515
        %v679 = vunpack.c.l.b16 %v519
        %v680 = vunpack.c.l.b16 %v522
        %v681 = vunpack.c.l.b16 %v526
        %v682 = vunpack.c.l.b16 %v529
        %v683 = vunpack.c.l.b16 %v533
        %v684 = vunpack.c.l.b16 %v536
        %v685 = vpack.c.b16 %v670, %v669
        %v686 = vpack.c.b16 %v672, %v671
        %v687 = vpack.c.b16 %v674, %v673
        %v688 = vpack.c.b16 %v676, %v675
        %v689 = vpack.c.b16 %v678, %v677
        %v690 = vpack.c.b16 %v680, %v679
        %v691 = vpack.c.b16 %v682, %v681
        %v692 = vpack.c.b16 %v684, %v683
        %v693 = vunpack.c.l.b16 %v253
        %v694 = vunpack.c.l.b16 %v254
        %v695 = vpack.c.b16 %v694, %v693
        %696 = vrot.lane.b32.xlu0 %v622, 64
        %v697 = vpop.permute.xlu0 %696
        %698 = vrot.lane.b32.xlu0 %v623, 64
        %v699 = vpop.permute.xlu0 %698
        %700 = vrot.lane.b32.xlu0 %v624, 64
        %v701 = vpop.permute.xlu0 %700
        %702 = vrot.lane.b32.xlu0 %v625, 64
        %v703 = vpop.permute.xlu0 %702
        %704 = vrot.lane.b32.xlu0 %v626, 64
        %v705 = vpop.permute.xlu0 %704
        %706 = vrot.lane.b32.xlu0 %v627, 64
        %v707 = vpop.permute.xlu0 %706
        %708 = vrot.lane.b32.xlu0 %v628, 64
        %v709 = vpop.permute.xlu0 %708
        %710 = vrot.lane.b32.xlu0 %v695, 64
        %v711 = vpop.permute.xlu0 %710
        %v712 = vunpack.c.l.b16 %v550
        %v713 = vunpack.c.l.b16 %v560
        %v714 = vpack.c.b16 %v713, %v712
        %v715 = vunpack.c.l.b16 %v567
        %v716 = vunpack.c.l.b16 %v570
        %v717 = vpack.c.b16 %v716, %v715
        %718 = vrot.lane.b32.xlu0 %v686, 64
        %v719 = vpop.permute.xlu0 %718
        %720 = vrot.lane.b32.xlu0 %v687, 64
        %v721 = vpop.permute.xlu0 %720
        %722 = vrot.lane.b32.xlu0 %v688, 64
        %v723 = vpop.permute.xlu0 %722
        %724 = vrot.lane.b32.xlu0 %v689, 64
        %v725 = vpop.permute.xlu0 %724
        %726 = vrot.lane.b32.xlu0 %v690, 64
        %v727 = vpop.permute.xlu0 %726
        %728 = vrot.lane.b32.xlu0 %v691, 64
        %v729 = vpop.permute.xlu0 %728
        %730 = vrot.lane.b32.xlu0 %v692, 64
        %v731 = vpop.permute.xlu0 %730
        %732 = vrot.lane.b32.xlu0 %v717, 64
        %v733 = vpop.permute.xlu0 %732
        %v734 = vunpack.c.l.b16 %v256
        %v735 = vunpack.c.l.b16 %v257
        %v736 = vpack.c.b16 %v735, %v734
        %v737 = vunpack.c.l.b16 %v584
        %v738 = vunpack.c.l.b16 %v594
        %v739 = vpack.c.b16 %v738, %v737
        %740 = vrot.lane.b32.xlu0 %v714, 64
        %v741 = vpop.permute.xlu0 %740
        %742 = vrot.lane.b32.xlu0 %v739, 64
        %v743 = vpop.permute.xlu0 %742
        %v744 = vunpack.c.l.b16 %v601
        %v745 = vunpack.c.l.b16 %v604
        %v746 = vpack.c.b16 %v745, %v744
        %vm747 = vcmask 523264
        %v750 = vsel %vm747, %v621, %v654
        %v754 = vsel %vm747, %v622, %v656
        %v758 = vsel %vm747, %v623, %v658
        %v762 = vsel %vm747, %v624, %v660
        %v766 = vsel %vm747, %v625, %v662
        %v770 = vsel %vm747, %v626, %v664
        %v774 = vsel %vm747, %v627, %v666
        %v778 = vsel %vm747, %v628, %v668
        %v782 = vsel %vm747, %v685, %v697
        %v786 = vsel %vm747, %v686, %v699
        %v790 = vsel %vm747, %v687, %v701
        %v794 = vsel %vm747, %v688, %v703
        %v798 = vsel %vm747, %v689, %v705
        %v802 = vsel %vm747, %v690, %v707
        %v806 = vsel %vm747, %v691, %v709
        %v810 = vsel %vm747, %v692, %v711
        %v814 = vsel %vm747, %v646, %v719
        %v818 = vsel %vm747, %v647, %v721
        %v822 = vsel %vm747, %v648, %v723
        %v826 = vsel %vm747, %v649, %v725
        %v830 = vsel %vm747, %v650, %v727
        %v834 = vsel %vm747, %v651, %v729
        %v838 = vsel %vm747, %v652, %v731
        %v842 = vsel %vm747, %v714, %v733
        %v846 = vsel %vm747, %v695, %v741
        %v850 = vsel %vm747, %v736, %v743
        %v852 = vld [vmem:[%s219] sm:$0xf]
        %v853 = vld [vmem:[%s219 + $0x4] sm:$0xf]
        %v854 = vld [vmem:[%s219 + $0x8] sm:$0xf]
        %v855 = vld [vmem:[%s219 + $0xc] sm:$0xf]
        %v856 = vld [vmem:[%s219 + $0x10] sm:$0xf]
        %v857 = vld [vmem:[%s219 + $0x14] sm:$0xf]
        %v858 = vld [vmem:[%s219 + $0x18] sm:$0xf]
        %v859 = vld [vmem:[%s219 + $0x1c] sm:$0xf]
        %v860 = vld [vmem:[%s219 + $0x20] sm:$0xf]
        %v861 = vld [vmem:[%s219 + $0x24] sm:$0xf]
        %v862 = vld [vmem:[%s219 + $0x28] sm:$0xf]
        %v863 = vld [vmem:[%s219 + $0x2c] sm:$0xf]
        %v864 = vld [vmem:[%s219 + $0x30] sm:$0xf]
        %v865 = vld [vmem:[%s219 + $0x34] sm:$0xf]
        %v866 = vld [vmem:[%s219 + $0x38] sm:$0xf]
        %v867 = vld [vmem:[%s219 + $0x3c] sm:$0xf]
        %v868 = vld [vmem:[%s219 + $0x40] sm:$0xf]
        %v869 = vld [vmem:[%s219 + $0x44] sm:$0xf]
        %v870 = vld [vmem:[%s219 + $0x48] sm:$0xf]
        %v871 = vld [vmem:[%s219 + $0x4c] sm:$0xf]
        %v872 = vld [vmem:[%s219 + $0x50] sm:$0xf]
        %v873 = vld [vmem:[%s219 + $0x54] sm:$0xf]
        %v874 = vld [vmem:[%s219 + $0x58] sm:$0xf]
        %v875 = vld [vmem:[%s219 + $0x5c] sm:$0xf]
        %v876 = vld [vmem:[%s219 + $0x60] sm:$0xf]
        %v877 = vld [vmem:[%s219 + $0x64] sm:$0xf]
        %v878 = vld [vmem:[%s219 + $0x68] sm:$0xf]
        %v879 = vld [vmem:[%s219 + $0x6c] sm:$0xf]
        %v880 = vld [vmem:[%s219 + $0x70] sm:$0xf]
        %v881 = vld [vmem:[%s219 + $0x74] sm:$0xf]
        %v882 = vld [vmem:[%s219 + $0x78] sm:$0xf]
        %v883 = vld [vmem:[%s219 + $0x7c] sm:$0xf]
        %v884 = vld [vmem:[%s219 + $0x80] sm:$0xf]
        %v885 = vld [vmem:[%s219 + $0x84] sm:$0xf]
        %v886 = vld [vmem:[%s219 + $0x88] sm:$0xf]
        %v887 = vld [vmem:[%s219 + $0x8c] sm:$0xf]
        %v888 = vld [vmem:[%s219 + $0x90] sm:$0xf]
        %v889 = vld [vmem:[%s219 + $0x94] sm:$0xf]
        %v890 = vld [vmem:[%s219 + $0x98] sm:$0xf]
        %v891 = vld [vmem:[%s219 + $0x9c] sm:$0xf]
        %v892 = vld [vmem:[%s219 + $0xa0] sm:$0xf]
        %v893 = vld [vmem:[%s219 + $0xa4] sm:$0xf]
        %v894 = vld [vmem:[%s219 + $0xa8] sm:$0xf]
        %v895 = vld [vmem:[%s219 + $0xac] sm:$0xf]
        %v896 = vld [vmem:[%s219 + $0xb0] sm:$0xf]
        %v897 = vld [vmem:[%s219 + $0xb4] sm:$0xf]
        %v898 = vld [vmem:[%s219 + $0xb8] sm:$0xf]
        %v899 = vld [vmem:[%s219 + $0xbc] sm:$0xf]
        %v900 = vld [vmem:[%s219 + $0xc0] sm:$0xf]
        %v901 = vld [vmem:[%s219 + $0xc4] sm:$0xf]
        %v902 = vld [vmem:[%s219 + $0xc8] sm:$0xf]
        %v903 = vld [vmem:[%s219 + $0xcc] sm:$0xf]
        %v904 = vld [vmem:[%s219 + $0xd0] sm:$0xf]
        %v905 = vld [vmem:[%s219 + $0xd4] sm:$0xf]
        %v906 = vld [vmem:[%s219 + $0xd8] sm:$0xf]
        %v907 = vld [vmem:[%s219 + $0xdc] sm:$0xf]
        %v908 = vld [vmem:[%s219 + $0xe0] sm:$0xf]
        %v909 = vld [vmem:[%s219 + $0xe4] sm:$0xf]
        %v910 = vld [vmem:[%s219 + $0xe8] sm:$0xf]
        %v911 = vld [vmem:[%s219 + $0xec] sm:$0xf]
        %v912 = vld [vmem:[%s219 + $0xf0] sm:$0xf]
        %v913 = vld [vmem:[%s219 + $0xf4] sm:$0xf]
        %v914 = vld [vmem:[%s219 + $0xf8] sm:$0xf]
        %v915 = vld [vmem:[%s219 + $0xfc] sm:$0xf]
        %v916 = vld [vmem:[%s219 + $0x100] sm:$0xf]
        %v917 = vld [vmem:[%s219 + $0x104] sm:$0xf]
        %v918 = vld [vmem:[%s219 + $0x108] sm:$0xf]
        %v919 = vld [vmem:[%s219 + $0x10c] sm:$0xf]
        %v920 = vld [vmem:[%s219 + $0x110] sm:$0xf]
        %v921 = vld [vmem:[%s219 + $0x114] sm:$0xf]
        %v922 = vld [vmem:[%s219 + $0x118] sm:$0xf]
        %v923 = vld [vmem:[%s219 + $0x11c] sm:$0xf]
        %v924 = vld [vmem:[%s222] sm:$0x1]
        %v926 = vlaneseq
        %v927 = vshrl.u32 %v926, 7
        %v928 = vsub.s32 0, %v927
        %v929 = vrot.slane %v924, %v928
        %v1003 = vunpack.c.l.b16 %v852
        %v1004 = vunpack.c.l.b16 %v853
        %v1005 = vunpack.c.l.b16 %v854
        %v1006 = vunpack.c.l.b16 %v855
        %v1007 = vunpack.c.l.b16 %v856
        %v1008 = vunpack.c.l.b16 %v857
        %v1009 = vunpack.c.l.b16 %v858
        %v1010 = vunpack.c.l.b16 %v859
        %v1011 = vunpack.c.l.b16 %v860
        %v1012 = vunpack.c.l.b16 %v861
        %v1013 = vunpack.c.l.b16 %v862
        %v1014 = vunpack.c.l.b16 %v863
        %v1015 = vunpack.c.l.b16 %v864
        %v1016 = vunpack.c.l.b16 %v865
        %v1017 = vunpack.c.l.b16 %v866
        %v1018 = vunpack.c.l.b16 %v867
        %v1019 = vunpack.c.l.b16 %v868
        %v1020 = vunpack.c.l.b16 %v869
        %v1021 = vunpack.c.l.b16 %v870
        %v1022 = vunpack.c.l.b16 %v871
        %v1023 = vunpack.c.l.b16 %v872
        %v1024 = vunpack.c.l.b16 %v873
        %v1025 = vunpack.c.l.b16 %v874
        %v1026 = vunpack.c.l.b16 %v875
        %v1027 = vunpack.c.l.b16 %v876
        %v1028 = vunpack.c.l.b16 %v877
        %v1029 = vunpack.c.l.b16 %v878
        %v1030 = vunpack.c.l.b16 %v879
        %v1031 = vunpack.c.l.b16 %v880
        %v1032 = vunpack.c.l.b16 %v881
        %v1033 = vunpack.c.l.b16 %v882
        %v1034 = vunpack.c.l.b16 %v883
        %v1035 = vunpack.c.l.b16 %v884
        %v1036 = vunpack.c.l.b16 %v885
        %v1037 = vunpack.c.l.b16 %v886
        %v1038 = vunpack.c.l.b16 %v887
        %v1039 = vunpack.c.l.b16 %v888
        %v1040 = vunpack.c.l.b16 %v889
        %v1041 = vunpack.c.l.b16 %v890
        %v1042 = vunpack.c.l.b16 %v891
        %v1043 = vunpack.c.l.b16 %v892
        %v1044 = vunpack.c.l.b16 %v893
        %v1045 = vunpack.c.l.b16 %v894
        %v1046 = vunpack.c.l.b16 %v895
        %v1047 = vunpack.c.l.b16 %v896
        %v1048 = vunpack.c.l.b16 %v897
        %v1049 = vunpack.c.l.b16 %v898
        %v1050 = vunpack.c.l.b16 %v899
        %v1051 = vunpack.c.l.b16 %v900
        %v1052 = vunpack.c.l.b16 %v901
        %v1053 = vunpack.c.l.b16 %v902
        %v1054 = vunpack.c.l.b16 %v903
        %v1055 = vunpack.c.l.b16 %v904
        %v1056 = vunpack.c.l.b16 %v905
        %v1057 = vunpack.c.l.b16 %v906
        %v1058 = vunpack.c.l.b16 %v907
        %v1059 = vunpack.c.l.b16 %v908
        %v1060 = vunpack.c.l.b16 %v909
        %v1061 = vunpack.c.l.b16 %v910
        %v1062 = vunpack.c.l.b16 %v911
        %v1063 = vunpack.c.l.b16 %v912
        %v1064 = vunpack.c.l.b16 %v913
        %v1065 = vunpack.c.l.b16 %v914
        %v1066 = vunpack.c.l.b16 %v915
        %v1067 = vunpack.c.l.b16 %v916
        %v1068 = vunpack.c.l.b16 %v917
        %v1069 = vunpack.c.l.b16 %v918
        %v1070 = vunpack.c.l.b16 %v919
        %v1071 = vunpack.c.l.b16 %v920
        %v1072 = vunpack.c.l.b16 %v921
        %v1073 = vunpack.c.l.b16 %v922
        %v1074 = vunpack.c.l.b16 %v923
        %v1075 = vpack.c.b16 %v1004, %v1003
        %v1076 = vpack.c.b16 %v1006, %v1005
        %v1077 = vpack.c.b16 %v1008, %v1007
        %v1078 = vpack.c.b16 %v1010, %v1009
        %v1079 = vpack.c.b16 %v1012, %v1011
        %v1080 = vpack.c.b16 %v1014, %v1013
        %v1081 = vpack.c.b16 %v1016, %v1015
        %v1082 = vpack.c.b16 %v1018, %v1017
        %v1083 = vpack.c.b16 %v1020, %v1019
        %v1084 = vpack.c.b16 %v1022, %v1021
        %v1085 = vpack.c.b16 %v1024, %v1023
        %v1086 = vpack.c.b16 %v1026, %v1025
        %v1087 = vpack.c.b16 %v1028, %v1027
        %v1088 = vpack.c.b16 %v1030, %v1029
        %v1089 = vpack.c.b16 %v1032, %v1031
        %v1090 = vpack.c.b16 %v1034, %v1033
        %v1091 = vpack.c.b16 %v1036, %v1035
        %v1092 = vpack.c.b16 %v1038, %v1037
        %v1093 = vpack.c.b16 %v1040, %v1039
        %v1094 = vpack.c.b16 %v1042, %v1041
        %v1095 = vpack.c.b16 %v1044, %v1043
        %v1096 = vpack.c.b16 %v1046, %v1045
        %v1097 = vpack.c.b16 %v1048, %v1047
        %v1098 = vpack.c.b16 %v1050, %v1049
        %v1099 = vpack.c.b16 %v1052, %v1051
        %v1100 = vpack.c.b16 %v1054, %v1053
        %v1101 = vpack.c.b16 %v1056, %v1055
        %v1102 = vpack.c.b16 %v1058, %v1057
        %v1103 = vpack.c.b16 %v1060, %v1059
        %v1104 = vpack.c.b16 %v1062, %v1061
        %v1105 = vpack.c.b16 %v1064, %v1063
        %v1106 = vpack.c.b16 %v1066, %v1065
        %v1107 = vpack.c.b16 %v1068, %v1067
        %v1108 = vpack.c.b16 %v1070, %v1069
        %v1109 = vpack.c.b16 %v1072, %v1071
        %v1110 = vpack.c.b16 %v1074, %v1073
        %v1147 = vsel %vm747, %v687, 0
        %v1149 = vsel %vm747, %v688, 0
        %v1151 = vsel %vm747, %v689, 0
        %v1153 = vsel %vm747, %v690, 0
        %v1155 = vsel %vm747, %v691, 0
        %v1157 = vsel %vm747, %v692, 0
        %v1160 = vsel %vm747, %v717, 0
        %v1163 = vsel %vm747, %v746, 0
        %1165 = vmatprep.subr.bf16.mxu0 0
        %1166 = vmatpush1.bf16.msra.mxu0 %v1082
        %1167 = vmatprep.subr.bf16.mxu0 0
        %1168 = vmatpush1.bf16.msra.mxu0 %v1081
        %1169 = vmatprep.subr.bf16.mxu0 0
        %1170 = vmatpush1.bf16.msra.mxu0 %v1080
        %1171 = vmatprep.subr.bf16.mxu0 0
        %1172 = vmatpush1.bf16.msra.mxu0 %v1079
        %1173 = vmatprep.subr.bf16.mxu0 0
        %1174 = vmatpush1.bf16.msra.mxu0 %v1078
        %1175 = vmatprep.subr.bf16.mxu0 0
        %1176 = vmatpush1.bf16.msra.mxu0 %v1077
        %1177 = vmatprep.subr.bf16.mxu0 0
        %1178 = vmatpush1.bf16.msra.mxu0 %v1076
        %1179 = vmatprep.subr.bf16.mxu0 0
        %1180 = vmatpush1.bf16.msra.mxu0 %v1075
        %1181 = vmatprep.subr.bf16.mxu0 0
        %1182 = vmatpush2.bf16.msra.mxu0 %v1090
        %1183 = vmatprep.subr.bf16.mxu0 0
        %1184 = vmatpush2.bf16.msra.mxu0 %v1089
        %1185 = vmatprep.subr.bf16.mxu0 0
        %1186 = vmatpush2.bf16.msra.mxu0 %v1088
        %1187 = vmatprep.subr.bf16.mxu0 0
        %1188 = vmatpush2.bf16.msra.mxu0 %v1087
        %1189 = vmatprep.subr.bf16.mxu0 0
        %1190 = vmatpush2.bf16.msra.mxu0 %v1086
        %1191 = vmatprep.subr.bf16.mxu0 0
        %1192 = vmatpush2.bf16.msra.mxu0 %v1085
        %1193 = vmatprep.subr.bf16.mxu0 0
        %1194 = vmatpush2.bf16.msra.mxu0 %v1084
        %1195 = vmatprep.subr.bf16.mxu0 0
        %1196 = vmatpush2.bf16.msra.mxu0 %v1083
        %1197 = vmatprep.mubr.bf16.mxu0 %v782
        %1198 = vmatmul.mubr.bf16.gmra.mxu0 %v750
        %v1199 = vpop.f32.mrf.mxu0
        %v1200 = vadd.f32 %v929, %v1199
        %v1201 = vpop.f32.mrf.mxu0
        %v1202 = vpop.f32.mrf.mxu0
        %v1203 = vadd.f32 %v929, %v1202
        %v1204 = vpop.f32.mrf.mxu0
        %1205 = vmatprep.mubr.bf16.mxu0 %v786
        %1206 = vmatmul.mubr.bf16.gmra.mxu0 %v754
        %v1207 = vpop.f32.mrf.mxu0
        %v1208 = vadd.f32 %v929, %v1207
        %v1209 = vpop.f32.mrf.mxu0
        %v1210 = vpop.f32.mrf.mxu0
        %v1211 = vadd.f32 %v929, %v1210
        %v1212 = vpop.f32.mrf.mxu0
        %1213 = vmatprep.mubr.bf16.mxu0 %v790
        %1214 = vmatmul.mubr.bf16.gmra.mxu0 %v758
        %v1215 = vpop.f32.mrf.mxu0
        %v1216 = vadd.f32 %v929, %v1215
        %v1217 = vpop.f32.mrf.mxu0
        %v1218 = vpop.f32.mrf.mxu0
        %v1219 = vadd.f32 %v929, %v1218
        %v1220 = vpop.f32.mrf.mxu0
        %1221 = vmatprep.mubr.bf16.mxu0 %v794
        %1222 = vmatmul.mubr.bf16.gmra.mxu0 %v762
        %v1223 = vpop.f32.mrf.mxu0
        %v1224 = vadd.f32 %v929, %v1223
        %v1225 = vpop.f32.mrf.mxu0
        %v1226 = vpop.f32.mrf.mxu0
        %v1227 = vadd.f32 %v929, %v1226
        %v1228 = vpop.f32.mrf.mxu0
        %1229 = vmatprep.mubr.bf16.mxu0 %v798
        %1230 = vmatmul.mubr.bf16.gmra.mxu0 %v766
        %v1231 = vpop.f32.mrf.mxu0
        %v1232 = vadd.f32 %v929, %v1231
        %v1233 = vpop.f32.mrf.mxu0
        %v1234 = vpop.f32.mrf.mxu0
        %v1235 = vadd.f32 %v929, %v1234
        %v1236 = vpop.f32.mrf.mxu0
        %1237 = vmatprep.mubr.bf16.mxu0 %v802
        %1238 = vmatmul.mubr.bf16.gmra.mxu0 %v770
        %v1239 = vpop.f32.mrf.mxu0
        %v1240 = vadd.f32 %v929, %v1239
        %v1241 = vpop.f32.mrf.mxu0
        %v1242 = vpop.f32.mrf.mxu0
        %v1243 = vadd.f32 %v929, %v1242
        %v1244 = vpop.f32.mrf.mxu0
        %1245 = vmatprep.mubr.bf16.mxu0 %v806
        %1246 = vmatmul.mubr.bf16.gmra.mxu0 %v774
        %v1247 = vpop.f32.mrf.mxu0
        %v1248 = vadd.f32 %v929, %v1247
        %v1249 = vpop.f32.mrf.mxu0
        %v1250 = vpop.f32.mrf.mxu0
        %v1251 = vadd.f32 %v929, %v1250
        %v1252 = vpop.f32.mrf.mxu0
        %1253 = vmatprep.mubr.bf16.mxu0 %v810
        %1254 = vmatmul.mubr.bf16.gmra.mxu0 %v778
        %v1255 = vpop.f32.mrf.mxu0
        %v1256 = vadd.f32 %v929, %v1255
        %v1257 = vpop.f32.mrf.mxu0
        %v1258 = vpop.f32.mrf.mxu0
        %v1259 = vadd.f32 %v929, %v1258
        %v1260 = vpop.f32.mrf.mxu0
        %1261 = vdwg.mxu0
        %1262 = vmatprep.subr.bf16.mxu0 0
        %1263 = vmatpush1.bf16.msra.mxu0 %v1098
        %1264 = vmatprep.subr.bf16.mxu0 0
        %1265 = vmatpush1.bf16.msra.mxu0 %v1097
        %1266 = vmatprep.subr.bf16.mxu0 0
        %1267 = vmatpush1.bf16.msra.mxu0 %v1096
        %1268 = vmatprep.subr.bf16.mxu0 0
        %1269 = vmatpush1.bf16.msra.mxu0 %v1095
        %1270 = vmatprep.subr.bf16.mxu0 0
        %1271 = vmatpush1.bf16.msra.mxu0 %v1094
        %1272 = vmatprep.subr.bf16.mxu0 0
        %1273 = vmatpush1.bf16.msra.mxu0 %v1093
        %1274 = vmatprep.subr.bf16.mxu0 0
        %1275 = vmatpush1.bf16.msra.mxu0 %v1092
        %1276 = vmatprep.subr.bf16.mxu0 0
        %1277 = vmatpush1.bf16.msra.mxu0 %v1091
        %1278 = vmatprep.subr.bf16.mxu0 0
        %1279 = vmatpush2.bf16.msra.mxu0 %v1106
        %1280 = vmatprep.subr.bf16.mxu0 0
        %1281 = vmatpush2.bf16.msra.mxu0 %v1105
        %1282 = vmatprep.subr.bf16.mxu0 0
        %1283 = vmatpush2.bf16.msra.mxu0 %v1104
        %1284 = vmatprep.subr.bf16.mxu0 0
        %1285 = vmatpush2.bf16.msra.mxu0 %v1103
        %1286 = vmatprep.subr.bf16.mxu0 0
        %1287 = vmatpush2.bf16.msra.mxu0 %v1102
        %1288 = vmatprep.subr.bf16.mxu0 0
        %1289 = vmatpush2.bf16.msra.mxu0 %v1101
        %1290 = vmatprep.subr.bf16.mxu0 0
        %1291 = vmatpush2.bf16.msra.mxu0 %v1100
        %1292 = vmatprep.subr.bf16.mxu0 0
        %1293 = vmatpush2.bf16.msra.mxu0 %v1099
        %1294 = vmatprep.mubr.bf16.mxu0 %v758
        %1295 = vmatmul.mubr.bf16.gmra.mxu0 %v814
        %v1296 = vpop.f32.mrf.mxu0
        %v1297 = vadd.f32 %v1200, %v1296
        %v1298 = vpop.f32.mrf.mxu0
        %v1299 = vpop.f32.mrf.mxu0
        %v1300 = vadd.f32 %v1203, %v1299
        %v1301 = vpop.f32.mrf.mxu0
        %1302 = vmatprep.mubr.bf16.mxu0 %v762
        %1303 = vmatmul.mubr.bf16.gmra.mxu0 %v818
        %v1304 = vpop.f32.mrf.mxu0
        %v1305 = vadd.f32 %v1208, %v1304
        %v1306 = vpop.f32.mrf.mxu0
        %v1307 = vpop.f32.mrf.mxu0
        %v1308 = vadd.f32 %v1211, %v1307
        %v1309 = vpop.f32.mrf.mxu0
        %1310 = vmatprep.mubr.bf16.mxu0 %v766
        %1311 = vmatmul.mubr.bf16.gmra.mxu0 %v822
        %v1312 = vpop.f32.mrf.mxu0
        %v1313 = vadd.f32 %v1216, %v1312
        %v1314 = vpop.f32.mrf.mxu0
        %v1315 = vpop.f32.mrf.mxu0
        %v1316 = vadd.f32 %v1219, %v1315
        %v1317 = vpop.f32.mrf.mxu0
        %1318 = vmatprep.mubr.bf16.mxu0 %v770
        %1319 = vmatmul.mubr.bf16.gmra.mxu0 %v826
        %v1320 = vpop.f32.mrf.mxu0
        %v1321 = vadd.f32 %v1224, %v1320
        %v1322 = vpop.f32.mrf.mxu0
        %v1323 = vpop.f32.mrf.mxu0
        %v1324 = vadd.f32 %v1227, %v1323
        %v1325 = vpop.f32.mrf.mxu0
        %1326 = vmatprep.mubr.bf16.mxu0 %v774
        %1327 = vmatmul.mubr.bf16.gmra.mxu0 %v830
        %v1328 = vpop.f32.mrf.mxu0
        %v1329 = vadd.f32 %v1232, %v1328
        %v1330 = vpop.f32.mrf.mxu0
        %v1331 = vpop.f32.mrf.mxu0
        %v1332 = vadd.f32 %v1235, %v1331
        %v1333 = vpop.f32.mrf.mxu0
        %1334 = vmatprep.mubr.bf16.mxu0 %v778
        %1335 = vmatmul.mubr.bf16.gmra.mxu0 %v834
        %v1336 = vpop.f32.mrf.mxu0
        %v1337 = vadd.f32 %v1240, %v1336
        %v1338 = vpop.f32.mrf.mxu0
        %v1339 = vpop.f32.mrf.mxu0
        %v1340 = vadd.f32 %v1243, %v1339
        %v1341 = vpop.f32.mrf.mxu0
        %1342 = vmatprep.mubr.bf16.mxu0 %v846
        %1343 = vmatmul.mubr.bf16.gmra.mxu0 %v838
        %v1344 = vpop.f32.mrf.mxu0
        %v1345 = vadd.f32 %v1248, %v1344
        %v1346 = vpop.f32.mrf.mxu0
        %v1347 = vpop.f32.mrf.mxu0
        %v1348 = vadd.f32 %v1251, %v1347
        %v1349 = vpop.f32.mrf.mxu0
        %1350 = vmatprep.mubr.bf16.mxu0 %v850
        %1351 = vmatmul.mubr.bf16.gmra.mxu0 %v842
        %v1352 = vpop.f32.mrf.mxu0
        %v1353 = vadd.f32 %v1256, %v1352
        %v1354 = vpop.f32.mrf.mxu0
        %v1355 = vpop.f32.mrf.mxu0
        %v1356 = vadd.f32 %v1259, %v1355
        %v1357 = vpop.f32.mrf.mxu0
        %1358 = vdwg.mxu0
        %1359 = vmatprep.subr.bf16.mxu0 0
        %1360 = vmatpush1.bf16.msra.mxu0 0
        %1361 = vmatprep.subr.bf16.mxu0 0
        %1362 = vmatpush1.bf16.msra.mxu0 0
        %1363 = vmatprep.subr.bf16.mxu0 0
        %1364 = vmatpush1.bf16.msra.mxu0 0
        %1365 = vmatprep.subr.bf16.mxu0 0
        %1366 = vmatpush1.bf16.msra.mxu0 0
        %1367 = vmatprep.subr.bf16.mxu0 0
        %1368 = vmatpush1.bf16.msra.mxu0 %v1110
        %1369 = vmatprep.subr.bf16.mxu0 0
        %1370 = vmatpush1.bf16.msra.mxu0 %v1109
        %1371 = vmatprep.subr.bf16.mxu0 0
        %1372 = vmatpush1.bf16.msra.mxu0 %v1108
        %1373 = vmatprep.subr.bf16.mxu0 0
        %1374 = vmatpush1.bf16.msra.mxu0 %v1107
        %1375 = vmatprep.subr.bf16.mxu0 0
        %1376 = vmatpush2.bf16.msra.mxu0 0
        %1377 = vmatprep.subr.bf16.mxu0 0
        %1378 = vmatpush2.bf16.msra.mxu0 0
        %1379 = vmatprep.subr.bf16.mxu0 0
        %1380 = vmatpush2.bf16.msra.mxu0 0
        %1381 = vmatprep.subr.bf16.mxu0 0
        %1382 = vmatpush2.bf16.msra.mxu0 0
        %1383 = vmatprep.subr.bf16.mxu0 0
        %1384 = vmatpush2.bf16.msra.mxu0 0
        %1385 = vmatprep.subr.bf16.mxu0 0
        %1386 = vmatpush2.bf16.msra.mxu0 0
        %1387 = vmatprep.subr.bf16.mxu0 0
        %1388 = vmatpush2.bf16.msra.mxu0 0
        %1389 = vmatprep.subr.bf16.mxu0 0
        %1390 = vmatpush2.bf16.msra.mxu0 0
        %1391 = vmatprep.mubr.bf16.mxu0 0
        %1392 = vmatmul.mubr.bf16.gmra.mxu0 %v1147
        %v1393 = vpop.f32.mrf.mxu0
        %v1394 = vadd.f32 %v1297, %v1393
        %v1395 = vpop.f32.mrf.mxu0
        %v1396 = vpop.f32.mrf.mxu0
        %v1397 = vadd.f32 %v1300, %v1396
        %v1398 = vpop.f32.mrf.mxu0
        %1399 = vmatprep.mubr.bf16.mxu0 0
        %1400 = vmatmul.mubr.bf16.gmra.mxu0 %v1149
        %v1401 = vpop.f32.mrf.mxu0
        %v1402 = vadd.f32 %v1305, %v1401
        %v1403 = vpop.f32.mrf.mxu0
        %v1404 = vpop.f32.mrf.mxu0
        %v1405 = vadd.f32 %v1308, %v1404
        %v1406 = vpop.f32.mrf.mxu0
        %1407 = vmatprep.mubr.bf16.mxu0 0
        %1408 = vmatmul.mubr.bf16.gmra.mxu0 %v1151
        %v1409 = vpop.f32.mrf.mxu0
        %v1410 = vadd.f32 %v1313, %v1409
        %v1411 = vpop.f32.mrf.mxu0
        %v1412 = vpop.f32.mrf.mxu0
        %v1413 = vadd.f32 %v1316, %v1412
        %v1414 = vpop.f32.mrf.mxu0
        %1415 = vmatprep.mubr.bf16.mxu0 0
        %1416 = vmatmul.mubr.bf16.gmra.mxu0 %v1153
        %v1417 = vpop.f32.mrf.mxu0
        %v1418 = vadd.f32 %v1321, %v1417
        %v1419 = vpop.f32.mrf.mxu0
        %v1420 = vpop.f32.mrf.mxu0
        %v1421 = vadd.f32 %v1324, %v1420
        %v1422 = vpop.f32.mrf.mxu0
        %1423 = vmatprep.mubr.bf16.mxu0 0
        %1424 = vmatmul.mubr.bf16.gmra.mxu0 %v1155
        %v1425 = vpop.f32.mrf.mxu0
        %v1426 = vadd.f32 %v1329, %v1425
        %v1427 = vpop.f32.mrf.mxu0
        %v1428 = vpop.f32.mrf.mxu0
        %v1429 = vadd.f32 %v1332, %v1428
        %v1430 = vpop.f32.mrf.mxu0
        %1431 = vmatprep.mubr.bf16.mxu0 0
        %1432 = vmatmul.mubr.bf16.gmra.mxu0 %v1157
        %v1433 = vpop.f32.mrf.mxu0
        %v1434 = vadd.f32 %v1337, %v1433
        %v1435 = vpop.f32.mrf.mxu0
        %v1436 = vpop.f32.mrf.mxu0
        %v1437 = vadd.f32 %v1340, %v1436
        %v1438 = vpop.f32.mrf.mxu0
        %1439 = vmatprep.mubr.bf16.mxu0 0
        %1440 = vmatmul.mubr.bf16.gmra.mxu0 %v1160
        %v1441 = vpop.f32.mrf.mxu0
        %v1442 = vadd.f32 %v1345, %v1441
        %v1443 = vpop.f32.mrf.mxu0
        %v1444 = vpop.f32.mrf.mxu0
        %v1445 = vadd.f32 %v1348, %v1444
        %v1446 = vpop.f32.mrf.mxu0
        %1447 = vmatprep.mubr.bf16.mxu0 0
        %1448 = vmatmul.mubr.bf16.gmra.mxu0 %v1163
        %v1449 = vpop.f32.mrf.mxu0
        %v1450 = vadd.f32 %v1353, %v1449
        %v1451 = vpop.f32.mrf.mxu0
        %v1452 = vpop.f32.mrf.mxu0
        %v1453 = vadd.f32 %v1356, %v1452
        %v1454 = vpop.f32.mrf.mxu0
        %1455 = vdwg.mxu0
        %v1456 = vmax.f32 %v1394, 0.0
        %v1457 = vmax.f32 %v1397, 0.0
        %v1458 = vmax.f32 %v1402, 0.0
        %v1459 = vmax.f32 %v1405, 0.0
        %v1460 = vmax.f32 %v1410, 0.0
        %v1461 = vmax.f32 %v1413, 0.0
        %v1462 = vmax.f32 %v1418, 0.0
        %v1463 = vmax.f32 %v1421, 0.0
        %v1464 = vmax.f32 %v1426, 0.0
        %v1465 = vmax.f32 %v1429, 0.0
        %v1466 = vmax.f32 %v1434, 0.0
        %v1467 = vmax.f32 %v1437, 0.0
        %v1468 = vmax.f32 %v1442, 0.0
        %v1469 = vmax.f32 %v1445, 0.0
        %v1470 = vmax.f32 %v1450, 0.0
        %v1471 = vmax.f32 %v1453, 0.0
        %1472 = vst.msk [vmem:[%s210] sm:$0xff] %vm747, %v1456
        %1473 = vst.msk [vmem:[%s210 + $0x8] sm:$0xff] %vm747, %v1457
        %1474 = vst.msk [vmem:[%s210 + $0x10] sm:$0xff] %vm747, %v1458
        %1475 = vst.msk [vmem:[%s210 + $0x18] sm:$0xff] %vm747, %v1459
        %1476 = vst.msk [vmem:[%s210 + $0x20] sm:$0xff] %vm747, %v1460
        %1477 = vst.msk [vmem:[%s210 + $0x28] sm:$0xff] %vm747, %v1461
        %1478 = vst.msk [vmem:[%s210 + $0x30] sm:$0xff] %vm747, %v1462
        %1479 = vst.msk [vmem:[%s210 + $0x38] sm:$0xff] %vm747, %v1463
        %1480 = vst.msk [vmem:[%s210 + $0x40] sm:$0xff] %vm747, %v1464
        %1481 = vst.msk [vmem:[%s210 + $0x48] sm:$0xff] %vm747, %v1465
        %1482 = vst.msk [vmem:[%s210 + $0x50] sm:$0xff] %vm747, %v1466
        %1483 = vst.msk [vmem:[%s210 + $0x58] sm:$0xff] %vm747, %v1467
        %1484 = vst.msk [vmem:[%s210 + $0x60] sm:$0xff] %vm747, %v1468
        %1485 = vst.msk [vmem:[%s210 + $0x68] sm:$0xff] %vm747, %v1469
        %1486 = vst.msk [vmem:[%s210 + $0x70] sm:$0xff] %vm747, %v1470
        %1487 = vst.msk [vmem:[%s210 + $0x78] sm:$0xff] %vm747, %v1471
        %s1488 = sand.u32 %s126, 1
        %s1489 = scalar_lea.sflag [#allocation3], %s1488
        %s1490 = sand.u32 %s126, 1
        %s1491 = smul.addr %s1490, 128
        %s1492 = scalar_lea.vmem [#allocation2], %s1491
        // Predicated region
        $region33: #{unetup3_forward.5} parent=31 // pred_check
          %p1493 = pneg %p136
        $region34: #{unetup3_forward.5} parent=31 // pred_check_branch
          %1495 = sbr.rel (%p1493) target = $region36
        $region35: #{unetup3_forward.5} parent=31 // pred_region
          %s1496 = smul.u32 8, %s23
          %s1498 = ssub.s32 2048, 2048
          %1499 = vsyncadd %s1489, %s1498
          %s1500 = smul.addr %s1496, 2
          %s1501 = sadd.s32 %s24, %s1500
          %s1502 = smul.addr %s22, 32
          %s1503 = sadd.s32 %s1501, %s1502
          %s1504 = smul.addr %s1503, 128
          %s1505 = scalar_lea.hbm %s3, %s1504
          %s1506 = sshll.u32 %s1492, 4
          %s1507 = int_to_ptr.vmem [resolvable:$true] %s1506
          %1512 = dma.vmem_to_hbm [thread:$0]  %s1507, 2048, %s1505, %s1489, 128, 128, 8
        $region36: #{unetup3_forward.5} parent=31 // pred_fallthru
          _
      $region32: #{unetup3_forward.5} parent=5 // pred_fallthru
        _
      %p1513 = scmp.le.s32.totalorder 2, %s12
      // Predicated region
      $region37: #{unetup3_forward.5} parent=5 // pred_check
        %p1514 = pneg %p1513
      $region38: #{unetup3_forward.5} parent=5 // pred_check_branch
        %1516 = sbr.rel (%p1514) target = $region40
      $region39: #{unetup3_forward.5} parent=5 // pred_region
        %s1517 = ssub.s32 %s12, 2
        // Predicated region
        $region41: #{unetup3_forward.5} parent=39 // pred_check
          %p1518 = pneg %p142
        $region42: #{unetup3_forward.5} parent=39 // pred_check_branch
          %1520 = sbr.rel (%p1518) target = $region44
        $region43: #{unetup3_forward.5} parent=39 // pred_region
          %s1521 = sand.u32 %s127, 1
          %s1522 = scalar_lea.sflag [#allocation3], %s1521
          %s1523 = sand.u32 %s127, 1
          %s1524 = smul.addr %s1523, 128
          %s1525 = scalar_lea.vmem [#allocation2], %s1524
          %1526 = dma.done %s1522, 2048
        $region44: #{unetup3_forward.5} parent=39 // pred_fallthru
          _
      $region40: #{unetup3_forward.5} parent=5 // pred_fallthru
        _
    $region6: #{unetup3_forward.5} parent=1 // loop_footer
      %s16 = sadd.s32 1, %s12
    $region7: #{unetup3_forward.5} parent=1 // loop_footer_branch
      %11 = sbr.rel target = $region3
    $region8: #{unetup3_forward.5} parent=1 // loop_exit
      _
    %1527 = vsyncpa [#allocation3], 1
    %s1528 = scalar_lea.sflag [#allocation3], 1
    %1529 = vsyncpa %s1528, 1

// kernel: unetup3_forward.4
$region0: #{unetup3_forward.4}
  #allocation0 [shape = 'u32[]', space=smem, size = 0x4, offset = 0x4, fixed_abs, tag = 'smem constant byte address 0x4 - core index']
  #allocation1 [shape = 'u32[144,128]{1,0:T(1,128)}', space=vmem, size = 0x12000, scoped, tag = 'internal scratch']
  %s0 = inlined_call_operand.vmem [shape: bf16[2,18,18,64], index: 0, kind: input, shape index: {}]
  %s1 = inlined_call_operand.vmem [shape: bf16[2,18,18,64], index: 1, kind: input, shape index: {}]
  %s2 = inlined_call_operand.vmem [shape: bf16[2,18,18,64], index: 2, kind: input, shape index: {}]
  %s3 = inlined_call_operand.vmem [shape: bf16[576,64], index: 3, kind: input, shape index: {}]
  %s4 = inlined_call_operand.vmem [shape: bf16[576,64], index: 4, kind: input, shape index: {}]
  %s5 = inlined_call_operand.vmem [shape: bf16[576,64], index: 5, kind: input, shape index: {}]
  %s6 = inlined_call_operand.vmem [shape: f32[1,64], index: 6, kind: input, shape index: {}]
  %s7 = inlined_call_operand.vmem [shape: bf16[2,16,16,64], index: 7, kind: output, shape index: {}]
  %s8 = sld [smem:[#allocation0]]
  $region61: #{unetup3_forward.4} parent=0
    _
  %s10 = ssub.s32 1, %s8
  %s11 = scalar_select 0, %s10, %s8
  loop: start=0, step=1, limit=6
  $region2: #{unetup3_forward.4} parent=0 // loop_pre_header
    _
  $region3: #{unetup3_forward.4} parent=0 // loop_header
    %s13 = sphi 0, %s17
    %p14 = scmp.ge.s32.totalorder %s13, 6
    %s20 = sphi 0, %s39
    %s21 = sphi 0, %s35
    %s22 = sphi 0, %s31
    %s23 = sphi 0, %s20
    %s24 = sphi 0, %s21
    %s25 = sphi 0, %s22
    %s26 = sphi 0, %s23
    %s27 = sphi 0, %s24
    %s28 = sphi 0, %s25
    %s42 = sphi 0, %s44
    %s45 = sphi 0, %s42
    %s46 = sphi 0, %s45
    %s62 = sphi 0, %s46
    %s68 = sphi 0, %s70
    %s71 = sphi 0, %s68
    %s72 = sphi 0, %s71
    %s88 = sphi 0, %s72
    %s94 = sphi 0, %s96
    %s97 = sphi 0, %s94
    %s98 = sphi 0, %s97
    %s114 = sphi 0, %s98
    %s120 = sphi 0, %s122
    %s123 = sphi 0, %s120
    %s124 = sphi 0, %s123
    %s140 = sphi 0, %s124
    %s146 = sphi 0, %s148
    %s149 = sphi 0, %s146
    %s150 = sphi 0, %s149
    %s166 = sphi 0, %s150
    %s172 = sphi 0, %s174
    %s175 = sphi 0, %s172
    %s176 = sphi 0, %s175
    %s192 = sphi 0, %s176
    %s198 = sphi 0, %s200
    %s201 = sphi 0, %s198
    %s202 = sphi 0, %s201
    %s218 = sphi 0, %s202
    %s228 = sphi 0, %s230
    %s231 = sphi 0, %s228
    %s232 = sphi 0, %s231
    %s248 = sphi 0, %s232
  $region4: #{unetup3_forward.4} parent=0 // loop_header_branch
    %16 = sbr.rel (%p14) target = $region8
  $region5: #{unetup3_forward.4} parent=0 // loop_body
    %s18 = ssub.s32 %s13, 1
    %s19 = ssub.s32 %s13, 2
    %s29 = sadd.s32 1, %s22
    %p30 = scmp.ge.s32.totalorder %s29, 1
    %s31 = scalar_select %p30, 0, %s29
    %s32 = sadd.s32 1, %s21
    %s33 = scalar_select %p30, %s32, %s21
    %p34 = scmp.ge.s32.totalorder %s33, 2
    %s35 = scalar_select %p34, 0, %s33
    %s36 = sadd.s32 1, %s20
    %s37 = scalar_select %p34, %s36, %s20
    %p38 = scmp.ge.s32.totalorder %s37, 2
    %s39 = scalar_select %p38, 0, %s37
    %s40 = ssub.s32 %s20, %s39
    %p41 = scmp.eq.s32.totalorder %s40, 0
    %s43 = sadd.s32 %s42, 1
    %s44 = scalar_select %p41, %s42, %s43
    %p47 = pneg %p41
    %p48 = scmp.eq.s32.totalorder %s13, 3
    %p49 = por %p47, %p48
    %p50 = scmp.ne.s32.totalorder %s42, %s45
    %p51 = scmp.eq.s32.totalorder %s13, 0
    %p52 = por %p50, %p51
    %p53 = scmp.ne.s32.totalorder %s42, %s45
    %p54 = scmp.eq.s32.totalorder %s18, 3
    %p55 = por %p53, %p54
    %p56 = scmp.ne.s32.totalorder %s45, %s46
    %p57 = scmp.eq.s32.totalorder %s18, 0
    %p58 = por %p56, %p57
    %p59 = scmp.ne.s32.totalorder %s45, %s46
    %p60 = scmp.eq.s32.totalorder %s19, 3
    %p61 = por %p59, %p60
    %p63 = scmp.ne.s32.totalorder %s46, %s62
    %p64 = scmp.eq.s32.totalorder %s19, 0
    %p65 = por %p63, %p64
    %s66 = ssub.s32 %s20, %s39
    %p67 = scmp.eq.s32.totalorder %s66, 0
    %s69 = sadd.s32 %s68, 1
    %s70 = scalar_select %p67, %s68, %s69
    %p73 = pneg %p67
    %p74 = scmp.eq.s32.totalorder %s13, 3
    %p75 = por %p73, %p74
    %p76 = scmp.ne.s32.totalorder %s68, %s71
    %p77 = scmp.eq.s32.totalorder %s13, 0
    %p78 = por %p76, %p77
    %p79 = scmp.ne.s32.totalorder %s68, %s71
    %p80 = scmp.eq.s32.totalorder %s18, 3
    %p81 = por %p79, %p80
    %p82 = scmp.ne.s32.totalorder %s71, %s72
    %p83 = scmp.eq.s32.totalorder %s18, 0
    %p84 = por %p82, %p83
    %p85 = scmp.ne.s32.totalorder %s71, %s72
    %p86 = scmp.eq.s32.totalorder %s19, 3
    %p87 = por %p85, %p86
    %p89 = scmp.ne.s32.totalorder %s72, %s88
    %p90 = scmp.eq.s32.totalorder %s19, 0
    %p91 = por %p89, %p90
    %s92 = ssub.s32 %s20, %s39
    %p93 = scmp.eq.s32.totalorder %s92, 0
    %s95 = sadd.s32 %s94, 1
    %s96 = scalar_select %p93, %s94, %s95
    %p99 = pneg %p93
    %p100 = scmp.eq.s32.totalorder %s13, 3
    %p101 = por %p99, %p100
    %p102 = scmp.ne.s32.totalorder %s94, %s97
    %p103 = scmp.eq.s32.totalorder %s13, 0
    %p104 = por %p102, %p103
    %p105 = scmp.ne.s32.totalorder %s94, %s97
    %p106 = scmp.eq.s32.totalorder %s18, 3
    %p107 = por %p105, %p106
    %p108 = scmp.ne.s32.totalorder %s97, %s98
    %p109 = scmp.eq.s32.totalorder %s18, 0
    %p110 = por %p108, %p109
    %p111 = scmp.ne.s32.totalorder %s97, %s98
    %p112 = scmp.eq.s32.totalorder %s19, 3
    %p113 = por %p111, %p112
    %p115 = scmp.ne.s32.totalorder %s98, %s114
    %p116 = scmp.eq.s32.totalorder %s19, 0
    %p117 = por %p115, %p116
    %s118 = ssub.s32 %s22, %s31
    %p119 = scmp.eq.s32.totalorder %s118, 0
    %s121 = sadd.s32 %s120, 1
    %s122 = scalar_select %p119, %s120, %s121
    %p125 = pneg %p119
    %p126 = scmp.eq.s32.totalorder %s13, 3
    %p127 = por %p125, %p126
    %p128 = scmp.ne.s32.totalorder %s120, %s123
    %p129 = scmp.eq.s32.totalorder %s13, 0
    %p130 = por %p128, %p129
    %p131 = scmp.ne.s32.totalorder %s120, %s123
    %p132 = scmp.eq.s32.totalorder %s18, 3
    %p133 = por %p131, %p132
    %p134 = scmp.ne.s32.totalorder %s123, %s124
    %p135 = scmp.eq.s32.totalorder %s18, 0
    %p136 = por %p134, %p135
    %p137 = scmp.ne.s32.totalorder %s123, %s124
    %p138 = scmp.eq.s32.totalorder %s19, 3
    %p139 = por %p137, %p138
    %p141 = scmp.ne.s32.totalorder %s124, %s140
    %p142 = scmp.eq.s32.totalorder %s19, 0
    %p143 = por %p141, %p142
    %s144 = ssub.s32 %s22, %s31
    %p145 = scmp.eq.s32.totalorder %s144, 0
    %s147 = sadd.s32 %s146, 1
    %s148 = scalar_select %p145, %s146, %s147
    %p151 = pneg %p145
    %p152 = scmp.eq.s32.totalorder %s13, 3
    %p153 = por %p151, %p152
    %p154 = scmp.ne.s32.totalorder %s146, %s149
    %p155 = scmp.eq.s32.totalorder %s13, 0
    %p156 = por %p154, %p155
    %p157 = scmp.ne.s32.totalorder %s146, %s149
    %p158 = scmp.eq.s32.totalorder %s18, 3
    %p159 = por %p157, %p158
    %p160 = scmp.ne.s32.totalorder %s149, %s150
    %p161 = scmp.eq.s32.totalorder %s18, 0
    %p162 = por %p160, %p161
    %p163 = scmp.ne.s32.totalorder %s149, %s150
    %p164 = scmp.eq.s32.totalorder %s19, 3
    %p165 = por %p163, %p164
    %p167 = scmp.ne.s32.totalorder %s150, %s166
    %p168 = scmp.eq.s32.totalorder %s19, 0
    %p169 = por %p167, %p168
    %s170 = ssub.s32 %s22, %s31
    %p171 = scmp.eq.s32.totalorder %s170, 0
    %s173 = sadd.s32 %s172, 1
    %s174 = scalar_select %p171, %s172, %s173
    %p177 = pneg %p171
    %p178 = scmp.eq.s32.totalorder %s13, 3
    %p179 = por %p177, %p178
    %p180 = scmp.ne.s32.totalorder %s172, %s175
    %p181 = scmp.eq.s32.totalorder %s13, 0
    %p182 = por %p180, %p181
    %p183 = scmp.ne.s32.totalorder %s172, %s175
    %p184 = scmp.eq.s32.totalorder %s18, 3
    %p185 = por %p183, %p184
    %p186 = scmp.ne.s32.totalorder %s175, %s176
    %p187 = scmp.eq.s32.totalorder %s18, 0
    %p188 = por %p186, %p187
    %p189 = scmp.ne.s32.totalorder %s175, %s176
    %p190 = scmp.eq.s32.totalorder %s19, 3
    %p191 = por %p189, %p190
    %p193 = scmp.ne.s32.totalorder %s176, %s192
    %p194 = scmp.eq.s32.totalorder %s19, 0
    %p195 = por %p193, %p194
    %s196 = ssub.s32 %s22, %s31
    %p197 = scmp.eq.s32.totalorder %s196, 0
    %s199 = sadd.s32 %s198, 1
    %s200 = scalar_select %p197, %s198, %s199
    %p203 = pneg %p197
    %p204 = scmp.eq.s32.totalorder %s13, 3
    %p205 = por %p203, %p204
    %p206 = scmp.ne.s32.totalorder %s198, %s201
    %p207 = scmp.eq.s32.totalorder %s13, 0
    %p208 = por %p206, %p207
    %p209 = scmp.ne.s32.totalorder %s198, %s201
    %p210 = scmp.eq.s32.totalorder %s18, 3
    %p211 = por %p209, %p210
    %p212 = scmp.ne.s32.totalorder %s201, %s202
    %p213 = scmp.eq.s32.totalorder %s18, 0
    %p214 = por %p212, %p213
    %p215 = scmp.ne.s32.totalorder %s201, %s202
    %p216 = scmp.eq.s32.totalorder %s19, 3
    %p217 = por %p215, %p216
    %p219 = scmp.ne.s32.totalorder %s202, %s218
    %p220 = scmp.eq.s32.totalorder %s19, 0
    %p221 = por %p219, %p220
    %s222 = ssub.s32 %s20, %s39
    %s223 = ssub.s32 %s21, %s35
    %s224 = sor.u32 %s222, %s223
    %s225 = ssub.s32 %s22, %s31
    %s226 = sor.u32 %s224, %s225
    %p227 = scmp.eq.s32.totalorder %s226, 0
    %s229 = sadd.s32 %s228, 1
    %s230 = scalar_select %p227, %s228, %s229
    %p233 = pneg %p227
    %p234 = scmp.eq.s32.totalorder %s13, 3
    %p235 = por %p233, %p234
    %p236 = scmp.ne.s32.totalorder %s228, %s231
    %p237 = scmp.eq.s32.totalorder %s13, 0
    %p238 = por %p236, %p237
    %p239 = scmp.ne.s32.totalorder %s228, %s231
    %p240 = scmp.eq.s32.totalorder %s18, 3
    %p241 = por %p239, %p240
    %p242 = scmp.ne.s32.totalorder %s231, %s232
    %p243 = scmp.eq.s32.totalorder %s18, 0
    %p244 = por %p242, %p243
    %p245 = scmp.ne.s32.totalorder %s231, %s232
    %p246 = scmp.eq.s32.totalorder %s19, 3
    %p247 = por %p245, %p246
    %p249 = scmp.ne.s32.totalorder %s232, %s248
    %p250 = scmp.eq.s32.totalorder %s19, 0
    %p251 = por %p249, %p250
    %p252 = scmp.le.s32.totalorder 1, %s13
    %p253 = scmp.lt.s32.totalorder %s13, 5
    %p254 = pnand %p252, %p253
    %p255 = pneg %p254
    // Predicated region
    $region9: #{unetup3_forward.4} parent=5 // pred_check
      _
    $region10: #{unetup3_forward.4} parent=5 // pred_check_branch
      %257 = sbr.rel (%p254) target = $region12
    $region11: #{unetup3_forward.4} parent=5 // pred_region
      %s258 = ssub.s32 %s13, 1
      // Predicated region
      $region13: #{unetup3_forward.4} parent=11 // pred_check
        %p259 = pneg %p136
      $region14: #{unetup3_forward.4} parent=11 // pred_check_branch
        %261 = sbr.rel (%p259) target = $region16
      $region15: #{unetup3_forward.4} parent=11 // pred_region
        %p262 = scmp.lt.s32.totalorder %s25, 0
        %s263 = scalar_select %p262, %s25, 0
        %s264 = smul.addr %s263, 4
        %s265 = scalar_lea.vmem %s3, %s264
      $region16: #{unetup3_forward.4} parent=11 // pred_fallthru
        _
      // Predicated region
      $region17: #{unetup3_forward.4} parent=11 // pred_check
        %p266 = pneg %p162
      $region18: #{unetup3_forward.4} parent=11 // pred_check_branch
        %268 = sbr.rel (%p266) target = $region20
      $region19: #{unetup3_forward.4} parent=11 // pred_region
        %p269 = scmp.lt.s32.totalorder %s25, 0
        %s270 = scalar_select %p269, %s25, 0
        %s271 = smul.addr %s270, 4
        %s272 = scalar_lea.vmem %s4, %s271
      $region20: #{unetup3_forward.4} parent=11 // pred_fallthru
        _
      // Predicated region
      $region21: #{unetup3_forward.4} parent=11 // pred_check
        %p273 = pneg %p188
      $region22: #{unetup3_forward.4} parent=11 // pred_check_branch
        %275 = sbr.rel (%p273) target = $region24
      $region23: #{unetup3_forward.4} parent=11 // pred_region
        %p276 = scmp.lt.s32.totalorder %s25, 0
        %s277 = scalar_select %p276, %s25, 0
        %s278 = smul.addr %s277, 4
        %s279 = scalar_lea.vmem %s5, %s278
      $region24: #{unetup3_forward.4} parent=11 // pred_fallthru
        _
      // Predicated region
      $region25: #{unetup3_forward.4} parent=11 // pred_check
        %p280 = pneg %p214
      $region26: #{unetup3_forward.4} parent=11 // pred_check_branch
        %282 = sbr.rel (%p280) target = $region28
      $region27: #{unetup3_forward.4} parent=11 // pred_region
        %p283 = scmp.lt.s32.totalorder %s25, 0
        %s284 = scalar_select %p283, %s25, 0
        %s285 = scalar_lea.vmem %s6, %s284
      $region28: #{unetup3_forward.4} parent=11 // pred_fallthru
        _
    $region12: #{unetup3_forward.4} parent=5 // pred_fallthru
      _
    %p286 = scmp.lt.s32.totalorder %s13, 4
    // Predicated region
    $region29: #{unetup3_forward.4} parent=5 // pred_check
      %p287 = pneg %p286
    $region30: #{unetup3_forward.4} parent=5 // pred_check_branch
      %289 = sbr.rel (%p287) target = $region32
    $region31: #{unetup3_forward.4} parent=5 // pred_region
      // Predicated region
      $region33: #{unetup3_forward.4} parent=31 // pred_check
        %p290 = pneg %p52
      $region34: #{unetup3_forward.4} parent=31 // pred_check_branch
        %292 = sbr.rel (%p290) target = $region36
      $region35: #{unetup3_forward.4} parent=31 // pred_region
        %p293 = scmp.lt.s32.totalorder %s20, 1
        %s294 = scalar_select %p293, %s20, 1
        %s295 = smul.addr %s294, 54
        %s296 = smul.addr %s295, 4
        %s297 = scalar_lea.vmem %s0, %s296
      $region36: #{unetup3_forward.4} parent=31 // pred_fallthru
        _
      // Predicated region
      $region37: #{unetup3_forward.4} parent=31 // pred_check
        %p298 = pneg %p78
      $region38: #{unetup3_forward.4} parent=31 // pred_check_branch
        %300 = sbr.rel (%p298) target = $region40
      $region39: #{unetup3_forward.4} parent=31 // pred_region
        %p301 = scmp.lt.s32.totalorder %s20, 1
        %s302 = scalar_select %p301, %s20, 1
        %s303 = smul.addr %s302, 54
        %s304 = smul.addr %s303, 4
        %s305 = scalar_lea.vmem %s1, %s304
      $region40: #{unetup3_forward.4} parent=31 // pred_fallthru
        _
      // Predicated region
      $region41: #{unetup3_forward.4} parent=31 // pred_check
        %p306 = pneg %p104
      $region42: #{unetup3_forward.4} parent=31 // pred_check_branch
        %308 = sbr.rel (%p306) target = $region44
      $region43: #{unetup3_forward.4} parent=31 // pred_region
        %p309 = scmp.lt.s32.totalorder %s20, 1
        %s310 = scalar_select %p309, %s20, 1
        %s311 = smul.addr %s310, 54
        %s312 = smul.addr %s311, 4
        %s313 = scalar_lea.vmem %s2, %s312
      $region44: #{unetup3_forward.4} parent=31 // pred_fallthru
        _
    $region32: #{unetup3_forward.4} parent=5 // pred_fallthru
      _
    %p314 = scmp.le.s32.totalorder 1, %s13
    %p315 = scmp.lt.s32.totalorder %s13, 5
    %p316 = pnand %p314, %p315
    %p317 = pneg %p316
    // Predicated region
    $region45: #{unetup3_forward.4} parent=5 // pred_check
      _
    $region46: #{unetup3_forward.4} parent=5 // pred_check_branch
      %319 = sbr.rel (%p316) target = $region48
    $region47: #{unetup3_forward.4} parent=5 // pred_region
      %s320 = ssub.s32 %s13, 1
      %p321 = scmp.lt.s32.totalorder %s23, 1
      %s322 = scalar_select %p321, %s23, 1
      %s323 = smul.addr %s322, 54
      %s324 = smul.addr %s323, 4
      %s325 = scalar_lea.vmem %s0, %s324
      %p326 = pneg %p58
      %p327 = pneg %p55
      %p328 = scmp.lt.s32.totalorder %s23, 1
      %s329 = scalar_select %p328, %s23, 1
      %s330 = smul.addr %s329, 54
      %s331 = smul.addr %s330, 4
      %s332 = scalar_lea.vmem %s1, %s331
      %p333 = pneg %p84
      %p334 = pneg %p81
      %p335 = scmp.lt.s32.totalorder %s23, 1
      %s336 = scalar_select %p335, %s23, 1
      %s337 = smul.addr %s336, 54
      %s338 = smul.addr %s337, 4
      %s339 = scalar_lea.vmem %s2, %s338
      %p340 = pneg %p110
      %p341 = pneg %p107
      %p342 = scmp.lt.s32.totalorder %s25, 0
      %s343 = scalar_select %p342, %s25, 0
      %s344 = smul.addr %s343, 4
      %s345 = scalar_lea.vmem %s3, %s344
      %p346 = pneg %p136
      %p347 = pneg %p133
      %p348 = scmp.lt.s32.totalorder %s25, 0
      %s349 = scalar_select %p348, %s25, 0
      %s350 = smul.addr %s349, 4
      %s351 = scalar_lea.vmem %s4, %s350
      %p352 = pneg %p162
      %p353 = pneg %p159
      %p354 = scmp.lt.s32.totalorder %s25, 0
      %s355 = scalar_select %p354, %s25, 0
      %s356 = smul.addr %s355, 4
      %s357 = scalar_lea.vmem %s5, %s356
      %p358 = pneg %p188
      %p359 = pneg %p185
      %p360 = scmp.lt.s32.totalorder %s25, 0
      %s361 = scalar_select %p360, %s25, 0
      %s362 = scalar_lea.vmem %s6, %s361
      %p363 = pneg %p214
      %p364 = pneg %p211
      %p365 = pneg %p244
      %p366 = pneg %p241
      %s367 = smul.u32 8, %s24
      %p368 = scmp.lt.s32.totalorder %s23, 1
      %s369 = scalar_select %p368, %s23, 1
      %p370 = scmp.lt.s32.totalorder %s367, 15
      %s371 = scalar_select %p370, %s367, 15
      %p372 = scmp.lt.s32.totalorder %s25, 0
      %s373 = scalar_select %p372, %s25, 0
      %s374 = smul.addr %s371, 2
      %s375 = sadd.s32 %s373, %s374
      %s376 = smul.addr %s369, 32
      %s377 = sadd.s32 %s375, %s376
      %s378 = smul.addr %s377, 4
      %s379 = scalar_lea.vmem %s7, %s378
      %p380 = scmp.lt.s32.totalorder %s23, 1
      %s381 = scalar_select %p380, %s23, 1
      %s382 = smul.addr %s381, 54
      %s383 = smul.addr %s382, 4
      %s384 = scalar_lea.vmem %s0, %s383
      %p385 = scmp.lt.s32.totalorder %s23, 1
      %s386 = scalar_select %p385, %s23, 1
      %s387 = smul.addr %s386, 54
      %s388 = smul.addr %s387, 4
      %s389 = scalar_lea.vmem %s1, %s388
      %p390 = scmp.lt.s32.totalorder %s23, 1
      %s391 = scalar_select %p390, %s23, 1
      %s392 = smul.addr %s391, 54
      %s393 = smul.addr %s392, 4
      %s394 = scalar_lea.vmem %s2, %s393
      %p395 = scmp.lt.s32.totalorder %s25, 0
      %s396 = scalar_select %p395, %s25, 0
      %s397 = smul.addr %s396, 4
      %s398 = scalar_lea.vmem %s3, %s397
      %p399 = scmp.lt.s32.totalorder %s25, 0
      %s400 = scalar_select %p399, %s25, 0
      %s401 = smul.addr %s400, 4
      %s402 = scalar_lea.vmem %s4, %s401
      %p403 = scmp.lt.s32.totalorder %s25, 0
      %s404 = scalar_select %p403, %s25, 0
      %s405 = smul.addr %s404, 4
      %s406 = scalar_lea.vmem %s5, %s405
      %p407 = scmp.lt.s32.totalorder %s25, 0
      %s408 = scalar_select %p407, %s25, 0
      %s409 = scalar_lea.vmem %s6, %s408
      %s410 = smul.u32 8, %s24
      %p411 = scmp.lt.s32.totalorder %s23, 1
      %s412 = scalar_select %p411, %s23, 1
      %p413 = scmp.lt.s32.totalorder %s410, 15
      %s414 = scalar_select %p413, %s410, 15
      %p415 = scmp.lt.s32.totalorder %s25, 0
      %s416 = scalar_select %p415, %s25, 0
      %s417 = smul.addr %s414, 2
      %s418 = sadd.s32 %s416, %s417
      %s419 = smul.addr %s412, 32
      %s420 = sadd.s32 %s418, %s419
      %s421 = smul.addr %s420, 4
      %s422 = scalar_lea.vmem %s7, %s421
      %s423 = smul.u32 8, %s24
      %s425 = smul.u32 %s24, 8
      %s426 = smul.u32 %s425, 3
      %s427 = smul.addr %s426, 4
      %s428 = scalar_lea.vmem %s384, %s427
      %v429 = vld [vmem:[%s428] sm:$0xf]
      %v430 = vld [vmem:[%s428 + $0x4] sm:$0xf]
      %v431 = vld [vmem:[%s428 + $0x8] sm:$0x1]
      %v432 = vld [vmem:[%s428 + $0xc] sm:$0xf]
      %v433 = vld [vmem:[%s428 + $0x10] sm:$0xf]
      %v434 = vld [vmem:[%s428 + $0x14] sm:$0x1]
      %v435 = vld [vmem:[%s428 + $0x18] sm:$0xf]
      %v436 = vld [vmem:[%s428 + $0x1c] sm:$0xf]
      %v437 = vld [vmem:[%s428 + $0x20] sm:$0x1]
      %v438 = vld [vmem:[%s428 + $0x24] sm:$0xf]
      %v439 = vld [vmem:[%s428 + $0x28] sm:$0xf]
      %v440 = vld [vmem:[%s428 + $0x2c] sm:$0x1]
      %v441 = vld [vmem:[%s428 + $0x30] sm:$0xf]
      %v442 = vld [vmem:[%s428 + $0x34] sm:$0xf]
      %v443 = vld [vmem:[%s428 + $0x38] sm:$0x1]
      %v444 = vld [vmem:[%s428 + $0x3c] sm:$0xf]
      %v445 = vld [vmem:[%s428 + $0x40] sm:$0xf]
      %v446 = vld [vmem:[%s428 + $0x44] sm:$0x1]
      %v447 = vld [vmem:[%s428 + $0x48] sm:$0xf]
      %v448 = vld [vmem:[%s428 + $0x4c] sm:$0xf]
      %v449 = vld [vmem:[%s428 + $0x50] sm:$0x1]
      %v450 = vld [vmem:[%s428 + $0x54] sm:$0xf]
      %v451 = vld [vmem:[%s428 + $0x58] sm:$0xf]
      %v452 = vld [vmem:[%s428 + $0x5c] sm:$0x1]
      %v453 = vld [vmem:[%s428 + $0x60] sm:$0xf]
      %v454 = vld [vmem:[%s428 + $0x64] sm:$0xf]
      %v455 = vld [vmem:[%s428 + $0x68] sm:$0x1]
      %v456 = vld [vmem:[%s428 + $0x6c] sm:$0xf]
      %v457 = vld [vmem:[%s428 + $0x70] sm:$0xf]
      %v458 = vld [vmem:[%s428 + $0x74] sm:$0x1]
      %vm459 = vsmask.f32 3328
      %vm460 = vsmask.f32 7440
      %vm461 = vmor %vm459, %vm460
      %v463 = vshrl.u32 %v429, 16
      %v465 = vrot.slane %v463, 4
      %v466 = vshll.u32 %v429, 16
      %v468 = vrot.slane %v466, 5
      %v469 = vor.u32 %v465, %v468
      %v470 = vrot.slane %v469, 4
      %v472 = vshll.u32 %v430, 16
      %v474 = vrot.slane %v472, 5
      %v475 = vsel %vm461, %v470, %v474
      %v476 = vshrl.u32 %v430, 16
      %v478 = vrot.slane %v476, 4
      %v479 = vor.u32 %v478, %v474
      %v480 = vrot.slane %v479, 4
      %v482 = vshll.u32 %v431, 16
      %v484 = vrot.slane %v482, 5
      %v485 = vsel %vm461, %v480, %v484
      %v487 = vshrl.u32 %v432, 16
      %v489 = vrot.slane %v487, 4
      %v490 = vshll.u32 %v432, 16
      %v492 = vrot.slane %v490, 5
      %v493 = vor.u32 %v489, %v492
      %v494 = vrot.slane %v493, 4
      %v496 = vshll.u32 %v433, 16
      %v498 = vrot.slane %v496, 5
      %v499 = vsel %vm461, %v494, %v498
      %v500 = vshrl.u32 %v433, 16
      %v502 = vrot.slane %v500, 4
      %v503 = vor.u32 %v502, %v498
      %v504 = vrot.slane %v503, 4
      %v506 = vshll.u32 %v434, 16
      %v508 = vrot.slane %v506, 5
      %v509 = vsel %vm461, %v504, %v508
      %v511 = vshrl.u32 %v435, 16
      %v513 = vrot.slane %v511, 4
      %v514 = vshll.u32 %v435, 16
      %v516 = vrot.slane %v514, 5
      %v517 = vor.u32 %v513, %v516
      %v518 = vrot.slane %v517, 4
      %v520 = vshll.u32 %v436, 16
      %v522 = vrot.slane %v520, 5
      %v523 = vsel %vm461, %v518, %v522
      %v524 = vshrl.u32 %v436, 16
      %v526 = vrot.slane %v524, 4
      %v527 = vor.u32 %v526, %v522
      %v528 = vrot.slane %v527, 4
      %v530 = vshll.u32 %v437, 16
      %v532 = vrot.slane %v530, 5
      %v533 = vsel %vm461, %v528, %v532
      %v535 = vshrl.u32 %v438, 16
      %v537 = vrot.slane %v535, 4
      %v538 = vshll.u32 %v438, 16
      %v540 = vrot.slane %v538, 5
      %v541 = vor.u32 %v537, %v540
      %v542 = vrot.slane %v541, 4
      %v544 = vshll.u32 %v439, 16
      %v546 = vrot.slane %v544, 5
      %v547 = vsel %vm461, %v542, %v546
      %v548 = vshrl.u32 %v439, 16
      %v550 = vrot.slane %v548, 4
      %v551 = vor.u32 %v550, %v546
      %v552 = vrot.slane %v551, 4
      %v554 = vshll.u32 %v440, 16
      %v556 = vrot.slane %v554, 5
      %v557 = vsel %vm461, %v552, %v556
      %v559 = vshrl.u32 %v441, 16
      %v561 = vrot.slane %v559, 4
      %v562 = vshll.u32 %v441, 16
      %v564 = vrot.slane %v562, 5
      %v565 = vor.u32 %v561, %v564
      %v566 = vrot.slane %v565, 4
      %v568 = vshll.u32 %v442, 16
      %v570 = vrot.slane %v568, 5
      %v571 = vsel %vm461, %v566, %v570
      %v572 = vshrl.u32 %v442, 16
      %v574 = vrot.slane %v572, 4
      %v575 = vor.u32 %v574, %v570
      %v576 = vrot.slane %v575, 4
      %v578 = vshll.u32 %v443, 16
      %v580 = vrot.slane %v578, 5
      %v581 = vsel %vm461, %v576, %v580
      %v583 = vshrl.u32 %v444, 16
      %v585 = vrot.slane %v583, 4
      %v586 = vshll.u32 %v444, 16
      %v588 = vrot.slane %v586, 5
      %v589 = vor.u32 %v585, %v588
      %v590 = vrot.slane %v589, 4
      %v592 = vshll.u32 %v445, 16
      %v594 = vrot.slane %v592, 5
      %v595 = vsel %vm461, %v590, %v594
      %v596 = vshrl.u32 %v445, 16
      %v598 = vrot.slane %v596, 4
      %v599 = vor.u32 %v598, %v594
      %v600 = vrot.slane %v599, 4
      %v602 = vshll.u32 %v446, 16
      %v604 = vrot.slane %v602, 5
      %v605 = vsel %vm461, %v600, %v604
      %v607 = vshrl.u32 %v447, 16
      %v609 = vrot.slane %v607, 4
      %v610 = vshll.u32 %v447, 16
      %v612 = vrot.slane %v610, 5
      %v613 = vor.u32 %v609, %v612
      %v614 = vrot.slane %v613, 4
      %v616 = vshll.u32 %v448, 16
      %v618 = vrot.slane %v616, 5
      %v619 = vsel %vm461, %v614, %v618
      %v620 = vshrl.u32 %v448, 16
      %v622 = vrot.slane %v620, 4
      %v623 = vor.u32 %v622, %v618
      %v624 = vrot.slane %v623, 4
      %v626 = vshll.u32 %v449, 16
      %v628 = vrot.slane %v626, 5
      %v629 = vsel %vm461, %v624, %v628
      %v631 = vshrl.u32 %v450, 16
      %v633 = vrot.slane %v631, 4
      %v634 = vshll.u32 %v450, 16
      %v636 = vrot.slane %v634, 5
      %v637 = vor.u32 %v633, %v636
      %v638 = vrot.slane %v637, 4
      %v640 = vshll.u32 %v451, 16
      %v642 = vrot.slane %v640, 5
      %v643 = vsel %vm461, %v638, %v642
      %v644 = vshrl.u32 %v451, 16
      %v646 = vrot.slane %v644, 4
      %v647 = vor.u32 %v646, %v642
      %v648 = vrot.slane %v647, 4
      %v650 = vshll.u32 %v452, 16
      %v652 = vrot.slane %v650, 5
      %v653 = vsel %vm461, %v648, %v652
      %vm678 = vcmask 1042432
      %vm679 = vcmask 1046532
      %vm680 = vmor %vm678, %vm679
      %v681 = vrot.slane %v429, 5
      %v682 = vrot.slane %v681, 4
      %v683 = vrot.slane %v430, 5
      %v684 = vsel %vm680, %v682, %v683
      %v685 = vrot.slane %v683, 4
      %v686 = vrot.slane %v431, 5
      %v687 = vsel %vm680, %v685, %v686
      %v688 = vrot.slane %v432, 5
      %v689 = vrot.slane %v688, 4
      %v690 = vrot.slane %v433, 5
      %v691 = vsel %vm680, %v689, %v690
      %v692 = vrot.slane %v690, 4
      %v693 = vrot.slane %v434, 5
      %v694 = vsel %vm680, %v692, %v693
      %v695 = vrot.slane %v435, 5
      %v696 = vrot.slane %v695, 4
      %v697 = vrot.slane %v436, 5
      %v698 = vsel %vm680, %v696, %v697
      %v699 = vrot.slane %v697, 4
      %v700 = vrot.slane %v437, 5
      %v701 = vsel %vm680, %v699, %v700
      %v702 = vrot.slane %v438, 5
      %v703 = vrot.slane %v702, 4
      %v704 = vrot.slane %v439, 5
      %v705 = vsel %vm680, %v703, %v704
      %v706 = vrot.slane %v704, 4
      %v707 = vrot.slane %v440, 5
      %v708 = vsel %vm680, %v706, %v707
      %v709 = vrot.slane %v441, 5
      %v710 = vrot.slane %v709, 4
      %v711 = vrot.slane %v442, 5
      %v712 = vsel %vm680, %v710, %v711
      %v713 = vrot.slane %v711, 4
      %v714 = vrot.slane %v443, 5
      %v715 = vsel %vm680, %v713, %v714
      %v716 = vrot.slane %v444, 5
      %v717 = vrot.slane %v716, 4
      %v718 = vrot.slane %v445, 5
      %v719 = vsel %vm680, %v717, %v718
      %v720 = vrot.slane %v718, 4
      %v721 = vrot.slane %v446, 5
      %v722 = vsel %vm680, %v720, %v721
      %v723 = vrot.slane %v447, 5
      %v724 = vrot.slane %v723, 4
      %v725 = vrot.slane %v448, 5
      %v726 = vsel %vm680, %v724, %v725
      %v727 = vrot.slane %v725, 4
      %v728 = vrot.slane %v449, 5
      %v729 = vsel %vm680, %v727, %v728
      %v730 = vrot.slane %v450, 5
      %v731 = vrot.slane %v730, 4
      %v732 = vrot.slane %v451, 5
      %v733 = vsel %vm680, %v731, %v732
      %v734 = vrot.slane %v732, 4
      %v735 = vrot.slane %v452, 5
      %v736 = vsel %vm680, %v734, %v735
      %v738 = vshrl.u32 %v453, 16
      %v740 = vrot.slane %v738, 4
      %v741 = vshll.u32 %v453, 16
      %v743 = vrot.slane %v741, 5
      %v744 = vor.u32 %v740, %v743
      %v745 = vrot.slane %v744, 4
      %v747 = vshll.u32 %v454, 16
      %v749 = vrot.slane %v747, 5
      %v750 = vsel %vm461, %v745, %v749
      %v751 = vshrl.u32 %v454, 16
      %v753 = vrot.slane %v751, 4
      %v754 = vor.u32 %v753, %v749
      %v755 = vrot.slane %v754, 4
      %v757 = vshll.u32 %v455, 16
      %v759 = vrot.slane %v757, 5
      %v760 = vsel %vm461, %v755, %v759
      %v764 = vrot.slane %v453, 5
      %v765 = vrot.slane %v764, 4
      %v766 = vrot.slane %v454, 5
      %v767 = vsel %vm680, %v765, %v766
      %v768 = vrot.slane %v766, 4
      %v769 = vrot.slane %v455, 5
      %v770 = vsel %vm680, %v768, %v769
      %v772 = vshrl.u32 %v456, 16
      %v774 = vrot.slane %v772, 4
      %v775 = vshll.u32 %v456, 16
      %v777 = vrot.slane %v775, 5
      %v778 = vor.u32 %v774, %v777
      %v779 = vrot.slane %v778, 4
      %v781 = vshll.u32 %v457, 16
      %v783 = vrot.slane %v781, 5
      %v784 = vsel %vm461, %v779, %v783
      %v785 = vshrl.u32 %v457, 16
      %v787 = vrot.slane %v785, 4
      %v788 = vor.u32 %v787, %v783
      %v789 = vrot.slane %v788, 4
      %v791 = vshll.u32 %v458, 16
      %v793 = vrot.slane %v791, 5
      %v794 = vsel %vm461, %v789, %v793
      %v798 = vrot.slane %v456, 5
      %v799 = vrot.slane %v798, 4
      %v800 = vrot.slane %v457, 5
      %v801 = vsel %vm680, %v799, %v800
      %v802 = vrot.slane %v800, 4
      %v803 = vrot.slane %v458, 5
      %v804 = vsel %vm680, %v802, %v803
      %v805 = vunpack.c.l.b16 %v429
      %v806 = vunpack.c.l.b16 %v430
      %v807 = vunpack.c.l.b16 %v432
      %v808 = vunpack.c.l.b16 %v433
      %v809 = vunpack.c.l.b16 %v435
      %v810 = vunpack.c.l.b16 %v436
      %v811 = vunpack.c.l.b16 %v438
      %v812 = vunpack.c.l.b16 %v439
      %v813 = vunpack.c.l.b16 %v441
      %v814 = vunpack.c.l.b16 %v442
      %v815 = vunpack.c.l.b16 %v444
      %v816 = vunpack.c.l.b16 %v445
      %v817 = vunpack.c.l.b16 %v447
      %v818 = vunpack.c.l.b16 %v448
      %v819 = vunpack.c.l.b16 %v450
      %v820 = vunpack.c.l.b16 %v451
      %v821 = vpack.c.b16 %v806, %v805
      %v822 = vpack.c.b16 %v808, %v807
      %v823 = vpack.c.b16 %v810, %v809
      %v824 = vpack.c.b16 %v812, %v811
      %v825 = vpack.c.b16 %v814, %v813
      %v826 = vpack.c.b16 %v816, %v815
      %v827 = vpack.c.b16 %v818, %v817
      %v828 = vpack.c.b16 %v820, %v819
      %v829 = vunpack.c.l.b16 %v475
      %v830 = vunpack.c.l.b16 %v485
      %v831 = vunpack.c.l.b16 %v499
      %v832 = vunpack.c.l.b16 %v509
      %v833 = vunpack.c.l.b16 %v523
      %v834 = vunpack.c.l.b16 %v533
      %v835 = vunpack.c.l.b16 %v547
      %v836 = vunpack.c.l.b16 %v557
      %v837 = vunpack.c.l.b16 %v571
      %v838 = vunpack.c.l.b16 %v581
      %v839 = vunpack.c.l.b16 %v595
      %v840 = vunpack.c.l.b16 %v605
      %v841 = vunpack.c.l.b16 %v619
      %v842 = vunpack.c.l.b16 %v629
      %v843 = vunpack.c.l.b16 %v643
      %v844 = vunpack.c.l.b16 %v653
      %v845 = vpack.c.b16 %v830, %v829
      %v846 = vpack.c.b16 %v832, %v831
      %v847 = vpack.c.b16 %v834, %v833
      %v848 = vpack.c.b16 %v836, %v835
      %v849 = vpack.c.b16 %v838, %v837
      %v850 = vpack.c.b16 %v840, %v839
      %v851 = vpack.c.b16 %v842, %v841
      %v852 = vpack.c.b16 %v844, %v843
      %853 = vrot.lane.b32.xlu0 %v845, 64
      %v854 = vpop.permute.xlu0 %853
      %855 = vrot.lane.b32.xlu0 %v846, 64
      %v856 = vpop.permute.xlu0 %855
      %857 = vrot.lane.b32.xlu0 %v847, 64
      %v858 = vpop.permute.xlu0 %857
      %859 = vrot.lane.b32.xlu0 %v848, 64
      %v860 = vpop.permute.xlu0 %859
      %861 = vrot.lane.b32.xlu0 %v849, 64
      %v862 = vpop.permute.xlu0 %861
      %863 = vrot.lane.b32.xlu0 %v850, 64
      %v864 = vpop.permute.xlu0 %863
      %865 = vrot.lane.b32.xlu0 %v851, 64
      %v866 = vpop.permute.xlu0 %865
      %867 = vrot.lane.b32.xlu0 %v852, 64
      %v868 = vpop.permute.xlu0 %867
      %v869 = vunpack.c.l.b16 %v684
      %v870 = vunpack.c.l.b16 %v687
      %v871 = vunpack.c.l.b16 %v691
      %v872 = vunpack.c.l.b16 %v694
      %v873 = vunpack.c.l.b16 %v698
      %v874 = vunpack.c.l.b16 %v701
      %v875 = vunpack.c.l.b16 %v705
      %v876 = vunpack.c.l.b16 %v708
      %v877 = vunpack.c.l.b16 %v712
      %v878 = vunpack.c.l.b16 %v715
      %v879 = vunpack.c.l.b16 %v719
      %v880 = vunpack.c.l.b16 %v722
      %v881 = vunpack.c.l.b16 %v726
      %v882 = vunpack.c.l.b16 %v729
      %v883 = vunpack.c.l.b16 %v733
      %v884 = vunpack.c.l.b16 %v736
      %v885 = vpack.c.b16 %v870, %v869
      %v886 = vpack.c.b16 %v872, %v871
      %v887 = vpack.c.b16 %v874, %v873
      %v888 = vpack.c.b16 %v876, %v875
      %v889 = vpack.c.b16 %v878, %v877
      %v890 = vpack.c.b16 %v880, %v879
      %v891 = vpack.c.b16 %v882, %v881
      %v892 = vpack.c.b16 %v884, %v883
      %v893 = vunpack.c.l.b16 %v453
      %v894 = vunpack.c.l.b16 %v454
      %v895 = vpack.c.b16 %v894, %v893
      %896 = vrot.lane.b32.xlu0 %v822, 64
      %v897 = vpop.permute.xlu0 %896
      %898 = vrot.lane.b32.xlu0 %v823, 64
      %v899 = vpop.permute.xlu0 %898
      %900 = vrot.lane.b32.xlu0 %v824, 64
      %v901 = vpop.permute.xlu0 %900
      %902 = vrot.lane.b32.xlu0 %v825, 64
      %v903 = vpop.permute.xlu0 %902
      %904 = vrot.lane.b32.xlu0 %v826, 64
      %v905 = vpop.permute.xlu0 %904
      %906 = vrot.lane.b32.xlu0 %v827, 64
      %v907 = vpop.permute.xlu0 %906
      %908 = vrot.lane.b32.xlu0 %v828, 64
      %v909 = vpop.permute.xlu0 %908
      %910 = vrot.lane.b32.xlu0 %v895, 64
      %v911 = vpop.permute.xlu0 %910
      %v912 = vunpack.c.l.b16 %v750
      %v913 = vunpack.c.l.b16 %v760
      %v914 = vpack.c.b16 %v913, %v912
      %v915 = vunpack.c.l.b16 %v767
      %v916 = vunpack.c.l.b16 %v770
      %v917 = vpack.c.b16 %v916, %v915
      %918 = vrot.lane.b32.xlu0 %v886, 64
      %v919 = vpop.permute.xlu0 %918
      %920 = vrot.lane.b32.xlu0 %v887, 64
      %v921 = vpop.permute.xlu0 %920
      %922 = vrot.lane.b32.xlu0 %v888, 64
      %v923 = vpop.permute.xlu0 %922
      %924 = vrot.lane.b32.xlu0 %v889, 64
      %v925 = vpop.permute.xlu0 %924
      %926 = vrot.lane.b32.xlu0 %v890, 64
      %v927 = vpop.permute.xlu0 %926
      %928 = vrot.lane.b32.xlu0 %v891, 64
      %v929 = vpop.permute.xlu0 %928
      %930 = vrot.lane.b32.xlu0 %v892, 64
      %v931 = vpop.permute.xlu0 %930
      %932 = vrot.lane.b32.xlu0 %v917, 64
      %v933 = vpop.permute.xlu0 %932
      %v934 = vunpack.c.l.b16 %v456
      %v935 = vunpack.c.l.b16 %v457
      %v936 = vpack.c.b16 %v935, %v934
      %v937 = vunpack.c.l.b16 %v784
      %v938 = vunpack.c.l.b16 %v794
      %v939 = vpack.c.b16 %v938, %v937
      %940 = vrot.lane.b32.xlu0 %v914, 64
      %v941 = vpop.permute.xlu0 %940
      %942 = vrot.lane.b32.xlu0 %v939, 64
      %v943 = vpop.permute.xlu0 %942
      %v944 = vunpack.c.l.b16 %v801
      %v945 = vunpack.c.l.b16 %v804
      %v946 = vpack.c.b16 %v945, %v944
      %vm947 = vcmask 523264
      %v950 = vsel %vm947, %v821, %v854
      %v954 = vsel %vm947, %v822, %v856
      %v958 = vsel %vm947, %v823, %v858
      %v962 = vsel %vm947, %v824, %v860
      %v966 = vsel %vm947, %v825, %v862
      %v970 = vsel %vm947, %v826, %v864
      %v974 = vsel %vm947, %v827, %v866
      %v978 = vsel %vm947, %v828, %v868
      %v982 = vsel %vm947, %v885, %v897
      %v986 = vsel %vm947, %v886, %v899
      %v990 = vsel %vm947, %v887, %v901
      %v994 = vsel %vm947, %v888, %v903
      %v998 = vsel %vm947, %v889, %v905
      %v1002 = vsel %vm947, %v890, %v907
      %v1006 = vsel %vm947, %v891, %v909
      %v1010 = vsel %vm947, %v892, %v911
      %v1014 = vsel %vm947, %v846, %v919
      %v1018 = vsel %vm947, %v847, %v921
      %v1022 = vsel %vm947, %v848, %v923
      %v1026 = vsel %vm947, %v849, %v925
      %v1030 = vsel %vm947, %v850, %v927
      %v1034 = vsel %vm947, %v851, %v929
      %v1038 = vsel %vm947, %v852, %v931
      %v1042 = vsel %vm947, %v914, %v933
      %v1046 = vsel %vm947, %v895, %v941
      %v1050 = vsel %vm947, %v936, %v943
      %v1052 = vld [vmem:[%s398] sm:$0xf]
      %v1053 = vld [vmem:[%s398 + $0x4] sm:$0xf]
      %v1054 = vld [vmem:[%s398 + $0x8] sm:$0xf]
      %v1055 = vld [vmem:[%s398 + $0xc] sm:$0xf]
      %v1056 = vld [vmem:[%s398 + $0x10] sm:$0xf]
      %v1057 = vld [vmem:[%s398 + $0x14] sm:$0xf]
      %v1058 = vld [vmem:[%s398 + $0x18] sm:$0xf]
      %v1059 = vld [vmem:[%s398 + $0x1c] sm:$0xf]
      %v1060 = vld [vmem:[%s398 + $0x20] sm:$0xf]
      %v1061 = vld [vmem:[%s398 + $0x24] sm:$0xf]
      %v1062 = vld [vmem:[%s398 + $0x28] sm:$0xf]
      %v1063 = vld [vmem:[%s398 + $0x2c] sm:$0xf]
      %v1064 = vld [vmem:[%s398 + $0x30] sm:$0xf]
      %v1065 = vld [vmem:[%s398 + $0x34] sm:$0xf]
      %v1066 = vld [vmem:[%s398 + $0x38] sm:$0xf]
      %v1067 = vld [vmem:[%s398 + $0x3c] sm:$0xf]
      %v1068 = vld [vmem:[%s398 + $0x40] sm:$0xf]
      %v1069 = vld [vmem:[%s398 + $0x44] sm:$0xf]
      %v1070 = vld [vmem:[%s398 + $0x48] sm:$0xf]
      %v1071 = vld [vmem:[%s398 + $0x4c] sm:$0xf]
      %v1072 = vld [vmem:[%s398 + $0x50] sm:$0xf]
      %v1073 = vld [vmem:[%s398 + $0x54] sm:$0xf]
      %v1074 = vld [vmem:[%s398 + $0x58] sm:$0xf]
      %v1075 = vld [vmem:[%s398 + $0x5c] sm:$0xf]
      %v1076 = vld [vmem:[%s398 + $0x60] sm:$0xf]
      %v1077 = vld [vmem:[%s398 + $0x64] sm:$0xf]
      %v1078 = vld [vmem:[%s398 + $0x68] sm:$0xf]
      %v1079 = vld [vmem:[%s398 + $0x6c] sm:$0xf]
      %v1080 = vld [vmem:[%s398 + $0x70] sm:$0xf]
      %v1081 = vld [vmem:[%s398 + $0x74] sm:$0xf]
      %v1082 = vld [vmem:[%s398 + $0x78] sm:$0xf]
      %v1083 = vld [vmem:[%s398 + $0x7c] sm:$0xf]
      %v1084 = vld [vmem:[%s398 + $0x80] sm:$0xf]
      %v1085 = vld [vmem:[%s398 + $0x84] sm:$0xf]
      %v1086 = vld [vmem:[%s398 + $0x88] sm:$0xf]
      %v1087 = vld [vmem:[%s398 + $0x8c] sm:$0xf]
      %v1088 = vld [vmem:[%s398 + $0x90] sm:$0xf]
      %v1089 = vld [vmem:[%s398 + $0x94] sm:$0xf]
      %v1090 = vld [vmem:[%s398 + $0x98] sm:$0xf]
      %v1091 = vld [vmem:[%s398 + $0x9c] sm:$0xf]
      %v1092 = vld [vmem:[%s398 + $0xa0] sm:$0xf]
      %v1093 = vld [vmem:[%s398 + $0xa4] sm:$0xf]
      %v1094 = vld [vmem:[%s398 + $0xa8] sm:$0xf]
      %v1095 = vld [vmem:[%s398 + $0xac] sm:$0xf]
      %v1096 = vld [vmem:[%s398 + $0xb0] sm:$0xf]
      %v1097 = vld [vmem:[%s398 + $0xb4] sm:$0xf]
      %v1098 = vld [vmem:[%s398 + $0xb8] sm:$0xf]
      %v1099 = vld [vmem:[%s398 + $0xbc] sm:$0xf]
      %v1100 = vld [vmem:[%s398 + $0xc0] sm:$0xf]
      %v1101 = vld [vmem:[%s398 + $0xc4] sm:$0xf]
      %v1102 = vld [vmem:[%s398 + $0xc8] sm:$0xf]
      %v1103 = vld [vmem:[%s398 + $0xcc] sm:$0xf]
      %v1104 = vld [vmem:[%s398 + $0xd0] sm:$0xf]
      %v1105 = vld [vmem:[%s398 + $0xd4] sm:$0xf]
      %v1106 = vld [vmem:[%s398 + $0xd8] sm:$0xf]
      %v1107 = vld [vmem:[%s398 + $0xdc] sm:$0xf]
      %v1108 = vld [vmem:[%s398 + $0xe0] sm:$0xf]
      %v1109 = vld [vmem:[%s398 + $0xe4] sm:$0xf]
      %v1110 = vld [vmem:[%s398 + $0xe8] sm:$0xf]
      %v1111 = vld [vmem:[%s398 + $0xec] sm:$0xf]
      %v1112 = vld [vmem:[%s398 + $0xf0] sm:$0xf]
      %v1113 = vld [vmem:[%s398 + $0xf4] sm:$0xf]
      %v1114 = vld [vmem:[%s398 + $0xf8] sm:$0xf]
      %v1115 = vld [vmem:[%s398 + $0xfc] sm:$0xf]
      %v1116 = vld [vmem:[%s398 + $0x100] sm:$0xf]
      %v1117 = vld [vmem:[%s398 + $0x104] sm:$0xf]
      %v1118 = vld [vmem:[%s398 + $0x108] sm:$0xf]
      %v1119 = vld [vmem:[%s398 + $0x10c] sm:$0xf]
      %v1120 = vld [vmem:[%s398 + $0x110] sm:$0xf]
      %v1121 = vld [vmem:[%s398 + $0x114] sm:$0xf]
      %v1122 = vld [vmem:[%s398 + $0x118] sm:$0xf]
      %v1123 = vld [vmem:[%s398 + $0x11c] sm:$0xf]
      %s1124 = smul.addr %s426, 4
      %s1125 = scalar_lea.vmem %s389, %s1124
      %v1126 = vld [vmem:[%s1125] sm:$0xf]
      %v1127 = vld [vmem:[%s1125 + $0x4] sm:$0xf]
      %v1128 = vld [vmem:[%s1125 + $0x8] sm:$0x1]
      %v1129 = vld [vmem:[%s1125 + $0xc] sm:$0xf]
      %v1130 = vld [vmem:[%s1125 + $0x10] sm:$0xf]
      %v1131 = vld [vmem:[%s1125 + $0x14] sm:$0x1]
      %v1132 = vld [vmem:[%s1125 + $0x18] sm:$0xf]
      %v1133 = vld [vmem:[%s1125 + $0x1c] sm:$0xf]
      %v1134 = vld [vmem:[%s1125 + $0x20] sm:$0x1]
      %v1135 = vld [vmem:[%s1125 + $0x24] sm:$0xf]
      %v1136 = vld [vmem:[%s1125 + $0x28] sm:$0xf]
      %v1137 = vld [vmem:[%s1125 + $0x2c] sm:$0x1]
      %v1138 = vld [vmem:[%s1125 + $0x30] sm:$0xf]
      %v1139 = vld [vmem:[%s1125 + $0x34] sm:$0xf]
      %v1140 = vld [vmem:[%s1125 + $0x38] sm:$0x1]
      %v1141 = vld [vmem:[%s1125 + $0x3c] sm:$0xf]
      %v1142 = vld [vmem:[%s1125 + $0x40] sm:$0xf]
      %v1143 = vld [vmem:[%s1125 + $0x44] sm:$0x1]
      %v1144 = vld [vmem:[%s1125 + $0x48] sm:$0xf]
      %v1145 = vld [vmem:[%s1125 + $0x4c] sm:$0xf]
      %v1146 = vld [vmem:[%s1125 + $0x50] sm:$0x1]
      %v1147 = vld [vmem:[%s1125 + $0x54] sm:$0xf]
      %v1148 = vld [vmem:[%s1125 + $0x58] sm:$0xf]
      %v1149 = vld [vmem:[%s1125 + $0x5c] sm:$0x1]
      %v1150 = vld [vmem:[%s1125 + $0x60] sm:$0xf]
      %v1151 = vld [vmem:[%s1125 + $0x64] sm:$0xf]
      %v1152 = vld [vmem:[%s1125 + $0x68] sm:$0x1]
      %v1153 = vld [vmem:[%s1125 + $0x6c] sm:$0xf]
      %v1154 = vld [vmem:[%s1125 + $0x70] sm:$0xf]
      %v1155 = vld [vmem:[%s1125 + $0x74] sm:$0x1]
      %v1157 = vshrl.u32 %v1126, 16
      %v1159 = vrot.slane %v1157, 4
      %v1160 = vshll.u32 %v1126, 16
      %v1162 = vrot.slane %v1160, 5
      %v1163 = vor.u32 %v1159, %v1162
      %v1164 = vrot.slane %v1163, 4
      %v1166 = vshll.u32 %v1127, 16
      %v1168 = vrot.slane %v1166, 5
      %v1169 = vsel %vm461, %v1164, %v1168
      %v1170 = vshrl.u32 %v1127, 16
      %v1172 = vrot.slane %v1170, 4
      %v1173 = vor.u32 %v1172, %v1168
      %v1174 = vrot.slane %v1173, 4
      %v1176 = vshll.u32 %v1128, 16
      %v1178 = vrot.slane %v1176, 5
      %v1179 = vsel %vm461, %v1174, %v1178
      %v1181 = vshrl.u32 %v1129, 16
      %v1183 = vrot.slane %v1181, 4
      %v1184 = vshll.u32 %v1129, 16
      %v1186 = vrot.slane %v1184, 5
      %v1187 = vor.u32 %v1183, %v1186
      %v1188 = vrot.slane %v1187, 4
      %v1190 = vshll.u32 %v1130, 16
      %v1192 = vrot.slane %v1190, 5
      %v1193 = vsel %vm461, %v1188, %v1192
      %v1194 = vshrl.u32 %v1130, 16
      %v1196 = vrot.slane %v1194, 4
      %v1197 = vor.u32 %v1196, %v1192
      %v1198 = vrot.slane %v1197, 4
      %v1200 = vshll.u32 %v1131, 16
      %v1202 = vrot.slane %v1200, 5
      %v1203 = vsel %vm461, %v1198, %v1202
      %v1205 = vshrl.u32 %v1132, 16
      %v1207 = vrot.slane %v1205, 4
      %v1208 = vshll.u32 %v1132, 16
      %v1210 = vrot.slane %v1208, 5
      %v1211 = vor.u32 %v1207, %v1210
      %v1212 = vrot.slane %v1211, 4
      %v1214 = vshll.u32 %v1133, 16
      %v1216 = vrot.slane %v1214, 5
      %v1217 = vsel %vm461, %v1212, %v1216
      %v1218 = vshrl.u32 %v1133, 16
      %v1220 = vrot.slane %v1218, 4
      %v1221 = vor.u32 %v1220, %v1216
      %v1222 = vrot.slane %v1221, 4
      %v1224 = vshll.u32 %v1134, 16
      %v1226 = vrot.slane %v1224, 5
      %v1227 = vsel %vm461, %v1222, %v1226
      %v1229 = vshrl.u32 %v1135, 16
      %v1231 = vrot.slane %v1229, 4
      %v1232 = vshll.u32 %v1135, 16
      %v1234 = vrot.slane %v1232, 5
      %v1235 = vor.u32 %v1231, %v1234
      %v1236 = vrot.slane %v1235, 4
      %v1238 = vshll.u32 %v1136, 16
      %v1240 = vrot.slane %v1238, 5
      %v1241 = vsel %vm461, %v1236, %v1240
      %v1242 = vshrl.u32 %v1136, 16
      %v1244 = vrot.slane %v1242, 4
      %v1245 = vor.u32 %v1244, %v1240
      %v1246 = vrot.slane %v1245, 4
      %v1248 = vshll.u32 %v1137, 16
      %v1250 = vrot.slane %v1248, 5
      %v1251 = vsel %vm461, %v1246, %v1250
      %v1253 = vshrl.u32 %v1138, 16
      %v1255 = vrot.slane %v1253, 4
      %v1256 = vshll.u32 %v1138, 16
      %v1258 = vrot.slane %v1256, 5
      %v1259 = vor.u32 %v1255, %v1258
      %v1260 = vrot.slane %v1259, 4
      %v1262 = vshll.u32 %v1139, 16
      %v1264 = vrot.slane %v1262, 5
      %v1265 = vsel %vm461, %v1260, %v1264
      %v1266 = vshrl.u32 %v1139, 16
      %v1268 = vrot.slane %v1266, 4
      %v1269 = vor.u32 %v1268, %v1264
      %v1270 = vrot.slane %v1269, 4
      %v1272 = vshll.u32 %v1140, 16
      %v1274 = vrot.slane %v1272, 5
      %v1275 = vsel %vm461, %v1270, %v1274
      %v1277 = vshrl.u32 %v1141, 16
      %v1279 = vrot.slane %v1277, 4
      %v1280 = vshll.u32 %v1141, 16
      %v1282 = vrot.slane %v1280, 5
      %v1283 = vor.u32 %v1279, %v1282
      %v1284 = vrot.slane %v1283, 4
      %v1286 = vshll.u32 %v1142, 16
      %v1288 = vrot.slane %v1286, 5
      %v1289 = vsel %vm461, %v1284, %v1288
      %v1290 = vshrl.u32 %v1142, 16
      %v1292 = vrot.slane %v1290, 4
      %v1293 = vor.u32 %v1292, %v1288
      %v1294 = vrot.slane %v1293, 4
      %v1296 = vshll.u32 %v1143, 16
      %v1298 = vrot.slane %v1296, 5
      %v1299 = vsel %vm461, %v1294, %v1298
      %v1301 = vshrl.u32 %v1144, 16
      %v1303 = vrot.slane %v1301, 4
      %v1304 = vshll.u32 %v1144, 16
      %v1306 = vrot.slane %v1304, 5
      %v1307 = vor.u32 %v1303, %v1306
      %v1308 = vrot.slane %v1307, 4
      %v1310 = vshll.u32 %v1145, 16
      %v1312 = vrot.slane %v1310, 5
      %v1313 = vsel %vm461, %v1308, %v1312
      %v1314 = vshrl.u32 %v1145, 16
      %v1316 = vrot.slane %v1314, 4
      %v1317 = vor.u32 %v1316, %v1312
      %v1318 = vrot.slane %v1317, 4
      %v1320 = vshll.u32 %v1146, 16
      %v1322 = vrot.slane %v1320, 5
      %v1323 = vsel %vm461, %v1318, %v1322
      %v1325 = vshrl.u32 %v1147, 16
      %v1327 = vrot.slane %v1325, 4
      %v1328 = vshll.u32 %v1147, 16
      %v1330 = vrot.slane %v1328, 5
      %v1331 = vor.u32 %v1327, %v1330
      %v1332 = vrot.slane %v1331, 4
      %v1334 = vshll.u32 %v1148, 16
      %v1336 = vrot.slane %v1334, 5
      %v1337 = vsel %vm461, %v1332, %v1336
      %v1338 = vshrl.u32 %v1148, 16
      %v1340 = vrot.slane %v1338, 4
      %v1341 = vor.u32 %v1340, %v1336
      %v1342 = vrot.slane %v1341, 4
      %v1344 = vshll.u32 %v1149, 16
      %v1346 = vrot.slane %v1344, 5
      %v1347 = vsel %vm461, %v1342, %v1346
      %v1372 = vrot.slane %v1126, 5
      %v1373 = vrot.slane %v1372, 4
      %v1374 = vrot.slane %v1127, 5
      %v1375 = vsel %vm680, %v1373, %v1374
      %v1376 = vrot.slane %v1374, 4
      %v1377 = vrot.slane %v1128, 5
      %v1378 = vsel %vm680, %v1376, %v1377
      %v1379 = vrot.slane %v1129, 5
      %v1380 = vrot.slane %v1379, 4
      %v1381 = vrot.slane %v1130, 5
      %v1382 = vsel %vm680, %v1380, %v1381
      %v1383 = vrot.slane %v1381, 4
      %v1384 = vrot.slane %v1131, 5
      %v1385 = vsel %vm680, %v1383, %v1384
      %v1386 = vrot.slane %v1132, 5
      %v1387 = vrot.slane %v1386, 4
      %v1388 = vrot.slane %v1133, 5
      %v1389 = vsel %vm680, %v1387, %v1388
      %v1390 = vrot.slane %v1388, 4
      %v1391 = vrot.slane %v1134, 5
      %v1392 = vsel %vm680, %v1390, %v1391
      %v1393 = vrot.slane %v1135, 5
      %v1394 = vrot.slane %v1393, 4
      %v1395 = vrot.slane %v1136, 5
      %v1396 = vsel %vm680, %v1394, %v1395
      %v1397 = vrot.slane %v1395, 4
      %v1398 = vrot.slane %v1137, 5
      %v1399 = vsel %vm680, %v1397, %v1398
      %v1400 = vrot.slane %v1138, 5
      %v1401 = vrot.slane %v1400, 4
      %v1402 = vrot.slane %v1139, 5
      %v1403 = vsel %vm680, %v1401, %v1402
      %v1404 = vrot.slane %v1402, 4
      %v1405 = vrot.slane %v1140, 5
      %v1406 = vsel %vm680, %v1404, %v1405
      %v1407 = vrot.slane %v1141, 5
      %v1408 = vrot.slane %v1407, 4
      %v1409 = vrot.slane %v1142, 5
      %v1410 = vsel %vm680, %v1408, %v1409
      %v1411 = vrot.slane %v1409, 4
      %v1412 = vrot.slane %v1143, 5
      %v1413 = vsel %vm680, %v1411, %v1412
      %v1414 = vrot.slane %v1144, 5
      %v1415 = vrot.slane %v1414, 4
      %v1416 = vrot.slane %v1145, 5
      %v1417 = vsel %vm680, %v1415, %v1416
      %v1418 = vrot.slane %v1416, 4
      %v1419 = vrot.slane %v1146, 5
      %v1420 = vsel %vm680, %v1418, %v1419
      %v1421 = vrot.slane %v1147, 5
      %v1422 = vrot.slane %v1421, 4
      %v1423 = vrot.slane %v1148, 5
      %v1424 = vsel %vm680, %v1422, %v1423
      %v1425 = vrot.slane %v1423, 4
      %v1426 = vrot.slane %v1149, 5
      %v1427 = vsel %vm680, %v1425, %v1426
      %v1429 = vshrl.u32 %v1150, 16
      %v1431 = vrot.slane %v1429, 4
      %v1432 = vshll.u32 %v1150, 16
      %v1434 = vrot.slane %v1432, 5
      %v1435 = vor.u32 %v1431, %v1434
      %v1436 = vrot.slane %v1435, 4
      %v1438 = vshll.u32 %v1151, 16
      %v1440 = vrot.slane %v1438, 5
      %v1441 = vsel %vm461, %v1436, %v1440
      %v1442 = vshrl.u32 %v1151, 16
      %v1444 = vrot.slane %v1442, 4
      %v1445 = vor.u32 %v1444, %v1440
      %v1446 = vrot.slane %v1445, 4
      %v1448 = vshll.u32 %v1152, 16
      %v1450 = vrot.slane %v1448, 5
      %v1451 = vsel %vm461, %v1446, %v1450
      %v1455 = vrot.slane %v1150, 5
      %v1456 = vrot.slane %v1455, 4
      %v1457 = vrot.slane %v1151, 5
      %v1458 = vsel %vm680, %v1456, %v1457
      %v1459 = vrot.slane %v1457, 4
      %v1460 = vrot.slane %v1152, 5
      %v1461 = vsel %vm680, %v1459, %v1460
      %v1463 = vshrl.u32 %v1153, 16
      %v1465 = vrot.slane %v1463, 4
      %v1466 = vshll.u32 %v1153, 16
      %v1468 = vrot.slane %v1466, 5
      %v1469 = vor.u32 %v1465, %v1468
      %v1470 = vrot.slane %v1469, 4
      %v1472 = vshll.u32 %v1154, 16
      %v1474 = vrot.slane %v1472, 5
      %v1475 = vsel %vm461, %v1470, %v1474
      %v1476 = vshrl.u32 %v1154, 16
      %v1478 = vrot.slane %v1476, 4
      %v1479 = vor.u32 %v1478, %v1474
      %v1480 = vrot.slane %v1479, 4
      %v1482 = vshll.u32 %v1155, 16
      %v1484 = vrot.slane %v1482, 5
      %v1485 = vsel %vm461, %v1480, %v1484
      %v1489 = vrot.slane %v1153, 5
      %v1490 = vrot.slane %v1489, 4
      %v1491 = vrot.slane %v1154, 5
      %v1492 = vsel %vm680, %v1490, %v1491
      %v1493 = vrot.slane %v1491, 4
      %v1494 = vrot.slane %v1155, 5
      %v1495 = vsel %vm680, %v1493, %v1494
      %v1496 = vunpack.c.l.b16 %v1126
      %v1497 = vunpack.c.l.b16 %v1127
      %v1498 = vunpack.c.l.b16 %v1129
      %v1499 = vunpack.c.l.b16 %v1130
      %v1500 = vunpack.c.l.b16 %v1132
      %v1501 = vunpack.c.l.b16 %v1133
      %v1502 = vunpack.c.l.b16 %v1135
      %v1503 = vunpack.c.l.b16 %v1136
      %v1504 = vunpack.c.l.b16 %v1138
      %v1505 = vunpack.c.l.b16 %v1139
      %v1506 = vunpack.c.l.b16 %v1141
      %v1507 = vunpack.c.l.b16 %v1142
      %v1508 = vunpack.c.l.b16 %v1144
      %v1509 = vunpack.c.l.b16 %v1145
      %v1510 = vunpack.c.l.b16 %v1147
      %v1511 = vunpack.c.l.b16 %v1148
      %v1512 = vpack.c.b16 %v1497, %v1496
      %v1513 = vpack.c.b16 %v1499, %v1498
      %v1514 = vpack.c.b16 %v1501, %v1500
      %v1515 = vpack.c.b16 %v1503, %v1502
      %v1516 = vpack.c.b16 %v1505, %v1504
      %v1517 = vpack.c.b16 %v1507, %v1506
      %v1518 = vpack.c.b16 %v1509, %v1508
      %v1519 = vpack.c.b16 %v1511, %v1510
      %v1520 = vunpack.c.l.b16 %v1169
      %v1521 = vunpack.c.l.b16 %v1179
      %v1522 = vunpack.c.l.b16 %v1193
      %v1523 = vunpack.c.l.b16 %v1203
      %v1524 = vunpack.c.l.b16 %v1217
      %v1525 = vunpack.c.l.b16 %v1227
      %v1526 = vunpack.c.l.b16 %v1241
      %v1527 = vunpack.c.l.b16 %v1251
      %v1528 = vunpack.c.l.b16 %v1265
      %v1529 = vunpack.c.l.b16 %v1275
      %v1530 = vunpack.c.l.b16 %v1289
      %v1531 = vunpack.c.l.b16 %v1299
      %v1532 = vunpack.c.l.b16 %v1313
      %v1533 = vunpack.c.l.b16 %v1323
      %v1534 = vunpack.c.l.b16 %v1337
      %v1535 = vunpack.c.l.b16 %v1347
      %v1536 = vpack.c.b16 %v1521, %v1520
      %v1537 = vpack.c.b16 %v1523, %v1522
      %v1538 = vpack.c.b16 %v1525, %v1524
      %v1539 = vpack.c.b16 %v1527, %v1526
      %v1540 = vpack.c.b16 %v1529, %v1528
      %v1541 = vpack.c.b16 %v1531, %v1530
      %v1542 = vpack.c.b16 %v1533, %v1532
      %v1543 = vpack.c.b16 %v1535, %v1534
      %1544 = vrot.lane.b32.xlu0 %v1536, 64
      %v1545 = vpop.permute.xlu0 %1544
      %1546 = vrot.lane.b32.xlu0 %v1537, 64
      %v1547 = vpop.permute.xlu0 %1546
      %1548 = vrot.lane.b32.xlu0 %v1538, 64
      %v1549 = vpop.permute.xlu0 %1548
      %1550 = vrot.lane.b32.xlu0 %v1539, 64
      %v1551 = vpop.permute.xlu0 %1550
      %1552 = vrot.lane.b32.xlu0 %v1540, 64
      %v1553 = vpop.permute.xlu0 %1552
      %1554 = vrot.lane.b32.xlu0 %v1541, 64
      %v1555 = vpop.permute.xlu0 %1554
      %1556 = vrot.lane.b32.xlu0 %v1542, 64
      %v1557 = vpop.permute.xlu0 %1556
      %1558 = vrot.lane.b32.xlu0 %v1543, 64
      %v1559 = vpop.permute.xlu0 %1558
      %v1560 = vunpack.c.l.b16 %v1375
      %v1561 = vunpack.c.l.b16 %v1378
      %v1562 = vunpack.c.l.b16 %v1382
      %v1563 = vunpack.c.l.b16 %v1385
      %v1564 = vunpack.c.l.b16 %v1389
      %v1565 = vunpack.c.l.b16 %v1392
      %v1566 = vunpack.c.l.b16 %v1396
      %v1567 = vunpack.c.l.b16 %v1399
      %v1568 = vunpack.c.l.b16 %v1403
      %v1569 = vunpack.c.l.b16 %v1406
      %v1570 = vunpack.c.l.b16 %v1410
      %v1571 = vunpack.c.l.b16 %v1413
      %v1572 = vunpack.c.l.b16 %v1417
      %v1573 = vunpack.c.l.b16 %v1420
      %v1574 = vunpack.c.l.b16 %v1424
      %v1575 = vunpack.c.l.b16 %v1427
      %v1576 = vpack.c.b16 %v1561, %v1560
      %v1577 = vpack.c.b16 %v1563, %v1562
      %v1578 = vpack.c.b16 %v1565, %v1564
      %v1579 = vpack.c.b16 %v1567, %v1566
      %v1580 = vpack.c.b16 %v1569, %v1568
      %v1581 = vpack.c.b16 %v1571, %v1570
      %v1582 = vpack.c.b16 %v1573, %v1572
      %v1583 = vpack.c.b16 %v1575, %v1574
      %v1584 = vunpack.c.l.b16 %v1150
      %v1585 = vunpack.c.l.b16 %v1151
      %v1586 = vpack.c.b16 %v1585, %v1584
      %1587 = vrot.lane.b32.xlu0 %v1513, 64
      %v1588 = vpop.permute.xlu0 %1587
      %1589 = vrot.lane.b32.xlu0 %v1514, 64
      %v1590 = vpop.permute.xlu0 %1589
      %1591 = vrot.lane.b32.xlu0 %v1515, 64
      %v1592 = vpop.permute.xlu0 %1591
      %1593 = vrot.lane.b32.xlu0 %v1516, 64
      %v1594 = vpop.permute.xlu0 %1593
      %1595 = vrot.lane.b32.xlu0 %v1517, 64
      %v1596 = vpop.permute.xlu0 %1595
      %1597 = vrot.lane.b32.xlu0 %v1518, 64
      %v1598 = vpop.permute.xlu0 %1597
      %1599 = vrot.lane.b32.xlu0 %v1519, 64
      %v1600 = vpop.permute.xlu0 %1599
      %1601 = vrot.lane.b32.xlu0 %v1586, 64
      %v1602 = vpop.permute.xlu0 %1601
      %v1603 = vunpack.c.l.b16 %v1441
      %v1604 = vunpack.c.l.b16 %v1451
      %v1605 = vpack.c.b16 %v1604, %v1603
      %v1606 = vunpack.c.l.b16 %v1458
      %v1607 = vunpack.c.l.b16 %v1461
      %v1608 = vpack.c.b16 %v1607, %v1606
      %1609 = vrot.lane.b32.xlu0 %v1577, 64
      %v1610 = vpop.permute.xlu0 %1609
      %1611 = vrot.lane.b32.xlu0 %v1578, 64
      %v1612 = vpop.permute.xlu0 %1611
      %1613 = vrot.lane.b32.xlu0 %v1579, 64
      %v1614 = vpop.permute.xlu0 %1613
      %1615 = vrot.lane.b32.xlu0 %v1580, 64
      %v1616 = vpop.permute.xlu0 %1615
      %1617 = vrot.lane.b32.xlu0 %v1581, 64
      %v1618 = vpop.permute.xlu0 %1617
      %1619 = vrot.lane.b32.xlu0 %v1582, 64
      %v1620 = vpop.permute.xlu0 %1619
      %1621 = vrot.lane.b32.xlu0 %v1583, 64
      %v1622 = vpop.permute.xlu0 %1621
      %1623 = vrot.lane.b32.xlu0 %v1608, 64
      %v1624 = vpop.permute.xlu0 %1623
      %v1625 = vunpack.c.l.b16 %v1153
      %v1626 = vunpack.c.l.b16 %v1154
      %v1627 = vpack.c.b16 %v1626, %v1625
      %v1628 = vunpack.c.l.b16 %v1475
      %v1629 = vunpack.c.l.b16 %v1485
      %v1630 = vpack.c.b16 %v1629, %v1628
      %1631 = vrot.lane.b32.xlu0 %v1605, 64
      %v1632 = vpop.permute.xlu0 %1631
      %1633 = vrot.lane.b32.xlu0 %v1630, 64
      %v1634 = vpop.permute.xlu0 %1633
      %v1635 = vunpack.c.l.b16 %v1492
      %v1636 = vunpack.c.l.b16 %v1495
      %v1637 = vpack.c.b16 %v1636, %v1635
      %v1640 = vsel %vm947, %v1512, %v1545
      %v1644 = vsel %vm947, %v1513, %v1547
      %v1648 = vsel %vm947, %v1514, %v1549
      %v1652 = vsel %vm947, %v1515, %v1551
      %v1656 = vsel %vm947, %v1516, %v1553
      %v1660 = vsel %vm947, %v1517, %v1555
      %v1664 = vsel %vm947, %v1518, %v1557
      %v1668 = vsel %vm947, %v1519, %v1559
      %v1672 = vsel %vm947, %v1576, %v1588
      %v1676 = vsel %vm947, %v1577, %v1590
      %v1680 = vsel %vm947, %v1578, %v1592
      %v1684 = vsel %vm947, %v1579, %v1594
      %v1688 = vsel %vm947, %v1580, %v1596
      %v1692 = vsel %vm947, %v1581, %v1598
      %v1696 = vsel %vm947, %v1582, %v1600
      %v1700 = vsel %vm947, %v1583, %v1602
      %v1704 = vsel %vm947, %v1537, %v1610
      %v1708 = vsel %vm947, %v1538, %v1612
      %v1712 = vsel %vm947, %v1539, %v1614
      %v1716 = vsel %vm947, %v1540, %v1616
      %v1720 = vsel %vm947, %v1541, %v1618
      %v1724 = vsel %vm947, %v1542, %v1620
      %v1728 = vsel %vm947, %v1543, %v1622
      %v1732 = vsel %vm947, %v1605, %v1624
      %v1736 = vsel %vm947, %v1586, %v1632
      %v1740 = vsel %vm947, %v1627, %v1634
      %v1742 = vld [vmem:[%s402] sm:$0xf]
      %v1743 = vld [vmem:[%s402 + $0x4] sm:$0xf]
      %v1744 = vld [vmem:[%s402 + $0x8] sm:$0xf]
      %v1745 = vld [vmem:[%s402 + $0xc] sm:$0xf]
      %v1746 = vld [vmem:[%s402 + $0x10] sm:$0xf]
      %v1747 = vld [vmem:[%s402 + $0x14] sm:$0xf]
      %v1748 = vld [vmem:[%s402 + $0x18] sm:$0xf]
      %v1749 = vld [vmem:[%s402 + $0x1c] sm:$0xf]
      %v1750 = vld [vmem:[%s402 + $0x20] sm:$0xf]
      %v1751 = vld [vmem:[%s402 + $0x24] sm:$0xf]
      %v1752 = vld [vmem:[%s402 + $0x28] sm:$0xf]
      %v1753 = vld [vmem:[%s402 + $0x2c] sm:$0xf]
      %v1754 = vld [vmem:[%s402 + $0x30] sm:$0xf]
      %v1755 = vld [vmem:[%s402 + $0x34] sm:$0xf]
      %v1756 = vld [vmem:[%s402 + $0x38] sm:$0xf]
      %v1757 = vld [vmem:[%s402 + $0x3c] sm:$0xf]
      %v1758 = vld [vmem:[%s402 + $0x40] sm:$0xf]
      %v1759 = vld [vmem:[%s402 + $0x44] sm:$0xf]
      %v1760 = vld [vmem:[%s402 + $0x48] sm:$0xf]
      %v1761 = vld [vmem:[%s402 + $0x4c] sm:$0xf]
      %v1762 = vld [vmem:[%s402 + $0x50] sm:$0xf]
      %v1763 = vld [vmem:[%s402 + $0x54] sm:$0xf]
      %v1764 = vld [vmem:[%s402 + $0x58] sm:$0xf]
      %v1765 = vld [vmem:[%s402 + $0x5c] sm:$0xf]
      %v1766 = vld [vmem:[%s402 + $0x60] sm:$0xf]
      %v1767 = vld [vmem:[%s402 + $0x64] sm:$0xf]
      %v1768 = vld [vmem:[%s402 + $0x68] sm:$0xf]
      %v1769 = vld [vmem:[%s402 + $0x6c] sm:$0xf]
      %v1770 = vld [vmem:[%s402 + $0x70] sm:$0xf]
      %v1771 = vld [vmem:[%s402 + $0x74] sm:$0xf]
      %v1772 = vld [vmem:[%s402 + $0x78] sm:$0xf]
      %v1773 = vld [vmem:[%s402 + $0x7c] sm:$0xf]
      %v1774 = vld [vmem:[%s402 + $0x80] sm:$0xf]
      %v1775 = vld [vmem:[%s402 + $0x84] sm:$0xf]
      %v1776 = vld [vmem:[%s402 + $0x88] sm:$0xf]
      %v1777 = vld [vmem:[%s402 + $0x8c] sm:$0xf]
      %v1778 = vld [vmem:[%s402 + $0x90] sm:$0xf]
      %v1779 = vld [vmem:[%s402 + $0x94] sm:$0xf]
      %v1780 = vld [vmem:[%s402 + $0x98] sm:$0xf]
      %v1781 = vld [vmem:[%s402 + $0x9c] sm:$0xf]
      %v1782 = vld [vmem:[%s402 + $0xa0] sm:$0xf]
      %v1783 = vld [vmem:[%s402 + $0xa4] sm:$0xf]
      %v1784 = vld [vmem:[%s402 + $0xa8] sm:$0xf]
      %v1785 = vld [vmem:[%s402 + $0xac] sm:$0xf]
      %v1786 = vld [vmem:[%s402 + $0xb0] sm:$0xf]
      %v1787 = vld [vmem:[%s402 + $0xb4] sm:$0xf]
      %v1788 = vld [vmem:[%s402 + $0xb8] sm:$0xf]
      %v1789 = vld [vmem:[%s402 + $0xbc] sm:$0xf]
      %v1790 = vld [vmem:[%s402 + $0xc0] sm:$0xf]
      %v1791 = vld [vmem:[%s402 + $0xc4] sm:$0xf]
      %v1792 = vld [vmem:[%s402 + $0xc8] sm:$0xf]
      %v1793 = vld [vmem:[%s402 + $0xcc] sm:$0xf]
      %v1794 = vld [vmem:[%s402 + $0xd0] sm:$0xf]
      %v1795 = vld [vmem:[%s402 + $0xd4] sm:$0xf]
      %v1796 = vld [vmem:[%s402 + $0xd8] sm:$0xf]
      %v1797 = vld [vmem:[%s402 + $0xdc] sm:$0xf]
      %v1798 = vld [vmem:[%s402 + $0xe0] sm:$0xf]
      %v1799 = vld [vmem:[%s402 + $0xe4] sm:$0xf]
      %v1800 = vld [vmem:[%s402 + $0xe8] sm:$0xf]
      %v1801 = vld [vmem:[%s402 + $0xec] sm:$0xf]
      %v1802 = vld [vmem:[%s402 + $0xf0] sm:$0xf]
      %v1803 = vld [vmem:[%s402 + $0xf4] sm:$0xf]
      %v1804 = vld [vmem:[%s402 + $0xf8] sm:$0xf]
      %v1805 = vld [vmem:[%s402 + $0xfc] sm:$0xf]
      %v1806 = vld [vmem:[%s402 + $0x100] sm:$0xf]
      %v1807 = vld [vmem:[%s402 + $0x104] sm:$0xf]
      %v1808 = vld [vmem:[%s402 + $0x108] sm:$0xf]
      %v1809 = vld [vmem:[%s402 + $0x10c] sm:$0xf]
      %v1810 = vld [vmem:[%s402 + $0x110] sm:$0xf]
      %v1811 = vld [vmem:[%s402 + $0x114] sm:$0xf]
      %v1812 = vld [vmem:[%s402 + $0x118] sm:$0xf]
      %v1813 = vld [vmem:[%s402 + $0x11c] sm:$0xf]
      %v1886 = vunpack.c.l.b16 %v1742
      %v1887 = vunpack.c.l.b16 %v1743
      %v1888 = vunpack.c.l.b16 %v1744
      %v1889 = vunpack.c.l.b16 %v1745
      %v1890 = vunpack.c.l.b16 %v1746
      %v1891 = vunpack.c.l.b16 %v1747
      %v1892 = vunpack.c.l.b16 %v1748
      %v1893 = vunpack.c.l.b16 %v1749
      %v1894 = vunpack.c.l.b16 %v1750
      %v1895 = vunpack.c.l.b16 %v1751
      %v1896 = vunpack.c.l.b16 %v1752
      %v1897 = vunpack.c.l.b16 %v1753
      %v1898 = vunpack.c.l.b16 %v1754
      %v1899 = vunpack.c.l.b16 %v1755
      %v1900 = vunpack.c.l.b16 %v1756
      %v1901 = vunpack.c.l.b16 %v1757
      %v1902 = vunpack.c.l.b16 %v1758
      %v1903 = vunpack.c.l.b16 %v1759
      %v1904 = vunpack.c.l.b16 %v1760
      %v1905 = vunpack.c.l.b16 %v1761
      %v1906 = vunpack.c.l.b16 %v1762
      %v1907 = vunpack.c.l.b16 %v1763
      %v1908 = vunpack.c.l.b16 %v1764
      %v1909 = vunpack.c.l.b16 %v1765
      %v1910 = vunpack.c.l.b16 %v1766
      %v1911 = vunpack.c.l.b16 %v1767
      %v1912 = vunpack.c.l.b16 %v1768
      %v1913 = vunpack.c.l.b16 %v1769
      %v1914 = vunpack.c.l.b16 %v1770
      %v1915 = vunpack.c.l.b16 %v1771
      %v1916 = vunpack.c.l.b16 %v1772
      %v1917 = vunpack.c.l.b16 %v1773
      %v1918 = vunpack.c.l.b16 %v1774
      %v1919 = vunpack.c.l.b16 %v1775
      %v1920 = vunpack.c.l.b16 %v1776
      %v1921 = vunpack.c.l.b16 %v1777
      %v1922 = vunpack.c.l.b16 %v1778
      %v1923 = vunpack.c.l.b16 %v1779
      %v1924 = vunpack.c.l.b16 %v1780
      %v1925 = vunpack.c.l.b16 %v1781
      %v1926 = vunpack.c.l.b16 %v1782
      %v1927 = vunpack.c.l.b16 %v1783
      %v1928 = vunpack.c.l.b16 %v1784
      %v1929 = vunpack.c.l.b16 %v1785
      %v1930 = vunpack.c.l.b16 %v1786
      %v1931 = vunpack.c.l.b16 %v1787
      %v1932 = vunpack.c.l.b16 %v1788
      %v1933 = vunpack.c.l.b16 %v1789
      %v1934 = vunpack.c.l.b16 %v1790
      %v1935 = vunpack.c.l.b16 %v1791
      %v1936 = vunpack.c.l.b16 %v1792
      %v1937 = vunpack.c.l.b16 %v1793
      %v1938 = vunpack.c.l.b16 %v1794
      %v1939 = vunpack.c.l.b16 %v1795
      %v1940 = vunpack.c.l.b16 %v1796
      %v1941 = vunpack.c.l.b16 %v1797
      %v1942 = vunpack.c.l.b16 %v1798
      %v1943 = vunpack.c.l.b16 %v1799
      %v1944 = vunpack.c.l.b16 %v1800
      %v1945 = vunpack.c.l.b16 %v1801
      %v1946 = vunpack.c.l.b16 %v1802
      %v1947 = vunpack.c.l.b16 %v1803
      %v1948 = vunpack.c.l.b16 %v1804
      %v1949 = vunpack.c.l.b16 %v1805
      %v1950 = vunpack.c.l.b16 %v1806
      %v1951 = vunpack.c.l.b16 %v1807
      %v1952 = vunpack.c.l.b16 %v1808
      %v1953 = vunpack.c.l.b16 %v1809
      %v1954 = vunpack.c.l.b16 %v1810
      %v1955 = vunpack.c.l.b16 %v1811
      %v1956 = vunpack.c.l.b16 %v1812
      %v1957 = vunpack.c.l.b16 %v1813
      %v1958 = vpack.c.b16 %v1887, %v1886
      %v1959 = vpack.c.b16 %v1889, %v1888
      %v1960 = vpack.c.b16 %v1891, %v1890
      %v1961 = vpack.c.b16 %v1893, %v1892
      %v1962 = vpack.c.b16 %v1895, %v1894
      %v1963 = vpack.c.b16 %v1897, %v1896
      %v1964 = vpack.c.b16 %v1899, %v1898
      %v1965 = vpack.c.b16 %v1901, %v1900
      %v1966 = vpack.c.b16 %v1903, %v1902
      %v1967 = vpack.c.b16 %v1905, %v1904
      %v1968 = vpack.c.b16 %v1907, %v1906
      %v1969 = vpack.c.b16 %v1909, %v1908
      %v1970 = vpack.c.b16 %v1911, %v1910
      %v1971 = vpack.c.b16 %v1913, %v1912
      %v1972 = vpack.c.b16 %v1915, %v1914
      %v1973 = vpack.c.b16 %v1917, %v1916
      %v1974 = vpack.c.b16 %v1919, %v1918
      %v1975 = vpack.c.b16 %v1921, %v1920
      %v1976 = vpack.c.b16 %v1923, %v1922
      %v1977 = vpack.c.b16 %v1925, %v1924
      %v1978 = vpack.c.b16 %v1927, %v1926
      %v1979 = vpack.c.b16 %v1929, %v1928
      %v1980 = vpack.c.b16 %v1931, %v1930
      %v1981 = vpack.c.b16 %v1933, %v1932
      %v1982 = vpack.c.b16 %v1935, %v1934
      %v1983 = vpack.c.b16 %v1937, %v1936
      %v1984 = vpack.c.b16 %v1939, %v1938
      %v1985 = vpack.c.b16 %v1941, %v1940
      %v1986 = vpack.c.b16 %v1943, %v1942
      %v1987 = vpack.c.b16 %v1945, %v1944
      %v1988 = vpack.c.b16 %v1947, %v1946
      %v1989 = vpack.c.b16 %v1949, %v1948
      %v1990 = vpack.c.b16 %v1951, %v1950
      %v1991 = vpack.c.b16 %v1953, %v1952
      %v1992 = vpack.c.b16 %v1955, %v1954
      %v1993 = vpack.c.b16 %v1957, %v1956
      %v2030 = vsel %vm947, %v1578, 0
      %v2032 = vsel %vm947, %v1579, 0
      %v2034 = vsel %vm947, %v1580, 0
      %v2036 = vsel %vm947, %v1581, 0
      %v2038 = vsel %vm947, %v1582, 0
      %v2040 = vsel %vm947, %v1583, 0
      %v2043 = vsel %vm947, %v1608, 0
      %v2046 = vsel %vm947, %v1637, 0
      %2048 = vmatprep.subr.bf16.mxu0 0
      %2049 = vmatpush1.bf16.msra.mxu0 %v1965
      %2050 = vmatprep.subr.bf16.mxu0 0
      %2051 = vmatpush1.bf16.msra.mxu0 %v1964
      %2052 = vmatprep.subr.bf16.mxu0 0
      %2053 = vmatpush1.bf16.msra.mxu0 %v1963
      %2054 = vmatprep.subr.bf16.mxu0 0
      %2055 = vmatpush1.bf16.msra.mxu0 %v1962
      %2056 = vmatprep.subr.bf16.mxu0 0
      %2057 = vmatpush1.bf16.msra.mxu0 %v1961
      %2058 = vmatprep.subr.bf16.mxu0 0
      %2059 = vmatpush1.bf16.msra.mxu0 %v1960
      %2060 = vmatprep.subr.bf16.mxu0 0
      %2061 = vmatpush1.bf16.msra.mxu0 %v1959
      %2062 = vmatprep.subr.bf16.mxu0 0
      %2063 = vmatpush1.bf16.msra.mxu0 %v1958
      %2064 = vmatprep.subr.bf16.mxu0 0
      %2065 = vmatpush2.bf16.msra.mxu0 %v1973
      %2066 = vmatprep.subr.bf16.mxu0 0
      %2067 = vmatpush2.bf16.msra.mxu0 %v1972
      %2068 = vmatprep.subr.bf16.mxu0 0
      %2069 = vmatpush2.bf16.msra.mxu0 %v1971
      %2070 = vmatprep.subr.bf16.mxu0 0
      %2071 = vmatpush2.bf16.msra.mxu0 %v1970
      %2072 = vmatprep.subr.bf16.mxu0 0
      %2073 = vmatpush2.bf16.msra.mxu0 %v1969
      %2074 = vmatprep.subr.bf16.mxu0 0
      %2075 = vmatpush2.bf16.msra.mxu0 %v1968
      %2076 = vmatprep.subr.bf16.mxu0 0
      %2077 = vmatpush2.bf16.msra.mxu0 %v1967
      %2078 = vmatprep.subr.bf16.mxu0 0
      %2079 = vmatpush2.bf16.msra.mxu0 %v1966
      %2080 = vmatprep.mubr.bf16.mxu0 %v1672
      %2081 = vmatmul.mubr.bf16.gmra.mxu0 %v1640
      %v2082 = vpop.f32.mrf.mxu0
      %v2083 = vadd.f32 0.0, %v2082
      %v2084 = vpop.f32.mrf.mxu0
      %v2085 = vpop.f32.mrf.mxu0
      %v2086 = vadd.f32 0.0, %v2085
      %v2087 = vpop.f32.mrf.mxu0
      %2088 = vmatprep.mubr.bf16.mxu0 %v1676
      %2089 = vmatmul.mubr.bf16.gmra.mxu0 %v1644
      %v2090 = vpop.f32.mrf.mxu0
      %v2091 = vadd.f32 0.0, %v2090
      %v2092 = vpop.f32.mrf.mxu0
      %v2093 = vpop.f32.mrf.mxu0
      %v2094 = vadd.f32 0.0, %v2093
      %v2095 = vpop.f32.mrf.mxu0
      %2096 = vmatprep.mubr.bf16.mxu0 %v1680
      %2097 = vmatmul.mubr.bf16.gmra.mxu0 %v1648
      %v2098 = vpop.f32.mrf.mxu0
      %v2099 = vadd.f32 0.0, %v2098
      %v2100 = vpop.f32.mrf.mxu0
      %v2101 = vpop.f32.mrf.mxu0
      %v2102 = vadd.f32 0.0, %v2101
      %v2103 = vpop.f32.mrf.mxu0
      %2104 = vmatprep.mubr.bf16.mxu0 %v1684
      %2105 = vmatmul.mubr.bf16.gmra.mxu0 %v1652
      %v2106 = vpop.f32.mrf.mxu0
      %v2107 = vadd.f32 0.0, %v2106
      %v2108 = vpop.f32.mrf.mxu0
      %v2109 = vpop.f32.mrf.mxu0
      %v2110 = vadd.f32 0.0, %v2109
      %v2111 = vpop.f32.mrf.mxu0
      %2112 = vmatprep.mubr.bf16.mxu0 %v1688
      %2113 = vmatmul.mubr.bf16.gmra.mxu0 %v1656
      %v2114 = vpop.f32.mrf.mxu0
      %v2115 = vadd.f32 0.0, %v2114
      %v2116 = vpop.f32.mrf.mxu0
      %v2117 = vpop.f32.mrf.mxu0
      %v2118 = vadd.f32 0.0, %v2117
      %v2119 = vpop.f32.mrf.mxu0
      %2120 = vmatprep.mubr.bf16.mxu0 %v1692
      %2121 = vmatmul.mubr.bf16.gmra.mxu0 %v1660
      %v2122 = vpop.f32.mrf.mxu0
      %v2123 = vadd.f32 0.0, %v2122
      %v2124 = vpop.f32.mrf.mxu0
      %v2125 = vpop.f32.mrf.mxu0
      %v2126 = vadd.f32 0.0, %v2125
      %v2127 = vpop.f32.mrf.mxu0
      %2128 = vmatprep.mubr.bf16.mxu0 %v1696
      %2129 = vmatmul.mubr.bf16.gmra.mxu0 %v1664
      %v2130 = vpop.f32.mrf.mxu0
      %v2131 = vadd.f32 0.0, %v2130
      %v2132 = vpop.f32.mrf.mxu0
      %v2133 = vpop.f32.mrf.mxu0
      %v2134 = vadd.f32 0.0, %v2133
      %v2135 = vpop.f32.mrf.mxu0
      %2136 = vmatprep.mubr.bf16.mxu0 %v1700
      %2137 = vmatmul.mubr.bf16.gmra.mxu0 %v1668
      %v2138 = vpop.f32.mrf.mxu0
      %v2139 = vadd.f32 0.0, %v2138
      %v2140 = vpop.f32.mrf.mxu0
      %v2141 = vpop.f32.mrf.mxu0
      %v2142 = vadd.f32 0.0, %v2141
      %v2143 = vpop.f32.mrf.mxu0
      %2144 = vdwg.mxu0
      %2145 = vmatprep.subr.bf16.mxu0 0
      %2146 = vmatpush1.bf16.msra.mxu0 %v1981
      %2147 = vmatprep.subr.bf16.mxu0 0
      %2148 = vmatpush1.bf16.msra.mxu0 %v1980
      %2149 = vmatprep.subr.bf16.mxu0 0
      %2150 = vmatpush1.bf16.msra.mxu0 %v1979
      %2151 = vmatprep.subr.bf16.mxu0 0
      %2152 = vmatpush1.bf16.msra.mxu0 %v1978
      %2153 = vmatprep.subr.bf16.mxu0 0
      %2154 = vmatpush1.bf16.msra.mxu0 %v1977
      %2155 = vmatprep.subr.bf16.mxu0 0
      %2156 = vmatpush1.bf16.msra.mxu0 %v1976
      %2157 = vmatprep.subr.bf16.mxu0 0
      %2158 = vmatpush1.bf16.msra.mxu0 %v1975
      %2159 = vmatprep.subr.bf16.mxu0 0
      %2160 = vmatpush1.bf16.msra.mxu0 %v1974
      %2161 = vmatprep.subr.bf16.mxu0 0
      %2162 = vmatpush2.bf16.msra.mxu0 %v1989
      %2163 = vmatprep.subr.bf16.mxu0 0
      %2164 = vmatpush2.bf16.msra.mxu0 %v1988
      %2165 = vmatprep.subr.bf16.mxu0 0
      %2166 = vmatpush2.bf16.msra.mxu0 %v1987
      %2167 = vmatprep.subr.bf16.mxu0 0
      %2168 = vmatpush2.bf16.msra.mxu0 %v1986
      %2169 = vmatprep.subr.bf16.mxu0 0
      %2170 = vmatpush2.bf16.msra.mxu0 %v1985
      %2171 = vmatprep.subr.bf16.mxu0 0
      %2172 = vmatpush2.bf16.msra.mxu0 %v1984
      %2173 = vmatprep.subr.bf16.mxu0 0
      %2174 = vmatpush2.bf16.msra.mxu0 %v1983
      %2175 = vmatprep.subr.bf16.mxu0 0
      %2176 = vmatpush2.bf16.msra.mxu0 %v1982
      %2177 = vmatprep.mubr.bf16.mxu0 %v1648
      %2178 = vmatmul.mubr.bf16.gmra.mxu0 %v1704
      %v2179 = vpop.f32.mrf.mxu0
      %v2180 = vadd.f32 %v2083, %v2179
      %v2181 = vpop.f32.mrf.mxu0
      %v2182 = vpop.f32.mrf.mxu0
      %v2183 = vadd.f32 %v2086, %v2182
      %v2184 = vpop.f32.mrf.mxu0
      %2185 = vmatprep.mubr.bf16.mxu0 %v1652
      %2186 = vmatmul.mubr.bf16.gmra.mxu0 %v1708
      %v2187 = vpop.f32.mrf.mxu0
      %v2188 = vadd.f32 %v2091, %v2187
      %v2189 = vpop.f32.mrf.mxu0
      %v2190 = vpop.f32.mrf.mxu0
      %v2191 = vadd.f32 %v2094, %v2190
      %v2192 = vpop.f32.mrf.mxu0
      %2193 = vmatprep.mubr.bf16.mxu0 %v1656
      %2194 = vmatmul.mubr.bf16.gmra.mxu0 %v1712
      %v2195 = vpop.f32.mrf.mxu0
      %v2196 = vadd.f32 %v2099, %v2195
      %v2197 = vpop.f32.mrf.mxu0
      %v2198 = vpop.f32.mrf.mxu0
      %v2199 = vadd.f32 %v2102, %v2198
      %v2200 = vpop.f32.mrf.mxu0
      %2201 = vmatprep.mubr.bf16.mxu0 %v1660
      %2202 = vmatmul.mubr.bf16.gmra.mxu0 %v1716
      %v2203 = vpop.f32.mrf.mxu0
      %v2204 = vadd.f32 %v2107, %v2203
      %v2205 = vpop.f32.mrf.mxu0
      %v2206 = vpop.f32.mrf.mxu0
      %v2207 = vadd.f32 %v2110, %v2206
      %v2208 = vpop.f32.mrf.mxu0
      %2209 = vmatprep.mubr.bf16.mxu0 %v1664
      %2210 = vmatmul.mubr.bf16.gmra.mxu0 %v1720
      %v2211 = vpop.f32.mrf.mxu0
      %v2212 = vadd.f32 %v2115, %v2211
      %v2213 = vpop.f32.mrf.mxu0
      %v2214 = vpop.f32.mrf.mxu0
      %v2215 = vadd.f32 %v2118, %v2214
      %v2216 = vpop.f32.mrf.mxu0
      %2217 = vmatprep.mubr.bf16.mxu0 %v1668
      %2218 = vmatmul.mubr.bf16.gmra.mxu0 %v1724
      %v2219 = vpop.f32.mrf.mxu0
      %v2220 = vadd.f32 %v2123, %v2219
      %v2221 = vpop.f32.mrf.mxu0
      %v2222 = vpop.f32.mrf.mxu0
      %v2223 = vadd.f32 %v2126, %v2222
      %v2224 = vpop.f32.mrf.mxu0
      %2225 = vmatprep.mubr.bf16.mxu0 %v1736
      %2226 = vmatmul.mubr.bf16.gmra.mxu0 %v1728
      %v2227 = vpop.f32.mrf.mxu0
      %v2228 = vadd.f32 %v2131, %v2227
      %v2229 = vpop.f32.mrf.mxu0
      %v2230 = vpop.f32.mrf.mxu0
      %v2231 = vadd.f32 %v2134, %v2230
      %v2232 = vpop.f32.mrf.mxu0
      %2233 = vmatprep.mubr.bf16.mxu0 %v1740
      %2234 = vmatmul.mubr.bf16.gmra.mxu0 %v1732
      %v2235 = vpop.f32.mrf.mxu0
      %v2236 = vadd.f32 %v2139, %v2235
      %v2237 = vpop.f32.mrf.mxu0
      %v2238 = vpop.f32.mrf.mxu0
      %v2239 = vadd.f32 %v2142, %v2238
      %v2240 = vpop.f32.mrf.mxu0
      %2241 = vdwg.mxu0
      %2242 = vmatprep.subr.bf16.mxu0 0
      %2243 = vmatpush1.bf16.msra.mxu0 0
      %2244 = vmatprep.subr.bf16.mxu0 0
      %2245 = vmatpush1.bf16.msra.mxu0 0
      %2246 = vmatprep.subr.bf16.mxu0 0
      %2247 = vmatpush1.bf16.msra.mxu0 0
      %2248 = vmatprep.subr.bf16.mxu0 0
      %2249 = vmatpush1.bf16.msra.mxu0 0
      %2250 = vmatprep.subr.bf16.mxu0 0
      %2251 = vmatpush1.bf16.msra.mxu0 %v1993
      %2252 = vmatprep.subr.bf16.mxu0 0
      %2253 = vmatpush1.bf16.msra.mxu0 %v1992
      %2254 = vmatprep.subr.bf16.mxu0 0
      %2255 = vmatpush1.bf16.msra.mxu0 %v1991
      %2256 = vmatprep.subr.bf16.mxu0 0
      %2257 = vmatpush1.bf16.msra.mxu0 %v1990
      %2258 = vmatprep.subr.bf16.mxu0 0
      %2259 = vmatpush2.bf16.msra.mxu0 0
      %2260 = vmatprep.subr.bf16.mxu0 0
      %2261 = vmatpush2.bf16.msra.mxu0 0
      %2262 = vmatprep.subr.bf16.mxu0 0
      %2263 = vmatpush2.bf16.msra.mxu0 0
      %2264 = vmatprep.subr.bf16.mxu0 0
      %2265 = vmatpush2.bf16.msra.mxu0 0
      %2266 = vmatprep.subr.bf16.mxu0 0
      %2267 = vmatpush2.bf16.msra.mxu0 0
      %2268 = vmatprep.subr.bf16.mxu0 0
      %2269 = vmatpush2.bf16.msra.mxu0 0
      %2270 = vmatprep.subr.bf16.mxu0 0
      %2271 = vmatpush2.bf16.msra.mxu0 0
      %2272 = vmatprep.subr.bf16.mxu0 0
      %2273 = vmatpush2.bf16.msra.mxu0 0
      %2274 = vmatprep.mubr.bf16.mxu0 0
      %2275 = vmatmul.mubr.bf16.gmra.mxu0 %v2030
      %v2276 = vpop.f32.mrf.mxu0
      %v2277 = vadd.f32 %v2180, %v2276
      %v2278 = vpop.f32.mrf.mxu0
      %v2279 = vpop.f32.mrf.mxu0
      %v2280 = vadd.f32 %v2183, %v2279
      %v2281 = vpop.f32.mrf.mxu0
      %2282 = vmatprep.mubr.bf16.mxu0 0
      %2283 = vmatmul.mubr.bf16.gmra.mxu0 %v2032
      %v2284 = vpop.f32.mrf.mxu0
      %v2285 = vadd.f32 %v2188, %v2284
      %v2286 = vpop.f32.mrf.mxu0
      %v2287 = vpop.f32.mrf.mxu0
      %v2288 = vadd.f32 %v2191, %v2287
      %v2289 = vpop.f32.mrf.mxu0
      %2290 = vmatprep.mubr.bf16.mxu0 0
      %2291 = vmatmul.mubr.bf16.gmra.mxu0 %v2034
      %v2292 = vpop.f32.mrf.mxu0
      %v2293 = vadd.f32 %v2196, %v2292
      %v2294 = vpop.f32.mrf.mxu0
      %v2295 = vpop.f32.mrf.mxu0
      %v2296 = vadd.f32 %v2199, %v2295
      %v2297 = vpop.f32.mrf.mxu0
      %2298 = vmatprep.mubr.bf16.mxu0 0
      %2299 = vmatmul.mubr.bf16.gmra.mxu0 %v2036
      %v2300 = vpop.f32.mrf.mxu0
      %v2301 = vadd.f32 %v2204, %v2300
      %v2302 = vpop.f32.mrf.mxu0
      %v2303 = vpop.f32.mrf.mxu0
      %v2304 = vadd.f32 %v2207, %v2303
      %v2305 = vpop.f32.mrf.mxu0
      %2306 = vmatprep.mubr.bf16.mxu0 0
      %2307 = vmatmul.mubr.bf16.gmra.mxu0 %v2038
      %v2308 = vpop.f32.mrf.mxu0
      %v2309 = vadd.f32 %v2212, %v2308
      %v2310 = vpop.f32.mrf.mxu0
      %v2311 = vpop.f32.mrf.mxu0
      %v2312 = vadd.f32 %v2215, %v2311
      %v2313 = vpop.f32.mrf.mxu0
      %2314 = vmatprep.mubr.bf16.mxu0 0
      %2315 = vmatmul.mubr.bf16.gmra.mxu0 %v2040
      %v2316 = vpop.f32.mrf.mxu0
      %v2317 = vadd.f32 %v2220, %v2316
      %v2318 = vpop.f32.mrf.mxu0
      %v2319 = vpop.f32.mrf.mxu0
      %v2320 = vadd.f32 %v2223, %v2319
      %v2321 = vpop.f32.mrf.mxu0
      %2322 = vmatprep.mubr.bf16.mxu0 0
      %2323 = vmatmul.mubr.bf16.gmra.mxu0 %v2043
      %v2324 = vpop.f32.mrf.mxu0
      %v2325 = vadd.f32 %v2228, %v2324
      %v2326 = vpop.f32.mrf.mxu0
      %v2327 = vpop.f32.mrf.mxu0
      %v2328 = vadd.f32 %v2231, %v2327
      %v2329 = vpop.f32.mrf.mxu0
      %2330 = vmatprep.mubr.bf16.mxu0 0
      %2331 = vmatmul.mubr.bf16.gmra.mxu0 %v2046
      %v2332 = vpop.f32.mrf.mxu0
      %v2333 = vadd.f32 %v2236, %v2332
      %v2334 = vpop.f32.mrf.mxu0
      %v2335 = vpop.f32.mrf.mxu0
      %v2336 = vadd.f32 %v2239, %v2335
      %v2337 = vpop.f32.mrf.mxu0
      %2338 = vdwg.mxu0
      %v2411 = vunpack.c.l.b16 %v1052
      %v2412 = vunpack.c.l.b16 %v1053
      %v2413 = vunpack.c.l.b16 %v1054
      %v2414 = vunpack.c.l.b16 %v1055
      %v2415 = vunpack.c.l.b16 %v1056
      %v2416 = vunpack.c.l.b16 %v1057
      %v2417 = vunpack.c.l.b16 %v1058
      %v2418 = vunpack.c.l.b16 %v1059
      %v2419 = vunpack.c.l.b16 %v1060
      %v2420 = vunpack.c.l.b16 %v1061
      %v2421 = vunpack.c.l.b16 %v1062
      %v2422 = vunpack.c.l.b16 %v1063
      %v2423 = vunpack.c.l.b16 %v1064
      %v2424 = vunpack.c.l.b16 %v1065
      %v2425 = vunpack.c.l.b16 %v1066
      %v2426 = vunpack.c.l.b16 %v1067
      %v2427 = vunpack.c.l.b16 %v1068
      %v2428 = vunpack.c.l.b16 %v1069
      %v2429 = vunpack.c.l.b16 %v1070
      %v2430 = vunpack.c.l.b16 %v1071
      %v2431 = vunpack.c.l.b16 %v1072
      %v2432 = vunpack.c.l.b16 %v1073
      %v2433 = vunpack.c.l.b16 %v1074
      %v2434 = vunpack.c.l.b16 %v1075
      %v2435 = vunpack.c.l.b16 %v1076
      %v2436 = vunpack.c.l.b16 %v1077
      %v2437 = vunpack.c.l.b16 %v1078
      %v2438 = vunpack.c.l.b16 %v1079
      %v2439 = vunpack.c.l.b16 %v1080
      %v2440 = vunpack.c.l.b16 %v1081
      %v2441 = vunpack.c.l.b16 %v1082
      %v2442 = vunpack.c.l.b16 %v1083
      %v2443 = vunpack.c.l.b16 %v1084
      %v2444 = vunpack.c.l.b16 %v1085
      %v2445 = vunpack.c.l.b16 %v1086
      %v2446 = vunpack.c.l.b16 %v1087
      %v2447 = vunpack.c.l.b16 %v1088
      %v2448 = vunpack.c.l.b16 %v1089
      %v2449 = vunpack.c.l.b16 %v1090
      %v2450 = vunpack.c.l.b16 %v1091
      %v2451 = vunpack.c.l.b16 %v1092
      %v2452 = vunpack.c.l.b16 %v1093
      %v2453 = vunpack.c.l.b16 %v1094
      %v2454 = vunpack.c.l.b16 %v1095
      %v2455 = vunpack.c.l.b16 %v1096
      %v2456 = vunpack.c.l.b16 %v1097
      %v2457 = vunpack.c.l.b16 %v1098
      %v2458 = vunpack.c.l.b16 %v1099
      %v2459 = vunpack.c.l.b16 %v1100
      %v2460 = vunpack.c.l.b16 %v1101
      %v2461 = vunpack.c.l.b16 %v1102
      %v2462 = vunpack.c.l.b16 %v1103
      %v2463 = vunpack.c.l.b16 %v1104
      %v2464 = vunpack.c.l.b16 %v1105
      %v2465 = vunpack.c.l.b16 %v1106
      %v2466 = vunpack.c.l.b16 %v1107
      %v2467 = vunpack.c.l.b16 %v1108
      %v2468 = vunpack.c.l.b16 %v1109
      %v2469 = vunpack.c.l.b16 %v1110
      %v2470 = vunpack.c.l.b16 %v1111
      %v2471 = vunpack.c.l.b16 %v1112
      %v2472 = vunpack.c.l.b16 %v1113
      %v2473 = vunpack.c.l.b16 %v1114
      %v2474 = vunpack.c.l.b16 %v1115
      %v2475 = vunpack.c.l.b16 %v1116
      %v2476 = vunpack.c.l.b16 %v1117
      %v2477 = vunpack.c.l.b16 %v1118
      %v2478 = vunpack.c.l.b16 %v1119
      %v2479 = vunpack.c.l.b16 %v1120
      %v2480 = vunpack.c.l.b16 %v1121
      %v2481 = vunpack.c.l.b16 %v1122
      %v2482 = vunpack.c.l.b16 %v1123
      %v2483 = vpack.c.b16 %v2412, %v2411
      %v2484 = vpack.c.b16 %v2414, %v2413
      %v2485 = vpack.c.b16 %v2416, %v2415
      %v2486 = vpack.c.b16 %v2418, %v2417
      %v2487 = vpack.c.b16 %v2420, %v2419
      %v2488 = vpack.c.b16 %v2422, %v2421
      %v2489 = vpack.c.b16 %v2424, %v2423
      %v2490 = vpack.c.b16 %v2426, %v2425
      %v2491 = vpack.c.b16 %v2428, %v2427
      %v2492 = vpack.c.b16 %v2430, %v2429
      %v2493 = vpack.c.b16 %v2432, %v2431
      %v2494 = vpack.c.b16 %v2434, %v2433
      %v2495 = vpack.c.b16 %v2436, %v2435
      %v2496 = vpack.c.b16 %v2438, %v2437
      %v2497 = vpack.c.b16 %v2440, %v2439
      %v2498 = vpack.c.b16 %v2442, %v2441
      %v2499 = vpack.c.b16 %v2444, %v2443
      %v2500 = vpack.c.b16 %v2446, %v2445
      %v2501 = vpack.c.b16 %v2448, %v2447
      %v2502 = vpack.c.b16 %v2450, %v2449
      %v2503 = vpack.c.b16 %v2452, %v2451
      %v2504 = vpack.c.b16 %v2454, %v2453
      %v2505 = vpack.c.b16 %v2456, %v2455
      %v2506 = vpack.c.b16 %v2458, %v2457
      %v2507 = vpack.c.b16 %v2460, %v2459
      %v2508 = vpack.c.b16 %v2462, %v2461
      %v2509 = vpack.c.b16 %v2464, %v2463
      %v2510 = vpack.c.b16 %v2466, %v2465
      %v2511 = vpack.c.b16 %v2468, %v2467
      %v2512 = vpack.c.b16 %v2470, %v2469
      %v2513 = vpack.c.b16 %v2472, %v2471
      %v2514 = vpack.c.b16 %v2474, %v2473
      %v2515 = vpack.c.b16 %v2476, %v2475
      %v2516 = vpack.c.b16 %v2478, %v2477
      %v2517 = vpack.c.b16 %v2480, %v2479
      %v2518 = vpack.c.b16 %v2482, %v2481
      %v2555 = vsel %vm947, %v887, 0
      %v2557 = vsel %vm947, %v888, 0
      %v2559 = vsel %vm947, %v889, 0
      %v2561 = vsel %vm947, %v890, 0
      %v2563 = vsel %vm947, %v891, 0
      %v2565 = vsel %vm947, %v892, 0
      %v2568 = vsel %vm947, %v917, 0
      %v2571 = vsel %vm947, %v946, 0
      %2573 = vmatprep.subr.bf16.mxu0 0
      %2574 = vmatpush1.bf16.msra.mxu0 %v2490
      %2575 = vmatprep.subr.bf16.mxu0 0
      %2576 = vmatpush1.bf16.msra.mxu0 %v2489
      %2577 = vmatprep.subr.bf16.mxu0 0
      %2578 = vmatpush1.bf16.msra.mxu0 %v2488
      %2579 = vmatprep.subr.bf16.mxu0 0
      %2580 = vmatpush1.bf16.msra.mxu0 %v2487
      %2581 = vmatprep.subr.bf16.mxu0 0
      %2582 = vmatpush1.bf16.msra.mxu0 %v2486
      %2583 = vmatprep.subr.bf16.mxu0 0
      %2584 = vmatpush1.bf16.msra.mxu0 %v2485
      %2585 = vmatprep.subr.bf16.mxu0 0
      %2586 = vmatpush1.bf16.msra.mxu0 %v2484
      %2587 = vmatprep.subr.bf16.mxu0 0
      %2588 = vmatpush1.bf16.msra.mxu0 %v2483
      %2589 = vmatprep.subr.bf16.mxu0 0
      %2590 = vmatpush2.bf16.msra.mxu0 %v2498
      %2591 = vmatprep.subr.bf16.mxu0 0
      %2592 = vmatpush2.bf16.msra.mxu0 %v2497
      %2593 = vmatprep.subr.bf16.mxu0 0
      %2594 = vmatpush2.bf16.msra.mxu0 %v2496
      %2595 = vmatprep.subr.bf16.mxu0 0
      %2596 = vmatpush2.bf16.msra.mxu0 %v2495
      %2597 = vmatprep.subr.bf16.mxu0 0
      %2598 = vmatpush2.bf16.msra.mxu0 %v2494
      %2599 = vmatprep.subr.bf16.mxu0 0
      %2600 = vmatpush2.bf16.msra.mxu0 %v2493
      %2601 = vmatprep.subr.bf16.mxu0 0
      %2602 = vmatpush2.bf16.msra.mxu0 %v2492
      %2603 = vmatprep.subr.bf16.mxu0 0
      %2604 = vmatpush2.bf16.msra.mxu0 %v2491
      %2605 = vmatprep.mubr.bf16.mxu0 %v982
      %2606 = vmatmul.mubr.bf16.gmra.mxu0 %v950
      %v2607 = vpop.f32.mrf.mxu0
      %v2608 = vadd.f32 %v2277, %v2607
      %v2609 = vpop.f32.mrf.mxu0
      %v2610 = vpop.f32.mrf.mxu0
      %v2611 = vadd.f32 %v2280, %v2610
      %v2612 = vpop.f32.mrf.mxu0
      %2613 = vmatprep.mubr.bf16.mxu0 %v986
      %2614 = vmatmul.mubr.bf16.gmra.mxu0 %v954
      %v2615 = vpop.f32.mrf.mxu0
      %v2616 = vadd.f32 %v2285, %v2615
      %v2617 = vpop.f32.mrf.mxu0
      %v2618 = vpop.f32.mrf.mxu0
      %v2619 = vadd.f32 %v2288, %v2618
      %v2620 = vpop.f32.mrf.mxu0
      %2621 = vmatprep.mubr.bf16.mxu0 %v990
      %2622 = vmatmul.mubr.bf16.gmra.mxu0 %v958
      %v2623 = vpop.f32.mrf.mxu0
      %v2624 = vadd.f32 %v2293, %v2623
      %v2625 = vpop.f32.mrf.mxu0
      %v2626 = vpop.f32.mrf.mxu0
      %v2627 = vadd.f32 %v2296, %v2626
      %v2628 = vpop.f32.mrf.mxu0
      %2629 = vmatprep.mubr.bf16.mxu0 %v994
      %2630 = vmatmul.mubr.bf16.gmra.mxu0 %v962
      %v2631 = vpop.f32.mrf.mxu0
      %v2632 = vadd.f32 %v2301, %v2631
      %v2633 = vpop.f32.mrf.mxu0
      %v2634 = vpop.f32.mrf.mxu0
      %v2635 = vadd.f32 %v2304, %v2634
      %v2636 = vpop.f32.mrf.mxu0
      %2637 = vmatprep.mubr.bf16.mxu0 %v998
      %2638 = vmatmul.mubr.bf16.gmra.mxu0 %v966
      %v2639 = vpop.f32.mrf.mxu0
      %v2640 = vadd.f32 %v2309, %v2639
      %v2641 = vpop.f32.mrf.mxu0
      %v2642 = vpop.f32.mrf.mxu0
      %v2643 = vadd.f32 %v2312, %v2642
      %v2644 = vpop.f32.mrf.mxu0
      %2645 = vmatprep.mubr.bf16.mxu0 %v1002
      %2646 = vmatmul.mubr.bf16.gmra.mxu0 %v970
      %v2647 = vpop.f32.mrf.mxu0
      %v2648 = vadd.f32 %v2317, %v2647
      %v2649 = vpop.f32.mrf.mxu0
      %v2650 = vpop.f32.mrf.mxu0
      %v2651 = vadd.f32 %v2320, %v2650
      %v2652 = vpop.f32.mrf.mxu0
      %2653 = vmatprep.mubr.bf16.mxu0 %v1006
      %2654 = vmatmul.mubr.bf16.gmra.mxu0 %v974
      %v2655 = vpop.f32.mrf.mxu0
      %v2656 = vadd.f32 %v2325, %v2655
      %v2657 = vpop.f32.mrf.mxu0
      %v2658 = vpop.f32.mrf.mxu0
      %v2659 = vadd.f32 %v2328, %v2658
      %v2660 = vpop.f32.mrf.mxu0
      %2661 = vmatprep.mubr.bf16.mxu0 %v1010
      %2662 = vmatmul.mubr.bf16.gmra.mxu0 %v978
      %v2663 = vpop.f32.mrf.mxu0
      %v2664 = vadd.f32 %v2333, %v2663
      %v2665 = vpop.f32.mrf.mxu0
      %v2666 = vpop.f32.mrf.mxu0
      %v2667 = vadd.f32 %v2336, %v2666
      %v2668 = vpop.f32.mrf.mxu0
      %2669 = vdwg.mxu0
      %2670 = vmatprep.subr.bf16.mxu0 0
      %2671 = vmatpush1.bf16.msra.mxu0 %v2506
      %2672 = vmatprep.subr.bf16.mxu0 0
      %2673 = vmatpush1.bf16.msra.mxu0 %v2505
      %2674 = vmatprep.subr.bf16.mxu0 0
      %2675 = vmatpush1.bf16.msra.mxu0 %v2504
      %2676 = vmatprep.subr.bf16.mxu0 0
      %2677 = vmatpush1.bf16.msra.mxu0 %v2503
      %2678 = vmatprep.subr.bf16.mxu0 0
      %2679 = vmatpush1.bf16.msra.mxu0 %v2502
      %2680 = vmatprep.subr.bf16.mxu0 0
      %2681 = vmatpush1.bf16.msra.mxu0 %v2501
      %2682 = vmatprep.subr.bf16.mxu0 0
      %2683 = vmatpush1.bf16.msra.mxu0 %v2500
      %2684 = vmatprep.subr.bf16.mxu0 0
      %2685 = vmatpush1.bf16.msra.mxu0 %v2499
      %2686 = vmatprep.subr.bf16.mxu0 0
      %2687 = vmatpush2.bf16.msra.mxu0 %v2514
      %2688 = vmatprep.subr.bf16.mxu0 0
      %2689 = vmatpush2.bf16.msra.mxu0 %v2513
      %2690 = vmatprep.subr.bf16.mxu0 0
      %2691 = vmatpush2.bf16.msra.mxu0 %v2512
      %2692 = vmatprep.subr.bf16.mxu0 0
      %2693 = vmatpush2.bf16.msra.mxu0 %v2511
      %2694 = vmatprep.subr.bf16.mxu0 0
      %2695 = vmatpush2.bf16.msra.mxu0 %v2510
      %2696 = vmatprep.subr.bf16.mxu0 0
      %2697 = vmatpush2.bf16.msra.mxu0 %v2509
      %2698 = vmatprep.subr.bf16.mxu0 0
      %2699 = vmatpush2.bf16.msra.mxu0 %v2508
      %2700 = vmatprep.subr.bf16.mxu0 0
      %2701 = vmatpush2.bf16.msra.mxu0 %v2507
      %2702 = vmatprep.mubr.bf16.mxu0 %v958
      %2703 = vmatmul.mubr.bf16.gmra.mxu0 %v1014
      %v2704 = vpop.f32.mrf.mxu0
      %v2705 = vadd.f32 %v2608, %v2704
      %v2706 = vpop.f32.mrf.mxu0
      %v2707 = vpop.f32.mrf.mxu0
      %v2708 = vadd.f32 %v2611, %v2707
      %v2709 = vpop.f32.mrf.mxu0
      %2710 = vmatprep.mubr.bf16.mxu0 %v962
      %2711 = vmatmul.mubr.bf16.gmra.mxu0 %v1018
      %v2712 = vpop.f32.mrf.mxu0
      %v2713 = vadd.f32 %v2616, %v2712
      %v2714 = vpop.f32.mrf.mxu0
      %v2715 = vpop.f32.mrf.mxu0
      %v2716 = vadd.f32 %v2619, %v2715
      %v2717 = vpop.f32.mrf.mxu0
      %2718 = vmatprep.mubr.bf16.mxu0 %v966
      %2719 = vmatmul.mubr.bf16.gmra.mxu0 %v1022
      %v2720 = vpop.f32.mrf.mxu0
      %v2721 = vadd.f32 %v2624, %v2720
      %v2722 = vpop.f32.mrf.mxu0
      %v2723 = vpop.f32.mrf.mxu0
      %v2724 = vadd.f32 %v2627, %v2723
      %v2725 = vpop.f32.mrf.mxu0
      %2726 = vmatprep.mubr.bf16.mxu0 %v970
      %2727 = vmatmul.mubr.bf16.gmra.mxu0 %v1026
      %v2728 = vpop.f32.mrf.mxu0
      %v2729 = vadd.f32 %v2632, %v2728
      %v2730 = vpop.f32.mrf.mxu0
      %v2731 = vpop.f32.mrf.mxu0
      %v2732 = vadd.f32 %v2635, %v2731
      %v2733 = vpop.f32.mrf.mxu0
      %2734 = vmatprep.mubr.bf16.mxu0 %v974
      %2735 = vmatmul.mubr.bf16.gmra.mxu0 %v1030
      %v2736 = vpop.f32.mrf.mxu0
      %v2737 = vadd.f32 %v2640, %v2736
      %v2738 = vpop.f32.mrf.mxu0
      %v2739 = vpop.f32.mrf.mxu0
      %v2740 = vadd.f32 %v2643, %v2739
      %v2741 = vpop.f32.mrf.mxu0
      %2742 = vmatprep.mubr.bf16.mxu0 %v978
      %2743 = vmatmul.mubr.bf16.gmra.mxu0 %v1034
      %v2744 = vpop.f32.mrf.mxu0
      %v2745 = vadd.f32 %v2648, %v2744
      %v2746 = vpop.f32.mrf.mxu0
      %v2747 = vpop.f32.mrf.mxu0
      %v2748 = vadd.f32 %v2651, %v2747
      %v2749 = vpop.f32.mrf.mxu0
      %2750 = vmatprep.mubr.bf16.mxu0 %v1046
      %2751 = vmatmul.mubr.bf16.gmra.mxu0 %v1038
      %v2752 = vpop.f32.mrf.mxu0
      %v2753 = vadd.f32 %v2656, %v2752
      %v2754 = vpop.f32.mrf.mxu0
      %v2755 = vpop.f32.mrf.mxu0
      %v2756 = vadd.f32 %v2659, %v2755
      %v2757 = vpop.f32.mrf.mxu0
      %2758 = vmatprep.mubr.bf16.mxu0 %v1050
      %2759 = vmatmul.mubr.bf16.gmra.mxu0 %v1042
      %v2760 = vpop.f32.mrf.mxu0
      %v2761 = vadd.f32 %v2664, %v2760
      %v2762 = vpop.f32.mrf.mxu0
      %v2763 = vpop.f32.mrf.mxu0
      %v2764 = vadd.f32 %v2667, %v2763
      %v2765 = vpop.f32.mrf.mxu0
      %2766 = vdwg.mxu0
      %2767 = vmatprep.subr.bf16.mxu0 0
      %2768 = vmatpush1.bf16.msra.mxu0 0
      %2769 = vmatprep.subr.bf16.mxu0 0
      %2770 = vmatpush1.bf16.msra.mxu0 0
      %2771 = vmatprep.subr.bf16.mxu0 0
      %2772 = vmatpush1.bf16.msra.mxu0 0
      %2773 = vmatprep.subr.bf16.mxu0 0
      %2774 = vmatpush1.bf16.msra.mxu0 0
      %2775 = vmatprep.subr.bf16.mxu0 0
      %2776 = vmatpush1.bf16.msra.mxu0 %v2518
      %2777 = vmatprep.subr.bf16.mxu0 0
      %2778 = vmatpush1.bf16.msra.mxu0 %v2517
      %2779 = vmatprep.subr.bf16.mxu0 0
      %2780 = vmatpush1.bf16.msra.mxu0 %v2516
      %2781 = vmatprep.subr.bf16.mxu0 0
      %2782 = vmatpush1.bf16.msra.mxu0 %v2515
      %2783 = vmatprep.subr.bf16.mxu0 0
      %2784 = vmatpush2.bf16.msra.mxu0 0
      %2785 = vmatprep.subr.bf16.mxu0 0
      %2786 = vmatpush2.bf16.msra.mxu0 0
      %2787 = vmatprep.subr.bf16.mxu0 0
      %2788 = vmatpush2.bf16.msra.mxu0 0
      %2789 = vmatprep.subr.bf16.mxu0 0
      %2790 = vmatpush2.bf16.msra.mxu0 0
      %2791 = vmatprep.subr.bf16.mxu0 0
      %2792 = vmatpush2.bf16.msra.mxu0 0
      %2793 = vmatprep.subr.bf16.mxu0 0
      %2794 = vmatpush2.bf16.msra.mxu0 0
      %2795 = vmatprep.subr.bf16.mxu0 0
      %2796 = vmatpush2.bf16.msra.mxu0 0
      %2797 = vmatprep.subr.bf16.mxu0 0
      %2798 = vmatpush2.bf16.msra.mxu0 0
      %2799 = vmatprep.mubr.bf16.mxu0 0
      %2800 = vmatmul.mubr.bf16.gmra.mxu0 %v2555
      %v2801 = vpop.f32.mrf.mxu0
      %v2802 = vadd.f32 %v2705, %v2801
      %v2803 = vpop.f32.mrf.mxu0
      %v2804 = vpop.f32.mrf.mxu0
      %v2805 = vadd.f32 %v2708, %v2804
      %v2806 = vpop.f32.mrf.mxu0
      %2807 = vmatprep.mubr.bf16.mxu0 0
      %2808 = vmatmul.mubr.bf16.gmra.mxu0 %v2557
      %v2809 = vpop.f32.mrf.mxu0
      %v2810 = vadd.f32 %v2713, %v2809
      %v2811 = vpop.f32.mrf.mxu0
      %v2812 = vpop.f32.mrf.mxu0
      %v2813 = vadd.f32 %v2716, %v2812
      %v2814 = vpop.f32.mrf.mxu0
      %2815 = vmatprep.mubr.bf16.mxu0 0
      %2816 = vmatmul.mubr.bf16.gmra.mxu0 %v2559
      %v2817 = vpop.f32.mrf.mxu0
      %v2818 = vadd.f32 %v2721, %v2817
      %v2819 = vpop.f32.mrf.mxu0
      %v2820 = vpop.f32.mrf.mxu0
      %v2821 = vadd.f32 %v2724, %v2820
      %v2822 = vpop.f32.mrf.mxu0
      %2823 = vmatprep.mubr.bf16.mxu0 0
      %2824 = vmatmul.mubr.bf16.gmra.mxu0 %v2561
      %v2825 = vpop.f32.mrf.mxu0
      %v2826 = vadd.f32 %v2729, %v2825
      %v2827 = vpop.f32.mrf.mxu0
      %v2828 = vpop.f32.mrf.mxu0
      %v2829 = vadd.f32 %v2732, %v2828
      %v2830 = vpop.f32.mrf.mxu0
      %2831 = vmatprep.mubr.bf16.mxu0 0
      %2832 = vmatmul.mubr.bf16.gmra.mxu0 %v2563
      %v2833 = vpop.f32.mrf.mxu0
      %v2834 = vadd.f32 %v2737, %v2833
      %v2835 = vpop.f32.mrf.mxu0
      %v2836 = vpop.f32.mrf.mxu0
      %v2837 = vadd.f32 %v2740, %v2836
      %v2838 = vpop.f32.mrf.mxu0
      %2839 = vmatprep.mubr.bf16.mxu0 0
      %2840 = vmatmul.mubr.bf16.gmra.mxu0 %v2565
      %v2841 = vpop.f32.mrf.mxu0
      %v2842 = vadd.f32 %v2745, %v2841
      %v2843 = vpop.f32.mrf.mxu0
      %v2844 = vpop.f32.mrf.mxu0
      %v2845 = vadd.f32 %v2748, %v2844
      %v2846 = vpop.f32.mrf.mxu0
      %2847 = vmatprep.mubr.bf16.mxu0 0
      %2848 = vmatmul.mubr.bf16.gmra.mxu0 %v2568
      %v2849 = vpop.f32.mrf.mxu0
      %v2850 = vadd.f32 %v2753, %v2849
      %v2851 = vpop.f32.mrf.mxu0
      %v2852 = vpop.f32.mrf.mxu0
      %v2853 = vadd.f32 %v2756, %v2852
      %v2854 = vpop.f32.mrf.mxu0
      %2855 = vmatprep.mubr.bf16.mxu0 0
      %2856 = vmatmul.mubr.bf16.gmra.mxu0 %v2571
      %v2857 = vpop.f32.mrf.mxu0
      %v2858 = vadd.f32 %v2761, %v2857
      %v2859 = vpop.f32.mrf.mxu0
      %v2860 = vpop.f32.mrf.mxu0
      %v2861 = vadd.f32 %v2764, %v2860
      %v2862 = vpop.f32.mrf.mxu0
      %2863 = vdwg.mxu0
      %s2864 = smul.addr %s426, 4
      %s2865 = scalar_lea.vmem %s394, %s2864
      %v2866 = vld [vmem:[%s2865] sm:$0xf]
      %v2867 = vld [vmem:[%s2865 + $0x4] sm:$0xf]
      %v2868 = vld [vmem:[%s2865 + $0x8] sm:$0x1]
      %v2869 = vld [vmem:[%s2865 + $0xc] sm:$0xf]
      %v2870 = vld [vmem:[%s2865 + $0x10] sm:$0xf]
      %v2871 = vld [vmem:[%s2865 + $0x14] sm:$0x1]
      %v2872 = vld [vmem:[%s2865 + $0x18] sm:$0xf]
      %v2873 = vld [vmem:[%s2865 + $0x1c] sm:$0xf]
      %v2874 = vld [vmem:[%s2865 + $0x20] sm:$0x1]
      %v2875 = vld [vmem:[%s2865 + $0x24] sm:$0xf]
      %v2876 = vld [vmem:[%s2865 + $0x28] sm:$0xf]
      %v2877 = vld [vmem:[%s2865 + $0x2c] sm:$0x1]
      %v2878 = vld [vmem:[%s2865 + $0x30] sm:$0xf]
      %v2879 = vld [vmem:[%s2865 + $0x34] sm:$0xf]
      %v2880 = vld [vmem:[%s2865 + $0x38] sm:$0x1]
      %v2881 = vld [vmem:[%s2865 + $0x3c] sm:$0xf]
      %v2882 = vld [vmem:[%s2865 + $0x40] sm:$0xf]
      %v2883 = vld [vmem:[%s2865 + $0x44] sm:$0x1]
      %v2884 = vld [vmem:[%s2865 + $0x48] sm:$0xf]
      %v2885 = vld [vmem:[%s2865 + $0x4c] sm:$0xf]
      %v2886 = vld [vmem:[%s2865 + $0x50] sm:$0x1]
      %v2887 = vld [vmem:[%s2865 + $0x54] sm:$0xf]
      %v2888 = vld [vmem:[%s2865 + $0x58] sm:$0xf]
      %v2889 = vld [vmem:[%s2865 + $0x5c] sm:$0x1]
      %v2890 = vld [vmem:[%s2865 + $0x60] sm:$0xf]
      %v2891 = vld [vmem:[%s2865 + $0x64] sm:$0xf]
      %v2892 = vld [vmem:[%s2865 + $0x68] sm:$0x1]
      %v2893 = vld [vmem:[%s2865 + $0x6c] sm:$0xf]
      %v2894 = vld [vmem:[%s2865 + $0x70] sm:$0xf]
      %v2895 = vld [vmem:[%s2865 + $0x74] sm:$0x1]
      %v2897 = vshrl.u32 %v2866, 16
      %v2899 = vrot.slane %v2897, 4
      %v2900 = vshll.u32 %v2866, 16
      %v2902 = vrot.slane %v2900, 5
      %v2903 = vor.u32 %v2899, %v2902
      %v2904 = vrot.slane %v2903, 4
      %v2906 = vshll.u32 %v2867, 16
      %v2908 = vrot.slane %v2906, 5
      %v2909 = vsel %vm461, %v2904, %v2908
      %v2910 = vshrl.u32 %v2867, 16
      %v2912 = vrot.slane %v2910, 4
      %v2913 = vor.u32 %v2912, %v2908
      %v2914 = vrot.slane %v2913, 4
      %v2916 = vshll.u32 %v2868, 16
      %v2918 = vrot.slane %v2916, 5
      %v2919 = vsel %vm461, %v2914, %v2918
      %v2921 = vshrl.u32 %v2869, 16
      %v2923 = vrot.slane %v2921, 4
      %v2924 = vshll.u32 %v2869, 16
      %v2926 = vrot.slane %v2924, 5
      %v2927 = vor.u32 %v2923, %v2926
      %v2928 = vrot.slane %v2927, 4
      %v2930 = vshll.u32 %v2870, 16
      %v2932 = vrot.slane %v2930, 5
      %v2933 = vsel %vm461, %v2928, %v2932
      %v2934 = vshrl.u32 %v2870, 16
      %v2936 = vrot.slane %v2934, 4
      %v2937 = vor.u32 %v2936, %v2932
      %v2938 = vrot.slane %v2937, 4
      %v2940 = vshll.u32 %v2871, 16
      %v2942 = vrot.slane %v2940, 5
      %v2943 = vsel %vm461, %v2938, %v2942
      %v2945 = vshrl.u32 %v2872, 16
      %v2947 = vrot.slane %v2945, 4
      %v2948 = vshll.u32 %v2872, 16
      %v2950 = vrot.slane %v2948, 5
      %v2951 = vor.u32 %v2947, %v2950
      %v2952 = vrot.slane %v2951, 4
      %v2954 = vshll.u32 %v2873, 16
      %v2956 = vrot.slane %v2954, 5
      %v2957 = vsel %vm461, %v2952, %v2956
      %v2958 = vshrl.u32 %v2873, 16
      %v2960 = vrot.slane %v2958, 4
      %v2961 = vor.u32 %v2960, %v2956
      %v2962 = vrot.slane %v2961, 4
      %v2964 = vshll.u32 %v2874, 16
      %v2966 = vrot.slane %v2964, 5
      %v2967 = vsel %vm461, %v2962, %v2966
      %v2969 = vshrl.u32 %v2875, 16
      %v2971 = vrot.slane %v2969, 4
      %v2972 = vshll.u32 %v2875, 16
      %v2974 = vrot.slane %v2972, 5
      %v2975 = vor.u32 %v2971, %v2974
      %v2976 = vrot.slane %v2975, 4
      %v2978 = vshll.u32 %v2876, 16
      %v2980 = vrot.slane %v2978, 5
      %v2981 = vsel %vm461, %v2976, %v2980
      %v2982 = vshrl.u32 %v2876, 16
      %v2984 = vrot.slane %v2982, 4
      %v2985 = vor.u32 %v2984, %v2980
      %v2986 = vrot.slane %v2985, 4
      %v2988 = vshll.u32 %v2877, 16
      %v2990 = vrot.slane %v2988, 5
      %v2991 = vsel %vm461, %v2986, %v2990
      %v2993 = vshrl.u32 %v2878, 16
      %v2995 = vrot.slane %v2993, 4
      %v2996 = vshll.u32 %v2878, 16
      %v2998 = vrot.slane %v2996, 5
      %v2999 = vor.u32 %v2995, %v2998
      %v3000 = vrot.slane %v2999, 4
      %v3002 = vshll.u32 %v2879, 16
      %v3004 = vrot.slane %v3002, 5
      %v3005 = vsel %vm461, %v3000, %v3004
      %v3006 = vshrl.u32 %v2879, 16
      %v3008 = vrot.slane %v3006, 4
      %v3009 = vor.u32 %v3008, %v3004
      %v3010 = vrot.slane %v3009, 4
      %v3012 = vshll.u32 %v2880, 16
      %v3014 = vrot.slane %v3012, 5
      %v3015 = vsel %vm461, %v3010, %v3014
      %v3017 = vshrl.u32 %v2881, 16
      %v3019 = vrot.slane %v3017, 4
      %v3020 = vshll.u32 %v2881, 16
      %v3022 = vrot.slane %v3020, 5
      %v3023 = vor.u32 %v3019, %v3022
      %v3024 = vrot.slane %v3023, 4
      %v3026 = vshll.u32 %v2882, 16
      %v3028 = vrot.slane %v3026, 5
      %v3029 = vsel %vm461, %v3024, %v3028
      %v3030 = vshrl.u32 %v2882, 16
      %v3032 = vrot.slane %v3030, 4
      %v3033 = vor.u32 %v3032, %v3028
      %v3034 = vrot.slane %v3033, 4
      %v3036 = vshll.u32 %v2883, 16
      %v3038 = vrot.slane %v3036, 5
      %v3039 = vsel %vm461, %v3034, %v3038
      %v3041 = vshrl.u32 %v2884, 16
      %v3043 = vrot.slane %v3041, 4
      %v3044 = vshll.u32 %v2884, 16
      %v3046 = vrot.slane %v3044, 5
      %v3047 = vor.u32 %v3043, %v3046
      %v3048 = vrot.slane %v3047, 4
      %v3050 = vshll.u32 %v2885, 16
      %v3052 = vrot.slane %v3050, 5
      %v3053 = vsel %vm461, %v3048, %v3052
      %v3054 = vshrl.u32 %v2885, 16
      %v3056 = vrot.slane %v3054, 4
      %v3057 = vor.u32 %v3056, %v3052
      %v3058 = vrot.slane %v3057, 4
      %v3060 = vshll.u32 %v2886, 16
      %v3062 = vrot.slane %v3060, 5
      %v3063 = vsel %vm461, %v3058, %v3062
      %v3065 = vshrl.u32 %v2887, 16
      %v3067 = vrot.slane %v3065, 4
      %v3068 = vshll.u32 %v2887, 16
      %v3070 = vrot.slane %v3068, 5
      %v3071 = vor.u32 %v3067, %v3070
      %v3072 = vrot.slane %v3071, 4
      %v3074 = vshll.u32 %v2888, 16
      %v3076 = vrot.slane %v3074, 5
      %v3077 = vsel %vm461, %v3072, %v3076
      %v3078 = vshrl.u32 %v2888, 16
      %v3080 = vrot.slane %v3078, 4
      %v3081 = vor.u32 %v3080, %v3076
      %v3082 = vrot.slane %v3081, 4
      %v3084 = vshll.u32 %v2889, 16
      %v3086 = vrot.slane %v3084, 5
      %v3087 = vsel %vm461, %v3082, %v3086
      %v3112 = vrot.slane %v2866, 5
      %v3113 = vrot.slane %v3112, 4
      %v3114 = vrot.slane %v2867, 5
      %v3115 = vsel %vm680, %v3113, %v3114
      %v3116 = vrot.slane %v3114, 4
      %v3117 = vrot.slane %v2868, 5
      %v3118 = vsel %vm680, %v3116, %v3117
      %v3119 = vrot.slane %v2869, 5
      %v3120 = vrot.slane %v3119, 4
      %v3121 = vrot.slane %v2870, 5
      %v3122 = vsel %vm680, %v3120, %v3121
      %v3123 = vrot.slane %v3121, 4
      %v3124 = vrot.slane %v2871, 5
      %v3125 = vsel %vm680, %v3123, %v3124
      %v3126 = vrot.slane %v2872, 5
      %v3127 = vrot.slane %v3126, 4
      %v3128 = vrot.slane %v2873, 5
      %v3129 = vsel %vm680, %v3127, %v3128
      %v3130 = vrot.slane %v3128, 4
      %v3131 = vrot.slane %v2874, 5
      %v3132 = vsel %vm680, %v3130, %v3131
      %v3133 = vrot.slane %v2875, 5
      %v3134 = vrot.slane %v3133, 4
      %v3135 = vrot.slane %v2876, 5
      %v3136 = vsel %vm680, %v3134, %v3135
      %v3137 = vrot.slane %v3135, 4
      %v3138 = vrot.slane %v2877, 5
      %v3139 = vsel %vm680, %v3137, %v3138
      %v3140 = vrot.slane %v2878, 5
      %v3141 = vrot.slane %v3140, 4
      %v3142 = vrot.slane %v2879, 5
      %v3143 = vsel %vm680, %v3141, %v3142
      %v3144 = vrot.slane %v3142, 4
      %v3145 = vrot.slane %v2880, 5
      %v3146 = vsel %vm680, %v3144, %v3145
      %v3147 = vrot.slane %v2881, 5
      %v3148 = vrot.slane %v3147, 4
      %v3149 = vrot.slane %v2882, 5
      %v3150 = vsel %vm680, %v3148, %v3149
      %v3151 = vrot.slane %v3149, 4
      %v3152 = vrot.slane %v2883, 5
      %v3153 = vsel %vm680, %v3151, %v3152
      %v3154 = vrot.slane %v2884, 5
      %v3155 = vrot.slane %v3154, 4
      %v3156 = vrot.slane %v2885, 5
      %v3157 = vsel %vm680, %v3155, %v3156
      %v3158 = vrot.slane %v3156, 4
      %v3159 = vrot.slane %v2886, 5
      %v3160 = vsel %vm680, %v3158, %v3159
      %v3161 = vrot.slane %v2887, 5
      %v3162 = vrot.slane %v3161, 4
      %v3163 = vrot.slane %v2888, 5
      %v3164 = vsel %vm680, %v3162, %v3163
      %v3165 = vrot.slane %v3163, 4
      %v3166 = vrot.slane %v2889, 5
      %v3167 = vsel %vm680, %v3165, %v3166
      %v3169 = vshrl.u32 %v2890, 16
      %v3171 = vrot.slane %v3169, 4
      %v3172 = vshll.u32 %v2890, 16
      %v3174 = vrot.slane %v3172, 5
      %v3175 = vor.u32 %v3171, %v3174
      %v3176 = vrot.slane %v3175, 4
      %v3178 = vshll.u32 %v2891, 16
      %v3180 = vrot.slane %v3178, 5
      %v3181 = vsel %vm461, %v3176, %v3180
      %v3182 = vshrl.u32 %v2891, 16
      %v3184 = vrot.slane %v3182, 4
      %v3185 = vor.u32 %v3184, %v3180
      %v3186 = vrot.slane %v3185, 4
      %v3188 = vshll.u32 %v2892, 16
      %v3190 = vrot.slane %v3188, 5
      %v3191 = vsel %vm461, %v3186, %v3190
      %v3195 = vrot.slane %v2890, 5
      %v3196 = vrot.slane %v3195, 4
      %v3197 = vrot.slane %v2891, 5
      %v3198 = vsel %vm680, %v3196, %v3197
      %v3199 = vrot.slane %v3197, 4
      %v3200 = vrot.slane %v2892, 5
      %v3201 = vsel %vm680, %v3199, %v3200
      %v3203 = vshrl.u32 %v2893, 16
      %v3205 = vrot.slane %v3203, 4
      %v3206 = vshll.u32 %v2893, 16
      %v3208 = vrot.slane %v3206, 5
      %v3209 = vor.u32 %v3205, %v3208
      %v3210 = vrot.slane %v3209, 4
      %v3212 = vshll.u32 %v2894, 16
      %v3214 = vrot.slane %v3212, 5
      %v3215 = vsel %vm461, %v3210, %v3214
      %v3216 = vshrl.u32 %v2894, 16
      %v3218 = vrot.slane %v3216, 4
      %v3219 = vor.u32 %v3218, %v3214
      %v3220 = vrot.slane %v3219, 4
      %v3222 = vshll.u32 %v2895, 16
      %v3224 = vrot.slane %v3222, 5
      %v3225 = vsel %vm461, %v3220, %v3224
      %v3229 = vrot.slane %v2893, 5
      %v3230 = vrot.slane %v3229, 4
      %v3231 = vrot.slane %v2894, 5
      %v3232 = vsel %vm680, %v3230, %v3231
      %v3233 = vrot.slane %v3231, 4
      %v3234 = vrot.slane %v2895, 5
      %v3235 = vsel %vm680, %v3233, %v3234
      %v3236 = vunpack.c.l.b16 %v2866
      %v3237 = vunpack.c.l.b16 %v2867
      %v3238 = vunpack.c.l.b16 %v2869
      %v3239 = vunpack.c.l.b16 %v2870
      %v3240 = vunpack.c.l.b16 %v2872
      %v3241 = vunpack.c.l.b16 %v2873
      %v3242 = vunpack.c.l.b16 %v2875
      %v3243 = vunpack.c.l.b16 %v2876
      %v3244 = vunpack.c.l.b16 %v2878
      %v3245 = vunpack.c.l.b16 %v2879
      %v3246 = vunpack.c.l.b16 %v2881
      %v3247 = vunpack.c.l.b16 %v2882
      %v3248 = vunpack.c.l.b16 %v2884
      %v3249 = vunpack.c.l.b16 %v2885
      %v3250 = vunpack.c.l.b16 %v2887
      %v3251 = vunpack.c.l.b16 %v2888
      %v3252 = vpack.c.b16 %v3237, %v3236
      %v3253 = vpack.c.b16 %v3239, %v3238
      %v3254 = vpack.c.b16 %v3241, %v3240
      %v3255 = vpack.c.b16 %v3243, %v3242
      %v3256 = vpack.c.b16 %v3245, %v3244
      %v3257 = vpack.c.b16 %v3247, %v3246
      %v3258 = vpack.c.b16 %v3249, %v3248
      %v3259 = vpack.c.b16 %v3251, %v3250
      %v3260 = vunpack.c.l.b16 %v2909
      %v3261 = vunpack.c.l.b16 %v2919
      %v3262 = vunpack.c.l.b16 %v2933
      %v3263 = vunpack.c.l.b16 %v2943
      %v3264 = vunpack.c.l.b16 %v2957
      %v3265 = vunpack.c.l.b16 %v2967
      %v3266 = vunpack.c.l.b16 %v2981
      %v3267 = vunpack.c.l.b16 %v2991
      %v3268 = vunpack.c.l.b16 %v3005
      %v3269 = vunpack.c.l.b16 %v3015
      %v3270 = vunpack.c.l.b16 %v3029
      %v3271 = vunpack.c.l.b16 %v3039
      %v3272 = vunpack.c.l.b16 %v3053
      %v3273 = vunpack.c.l.b16 %v3063
      %v3274 = vunpack.c.l.b16 %v3077
      %v3275 = vunpack.c.l.b16 %v3087
      %v3276 = vpack.c.b16 %v3261, %v3260
      %v3277 = vpack.c.b16 %v3263, %v3262
      %v3278 = vpack.c.b16 %v3265, %v3264
      %v3279 = vpack.c.b16 %v3267, %v3266
      %v3280 = vpack.c.b16 %v3269, %v3268
      %v3281 = vpack.c.b16 %v3271, %v3270
      %v3282 = vpack.c.b16 %v3273, %v3272
      %v3283 = vpack.c.b16 %v3275, %v3274
      %3284 = vrot.lane.b32.xlu0 %v3276, 64
      %v3285 = vpop.permute.xlu0 %3284
      %3286 = vrot.lane.b32.xlu0 %v3277, 64
      %v3287 = vpop.permute.xlu0 %3286
      %3288 = vrot.lane.b32.xlu0 %v3278, 64
      %v3289 = vpop.permute.xlu0 %3288
      %3290 = vrot.lane.b32.xlu0 %v3279, 64
      %v3291 = vpop.permute.xlu0 %3290
      %3292 = vrot.lane.b32.xlu0 %v3280, 64
      %v3293 = vpop.permute.xlu0 %3292
      %3294 = vrot.lane.b32.xlu0 %v3281, 64
      %v3295 = vpop.permute.xlu0 %3294
      %3296 = vrot.lane.b32.xlu0 %v3282, 64
      %v3297 = vpop.permute.xlu0 %3296
      %3298 = vrot.lane.b32.xlu0 %v3283, 64
      %v3299 = vpop.permute.xlu0 %3298
      %v3300 = vunpack.c.l.b16 %v3115
      %v3301 = vunpack.c.l.b16 %v3118
      %v3302 = vunpack.c.l.b16 %v3122
      %v3303 = vunpack.c.l.b16 %v3125
      %v3304 = vunpack.c.l.b16 %v3129
      %v3305 = vunpack.c.l.b16 %v3132
      %v3306 = vunpack.c.l.b16 %v3136
      %v3307 = vunpack.c.l.b16 %v3139
      %v3308 = vunpack.c.l.b16 %v3143
      %v3309 = vunpack.c.l.b16 %v3146
      %v3310 = vunpack.c.l.b16 %v3150
      %v3311 = vunpack.c.l.b16 %v3153
      %v3312 = vunpack.c.l.b16 %v3157
      %v3313 = vunpack.c.l.b16 %v3160
      %v3314 = vunpack.c.l.b16 %v3164
      %v3315 = vunpack.c.l.b16 %v3167
      %v3316 = vpack.c.b16 %v3301, %v3300
      %v3317 = vpack.c.b16 %v3303, %v3302
      %v3318 = vpack.c.b16 %v3305, %v3304
      %v3319 = vpack.c.b16 %v3307, %v3306
      %v3320 = vpack.c.b16 %v3309, %v3308
      %v3321 = vpack.c.b16 %v3311, %v3310
      %v3322 = vpack.c.b16 %v3313, %v3312
      %v3323 = vpack.c.b16 %v3315, %v3314
      %v3324 = vunpack.c.l.b16 %v2890
      %v3325 = vunpack.c.l.b16 %v2891
      %v3326 = vpack.c.b16 %v3325, %v3324
      %3327 = vrot.lane.b32.xlu0 %v3253, 64
      %v3328 = vpop.permute.xlu0 %3327
      %3329 = vrot.lane.b32.xlu0 %v3254, 64
      %v3330 = vpop.permute.xlu0 %3329
      %3331 = vrot.lane.b32.xlu0 %v3255, 64
      %v3332 = vpop.permute.xlu0 %3331
      %3333 = vrot.lane.b32.xlu0 %v3256, 64
      %v3334 = vpop.permute.xlu0 %3333
      %3335 = vrot.lane.b32.xlu0 %v3257, 64
      %v3336 = vpop.permute.xlu0 %3335
      %3337 = vrot.lane.b32.xlu0 %v3258, 64
      %v3338 = vpop.permute.xlu0 %3337
      %3339 = vrot.lane.b32.xlu0 %v3259, 64
      %v3340 = vpop.permute.xlu0 %3339
      %3341 = vrot.lane.b32.xlu0 %v3326, 64
      %v3342 = vpop.permute.xlu0 %3341
      %v3343 = vunpack.c.l.b16 %v3181
      %v3344 = vunpack.c.l.b16 %v3191
      %v3345 = vpack.c.b16 %v3344, %v3343
      %v3346 = vunpack.c.l.b16 %v3198
      %v3347 = vunpack.c.l.b16 %v3201
      %v3348 = vpack.c.b16 %v3347, %v3346
      %3349 = vrot.lane.b32.xlu0 %v3317, 64
      %v3350 = vpop.permute.xlu0 %3349
      %3351 = vrot.lane.b32.xlu0 %v3318, 64
      %v3352 = vpop.permute.xlu0 %3351
      %3353 = vrot.lane.b32.xlu0 %v3319, 64
      %v3354 = vpop.permute.xlu0 %3353
      %3355 = vrot.lane.b32.xlu0 %v3320, 64
      %v3356 = vpop.permute.xlu0 %3355
      %3357 = vrot.lane.b32.xlu0 %v3321, 64
      %v3358 = vpop.permute.xlu0 %3357
      %3359 = vrot.lane.b32.xlu0 %v3322, 64
      %v3360 = vpop.permute.xlu0 %3359
      %3361 = vrot.lane.b32.xlu0 %v3323, 64
      %v3362 = vpop.permute.xlu0 %3361
      %3363 = vrot.lane.b32.xlu0 %v3348, 64
      %v3364 = vpop.permute.xlu0 %3363
      %v3365 = vunpack.c.l.b16 %v2893
      %v3366 = vunpack.c.l.b16 %v2894
      %v3367 = vpack.c.b16 %v3366, %v3365
      %v3368 = vunpack.c.l.b16 %v3215
      %v3369 = vunpack.c.l.b16 %v3225
      %v3370 = vpack.c.b16 %v3369, %v3368
      %3371 = vrot.lane.b32.xlu0 %v3345, 64
      %v3372 = vpop.permute.xlu0 %3371
      %3373 = vrot.lane.b32.xlu0 %v3370, 64
      %v3374 = vpop.permute.xlu0 %3373
      %v3375 = vunpack.c.l.b16 %v3232
      %v3376 = vunpack.c.l.b16 %v3235
      %v3377 = vpack.c.b16 %v3376, %v3375
      %v3380 = vsel %vm947, %v3252, %v3285
      %v3384 = vsel %vm947, %v3253, %v3287
      %v3388 = vsel %vm947, %v3254, %v3289
      %v3392 = vsel %vm947, %v3255, %v3291
      %v3396 = vsel %vm947, %v3256, %v3293
      %v3400 = vsel %vm947, %v3257, %v3295
      %v3404 = vsel %vm947, %v3258, %v3297
      %v3408 = vsel %vm947, %v3259, %v3299
      %v3412 = vsel %vm947, %v3316, %v3328
      %v3416 = vsel %vm947, %v3317, %v3330
      %v3420 = vsel %vm947, %v3318, %v3332
      %v3424 = vsel %vm947, %v3319, %v3334
      %v3428 = vsel %vm947, %v3320, %v3336
      %v3432 = vsel %vm947, %v3321, %v3338
      %v3436 = vsel %vm947, %v3322, %v3340
      %v3440 = vsel %vm947, %v3323, %v3342
      %v3444 = vsel %vm947, %v3277, %v3350
      %v3448 = vsel %vm947, %v3278, %v3352
      %v3452 = vsel %vm947, %v3279, %v3354
      %v3456 = vsel %vm947, %v3280, %v3356
      %v3460 = vsel %vm947, %v3281, %v3358
      %v3464 = vsel %vm947, %v3282, %v3360
      %v3468 = vsel %vm947, %v3283, %v3362
      %v3472 = vsel %vm947, %v3345, %v3364
      %v3476 = vsel %vm947, %v3326, %v3372
      %v3480 = vsel %vm947, %v3367, %v3374
      %v3482 = vld [vmem:[%s406] sm:$0xf]
      %v3483 = vld [vmem:[%s406 + $0x4] sm:$0xf]
      %v3484 = vld [vmem:[%s406 + $0x8] sm:$0xf]
      %v3485 = vld [vmem:[%s406 + $0xc] sm:$0xf]
      %v3486 = vld [vmem:[%s406 + $0x10] sm:$0xf]
      %v3487 = vld [vmem:[%s406 + $0x14] sm:$0xf]
      %v3488 = vld [vmem:[%s406 + $0x18] sm:$0xf]
      %v3489 = vld [vmem:[%s406 + $0x1c] sm:$0xf]
      %v3490 = vld [vmem:[%s406 + $0x20] sm:$0xf]
      %v3491 = vld [vmem:[%s406 + $0x24] sm:$0xf]
      %v3492 = vld [vmem:[%s406 + $0x28] sm:$0xf]
      %v3493 = vld [vmem:[%s406 + $0x2c] sm:$0xf]
      %v3494 = vld [vmem:[%s406 + $0x30] sm:$0xf]
      %v3495 = vld [vmem:[%s406 + $0x34] sm:$0xf]
      %v3496 = vld [vmem:[%s406 + $0x38] sm:$0xf]
      %v3497 = vld [vmem:[%s406 + $0x3c] sm:$0xf]
      %v3498 = vld [vmem:[%s406 + $0x40] sm:$0xf]
      %v3499 = vld [vmem:[%s406 + $0x44] sm:$0xf]
      %v3500 = vld [vmem:[%s406 + $0x48] sm:$0xf]
      %v3501 = vld [vmem:[%s406 + $0x4c] sm:$0xf]
      %v3502 = vld [vmem:[%s406 + $0x50] sm:$0xf]
      %v3503 = vld [vmem:[%s406 + $0x54] sm:$0xf]
      %v3504 = vld [vmem:[%s406 + $0x58] sm:$0xf]
      %v3505 = vld [vmem:[%s406 + $0x5c] sm:$0xf]
      %v3506 = vld [vmem:[%s406 + $0x60] sm:$0xf]
      %v3507 = vld [vmem:[%s406 + $0x64] sm:$0xf]
      %v3508 = vld [vmem:[%s406 + $0x68] sm:$0xf]
      %v3509 = vld [vmem:[%s406 + $0x6c] sm:$0xf]
      %v3510 = vld [vmem:[%s406 + $0x70] sm:$0xf]
      %v3511 = vld [vmem:[%s406 + $0x74] sm:$0xf]
      %v3512 = vld [vmem:[%s406 + $0x78] sm:$0xf]
      %v3513 = vld [vmem:[%s406 + $0x7c] sm:$0xf]
      %v3514 = vld [vmem:[%s406 + $0x80] sm:$0xf]
      %v3515 = vld [vmem:[%s406 + $0x84] sm:$0xf]
      %v3516 = vld [vmem:[%s406 + $0x88] sm:$0xf]
      %v3517 = vld [vmem:[%s406 + $0x8c] sm:$0xf]
      %v3518 = vld [vmem:[%s406 + $0x90] sm:$0xf]
      %v3519 = vld [vmem:[%s406 + $0x94] sm:$0xf]
      %v3520 = vld [vmem:[%s406 + $0x98] sm:$0xf]
      %v3521 = vld [vmem:[%s406 + $0x9c] sm:$0xf]
      %v3522 = vld [vmem:[%s406 + $0xa0] sm:$0xf]
      %v3523 = vld [vmem:[%s406 + $0xa4] sm:$0xf]
      %v3524 = vld [vmem:[%s406 + $0xa8] sm:$0xf]
      %v3525 = vld [vmem:[%s406 + $0xac] sm:$0xf]
      %v3526 = vld [vmem:[%s406 + $0xb0] sm:$0xf]
      %v3527 = vld [vmem:[%s406 + $0xb4] sm:$0xf]
      %v3528 = vld [vmem:[%s406 + $0xb8] sm:$0xf]
      %v3529 = vld [vmem:[%s406 + $0xbc] sm:$0xf]
      %v3530 = vld [vmem:[%s406 + $0xc0] sm:$0xf]
      %v3531 = vld [vmem:[%s406 + $0xc4] sm:$0xf]
      %v3532 = vld [vmem:[%s406 + $0xc8] sm:$0xf]
      %v3533 = vld [vmem:[%s406 + $0xcc] sm:$0xf]
      %v3534 = vld [vmem:[%s406 + $0xd0] sm:$0xf]
      %v3535 = vld [vmem:[%s406 + $0xd4] sm:$0xf]
      %v3536 = vld [vmem:[%s406 + $0xd8] sm:$0xf]
      %v3537 = vld [vmem:[%s406 + $0xdc] sm:$0xf]
      %v3538 = vld [vmem:[%s406 + $0xe0] sm:$0xf]
      %v3539 = vld [vmem:[%s406 + $0xe4] sm:$0xf]
      %v3540 = vld [vmem:[%s406 + $0xe8] sm:$0xf]
      %v3541 = vld [vmem:[%s406 + $0xec] sm:$0xf]
      %v3542 = vld [vmem:[%s406 + $0xf0] sm:$0xf]
      %v3543 = vld [vmem:[%s406 + $0xf4] sm:$0xf]
      %v3544 = vld [vmem:[%s406 + $0xf8] sm:$0xf]
      %v3545 = vld [vmem:[%s406 + $0xfc] sm:$0xf]
      %v3546 = vld [vmem:[%s406 + $0x100] sm:$0xf]
      %v3547 = vld [vmem:[%s406 + $0x104] sm:$0xf]
      %v3548 = vld [vmem:[%s406 + $0x108] sm:$0xf]
      %v3549 = vld [vmem:[%s406 + $0x10c] sm:$0xf]
      %v3550 = vld [vmem:[%s406 + $0x110] sm:$0xf]
      %v3551 = vld [vmem:[%s406 + $0x114] sm:$0xf]
      %v3552 = vld [vmem:[%s406 + $0x118] sm:$0xf]
      %v3553 = vld [vmem:[%s406 + $0x11c] sm:$0xf]
      %v3626 = vunpack.c.l.b16 %v3482
      %v3627 = vunpack.c.l.b16 %v3483
      %v3628 = vunpack.c.l.b16 %v3484
      %v3629 = vunpack.c.l.b16 %v3485
      %v3630 = vunpack.c.l.b16 %v3486
      %v3631 = vunpack.c.l.b16 %v3487
      %v3632 = vunpack.c.l.b16 %v3488
      %v3633 = vunpack.c.l.b16 %v3489
      %v3634 = vunpack.c.l.b16 %v3490
      %v3635 = vunpack.c.l.b16 %v3491
      %v3636 = vunpack.c.l.b16 %v3492
      %v3637 = vunpack.c.l.b16 %v3493
      %v3638 = vunpack.c.l.b16 %v3494
      %v3639 = vunpack.c.l.b16 %v3495
      %v3640 = vunpack.c.l.b16 %v3496
      %v3641 = vunpack.c.l.b16 %v3497
      %v3642 = vunpack.c.l.b16 %v3498
      %v3643 = vunpack.c.l.b16 %v3499
      %v3644 = vunpack.c.l.b16 %v3500
      %v3645 = vunpack.c.l.b16 %v3501
      %v3646 = vunpack.c.l.b16 %v3502
      %v3647 = vunpack.c.l.b16 %v3503
      %v3648 = vunpack.c.l.b16 %v3504
      %v3649 = vunpack.c.l.b16 %v3505
      %v3650 = vunpack.c.l.b16 %v3506
      %v3651 = vunpack.c.l.b16 %v3507
      %v3652 = vunpack.c.l.b16 %v3508
      %v3653 = vunpack.c.l.b16 %v3509
      %v3654 = vunpack.c.l.b16 %v3510
      %v3655 = vunpack.c.l.b16 %v3511
      %v3656 = vunpack.c.l.b16 %v3512
      %v3657 = vunpack.c.l.b16 %v3513
      %v3658 = vunpack.c.l.b16 %v3514
      %v3659 = vunpack.c.l.b16 %v3515
      %v3660 = vunpack.c.l.b16 %v3516
      %v3661 = vunpack.c.l.b16 %v3517
      %v3662 = vunpack.c.l.b16 %v3518
      %v3663 = vunpack.c.l.b16 %v3519
      %v3664 = vunpack.c.l.b16 %v3520
      %v3665 = vunpack.c.l.b16 %v3521
      %v3666 = vunpack.c.l.b16 %v3522
      %v3667 = vunpack.c.l.b16 %v3523
      %v3668 = vunpack.c.l.b16 %v3524
      %v3669 = vunpack.c.l.b16 %v3525
      %v3670 = vunpack.c.l.b16 %v3526
      %v3671 = vunpack.c.l.b16 %v3527
      %v3672 = vunpack.c.l.b16 %v3528
      %v3673 = vunpack.c.l.b16 %v3529
      %v3674 = vunpack.c.l.b16 %v3530
      %v3675 = vunpack.c.l.b16 %v3531
      %v3676 = vunpack.c.l.b16 %v3532
      %v3677 = vunpack.c.l.b16 %v3533
      %v3678 = vunpack.c.l.b16 %v3534
      %v3679 = vunpack.c.l.b16 %v3535
      %v3680 = vunpack.c.l.b16 %v3536
      %v3681 = vunpack.c.l.b16 %v3537
      %v3682 = vunpack.c.l.b16 %v3538
      %v3683 = vunpack.c.l.b16 %v3539
      %v3684 = vunpack.c.l.b16 %v3540
      %v3685 = vunpack.c.l.b16 %v3541
      %v3686 = vunpack.c.l.b16 %v3542
      %v3687 = vunpack.c.l.b16 %v3543
      %v3688 = vunpack.c.l.b16 %v3544
      %v3689 = vunpack.c.l.b16 %v3545
      %v3690 = vunpack.c.l.b16 %v3546
      %v3691 = vunpack.c.l.b16 %v3547
      %v3692 = vunpack.c.l.b16 %v3548
      %v3693 = vunpack.c.l.b16 %v3549
      %v3694 = vunpack.c.l.b16 %v3550
      %v3695 = vunpack.c.l.b16 %v3551
      %v3696 = vunpack.c.l.b16 %v3552
      %v3697 = vunpack.c.l.b16 %v3553
      %v3698 = vpack.c.b16 %v3627, %v3626
      %v3699 = vpack.c.b16 %v3629, %v3628
      %v3700 = vpack.c.b16 %v3631, %v3630
      %v3701 = vpack.c.b16 %v3633, %v3632
      %v3702 = vpack.c.b16 %v3635, %v3634
      %v3703 = vpack.c.b16 %v3637, %v3636
      %v3704 = vpack.c.b16 %v3639, %v3638
      %v3705 = vpack.c.b16 %v3641, %v3640
      %v3706 = vpack.c.b16 %v3643, %v3642
      %v3707 = vpack.c.b16 %v3645, %v3644
      %v3708 = vpack.c.b16 %v3647, %v3646
      %v3709 = vpack.c.b16 %v3649, %v3648
      %v3710 = vpack.c.b16 %v3651, %v3650
      %v3711 = vpack.c.b16 %v3653, %v3652
      %v3712 = vpack.c.b16 %v3655, %v3654
      %v3713 = vpack.c.b16 %v3657, %v3656
      %v3714 = vpack.c.b16 %v3659, %v3658
      %v3715 = vpack.c.b16 %v3661, %v3660
      %v3716 = vpack.c.b16 %v3663, %v3662
      %v3717 = vpack.c.b16 %v3665, %v3664
      %v3718 = vpack.c.b16 %v3667, %v3666
      %v3719 = vpack.c.b16 %v3669, %v3668
      %v3720 = vpack.c.b16 %v3671, %v3670
      %v3721 = vpack.c.b16 %v3673, %v3672
      %v3722 = vpack.c.b16 %v3675, %v3674
      %v3723 = vpack.c.b16 %v3677, %v3676
      %v3724 = vpack.c.b16 %v3679, %v3678
      %v3725 = vpack.c.b16 %v3681, %v3680
      %v3726 = vpack.c.b16 %v3683, %v3682
      %v3727 = vpack.c.b16 %v3685, %v3684
      %v3728 = vpack.c.b16 %v3687, %v3686
      %v3729 = vpack.c.b16 %v3689, %v3688
      %v3730 = vpack.c.b16 %v3691, %v3690
      %v3731 = vpack.c.b16 %v3693, %v3692
      %v3732 = vpack.c.b16 %v3695, %v3694
      %v3733 = vpack.c.b16 %v3697, %v3696
      %v3770 = vsel %vm947, %v3318, 0
      %v3772 = vsel %vm947, %v3319, 0
      %v3774 = vsel %vm947, %v3320, 0
      %v3776 = vsel %vm947, %v3321, 0
      %v3778 = vsel %vm947, %v3322, 0
      %v3780 = vsel %vm947, %v3323, 0
      %v3783 = vsel %vm947, %v3348, 0
      %v3786 = vsel %vm947, %v3377, 0
      %3788 = vmatprep.subr.bf16.mxu0 0
      %3789 = vmatpush1.bf16.msra.mxu0 %v3705
      %3790 = vmatprep.subr.bf16.mxu0 0
      %3791 = vmatpush1.bf16.msra.mxu0 %v3704
      %3792 = vmatprep.subr.bf16.mxu0 0
      %3793 = vmatpush1.bf16.msra.mxu0 %v3703
      %3794 = vmatprep.subr.bf16.mxu0 0
      %3795 = vmatpush1.bf16.msra.mxu0 %v3702
      %3796 = vmatprep.subr.bf16.mxu0 0
      %3797 = vmatpush1.bf16.msra.mxu0 %v3701
      %3798 = vmatprep.subr.bf16.mxu0 0
      %3799 = vmatpush1.bf16.msra.mxu0 %v3700
      %3800 = vmatprep.subr.bf16.mxu0 0
      %3801 = vmatpush1.bf16.msra.mxu0 %v3699
      %3802 = vmatprep.subr.bf16.mxu0 0
      %3803 = vmatpush1.bf16.msra.mxu0 %v3698
      %3804 = vmatprep.subr.bf16.mxu0 0
      %3805 = vmatpush2.bf16.msra.mxu0 %v3713
      %3806 = vmatprep.subr.bf16.mxu0 0
      %3807 = vmatpush2.bf16.msra.mxu0 %v3712
      %3808 = vmatprep.subr.bf16.mxu0 0
      %3809 = vmatpush2.bf16.msra.mxu0 %v3711
      %3810 = vmatprep.subr.bf16.mxu0 0
      %3811 = vmatpush2.bf16.msra.mxu0 %v3710
      %3812 = vmatprep.subr.bf16.mxu0 0
      %3813 = vmatpush2.bf16.msra.mxu0 %v3709
      %3814 = vmatprep.subr.bf16.mxu0 0
      %3815 = vmatpush2.bf16.msra.mxu0 %v3708
      %3816 = vmatprep.subr.bf16.mxu0 0
      %3817 = vmatpush2.bf16.msra.mxu0 %v3707
      %3818 = vmatprep.subr.bf16.mxu0 0
      %3819 = vmatpush2.bf16.msra.mxu0 %v3706
      %3820 = vmatprep.mubr.bf16.mxu0 %v3412
      %3821 = vmatmul.mubr.bf16.gmra.mxu0 %v3380
      %v3822 = vpop.f32.mrf.mxu0
      %v3823 = vadd.f32 0.0, %v3822
      %v3824 = vpop.f32.mrf.mxu0
      %v3825 = vpop.f32.mrf.mxu0
      %v3826 = vadd.f32 0.0, %v3825
      %v3827 = vpop.f32.mrf.mxu0
      %3828 = vmatprep.mubr.bf16.mxu0 %v3416
      %3829 = vmatmul.mubr.bf16.gmra.mxu0 %v3384
      %v3830 = vpop.f32.mrf.mxu0
      %v3831 = vadd.f32 0.0, %v3830
      %v3832 = vpop.f32.mrf.mxu0
      %v3833 = vpop.f32.mrf.mxu0
      %v3834 = vadd.f32 0.0, %v3833
      %v3835 = vpop.f32.mrf.mxu0
      %3836 = vmatprep.mubr.bf16.mxu0 %v3420
      %3837 = vmatmul.mubr.bf16.gmra.mxu0 %v3388
      %v3838 = vpop.f32.mrf.mxu0
      %v3839 = vadd.f32 0.0, %v3838
      %v3840 = vpop.f32.mrf.mxu0
      %v3841 = vpop.f32.mrf.mxu0
      %v3842 = vadd.f32 0.0, %v3841
      %v3843 = vpop.f32.mrf.mxu0
      %3844 = vmatprep.mubr.bf16.mxu0 %v3424
      %3845 = vmatmul.mubr.bf16.gmra.mxu0 %v3392
      %v3846 = vpop.f32.mrf.mxu0
      %v3847 = vadd.f32 0.0, %v3846
      %v3848 = vpop.f32.mrf.mxu0
      %v3849 = vpop.f32.mrf.mxu0
      %v3850 = vadd.f32 0.0, %v3849
      %v3851 = vpop.f32.mrf.mxu0
      %3852 = vmatprep.mubr.bf16.mxu0 %v3428
      %3853 = vmatmul.mubr.bf16.gmra.mxu0 %v3396
      %v3854 = vpop.f32.mrf.mxu0
      %v3855 = vadd.f32 0.0, %v3854
      %v3856 = vpop.f32.mrf.mxu0
      %v3857 = vpop.f32.mrf.mxu0
      %v3858 = vadd.f32 0.0, %v3857
      %v3859 = vpop.f32.mrf.mxu0
      %3860 = vmatprep.mubr.bf16.mxu0 %v3432
      %3861 = vmatmul.mubr.bf16.gmra.mxu0 %v3400
      %v3862 = vpop.f32.mrf.mxu0
      %v3863 = vadd.f32 0.0, %v3862
      %v3864 = vpop.f32.mrf.mxu0
      %v3865 = vpop.f32.mrf.mxu0
      %v3866 = vadd.f32 0.0, %v3865
      %v3867 = vpop.f32.mrf.mxu0
      %3868 = vmatprep.mubr.bf16.mxu0 %v3436
      %3869 = vmatmul.mubr.bf16.gmra.mxu0 %v3404
      %v3870 = vpop.f32.mrf.mxu0
      %v3871 = vadd.f32 0.0, %v3870
      %v3872 = vpop.f32.mrf.mxu0
      %v3873 = vpop.f32.mrf.mxu0
      %v3874 = vadd.f32 0.0, %v3873
      %v3875 = vpop.f32.mrf.mxu0
      %3876 = vmatprep.mubr.bf16.mxu0 %v3440
      %3877 = vmatmul.mubr.bf16.gmra.mxu0 %v3408
      %v3878 = vpop.f32.mrf.mxu0
      %v3879 = vadd.f32 0.0, %v3878
      %v3880 = vpop.f32.mrf.mxu0
      %v3881 = vpop.f32.mrf.mxu0
      %v3882 = vadd.f32 0.0, %v3881
      %v3883 = vpop.f32.mrf.mxu0
      %3884 = vdwg.mxu0
      %3885 = vmatprep.subr.bf16.mxu0 0
      %3886 = vmatpush1.bf16.msra.mxu0 %v3721
      %3887 = vmatprep.subr.bf16.mxu0 0
      %3888 = vmatpush1.bf16.msra.mxu0 %v3720
      %3889 = vmatprep.subr.bf16.mxu0 0
      %3890 = vmatpush1.bf16.msra.mxu0 %v3719
      %3891 = vmatprep.subr.bf16.mxu0 0
      %3892 = vmatpush1.bf16.msra.mxu0 %v3718
      %3893 = vmatprep.subr.bf16.mxu0 0
      %3894 = vmatpush1.bf16.msra.mxu0 %v3717
      %3895 = vmatprep.subr.bf16.mxu0 0
      %3896 = vmatpush1.bf16.msra.mxu0 %v3716
      %3897 = vmatprep.subr.bf16.mxu0 0
      %3898 = vmatpush1.bf16.msra.mxu0 %v3715
      %3899 = vmatprep.subr.bf16.mxu0 0
      %3900 = vmatpush1.bf16.msra.mxu0 %v3714
      %3901 = vmatprep.subr.bf16.mxu0 0
      %3902 = vmatpush2.bf16.msra.mxu0 %v3729
      %3903 = vmatprep.subr.bf16.mxu0 0
      %3904 = vmatpush2.bf16.msra.mxu0 %v3728
      %3905 = vmatprep.subr.bf16.mxu0 0
      %3906 = vmatpush2.bf16.msra.mxu0 %v3727
      %3907 = vmatprep.subr.bf16.mxu0 0
      %3908 = vmatpush2.bf16.msra.mxu0 %v3726
      %3909 = vmatprep.subr.bf16.mxu0 0
      %3910 = vmatpush2.bf16.msra.mxu0 %v3725
      %3911 = vmatprep.subr.bf16.mxu0 0
      %3912 = vmatpush2.bf16.msra.mxu0 %v3724
      %3913 = vmatprep.subr.bf16.mxu0 0
      %3914 = vmatpush2.bf16.msra.mxu0 %v3723
      %3915 = vmatprep.subr.bf16.mxu0 0
      %3916 = vmatpush2.bf16.msra.mxu0 %v3722
      %3917 = vmatprep.mubr.bf16.mxu0 %v3388
      %3918 = vmatmul.mubr.bf16.gmra.mxu0 %v3444
      %v3919 = vpop.f32.mrf.mxu0
      %v3920 = vadd.f32 %v3823, %v3919
      %v3921 = vpop.f32.mrf.mxu0
      %v3922 = vpop.f32.mrf.mxu0
      %v3923 = vadd.f32 %v3826, %v3922
      %v3924 = vpop.f32.mrf.mxu0
      %3925 = vmatprep.mubr.bf16.mxu0 %v3392
      %3926 = vmatmul.mubr.bf16.gmra.mxu0 %v3448
      %v3927 = vpop.f32.mrf.mxu0
      %v3928 = vadd.f32 %v3831, %v3927
      %v3929 = vpop.f32.mrf.mxu0
      %v3930 = vpop.f32.mrf.mxu0
      %v3931 = vadd.f32 %v3834, %v3930
      %v3932 = vpop.f32.mrf.mxu0
      %3933 = vmatprep.mubr.bf16.mxu0 %v3396
      %3934 = vmatmul.mubr.bf16.gmra.mxu0 %v3452
      %v3935 = vpop.f32.mrf.mxu0
      %v3936 = vadd.f32 %v3839, %v3935
      %v3937 = vpop.f32.mrf.mxu0
      %v3938 = vpop.f32.mrf.mxu0
      %v3939 = vadd.f32 %v3842, %v3938
      %v3940 = vpop.f32.mrf.mxu0
      %3941 = vmatprep.mubr.bf16.mxu0 %v3400
      %3942 = vmatmul.mubr.bf16.gmra.mxu0 %v3456
      %v3943 = vpop.f32.mrf.mxu0
      %v3944 = vadd.f32 %v3847, %v3943
      %v3945 = vpop.f32.mrf.mxu0
      %v3946 = vpop.f32.mrf.mxu0
      %v3947 = vadd.f32 %v3850, %v3946
      %v3948 = vpop.f32.mrf.mxu0
      %3949 = vmatprep.mubr.bf16.mxu0 %v3404
      %3950 = vmatmul.mubr.bf16.gmra.mxu0 %v3460
      %v3951 = vpop.f32.mrf.mxu0
      %v3952 = vadd.f32 %v3855, %v3951
      %v3953 = vpop.f32.mrf.mxu0
      %v3954 = vpop.f32.mrf.mxu0
      %v3955 = vadd.f32 %v3858, %v3954
      %v3956 = vpop.f32.mrf.mxu0
      %3957 = vmatprep.mubr.bf16.mxu0 %v3408
      %3958 = vmatmul.mubr.bf16.gmra.mxu0 %v3464
      %v3959 = vpop.f32.mrf.mxu0
      %v3960 = vadd.f32 %v3863, %v3959
      %v3961 = vpop.f32.mrf.mxu0
      %v3962 = vpop.f32.mrf.mxu0
      %v3963 = vadd.f32 %v3866, %v3962
      %v3964 = vpop.f32.mrf.mxu0
      %3965 = vmatprep.mubr.bf16.mxu0 %v3476
      %3966 = vmatmul.mubr.bf16.gmra.mxu0 %v3468
      %v3967 = vpop.f32.mrf.mxu0
      %v3968 = vadd.f32 %v3871, %v3967
      %v3969 = vpop.f32.mrf.mxu0
      %v3970 = vpop.f32.mrf.mxu0
      %v3971 = vadd.f32 %v3874, %v3970
      %v3972 = vpop.f32.mrf.mxu0
      %3973 = vmatprep.mubr.bf16.mxu0 %v3480
      %3974 = vmatmul.mubr.bf16.gmra.mxu0 %v3472
      %v3975 = vpop.f32.mrf.mxu0
      %v3976 = vadd.f32 %v3879, %v3975
      %v3977 = vpop.f32.mrf.mxu0
      %v3978 = vpop.f32.mrf.mxu0
      %v3979 = vadd.f32 %v3882, %v3978
      %v3980 = vpop.f32.mrf.mxu0
      %3981 = vdwg.mxu0
      %3982 = vmatprep.subr.bf16.mxu0 0
      %3983 = vmatpush1.bf16.msra.mxu0 0
      %3984 = vmatprep.subr.bf16.mxu0 0
      %3985 = vmatpush1.bf16.msra.mxu0 0
      %3986 = vmatprep.subr.bf16.mxu0 0
      %3987 = vmatpush1.bf16.msra.mxu0 0
      %3988 = vmatprep.subr.bf16.mxu0 0
      %3989 = vmatpush1.bf16.msra.mxu0 0
      %3990 = vmatprep.subr.bf16.mxu0 0
      %3991 = vmatpush1.bf16.msra.mxu0 %v3733
      %3992 = vmatprep.subr.bf16.mxu0 0
      %3993 = vmatpush1.bf16.msra.mxu0 %v3732
      %3994 = vmatprep.subr.bf16.mxu0 0
      %3995 = vmatpush1.bf16.msra.mxu0 %v3731
      %3996 = vmatprep.subr.bf16.mxu0 0
      %3997 = vmatpush1.bf16.msra.mxu0 %v3730
      %3998 = vmatprep.subr.bf16.mxu0 0
      %3999 = vmatpush2.bf16.msra.mxu0 0
      %4000 = vmatprep.subr.bf16.mxu0 0
      %4001 = vmatpush2.bf16.msra.mxu0 0
      %4002 = vmatprep.subr.bf16.mxu0 0
      %4003 = vmatpush2.bf16.msra.mxu0 0
      %4004 = vmatprep.subr.bf16.mxu0 0
      %4005 = vmatpush2.bf16.msra.mxu0 0
      %4006 = vmatprep.subr.bf16.mxu0 0
      %4007 = vmatpush2.bf16.msra.mxu0 0
      %4008 = vmatprep.subr.bf16.mxu0 0
      %4009 = vmatpush2.bf16.msra.mxu0 0
      %4010 = vmatprep.subr.bf16.mxu0 0
      %4011 = vmatpush2.bf16.msra.mxu0 0
      %4012 = vmatprep.subr.bf16.mxu0 0
      %4013 = vmatpush2.bf16.msra.mxu0 0
      %4014 = vmatprep.mubr.bf16.mxu0 0
      %4015 = vmatmul.mubr.bf16.gmra.mxu0 %v3770
      %v4016 = vpop.f32.mrf.mxu0
      %v4017 = vadd.f32 %v3920, %v4016
      %v4018 = vpop.f32.mrf.mxu0
      %v4019 = vpop.f32.mrf.mxu0
      %v4020 = vadd.f32 %v3923, %v4019
      %v4021 = vpop.f32.mrf.mxu0
      %4022 = vmatprep.mubr.bf16.mxu0 0
      %4023 = vmatmul.mubr.bf16.gmra.mxu0 %v3772
      %v4024 = vpop.f32.mrf.mxu0
      %v4025 = vadd.f32 %v3928, %v4024
      %v4026 = vpop.f32.mrf.mxu0
      %v4027 = vpop.f32.mrf.mxu0
      %v4028 = vadd.f32 %v3931, %v4027
      %v4029 = vpop.f32.mrf.mxu0
      %4030 = vmatprep.mubr.bf16.mxu0 0
      %4031 = vmatmul.mubr.bf16.gmra.mxu0 %v3774
      %v4032 = vpop.f32.mrf.mxu0
      %v4033 = vadd.f32 %v3936, %v4032
      %v4034 = vpop.f32.mrf.mxu0
      %v4035 = vpop.f32.mrf.mxu0
      %v4036 = vadd.f32 %v3939, %v4035
      %v4037 = vpop.f32.mrf.mxu0
      %4038 = vmatprep.mubr.bf16.mxu0 0
      %4039 = vmatmul.mubr.bf16.gmra.mxu0 %v3776
      %v4040 = vpop.f32.mrf.mxu0
      %v4041 = vadd.f32 %v3944, %v4040
      %v4042 = vpop.f32.mrf.mxu0
      %v4043 = vpop.f32.mrf.mxu0
      %v4044 = vadd.f32 %v3947, %v4043
      %v4045 = vpop.f32.mrf.mxu0
      %4046 = vmatprep.mubr.bf16.mxu0 0
      %4047 = vmatmul.mubr.bf16.gmra.mxu0 %v3778
      %v4048 = vpop.f32.mrf.mxu0
      %v4049 = vadd.f32 %v3952, %v4048
      %v4050 = vpop.f32.mrf.mxu0
      %v4051 = vpop.f32.mrf.mxu0
      %v4052 = vadd.f32 %v3955, %v4051
      %v4053 = vpop.f32.mrf.mxu0
      %4054 = vmatprep.mubr.bf16.mxu0 0
      %4055 = vmatmul.mubr.bf16.gmra.mxu0 %v3780
      %v4056 = vpop.f32.mrf.mxu0
      %v4057 = vadd.f32 %v3960, %v4056
      %v4058 = vpop.f32.mrf.mxu0
      %v4059 = vpop.f32.mrf.mxu0
      %v4060 = vadd.f32 %v3963, %v4059
      %v4061 = vpop.f32.mrf.mxu0
      %4062 = vmatprep.mubr.bf16.mxu0 0
      %4063 = vmatmul.mubr.bf16.gmra.mxu0 %v3783
      %v4064 = vpop.f32.mrf.mxu0
      %v4065 = vadd.f32 %v3968, %v4064
      %v4066 = vpop.f32.mrf.mxu0
      %v4067 = vpop.f32.mrf.mxu0
      %v4068 = vadd.f32 %v3971, %v4067
      %v4069 = vpop.f32.mrf.mxu0
      %4070 = vmatprep.mubr.bf16.mxu0 0
      %4071 = vmatmul.mubr.bf16.gmra.mxu0 %v3786
      %v4072 = vpop.f32.mrf.mxu0
      %v4073 = vadd.f32 %v3976, %v4072
      %v4074 = vpop.f32.mrf.mxu0
      %v4075 = vpop.f32.mrf.mxu0
      %v4076 = vadd.f32 %v3979, %v4075
      %v4077 = vpop.f32.mrf.mxu0
      %4078 = vdwg.mxu0
      %v4079 = vadd.f32 %v2802, %v4017
      %v4080 = vadd.f32 %v2805, %v4020
      %v4081 = vadd.f32 %v2810, %v4025
      %v4082 = vadd.f32 %v2813, %v4028
      %v4083 = vadd.f32 %v2818, %v4033
      %v4084 = vadd.f32 %v2821, %v4036
      %v4085 = vadd.f32 %v2826, %v4041
      %v4086 = vadd.f32 %v2829, %v4044
      %v4087 = vadd.f32 %v2834, %v4049
      %v4088 = vadd.f32 %v2837, %v4052
      %v4089 = vadd.f32 %v2842, %v4057
      %v4090 = vadd.f32 %v2845, %v4060
      %v4091 = vadd.f32 %v2850, %v4065
      %v4092 = vadd.f32 %v2853, %v4068
      %v4093 = vadd.f32 %v2858, %v4073
      %v4094 = vadd.f32 %v2861, %v4076
      %v4095 = vld [vmem:[%s409] sm:$0x1]
      %v4097 = vlaneseq
      %v4098 = vshrl.u32 %v4097, 7
      %v4099 = vsub.s32 0, %v4098
      %v4100 = vrot.slane %v4095, %v4099
      %v4102 = vadd.f32 %v4079, %v4100
      %v4103 = vadd.f32 %v4080, %v4100
      %v4104 = vadd.f32 %v4081, %v4100
      %v4105 = vadd.f32 %v4082, %v4100
      %v4106 = vadd.f32 %v4083, %v4100
      %v4107 = vadd.f32 %v4084, %v4100
      %v4108 = vadd.f32 %v4085, %v4100
      %v4109 = vadd.f32 %v4086, %v4100
      %v4110 = vadd.f32 %v4087, %v4100
      %v4111 = vadd.f32 %v4088, %v4100
      %v4112 = vadd.f32 %v4089, %v4100
      %v4113 = vadd.f32 %v4090, %v4100
      %v4114 = vadd.f32 %v4091, %v4100
      %v4115 = vadd.f32 %v4092, %v4100
      %v4116 = vadd.f32 %v4093, %v4100
      %v4117 = vadd.f32 %v4094, %v4100
      %v4118 = vmax.f32 %v4102, 0.0
      %v4119 = vmax.f32 %v4103, 0.0
      %v4120 = vmax.f32 %v4104, 0.0
      %v4121 = vmax.f32 %v4105, 0.0
      %v4122 = vmax.f32 %v4106, 0.0
      %v4123 = vmax.f32 %v4107, 0.0
      %v4124 = vmax.f32 %v4108, 0.0
      %v4125 = vmax.f32 %v4109, 0.0
      %v4126 = vmax.f32 %v4110, 0.0
      %v4127 = vmax.f32 %v4111, 0.0
      %v4128 = vmax.f32 %v4112, 0.0
      %v4129 = vmax.f32 %v4113, 0.0
      %v4130 = vmax.f32 %v4114, 0.0
      %v4131 = vmax.f32 %v4115, 0.0
      %v4132 = vmax.f32 %v4116, 0.0
      %v4133 = vmax.f32 %v4117, 0.0
      %v4134 = vpack.c.bf16 %v4119, %v4118
      %v4135 = vpack.c.bf16 %v4121, %v4120
      %v4136 = vpack.c.bf16 %v4123, %v4122
      %v4137 = vpack.c.bf16 %v4125, %v4124
      %v4138 = vpack.c.bf16 %v4127, %v4126
      %v4139 = vpack.c.bf16 %v4129, %v4128
      %v4140 = vpack.c.bf16 %v4131, %v4130
      %v4141 = vpack.c.bf16 %v4133, %v4132
      %v4150 = vunpack.c.l.b16 %v4134
      %v4151 = vunpack.c.h.b16 %v4134
      %v4152 = vunpack.c.l.b16 %v4135
      %v4153 = vunpack.c.h.b16 %v4135
      %v4154 = vunpack.c.l.b16 %v4136
      %v4155 = vunpack.c.h.b16 %v4136
      %v4156 = vunpack.c.l.b16 %v4137
      %v4157 = vunpack.c.h.b16 %v4137
      %v4158 = vunpack.c.l.b16 %v4138
      %v4159 = vunpack.c.h.b16 %v4138
      %v4160 = vunpack.c.l.b16 %v4139
      %v4161 = vunpack.c.h.b16 %v4139
      %v4162 = vunpack.c.l.b16 %v4140
      %v4163 = vunpack.c.h.b16 %v4140
      %v4164 = vunpack.c.l.b16 %v4141
      %v4165 = vunpack.c.h.b16 %v4141
      %v4166 = vpack.c.b16 %v4150, %v4150
      %v4167 = vpack.c.b16 %v4151, %v4151
      %v4168 = vpack.c.b16 %v4152, %v4152
      %v4169 = vpack.c.b16 %v4153, %v4153
      %v4170 = vpack.c.b16 %v4154, %v4154
      %v4171 = vpack.c.b16 %v4155, %v4155
      %v4172 = vpack.c.b16 %v4156, %v4156
      %v4173 = vpack.c.b16 %v4157, %v4157
      %v4174 = vpack.c.b16 %v4158, %v4158
      %v4175 = vpack.c.b16 %v4159, %v4159
      %v4176 = vpack.c.b16 %v4160, %v4160
      %v4177 = vpack.c.b16 %v4161, %v4161
      %v4178 = vpack.c.b16 %v4162, %v4162
      %v4179 = vpack.c.b16 %v4163, %v4163
      %v4180 = vpack.c.b16 %v4164, %v4164
      %v4181 = vpack.c.b16 %v4165, %v4165
      %vm4198 = vcmask 519168
      %4199 = vst.msk [vmem:[%s422] sm:$0xf] %vm4198, %v4166
      %4200 = vst.msk [vmem:[%s422 + $0x4] sm:$0xf] %vm4198, %v4167
      %4201 = vst.msk [vmem:[%s422 + $0x8] sm:$0xf] %vm4198, %v4168
      %4202 = vst.msk [vmem:[%s422 + $0xc] sm:$0xf] %vm4198, %v4169
      %4203 = vst.msk [vmem:[%s422 + $0x10] sm:$0xf] %vm4198, %v4170
      %4204 = vst.msk [vmem:[%s422 + $0x14] sm:$0xf] %vm4198, %v4171
      %4205 = vst.msk [vmem:[%s422 + $0x18] sm:$0xf] %vm4198, %v4172
      %4206 = vst.msk [vmem:[%s422 + $0x1c] sm:$0xf] %vm4198, %v4173
      %4207 = vst.msk [vmem:[%s422 + $0x20] sm:$0xf] %vm4198, %v4174
      %4208 = vst.msk [vmem:[%s422 + $0x24] sm:$0xf] %vm4198, %v4175
      %4209 = vst.msk [vmem:[%s422 + $0x28] sm:$0xf] %vm4198, %v4176
      %4210 = vst.msk [vmem:[%s422 + $0x2c] sm:$0xf] %vm4198, %v4177
      %4211 = vst.msk [vmem:[%s422 + $0x30] sm:$0xf] %vm4198, %v4178
      %4212 = vst.msk [vmem:[%s422 + $0x34] sm:$0xf] %vm4198, %v4179
      %4213 = vst.msk [vmem:[%s422 + $0x38] sm:$0xf] %vm4198, %v4180
      %4214 = vst.msk [vmem:[%s422 + $0x3c] sm:$0xf] %vm4198, %v4181
      %s4215 = smul.u32 8, %s24
      %p4216 = scmp.lt.s32.totalorder %s23, 1
      %s4217 = scalar_select %p4216, %s23, 1
      %p4218 = scmp.lt.s32.totalorder %s4215, 15
      %s4219 = scalar_select %p4218, %s4215, 15
      %p4220 = scmp.lt.s32.totalorder %s25, 0
      %s4221 = scalar_select %p4220, %s25, 0
      %s4222 = smul.addr %s4219, 2
      %s4223 = sadd.s32 %s4221, %s4222
      %s4224 = smul.addr %s4217, 32
      %s4225 = sadd.s32 %s4223, %s4224
      %s4226 = smul.addr %s4225, 4
      %s4227 = scalar_lea.vmem %s7, %s4226
      // Predicated region
      $region49: #{unetup3_forward.4} parent=47 // pred_check
        %p4228 = pneg %p241
      $region50: #{unetup3_forward.4} parent=47 // pred_check_branch
        %4230 = sbr.rel (%p4228) target = $region52
      $region51: #{unetup3_forward.4} parent=47 // pred_region
        %s4231 = smul.u32 8, %s24
      $region52: #{unetup3_forward.4} parent=47 // pred_fallthru
        _
    $region48: #{unetup3_forward.4} parent=5 // pred_fallthru
      _
    %p4232 = scmp.le.s32.totalorder 2, %s13
    // Predicated region
    $region53: #{unetup3_forward.4} parent=5 // pred_check
      %p4233 = pneg %p4232
    $region54: #{unetup3_forward.4} parent=5 // pred_check_branch
      %4235 = sbr.rel (%p4233) target = $region56
    $region55: #{unetup3_forward.4} parent=5 // pred_region
      %s4236 = ssub.s32 %s13, 2
      // Predicated region
      $region57: #{unetup3_forward.4} parent=55 // pred_check
        %p4237 = pneg %p247
      $region58: #{unetup3_forward.4} parent=55 // pred_check_branch
        %4239 = sbr.rel (%p4237) target = $region60
      $region59: #{unetup3_forward.4} parent=55 // pred_region
        %s4240 = smul.u32 8, %s27
        %p4241 = scmp.lt.s32.totalorder %s26, 1
        %s4242 = scalar_select %p4241, %s26, 1
        %p4243 = scmp.lt.s32.totalorder %s4240, 15
        %s4244 = scalar_select %p4243, %s4240, 15
        %p4245 = scmp.lt.s32.totalorder %s28, 0
        %s4246 = scalar_select %p4245, %s28, 0
        %s4247 = smul.addr %s4244, 2
        %s4248 = sadd.s32 %s4246, %s4247
        %s4249 = smul.addr %s4242, 32
        %s4250 = sadd.s32 %s4248, %s4249
        %s4251 = smul.addr %s4250, 4
        %s4252 = scalar_lea.vmem %s7, %s4251
      $region60: #{unetup3_forward.4} parent=55 // pred_fallthru
        _
    $region56: #{unetup3_forward.4} parent=5 // pred_fallthru
      _
  $region6: #{unetup3_forward.4} parent=0 // loop_footer
    %s17 = sadd.s32 1, %s13
  $region7: #{unetup3_forward.4} parent=0 // loop_footer_branch
    %12 = sbr.rel target = $region3
  $region8: #{unetup3_forward.4} parent=0 // loop_exit
    _

</llo_original>
